<compile_context>
chip_gen: v5e
topology: v5e:2x2
jax: 0.10.0
libtpu: 0.0.40
codegen_flags: <defaults>
</compile_context>

<pallas_src>
import numpy as np
import jax
import jax.numpy as jnp
from jax import lax
from jax.experimental import pallas as pl
from jax.experimental.pallas import tpu as pltpu

GN_EPS = 1e-5


# -----------------------------------------------------------------------------
# Fused per-sample kernel: conv1..conv10 + pools + GAP + output + log_softmax.
# -----------------------------------------------------------------------------
def _fused_kernel(x_ref, m1_ref, m2_ref, m3_ref, s1_ref, s2_ref,
                  mem24_ref, mem48_ref, g24_ref, b24_ref, g48_ref, b48_ref,
                  w1_ref, w2_ref, w3_ref, w4_ref, w5_ref, w6_ref, w7_ref,
                  w8_ref, w9_ref, w10_ref, wout_ref, o_ref):
    # ---- constants hoisted once per sample (grid step) ----------------------
    m1 = m1_ref[...]        # (9, 1024)  f32 0/1 border masks, 32x32 stage
    m2 = m2_ref[...]        # (9, 256)   16x16 stage
    m3 = m3_ref[...]        # (10, 128)  8x8 stage; row 9 = valid-lane mask
    mem24 = mem24_ref[...]  # (24, 24)   group membership for GroupNorm(4, 24)
    mem48 = mem48_ref[...]  # (48, 48)   group membership for GroupNorm(8, 48)

    def conv3x3(a, w_ref, masks, width):
        """3x3 'same' conv (bias-free) as ONE MXU matmul.

        a:      (Cin, P) f32, flat index p = h*width + w (padded lanes are 0)
        w_ref:  (Cout, 9*Cin) bf16, column index = (ky*3+kx)*Cin + ci
        masks:  (>=9, P) f32 0/1 border masks, applied in f32 before the cast.
        """
        _, p = a.shape
        taps = []
        for t in range(9):
            dy, dx = t // 3 - 1, t % 3 - 1
            delta = dy * width + dx
            sh = a if delta == 0 else pltpu.roll(a, shift=(-delta) % p, axis=1)
            if t != 4:                      # centre tap needs no border mask
                sh = sh * masks[t:t + 1, :]
            taps.append(sh)
        # all chunks have Cin in {8,16,24,48} rows (multiples of 8) -> aligned
        tile = jnp.concatenate(taps, axis=0).astype(jnp.bfloat16)   # (9*Cin, P)
        return jnp.dot(w_ref[...], tile, preferred_element_type=jnp.float32)

    def relu_gn(y, member, gamma, beta, n_valid, active=None):
        """ReLU -> GroupNorm (every group has C/G = 6 channels) + affine.

        Lane-first stats: 128-wide partial sums, tiny membership matmul for the
        group combine, final 128-lane reduce (one-pass E[x^2]-E[x]^2 variance).
        """
        y = jnp.maximum(y, 0.0)
        p = y.shape[1]
        s = None
        q = None
        for i in range(0, p, 128):          # 128-lane chunks (aligned slices)
            c = y[:, i:i + 128]
            s = c if s is None else s + c
            q = c * c if q is None else q + c * c
        gs = jnp.sum(jnp.dot(member, s, preferred_element_type=jnp.float32),
                     axis=1, keepdims=True)                       # (C, 1)
        gq = jnp.sum(jnp.dot(member, q, preferred_element_type=jnp.float32),
                     axis=1, keepdims=True)
        inv_n = 1.0 / float(6 * n_valid)                          # 6*HW per group
        mean = gs * inv_n
        var = gq * inv_n - mean * mean
        scale = lax.rsqrt(var + GN_EPS) * gamma
        out = (y - mean) * scale + beta
        if active is not None:
            out = out * active              # keep padded lanes exactly zero
        return out

    def pool2x2(y, width, sel_ref):
        """MaxPool(2,2): anchor max via two lane rolls, then a 0/1 selection
        matmul keeping only the even-(h, w) anchors (in-kernel decimation)."""
        p = y.shape[1]
        m = jnp.maximum(y, pltpu.roll(y, shift=p - 1, axis=1))      # x[p+1]
        m = jnp.maximum(m, pltpu.roll(m, shift=p - width, axis=1))  # x[p+W]
        return jnp.dot(m.astype(jnp.bfloat16), sel_ref[...],
                       preferred_element_type=jnp.float32)

    # --------------------------- stage 1 : 32 x 32 ---------------------------
    x = x_ref[0]                                                    # (8, 1024) f32
    a = relu_gn(conv3x3(x, w1_ref, m1, 32), mem24, g24_ref[0], b24_ref[0], 1024)
    a = relu_gn(conv3x3(a, w2_ref, m1, 32), mem48, g48_ref[0], b48_ref[0], 1024)
    y = jnp.dot(w3_ref[...], a.astype(jnp.bfloat16),
                preferred_element_type=jnp.float32)                 # 1x1 -> (16, 1024)
    a = pool2x2(y, 32, s1_ref)                                      # (16, 256)

    # --------------------------- stage 2 : 16 x 16 ---------------------------
    a = relu_gn(conv3x3(a, w4_ref, m2, 16), mem24, g24_ref[1], b24_ref[1], 256)
    a = relu_gn(conv3x3(a, w5_ref, m2, 16), mem24, g24_ref[2], b24_ref[2], 256)
    a = relu_gn(conv3x3(a, w6_ref, m2, 16), mem48, g48_ref[1], b48_ref[1], 256)
    y = jnp.dot(w7_ref[...], a.astype(jnp.bfloat16),
                preferred_element_type=jnp.float32)                 # 1x1 -> (16, 256)
    a = pool2x2(y, 16, s2_ref)                                      # (16, 128), lanes>=64 zero

    # ------------- stage 3 : 8 x 8 (64 valid positions in 128 lanes) ---------
    act = m3[9:10, :]                                               # (1, 128) valid-lane mask
    a = relu_gn(conv3x3(a, w8_ref, m3, 8), mem24, g24_ref[3], b24_ref[3], 64, act)
    a = relu_gn(conv3x3(a, w9_ref, m3, 8), mem24, g24_ref[4], b24_ref[4], 64, act)
    a = relu_gn(conv3x3(a, w10_ref, m3, 8), mem48, g48_ref[2], b48_ref[2], 64, act)

    # ------------- GAP(8x8) + output 1x1 conv + log_softmax ------------------
    # (1x1 conv commutes with the spatial mean; padded lanes are exactly zero)
    logits_full = jnp.dot(wout_ref[...], a, preferred_element_type=jnp.float32)
    logits = jnp.sum(logits_full, axis=1, keepdims=True) * (1.0 / 64.0)  # (10, 1)
    z = logits - jnp.max(logits, axis=0, keepdims=True)
    o_ref[0] = z - jnp.log(jnp.sum(jnp.exp(z), axis=0, keepdims=True))


# -----------------------------------------------------------------------------
# Host-side constants & parameters
# -----------------------------------------------------------------------------
def _tap_masks(h, w, p_store, p_valid, add_valid_row=False):
    pos = np.arange(p_store)
    hh, ww = pos // w, pos % w
    rows = []
    for ky in range(3):
        for kx in range(3):
            dy, dx = ky - 1, kx - 1
            ok = ((hh + dy >= 0) & (hh + dy < h) & (ww + dx >= 0) & (ww + dx < w)
                  & (pos < p_valid))
            rows.append(ok)
    if add_valid_row:
        rows.append(pos < p_valid)
    return jnp.asarray(np.stack(rows).astype(np.float32))


def _pool_select(h, w, out_store):
    """0/1 matrix selecting the even-(h, w) anchors of a flattened h*w map."""
    ho, wo = h // 2, w // 2
    sel = np.zeros((h * w, out_store), np.float32)
    for a in range(ho):
        for b in range(wo):
            sel[(2 * a) * w + (2 * b), a * wo + b] = 1.0
    return jnp.asarray(sel).astype(jnp.bfloat16)


def _group_member(c, groups):
    gid = np.arange(c) // (c // groups)
    return jnp.asarray((gid[:, None] == gid[None, :]).astype(np.float32))


def _conv3x3_w(key, cin, cout, cin_pad=None):
    """Conv2d(cin, cout, 3, padding=1, bias=False) packed as (Cout, 9*Cin_pad)
    with column index (ky*3 + kx)*Cin_pad + ci  (cross-correlation, PyTorch)."""
    cin_pad = cin if cin_pad is None else cin_pad
    fan_in = cin * 9
    w = jax.random.normal(key, (cout, cin, 3, 3), jnp.float32) * (2.0 / fan_in) ** 0.5
    if cin_pad > cin:
        w = jnp.pad(w, ((0, 0), (0, cin_pad - cin), (0, 0), (0, 0)))
    w = jnp.transpose(w, (0, 2, 3, 1)).reshape(cout, 9 * cin_pad)
    return w.astype(jnp.bfloat16)


def _conv1x1_w(key, cin, cout, cout_pad=None):
    cout_pad = cout if cout_pad is None else cout_pad
    w = jax.random.normal(key, (cout, cin), jnp.float32) * (2.0 / cin) ** 0.5
    if cout_pad > cout:
        w = jnp.pad(w, ((0, cout_pad - cout), (0, 0)))      # zero output channels
    return w.astype(jnp.bfloat16)


def _gn_pack(key, n, c):
    kg, kb = jax.random.split(key)
    g = 1.0 + 0.1 * jax.random.normal(kg, (n, c, 1), jnp.float32)
    b = 0.1 * jax.random.normal(kb, (n, c, 1), jnp.float32)
    return g, b


def init_params(key):
    ks = jax.random.split(key, 13)
    p = {}
    p["w1"] = _conv3x3_w(ks[0], 3, 24, cin_pad=8)
    p["w2"] = _conv3x3_w(ks[1], 24, 48)
    p["w3"] = _conv1x1_w(ks[2], 48, 12, cout_pad=16)
    p["w4"] = _conv3x3_w(ks[3], 12, 24, cin_pad=16)
    p["w5"] = _conv3x3_w(ks[4], 24, 24)
    p["w6"] = _conv3x3_w(ks[5], 24, 48)
    p["w7"] = _conv1x1_w(ks[6], 48, 12, cout_pad=16)
    p["w8"] = _conv3x3_w(ks[7], 12, 24, cin_pad=16)
    p["w9"] = _conv3x3_w(ks[8], 24, 24)
    p["w10"] = _conv3x3_w(ks[9], 24, 48)
    p["wout"] = jax.random.normal(ks[10], (10, 48), jnp.float32) * (2.0 / 48.0) ** 0.5
    # GroupNorm affines packed by channel count:
    #   24-ch GNs: convblock 1, 4, 5, 8, 9   /   48-ch GNs: convblock 2, 6, 10
    p["g24"], p["b24"] = _gn_pack(ks[11], 5, 24)
    p["g48"], p["b48"] = _gn_pack(ks[12], 3, 48)
    # host-precomputed kernel constants
    p["m1"] = _tap_masks(32, 32, 1024, 1024)
    p["m2"] = _tap_masks(16, 16, 256, 256)
    p["m3"] = _tap_masks(8, 8, 128, 64, add_valid_row=True)
    p["s1"] = _pool_select(32, 32, 256)
    p["s2"] = _pool_select(16, 16, 128)
    p["mem24"] = _group_member(24, 4)
    p["mem48"] = _group_member(48, 8)
    return p


# -----------------------------------------------------------------------------
# pallas_call wrapper
# -----------------------------------------------------------------------------
def _cspec(shape):
    zeros = (0,) * len(shape)

    def idx(b):
        return zeros

    return pl.BlockSpec(shape, idx)


@jax.jit
def group_norm_net_forward(x_nchw, params):
    """x_nchw: (B, 3, 32, 32) float32 -> (B, 10) float32 log-probabilities."""
    B = x_nchw.shape[0]
    p = params
    # NCHW -> channels-first / spatially-flattened; pad Cin 3 -> 8 (zero channels)
    x = x_nchw.reshape(B, 3, 32 * 32).astype(jnp.float32)
    x = jnp.pad(x, ((0, 0), (0, 5), (0, 0)))

    out = pl.pallas_call(
        _fused_kernel,
        out_shape=jax.ShapeDtypeStruct((B, 10, 1), jnp.float32),
        grid=(B,),
        in_specs=[
            pl.BlockSpec((1, 8, 1024), lambda b: (b, 0, 0)),   # x
            _cspec((9, 1024)),                                 # m1
            _cspec((9, 256)),                                  # m2
            _cspec((10, 128)),                                 # m3
            _cspec((1024, 256)),                               # s1
            _cspec((256, 128)),                                # s2
            _cspec((24, 24)),                                  # mem24
            _cspec((48, 48)),                                  # mem48
            _cspec((5, 24, 1)),                                # g24
            _cspec((5, 24, 1)),                                # b24
            _cspec((3, 48, 1)),                                # g48
            _cspec((3, 48, 1)),                                # b48
            _cspec((24, 72)),                                  # w1
            _cspec((48, 216)),                                 # w2
            _cspec((16, 48)),                                  # w3
            _cspec((24, 144)),                                 # w4
            _cspec((24, 216)),                                 # w5
            _cspec((48, 216)),                                 # w6
            _cspec((16, 48)),                                  # w7
            _cspec((24, 144)),                                 # w8
            _cspec((24, 216)),                                 # w9
            _cspec((48, 216)),                                 # w10
            _cspec((10, 48)),                                  # wout
        ],
        out_specs=pl.BlockSpec((1, 10, 1), lambda b: (b, 0, 0)),
        # Batch axis is "parallel" so v7x's two TensorCores split the samples.
        # (If B == 1 on v7x one core idles; split spatial work if that matters.)
        compiler_params=pltpu.CompilerParams(dimension_semantics=("parallel",)),
    )(x, p["m1"], p["m2"], p["m3"], p["s1"], p["s2"], p["mem24"], p["mem48"],
      p["g24"], p["b24"], p["g48"], p["b48"],
      p["w1"], p["w2"], p["w3"], p["w4"], p["w5"], p["w6"], p["w7"],
      p["w8"], p["w9"], p["w10"], p["wout"])
    return out.reshape(B, 10)


# -----------------------------------------------------------------------------
# Pure-JAX f32 reference (same packed params) for a correctness cross-check
# -----------------------------------------------------------------------------
def _reference_forward(x_nchw, p):
    f32 = jnp.float32
    hi = lax.Precision.HIGHEST

    def conv3x3(x, w_cat, cin_pad):
        cout = w_cat.shape[0]
        w = w_cat.astype(f32).reshape(cout, 3, 3, cin_pad)   # (co, ky, kx, ci)
        w = jnp.transpose(w, (0, 3, 1, 2))                   # OIHW
        if x.shape[1] < cin_pad:
            x = jnp.pad(x, ((0, 0), (0, cin_pad - x.shape[1]), (0, 0), (0, 0)))
        return lax.conv_general_dilated(
            x, w, window_strides=(1, 1), padding="SAME",
            dimension_numbers=("NCHW", "OIHW", "NCHW"), precision=hi)

    def conv1x1(x, w):
        return jnp.einsum("oc,bchw->bohw", w.astype(f32), x, precision=hi)

    def relu_gn(x, groups, gamma, beta):
        x = jnp.maximum(x, 0.0)
        b, c, h, w = x.shape
        xg = x.reshape(b, groups, c // groups, h, w)
        mean = jnp.mean(xg, axis=(2, 3, 4), keepdims=True)
        var = jnp.mean(jnp.square(xg - mean), axis=(2, 3, 4), keepdims=True)
        x = ((xg - mean) * lax.rsqrt(var + GN_EPS)).reshape(b, c, h, w)
        return x * gamma.reshape(1, c, 1, 1) + beta.reshape(1, c, 1, 1)

    def maxpool2(x):
        return lax.reduce_window(x, -jnp.inf, lax.max,
                                 (1, 1, 2, 2), (1, 1, 2, 2), "VALID")

    g24, b24 = p["g24"].astype(f32), p["b24"].astype(f32)
    g48, b48 = p["g48"].astype(f32), p["b48"].astype(f32)

    x = x_nchw.astype(f32)
    x = relu_gn(conv3x3(x, p["w1"], 8), 4, g24[0], b24[0])
    x = relu_gn(conv3x3(x, p["w2"], 24), 8, g48[0], b48[0])
    x = maxpool2(conv1x1(x, p["w3"]))
    x = relu_gn(conv3x3(x, p["w4"], 16), 4, g24[1], b24[1])
    x = relu_gn(conv3x3(x, p["w5"], 24), 4, g24[2], b24[2])
    x = relu_gn(conv3x3(x, p["w6"], 24), 8, g48[1], b48[1])
    x = maxpool2(conv1x1(x, p["w7"]))
    x = relu_gn(conv3x3(x, p["w8"], 16), 4, g24[3], b24[3])
    x = relu_gn(conv3x3(x, p["w9"], 24), 4, g24[4], b24[4])
    x = relu_gn(conv3x3(x, p["w10"], 24), 8, g48[2], b48[2])
    gap = jnp.mean(x, axis=(2, 3))                               # (B, 48)
    logits = jnp.dot(gap, p["wout"].astype(f32).T, precision=hi)
    return jax.nn.log_softmax(logits, axis=-1)


# -----------------------------------------------------------------------------
if __name__ == "__main__":
    key = jax.random.PRNGKey(0)
    k_params, k_input = jax.random.split(key)
    params = init_params(k_params)
    x = jax.random.normal(k_input, (2, 3, 32, 32), jnp.float32)

    out = jax.block_until_ready(group_norm_net_forward(x, params))

    assert out.shape == (2, 10)
    assert bool(jnp.all(jnp.isfinite(out)))
    # rows of log_softmax must exponentiate-sum to 1
    assert bool(jnp.allclose(jnp.sum(jnp.exp(out), axis=-1), 1.0, atol=1e-3))
    # cross-check against the pure-JAX f32 reference (bf16 MXU operands -> loose tol)
    ref = jax.block_until_ready(_reference_forward(x, params))
    assert float(jnp.max(jnp.abs(out - ref))) < 0.15

    print("KERNEL_OK")
</pallas_src>

<mosaic_0001>
module attributes {stable_mosaic.version = 11 : i64} {
  func.func @_fused_kernel(%arg0: i32, %arg1: memref<1x8x1024xf32, #tpu.memory_space<vmem>>, %arg2: memref<9x1024xf32, #tpu.memory_space<vmem>>, %arg3: memref<9x256xf32, #tpu.memory_space<vmem>>, %arg4: memref<10x128xf32, #tpu.memory_space<vmem>>, %arg5: memref<1024x256xbf16, #tpu.memory_space<vmem>>, %arg6: memref<256x128xbf16, #tpu.memory_space<vmem>>, %arg7: memref<24x24xf32, #tpu.memory_space<vmem>>, %arg8: memref<48x48xf32, #tpu.memory_space<vmem>>, %arg9: memref<5x24x1xf32, #tpu.memory_space<vmem>>, %arg10: memref<5x24x1xf32, #tpu.memory_space<vmem>>, %arg11: memref<3x48x1xf32, #tpu.memory_space<vmem>>, %arg12: memref<3x48x1xf32, #tpu.memory_space<vmem>>, %arg13: memref<24x72xbf16, #tpu.memory_space<vmem>>, %arg14: memref<48x216xbf16, #tpu.memory_space<vmem>>, %arg15: memref<16x48xbf16, #tpu.memory_space<vmem>>, %arg16: memref<24x144xbf16, #tpu.memory_space<vmem>>, %arg17: memref<24x216xbf16, #tpu.memory_space<vmem>>, %arg18: memref<48x216xbf16, #tpu.memory_space<vmem>>, %arg19: memref<16x48xbf16, #tpu.memory_space<vmem>>, %arg20: memref<24x144xbf16, #tpu.memory_space<vmem>>, %arg21: memref<24x216xbf16, #tpu.memory_space<vmem>>, %arg22: memref<48x216xbf16, #tpu.memory_space<vmem>>, %arg23: memref<10x48xf32, #tpu.memory_space<vmem>>, %arg24: memref<1x10x1xf32, #tpu.memory_space<vmem>>) attributes {dimension_semantics = [#tpu.dimension_semantics<parallel>], iteration_bounds = array<i64: 2>, scalar_prefetch = 0 : i64, scratch_operands = 0 : i64, tpu.core_type = #tpu.core_type<tc>, window_params = [{transform_indices = @transform_0, window_bounds = array<i64: 1, 8, 1024>}, {pipeline_mode = #tpu.pipeline_mode<synchronous>, transform_indices = @transform_1, window_bounds = array<i64: 9, 1024>}, {pipeline_mode = #tpu.pipeline_mode<synchronous>, transform_indices = @transform_2, window_bounds = array<i64: 9, 256>}, {pipeline_mode = #tpu.pipeline_mode<synchronous>, transform_indices = @transform_3, window_bounds = array<i64: 10, 128>}, {pipeline_mode = #tpu.pipeline_mode<synchronous>, transform_indices = @transform_4, window_bounds = array<i64: 1024, 256>}, {pipeline_mode = #tpu.pipeline_mode<synchronous>, transform_indices = @transform_5, window_bounds = array<i64: 256, 128>}, {pipeline_mode = #tpu.pipeline_mode<synchronous>, transform_indices = @transform_6, window_bounds = array<i64: 24, 24>}, {pipeline_mode = #tpu.pipeline_mode<synchronous>, transform_indices = @transform_7, window_bounds = array<i64: 48, 48>}, {pipeline_mode = #tpu.pipeline_mode<synchronous>, transform_indices = @transform_8, window_bounds = array<i64: 5, 24, 1>}, {pipeline_mode = #tpu.pipeline_mode<synchronous>, transform_indices = @transform_9, window_bounds = array<i64: 5, 24, 1>}, {pipeline_mode = #tpu.pipeline_mode<synchronous>, transform_indices = @transform_10, window_bounds = array<i64: 3, 48, 1>}, {pipeline_mode = #tpu.pipeline_mode<synchronous>, transform_indices = @transform_11, window_bounds = array<i64: 3, 48, 1>}, {pipeline_mode = #tpu.pipeline_mode<synchronous>, transform_indices = @transform_12, window_bounds = array<i64: 24, 72>}, {pipeline_mode = #tpu.pipeline_mode<synchronous>, transform_indices = @transform_13, window_bounds = array<i64: 48, 216>}, {pipeline_mode = #tpu.pipeline_mode<synchronous>, transform_indices = @transform_14, window_bounds = array<i64: 16, 48>}, {pipeline_mode = #tpu.pipeline_mode<synchronous>, transform_indices = @transform_15, window_bounds = array<i64: 24, 144>}, {pipeline_mode = #tpu.pipeline_mode<synchronous>, transform_indices = @transform_16, window_bounds = array<i64: 24, 216>}, {pipeline_mode = #tpu.pipeline_mode<synchronous>, transform_indices = @transform_17, window_bounds = array<i64: 48, 216>}, {pipeline_mode = #tpu.pipeline_mode<synchronous>, transform_indices = @transform_18, window_bounds = array<i64: 16, 48>}, {pipeline_mode = #tpu.pipeline_mode<synchronous>, transform_indices = @transform_19, window_bounds = array<i64: 24, 144>}, {pipeline_mode = #tpu.pipeline_mode<synchronous>, transform_indices = @transform_20, window_bounds = array<i64: 24, 216>}, {pipeline_mode = #tpu.pipeline_mode<synchronous>, transform_indices = @transform_21, window_bounds = array<i64: 48, 216>}, {pipeline_mode = #tpu.pipeline_mode<synchronous>, transform_indices = @transform_22, window_bounds = array<i64: 10, 48>}, {transform_indices = @transform_23, window_bounds = array<i64: 1, 10, 1>}]} {
    %c0 = arith.constant 0 : index
    %c0_0 = arith.constant 0 : index
    %0 = vector.load %arg2[%c0, %c0_0] : memref<9x1024xf32, #tpu.memory_space<vmem>>, vector<9x1024xf32>
    %c0_1 = arith.constant 0 : index
    %c0_2 = arith.constant 0 : index
    %1 = vector.load %arg3[%c0_1, %c0_2] : memref<9x256xf32, #tpu.memory_space<vmem>>, vector<9x256xf32>
    %c0_3 = arith.constant 0 : index
    %c0_4 = arith.constant 0 : index
    %2 = vector.load %arg4[%c0_3, %c0_4] : memref<10x128xf32, #tpu.memory_space<vmem>>, vector<10x128xf32>
    %c0_5 = arith.constant 0 : index
    %c0_6 = arith.constant 0 : index
    %3 = vector.load %arg7[%c0_5, %c0_6] : memref<24x24xf32, #tpu.memory_space<vmem>>, vector<24x24xf32>
    %c0_7 = arith.constant 0 : index
    %c0_8 = arith.constant 0 : index
    %4 = vector.load %arg8[%c0_7, %c0_8] : memref<48x48xf32, #tpu.memory_space<vmem>>, vector<48x48xf32>
    %c0_9 = arith.constant 0 : index
    %c0_10 = arith.constant 0 : index
    %c0_11 = arith.constant 0 : index
    %5 = vector.load %arg1[%c0_9, %c0_10, %c0_11] : memref<1x8x1024xf32, #tpu.memory_space<vmem>>, vector<1x8x1024xf32>
    %6 = vector.shape_cast %5 : vector<1x8x1024xf32> to vector<8x1024xf32>
    %c33_i32 = arith.constant 33 : i32
    %7 = tpu.dynamic_rotate %6 by %c33_i32 dim 1 : vector<8x1024xf32>, i32 -> vector<8x1024xf32>
    %8 = vector.extract_strided_slice %0 {offsets = [0, 0], sizes = [1, 1024], strides = [1, 1]} : vector<9x1024xf32> to vector<1x1024xf32>
    %9 = vector.broadcast %8 : vector<1x1024xf32> to vector<8x1024xf32>
    %10 = arith.mulf %7, %9 : vector<8x1024xf32>
    %c32_i32 = arith.constant 32 : i32
    %11 = tpu.dynamic_rotate %6 by %c32_i32 dim 1 : vector<8x1024xf32>, i32 -> vector<8x1024xf32>
    %12 = vector.extract_strided_slice %0 {offsets = [1, 0], sizes = [1, 1024], strides = [1, 1]} : vector<9x1024xf32> to vector<1x1024xf32>
    %13 = vector.broadcast %12 : vector<1x1024xf32> to vector<8x1024xf32>
    %14 = arith.mulf %11, %13 : vector<8x1024xf32>
    %c31_i32 = arith.constant 31 : i32
    %15 = tpu.dynamic_rotate %6 by %c31_i32 dim 1 : vector<8x1024xf32>, i32 -> vector<8x1024xf32>
    %16 = vector.extract_strided_slice %0 {offsets = [2, 0], sizes = [1, 1024], strides = [1, 1]} : vector<9x1024xf32> to vector<1x1024xf32>
    %17 = vector.broadcast %16 : vector<1x1024xf32> to vector<8x1024xf32>
    %18 = arith.mulf %15, %17 : vector<8x1024xf32>
    %c1_i32 = arith.constant 1 : i32
    %19 = tpu.dynamic_rotate %6 by %c1_i32 dim 1 : vector<8x1024xf32>, i32 -> vector<8x1024xf32>
    %20 = vector.extract_strided_slice %0 {offsets = [3, 0], sizes = [1, 1024], strides = [1, 1]} : vector<9x1024xf32> to vector<1x1024xf32>
    %21 = vector.broadcast %20 : vector<1x1024xf32> to vector<8x1024xf32>
    %22 = arith.mulf %19, %21 : vector<8x1024xf32>
    %c1023_i32 = arith.constant 1023 : i32
    %23 = tpu.dynamic_rotate %6 by %c1023_i32 dim 1 : vector<8x1024xf32>, i32 -> vector<8x1024xf32>
    %24 = vector.extract_strided_slice %0 {offsets = [5, 0], sizes = [1, 1024], strides = [1, 1]} : vector<9x1024xf32> to vector<1x1024xf32>
    %25 = vector.broadcast %24 : vector<1x1024xf32> to vector<8x1024xf32>
    %26 = arith.mulf %23, %25 : vector<8x1024xf32>
    %c993_i32 = arith.constant 993 : i32
    %27 = tpu.dynamic_rotate %6 by %c993_i32 dim 1 : vector<8x1024xf32>, i32 -> vector<8x1024xf32>
    %28 = vector.extract_strided_slice %0 {offsets = [6, 0], sizes = [1, 1024], strides = [1, 1]} : vector<9x1024xf32> to vector<1x1024xf32>
    %29 = vector.broadcast %28 : vector<1x1024xf32> to vector<8x1024xf32>
    %30 = arith.mulf %27, %29 : vector<8x1024xf32>
    %c992_i32 = arith.constant 992 : i32
    %31 = tpu.dynamic_rotate %6 by %c992_i32 dim 1 : vector<8x1024xf32>, i32 -> vector<8x1024xf32>
    %32 = vector.extract_strided_slice %0 {offsets = [7, 0], sizes = [1, 1024], strides = [1, 1]} : vector<9x1024xf32> to vector<1x1024xf32>
    %33 = vector.broadcast %32 : vector<1x1024xf32> to vector<8x1024xf32>
    %34 = arith.mulf %31, %33 : vector<8x1024xf32>
    %c991_i32 = arith.constant 991 : i32
    %35 = tpu.dynamic_rotate %6 by %c991_i32 dim 1 : vector<8x1024xf32>, i32 -> vector<8x1024xf32>
    %36 = vector.extract_strided_slice %0 {offsets = [8, 0], sizes = [1, 1024], strides = [1, 1]} : vector<9x1024xf32> to vector<1x1024xf32>
    %37 = vector.broadcast %36 : vector<1x1024xf32> to vector<8x1024xf32>
    %38 = arith.mulf %35, %37 : vector<8x1024xf32>
    %39 = tpu.concatenate %10, %14, %18, %22, %6, %26, %30, %34, %38 in 0 : vector<8x1024xf32>, vector<8x1024xf32>, vector<8x1024xf32>, vector<8x1024xf32>, vector<8x1024xf32>, vector<8x1024xf32>, vector<8x1024xf32>, vector<8x1024xf32>, vector<8x1024xf32> -> vector<72x1024xf32>
    %40 = arith.truncf %39 : vector<72x1024xf32> to vector<72x1024xbf16>
    %c0_12 = arith.constant 0 : index
    %c0_13 = arith.constant 0 : index
    %41 = vector.load %arg13[%c0_12, %c0_13] : memref<24x72xbf16, #tpu.memory_space<vmem>>, vector<24x72xbf16>
    %cst = arith.constant dense<0.000000e+00> : vector<24x1024xf32>
    %42 = tpu.matmul %41, %40, %cst {dimension_numbers = #tpu.dot_dimension_numbers<[1], [0], [0], [1], [0, 0, 1, 1], [], []>} : vector<24x72xbf16>, vector<72x1024xbf16>, vector<24x1024xf32> -> vector<24x1024xf32>
    %c0_14 = arith.constant 0 : index
    %c0_15 = arith.constant 0 : index
    %c0_16 = arith.constant 0 : index
    %43 = vector.load %arg9[%c0_14, %c0_15, %c0_16] : memref<5x24x1xf32, #tpu.memory_space<vmem>>, vector<1x24x1xf32>
    %44 = vector.shape_cast %43 : vector<1x24x1xf32> to vector<24x1xf32>
    %c0_17 = arith.constant 0 : index
    %c0_18 = arith.constant 0 : index
    %c0_19 = arith.constant 0 : index
    %45 = vector.load %arg10[%c0_17, %c0_18, %c0_19] : memref<5x24x1xf32, #tpu.memory_space<vmem>>, vector<1x24x1xf32>
    %46 = vector.shape_cast %45 : vector<1x24x1xf32> to vector<24x1xf32>
    %cst_20 = arith.constant 0.000000e+00 : f32
    %47 = vector.broadcast %cst_20 : f32 to vector<24x1024xf32>
    %48 = arith.maximumf %42, %47 : vector<24x1024xf32>
    %49 = vector.extract_strided_slice %48 {offsets = [0, 0], sizes = [24, 128], strides = [1, 1]} : vector<24x1024xf32> to vector<24x128xf32>
    %50 = arith.mulf %49, %49 : vector<24x128xf32>
    %51 = vector.extract_strided_slice %48 {offsets = [0, 128], sizes = [24, 128], strides = [1, 1]} : vector<24x1024xf32> to vector<24x128xf32>
    %52 = arith.addf %49, %51 : vector<24x128xf32>
    %53 = arith.mulf %51, %51 : vector<24x128xf32>
    %54 = arith.addf %50, %53 : vector<24x128xf32>
    %55 = vector.extract_strided_slice %48 {offsets = [0, 256], sizes = [24, 128], strides = [1, 1]} : vector<24x1024xf32> to vector<24x128xf32>
    %56 = arith.addf %52, %55 : vector<24x128xf32>
    %57 = arith.mulf %55, %55 : vector<24x128xf32>
    %58 = arith.addf %54, %57 : vector<24x128xf32>
    %59 = vector.extract_strided_slice %48 {offsets = [0, 384], sizes = [24, 128], strides = [1, 1]} : vector<24x1024xf32> to vector<24x128xf32>
    %60 = arith.addf %56, %59 : vector<24x128xf32>
    %61 = arith.mulf %59, %59 : vector<24x128xf32>
    %62 = arith.addf %58, %61 : vector<24x128xf32>
    %63 = vector.extract_strided_slice %48 {offsets = [0, 512], sizes = [24, 128], strides = [1, 1]} : vector<24x1024xf32> to vector<24x128xf32>
    %64 = arith.addf %60, %63 : vector<24x128xf32>
    %65 = arith.mulf %63, %63 : vector<24x128xf32>
    %66 = arith.addf %62, %65 : vector<24x128xf32>
    %67 = vector.extract_strided_slice %48 {offsets = [0, 640], sizes = [24, 128], strides = [1, 1]} : vector<24x1024xf32> to vector<24x128xf32>
    %68 = arith.addf %64, %67 : vector<24x128xf32>
    %69 = arith.mulf %67, %67 : vector<24x128xf32>
    %70 = arith.addf %66, %69 : vector<24x128xf32>
    %71 = vector.extract_strided_slice %48 {offsets = [0, 768], sizes = [24, 128], strides = [1, 1]} : vector<24x1024xf32> to vector<24x128xf32>
    %72 = arith.addf %68, %71 : vector<24x128xf32>
    %73 = arith.mulf %71, %71 : vector<24x128xf32>
    %74 = arith.addf %70, %73 : vector<24x128xf32>
    %75 = vector.extract_strided_slice %48 {offsets = [0, 896], sizes = [24, 128], strides = [1, 1]} : vector<24x1024xf32> to vector<24x128xf32>
    %76 = arith.addf %72, %75 : vector<24x128xf32>
    %77 = arith.mulf %75, %75 : vector<24x128xf32>
    %78 = arith.addf %74, %77 : vector<24x128xf32>
    %cst_21 = arith.constant dense<0.000000e+00> : vector<24x128xf32>
    %79 = tpu.matmul %3, %76, %cst_21 {dimension_numbers = #tpu.dot_dimension_numbers<[1], [0], [0], [1], [0, 0, 1, 1], [], []>} : vector<24x24xf32>, vector<24x128xf32>, vector<24x128xf32> -> vector<24x128xf32>
    %cst_22 = arith.constant dense<0.000000e+00> : vector<24xf32>
    %80 = vector.multi_reduction <add>, %79, %cst_22 [1] : vector<24x128xf32> to vector<24xf32>
    %81 = vector.shape_cast %80 : vector<24xf32> to vector<24x1xf32>
    %cst_23 = arith.constant dense<0.000000e+00> : vector<24x128xf32>
    %82 = tpu.matmul %3, %78, %cst_23 {dimension_numbers = #tpu.dot_dimension_numbers<[1], [0], [0], [1], [0, 0, 1, 1], [], []>} : vector<24x24xf32>, vector<24x128xf32>, vector<24x128xf32> -> vector<24x128xf32>
    %cst_24 = arith.constant dense<0.000000e+00> : vector<24xf32>
    %83 = vector.multi_reduction <add>, %82, %cst_24 [1] : vector<24x128xf32> to vector<24xf32>
    %84 = vector.shape_cast %83 : vector<24xf32> to vector<24x1xf32>
    %cst_25 = arith.constant 1.62760422E-4 : f32
    %85 = vector.broadcast %cst_25 : f32 to vector<24x1xf32>
    %86 = arith.mulf %81, %85 : vector<24x1xf32>
    %cst_26 = arith.constant 1.62760422E-4 : f32
    %87 = vector.broadcast %cst_26 : f32 to vector<24x1xf32>
    %88 = arith.mulf %84, %87 : vector<24x1xf32>
    %89 = arith.mulf %86, %86 : vector<24x1xf32>
    %90 = arith.subf %88, %89 : vector<24x1xf32>
    %cst_27 = arith.constant 9.99999974E-6 : f32
    %91 = vector.broadcast %cst_27 : f32 to vector<24x1xf32>
    %92 = arith.addf %90, %91 : vector<24x1xf32>
    %93 = math.rsqrt %92 : vector<24x1xf32>
    %94 = arith.mulf %93, %44 : vector<24x1xf32>
    %95 = vector.broadcast %86 : vector<24x1xf32> to vector<24x1024xf32>
    %96 = arith.subf %48, %95 : vector<24x1024xf32>
    %97 = vector.broadcast %94 : vector<24x1xf32> to vector<24x1024xf32>
    %98 = arith.mulf %96, %97 : vector<24x1024xf32>
    %99 = vector.broadcast %46 : vector<24x1xf32> to vector<24x1024xf32>
    %100 = arith.addf %98, %99 : vector<24x1024xf32>
    %c33_i32_28 = arith.constant 33 : i32
    %101 = tpu.dynamic_rotate %100 by %c33_i32_28 dim 1 : vector<24x1024xf32>, i32 -> vector<24x1024xf32>
    %102 = vector.extract_strided_slice %0 {offsets = [0, 0], sizes = [1, 1024], strides = [1, 1]} : vector<9x1024xf32> to vector<1x1024xf32>
    %103 = vector.broadcast %102 : vector<1x1024xf32> to vector<24x1024xf32>
    %104 = arith.mulf %101, %103 : vector<24x1024xf32>
    %c32_i32_29 = arith.constant 32 : i32
    %105 = tpu.dynamic_rotate %100 by %c32_i32_29 dim 1 : vector<24x1024xf32>, i32 -> vector<24x1024xf32>
    %106 = vector.extract_strided_slice %0 {offsets = [1, 0], sizes = [1, 1024], strides = [1, 1]} : vector<9x1024xf32> to vector<1x1024xf32>
    %107 = vector.broadcast %106 : vector<1x1024xf32> to vector<24x1024xf32>
    %108 = arith.mulf %105, %107 : vector<24x1024xf32>
    %c31_i32_30 = arith.constant 31 : i32
    %109 = tpu.dynamic_rotate %100 by %c31_i32_30 dim 1 : vector<24x1024xf32>, i32 -> vector<24x1024xf32>
    %110 = vector.extract_strided_slice %0 {offsets = [2, 0], sizes = [1, 1024], strides = [1, 1]} : vector<9x1024xf32> to vector<1x1024xf32>
    %111 = vector.broadcast %110 : vector<1x1024xf32> to vector<24x1024xf32>
    %112 = arith.mulf %109, %111 : vector<24x1024xf32>
    %c1_i32_31 = arith.constant 1 : i32
    %113 = tpu.dynamic_rotate %100 by %c1_i32_31 dim 1 : vector<24x1024xf32>, i32 -> vector<24x1024xf32>
    %114 = vector.extract_strided_slice %0 {offsets = [3, 0], sizes = [1, 1024], strides = [1, 1]} : vector<9x1024xf32> to vector<1x1024xf32>
    %115 = vector.broadcast %114 : vector<1x1024xf32> to vector<24x1024xf32>
    %116 = arith.mulf %113, %115 : vector<24x1024xf32>
    %c1023_i32_32 = arith.constant 1023 : i32
    %117 = tpu.dynamic_rotate %100 by %c1023_i32_32 dim 1 : vector<24x1024xf32>, i32 -> vector<24x1024xf32>
    %118 = vector.extract_strided_slice %0 {offsets = [5, 0], sizes = [1, 1024], strides = [1, 1]} : vector<9x1024xf32> to vector<1x1024xf32>
    %119 = vector.broadcast %118 : vector<1x1024xf32> to vector<24x1024xf32>
    %120 = arith.mulf %117, %119 : vector<24x1024xf32>
    %c993_i32_33 = arith.constant 993 : i32
    %121 = tpu.dynamic_rotate %100 by %c993_i32_33 dim 1 : vector<24x1024xf32>, i32 -> vector<24x1024xf32>
    %122 = vector.extract_strided_slice %0 {offsets = [6, 0], sizes = [1, 1024], strides = [1, 1]} : vector<9x1024xf32> to vector<1x1024xf32>
    %123 = vector.broadcast %122 : vector<1x1024xf32> to vector<24x1024xf32>
    %124 = arith.mulf %121, %123 : vector<24x1024xf32>
    %c992_i32_34 = arith.constant 992 : i32
    %125 = tpu.dynamic_rotate %100 by %c992_i32_34 dim 1 : vector<24x1024xf32>, i32 -> vector<24x1024xf32>
    %126 = vector.extract_strided_slice %0 {offsets = [7, 0], sizes = [1, 1024], strides = [1, 1]} : vector<9x1024xf32> to vector<1x1024xf32>
    %127 = vector.broadcast %126 : vector<1x1024xf32> to vector<24x1024xf32>
    %128 = arith.mulf %125, %127 : vector<24x1024xf32>
    %c991_i32_35 = arith.constant 991 : i32
    %129 = tpu.dynamic_rotate %100 by %c991_i32_35 dim 1 : vector<24x1024xf32>, i32 -> vector<24x1024xf32>
    %130 = vector.extract_strided_slice %0 {offsets = [8, 0], sizes = [1, 1024], strides = [1, 1]} : vector<9x1024xf32> to vector<1x1024xf32>
    %131 = vector.broadcast %130 : vector<1x1024xf32> to vector<24x1024xf32>
    %132 = arith.mulf %129, %131 : vector<24x1024xf32>
    %133 = tpu.concatenate %104, %108, %112, %116, %100, %120, %124, %128, %132 in 0 : vector<24x1024xf32>, vector<24x1024xf32>, vector<24x1024xf32>, vector<24x1024xf32>, vector<24x1024xf32>, vector<24x1024xf32>, vector<24x1024xf32>, vector<24x1024xf32>, vector<24x1024xf32> -> vector<216x1024xf32>
    %134 = arith.truncf %133 : vector<216x1024xf32> to vector<216x1024xbf16>
    %c0_36 = arith.constant 0 : index
    %c0_37 = arith.constant 0 : index
    %135 = vector.load %arg14[%c0_36, %c0_37] : memref<48x216xbf16, #tpu.memory_space<vmem>>, vector<48x216xbf16>
    %cst_38 = arith.constant dense<0.000000e+00> : vector<48x1024xf32>
    %136 = tpu.matmul %135, %134, %cst_38 {dimension_numbers = #tpu.dot_dimension_numbers<[1], [0], [0], [1], [0, 0, 1, 1], [], []>} : vector<48x216xbf16>, vector<216x1024xbf16>, vector<48x1024xf32> -> vector<48x1024xf32>
    %c0_39 = arith.constant 0 : index
    %c0_40 = arith.constant 0 : index
    %c0_41 = arith.constant 0 : index
    %137 = vector.load %arg11[%c0_39, %c0_40, %c0_41] : memref<3x48x1xf32, #tpu.memory_space<vmem>>, vector<1x48x1xf32>
    %138 = vector.shape_cast %137 : vector<1x48x1xf32> to vector<48x1xf32>
    %c0_42 = arith.constant 0 : index
    %c0_43 = arith.constant 0 : index
    %c0_44 = arith.constant 0 : index
    %139 = vector.load %arg12[%c0_42, %c0_43, %c0_44] : memref<3x48x1xf32, #tpu.memory_space<vmem>>, vector<1x48x1xf32>
    %140 = vector.shape_cast %139 : vector<1x48x1xf32> to vector<48x1xf32>
    %cst_45 = arith.constant 0.000000e+00 : f32
    %141 = vector.broadcast %cst_45 : f32 to vector<48x1024xf32>
    %142 = arith.maximumf %136, %141 : vector<48x1024xf32>
    %143 = vector.extract_strided_slice %142 {offsets = [0, 0], sizes = [48, 128], strides = [1, 1]} : vector<48x1024xf32> to vector<48x128xf32>
    %144 = arith.mulf %143, %143 : vector<48x128xf32>
    %145 = vector.extract_strided_slice %142 {offsets = [0, 128], sizes = [48, 128], strides = [1, 1]} : vector<48x1024xf32> to vector<48x128xf32>
    %146 = arith.addf %143, %145 : vector<48x128xf32>
    %147 = arith.mulf %145, %145 : vector<48x128xf32>
    %148 = arith.addf %144, %147 : vector<48x128xf32>
    %149 = vector.extract_strided_slice %142 {offsets = [0, 256], sizes = [48, 128], strides = [1, 1]} : vector<48x1024xf32> to vector<48x128xf32>
    %150 = arith.addf %146, %149 : vector<48x128xf32>
    %151 = arith.mulf %149, %149 : vector<48x128xf32>
    %152 = arith.addf %148, %151 : vector<48x128xf32>
    %153 = vector.extract_strided_slice %142 {offsets = [0, 384], sizes = [48, 128], strides = [1, 1]} : vector<48x1024xf32> to vector<48x128xf32>
    %154 = arith.addf %150, %153 : vector<48x128xf32>
    %155 = arith.mulf %153, %153 : vector<48x128xf32>
    %156 = arith.addf %152, %155 : vector<48x128xf32>
    %157 = vector.extract_strided_slice %142 {offsets = [0, 512], sizes = [48, 128], strides = [1, 1]} : vector<48x1024xf32> to vector<48x128xf32>
    %158 = arith.addf %154, %157 : vector<48x128xf32>
    %159 = arith.mulf %157, %157 : vector<48x128xf32>
    %160 = arith.addf %156, %159 : vector<48x128xf32>
    %161 = vector.extract_strided_slice %142 {offsets = [0, 640], sizes = [48, 128], strides = [1, 1]} : vector<48x1024xf32> to vector<48x128xf32>
    %162 = arith.addf %158, %161 : vector<48x128xf32>
    %163 = arith.mulf %161, %161 : vector<48x128xf32>
    %164 = arith.addf %160, %163 : vector<48x128xf32>
    %165 = vector.extract_strided_slice %142 {offsets = [0, 768], sizes = [48, 128], strides = [1, 1]} : vector<48x1024xf32> to vector<48x128xf32>
    %166 = arith.addf %162, %165 : vector<48x128xf32>
    %167 = arith.mulf %165, %165 : vector<48x128xf32>
    %168 = arith.addf %164, %167 : vector<48x128xf32>
    %169 = vector.extract_strided_slice %142 {offsets = [0, 896], sizes = [48, 128], strides = [1, 1]} : vector<48x1024xf32> to vector<48x128xf32>
    %170 = arith.addf %166, %169 : vector<48x128xf32>
    %171 = arith.mulf %169, %169 : vector<48x128xf32>
    %172 = arith.addf %168, %171 : vector<48x128xf32>
    %cst_46 = arith.constant dense<0.000000e+00> : vector<48x128xf32>
    %173 = tpu.matmul %4, %170, %cst_46 {dimension_numbers = #tpu.dot_dimension_numbers<[1], [0], [0], [1], [0, 0, 1, 1], [], []>} : vector<48x48xf32>, vector<48x128xf32>, vector<48x128xf32> -> vector<48x128xf32>
    %cst_47 = arith.constant dense<0.000000e+00> : vector<48xf32>
    %174 = vector.multi_reduction <add>, %173, %cst_47 [1] : vector<48x128xf32> to vector<48xf32>
    %175 = vector.shape_cast %174 : vector<48xf32> to vector<48x1xf32>
    %cst_48 = arith.constant dense<0.000000e+00> : vector<48x128xf32>
    %176 = tpu.matmul %4, %172, %cst_48 {dimension_numbers = #tpu.dot_dimension_numbers<[1], [0], [0], [1], [0, 0, 1, 1], [], []>} : vector<48x48xf32>, vector<48x128xf32>, vector<48x128xf32> -> vector<48x128xf32>
    %cst_49 = arith.constant dense<0.000000e+00> : vector<48xf32>
    %177 = vector.multi_reduction <add>, %176, %cst_49 [1] : vector<48x128xf32> to vector<48xf32>
    %178 = vector.shape_cast %177 : vector<48xf32> to vector<48x1xf32>
    %cst_50 = arith.constant 1.62760422E-4 : f32
    %179 = vector.broadcast %cst_50 : f32 to vector<48x1xf32>
    %180 = arith.mulf %175, %179 : vector<48x1xf32>
    %cst_51 = arith.constant 1.62760422E-4 : f32
    %181 = vector.broadcast %cst_51 : f32 to vector<48x1xf32>
    %182 = arith.mulf %178, %181 : vector<48x1xf32>
    %183 = arith.mulf %180, %180 : vector<48x1xf32>
    %184 = arith.subf %182, %183 : vector<48x1xf32>
    %cst_52 = arith.constant 9.99999974E-6 : f32
    %185 = vector.broadcast %cst_52 : f32 to vector<48x1xf32>
    %186 = arith.addf %184, %185 : vector<48x1xf32>
    %187 = math.rsqrt %186 : vector<48x1xf32>
    %188 = arith.mulf %187, %138 : vector<48x1xf32>
    %189 = vector.broadcast %180 : vector<48x1xf32> to vector<48x1024xf32>
    %190 = arith.subf %142, %189 : vector<48x1024xf32>
    %191 = vector.broadcast %188 : vector<48x1xf32> to vector<48x1024xf32>
    %192 = arith.mulf %190, %191 : vector<48x1024xf32>
    %193 = vector.broadcast %140 : vector<48x1xf32> to vector<48x1024xf32>
    %194 = arith.addf %192, %193 : vector<48x1024xf32>
    %c0_53 = arith.constant 0 : index
    %c0_54 = arith.constant 0 : index
    %195 = vector.load %arg15[%c0_53, %c0_54] : memref<16x48xbf16, #tpu.memory_space<vmem>>, vector<16x48xbf16>
    %196 = arith.truncf %194 : vector<48x1024xf32> to vector<48x1024xbf16>
    %cst_55 = arith.constant dense<0.000000e+00> : vector<16x1024xf32>
    %197 = tpu.matmul %195, %196, %cst_55 {dimension_numbers = #tpu.dot_dimension_numbers<[1], [0], [0], [1], [0, 0, 1, 1], [], []>} : vector<16x48xbf16>, vector<48x1024xbf16>, vector<16x1024xf32> -> vector<16x1024xf32>
    %c1023_i32_56 = arith.constant 1023 : i32
    %198 = tpu.dynamic_rotate %197 by %c1023_i32_56 dim 1 : vector<16x1024xf32>, i32 -> vector<16x1024xf32>
    %199 = arith.maximumf %197, %198 : vector<16x1024xf32>
    %c992_i32_57 = arith.constant 992 : i32
    %200 = tpu.dynamic_rotate %199 by %c992_i32_57 dim 1 : vector<16x1024xf32>, i32 -> vector<16x1024xf32>
    %201 = arith.maximumf %199, %200 : vector<16x1024xf32>
    %202 = arith.truncf %201 : vector<16x1024xf32> to vector<16x1024xbf16>
    %c0_58 = arith.constant 0 : index
    %c0_59 = arith.constant 0 : index
    %203 = vector.load %arg5[%c0_58, %c0_59] : memref<1024x256xbf16, #tpu.memory_space<vmem>>, vector<1024x256xbf16>
    %cst_60 = arith.constant dense<0.000000e+00> : vector<16x256xf32>
    %204 = tpu.matmul %202, %203, %cst_60 {dimension_numbers = #tpu.dot_dimension_numbers<[1], [0], [0], [1], [0, 0, 1, 1], [], []>} : vector<16x1024xbf16>, vector<1024x256xbf16>, vector<16x256xf32> -> vector<16x256xf32>
    %c17_i32 = arith.constant 17 : i32
    %205 = tpu.dynamic_rotate %204 by %c17_i32 dim 1 : vector<16x256xf32>, i32 -> vector<16x256xf32>
    %206 = vector.extract_strided_slice %1 {offsets = [0, 0], sizes = [1, 256], strides = [1, 1]} : vector<9x256xf32> to vector<1x256xf32>
    %207 = vector.broadcast %206 : vector<1x256xf32> to vector<16x256xf32>
    %208 = arith.mulf %205, %207 : vector<16x256xf32>
    %c16_i32 = arith.constant 16 : i32
    %209 = tpu.dynamic_rotate %204 by %c16_i32 dim 1 : vector<16x256xf32>, i32 -> vector<16x256xf32>
    %210 = vector.extract_strided_slice %1 {offsets = [1, 0], sizes = [1, 256], strides = [1, 1]} : vector<9x256xf32> to vector<1x256xf32>
    %211 = vector.broadcast %210 : vector<1x256xf32> to vector<16x256xf32>
    %212 = arith.mulf %209, %211 : vector<16x256xf32>
    %c15_i32 = arith.constant 15 : i32
    %213 = tpu.dynamic_rotate %204 by %c15_i32 dim 1 : vector<16x256xf32>, i32 -> vector<16x256xf32>
    %214 = vector.extract_strided_slice %1 {offsets = [2, 0], sizes = [1, 256], strides = [1, 1]} : vector<9x256xf32> to vector<1x256xf32>
    %215 = vector.broadcast %214 : vector<1x256xf32> to vector<16x256xf32>
    %216 = arith.mulf %213, %215 : vector<16x256xf32>
    %c1_i32_61 = arith.constant 1 : i32
    %217 = tpu.dynamic_rotate %204 by %c1_i32_61 dim 1 : vector<16x256xf32>, i32 -> vector<16x256xf32>
    %218 = vector.extract_strided_slice %1 {offsets = [3, 0], sizes = [1, 256], strides = [1, 1]} : vector<9x256xf32> to vector<1x256xf32>
    %219 = vector.broadcast %218 : vector<1x256xf32> to vector<16x256xf32>
    %220 = arith.mulf %217, %219 : vector<16x256xf32>
    %c255_i32 = arith.constant 255 : i32
    %221 = tpu.dynamic_rotate %204 by %c255_i32 dim 1 : vector<16x256xf32>, i32 -> vector<16x256xf32>
    %222 = vector.extract_strided_slice %1 {offsets = [5, 0], sizes = [1, 256], strides = [1, 1]} : vector<9x256xf32> to vector<1x256xf32>
    %223 = vector.broadcast %222 : vector<1x256xf32> to vector<16x256xf32>
    %224 = arith.mulf %221, %223 : vector<16x256xf32>
    %c241_i32 = arith.constant 241 : i32
    %225 = tpu.dynamic_rotate %204 by %c241_i32 dim 1 : vector<16x256xf32>, i32 -> vector<16x256xf32>
    %226 = vector.extract_strided_slice %1 {offsets = [6, 0], sizes = [1, 256], strides = [1, 1]} : vector<9x256xf32> to vector<1x256xf32>
    %227 = vector.broadcast %226 : vector<1x256xf32> to vector<16x256xf32>
    %228 = arith.mulf %225, %227 : vector<16x256xf32>
    %c240_i32 = arith.constant 240 : i32
    %229 = tpu.dynamic_rotate %204 by %c240_i32 dim 1 : vector<16x256xf32>, i32 -> vector<16x256xf32>
    %230 = vector.extract_strided_slice %1 {offsets = [7, 0], sizes = [1, 256], strides = [1, 1]} : vector<9x256xf32> to vector<1x256xf32>
    %231 = vector.broadcast %230 : vector<1x256xf32> to vector<16x256xf32>
    %232 = arith.mulf %229, %231 : vector<16x256xf32>
    %c239_i32 = arith.constant 239 : i32
    %233 = tpu.dynamic_rotate %204 by %c239_i32 dim 1 : vector<16x256xf32>, i32 -> vector<16x256xf32>
    %234 = vector.extract_strided_slice %1 {offsets = [8, 0], sizes = [1, 256], strides = [1, 1]} : vector<9x256xf32> to vector<1x256xf32>
    %235 = vector.broadcast %234 : vector<1x256xf32> to vector<16x256xf32>
    %236 = arith.mulf %233, %235 : vector<16x256xf32>
    %237 = tpu.concatenate %208, %212, %216, %220, %204, %224, %228, %232, %236 in 0 : vector<16x256xf32>, vector<16x256xf32>, vector<16x256xf32>, vector<16x256xf32>, vector<16x256xf32>, vector<16x256xf32>, vector<16x256xf32>, vector<16x256xf32>, vector<16x256xf32> -> vector<144x256xf32>
    %238 = arith.truncf %237 : vector<144x256xf32> to vector<144x256xbf16>
    %c0_62 = arith.constant 0 : index
    %c0_63 = arith.constant 0 : index
    %239 = vector.load %arg16[%c0_62, %c0_63] : memref<24x144xbf16, #tpu.memory_space<vmem>>, vector<24x144xbf16>
    %cst_64 = arith.constant dense<0.000000e+00> : vector<24x256xf32>
    %240 = tpu.matmul %239, %238, %cst_64 {dimension_numbers = #tpu.dot_dimension_numbers<[1], [0], [0], [1], [0, 0, 1, 1], [], []>} : vector<24x144xbf16>, vector<144x256xbf16>, vector<24x256xf32> -> vector<24x256xf32>
    %c1 = arith.constant 1 : index
    %c0_65 = arith.constant 0 : index
    %c0_66 = arith.constant 0 : index
    %241 = vector.load %arg9[%c1, %c0_65, %c0_66] : memref<5x24x1xf32, #tpu.memory_space<vmem>>, vector<1x24x1xf32>
    %242 = vector.shape_cast %241 : vector<1x24x1xf32> to vector<24x1xf32>
    %c1_67 = arith.constant 1 : index
    %c0_68 = arith.constant 0 : index
    %c0_69 = arith.constant 0 : index
    %243 = vector.load %arg10[%c1_67, %c0_68, %c0_69] : memref<5x24x1xf32, #tpu.memory_space<vmem>>, vector<1x24x1xf32>
    %244 = vector.shape_cast %243 : vector<1x24x1xf32> to vector<24x1xf32>
    %cst_70 = arith.constant 0.000000e+00 : f32
    %245 = vector.broadcast %cst_70 : f32 to vector<24x256xf32>
    %246 = arith.maximumf %240, %245 : vector<24x256xf32>
    %247 = vector.extract_strided_slice %246 {offsets = [0, 0], sizes = [24, 128], strides = [1, 1]} : vector<24x256xf32> to vector<24x128xf32>
    %248 = arith.mulf %247, %247 : vector<24x128xf32>
    %249 = vector.extract_strided_slice %246 {offsets = [0, 128], sizes = [24, 128], strides = [1, 1]} : vector<24x256xf32> to vector<24x128xf32>
    %250 = arith.addf %247, %249 : vector<24x128xf32>
    %251 = arith.mulf %249, %249 : vector<24x128xf32>
    %252 = arith.addf %248, %251 : vector<24x128xf32>
    %cst_71 = arith.constant dense<0.000000e+00> : vector<24x128xf32>
    %253 = tpu.matmul %3, %250, %cst_71 {dimension_numbers = #tpu.dot_dimension_numbers<[1], [0], [0], [1], [0, 0, 1, 1], [], []>} : vector<24x24xf32>, vector<24x128xf32>, vector<24x128xf32> -> vector<24x128xf32>
    %cst_72 = arith.constant dense<0.000000e+00> : vector<24xf32>
    %254 = vector.multi_reduction <add>, %253, %cst_72 [1] : vector<24x128xf32> to vector<24xf32>
    %255 = vector.shape_cast %254 : vector<24xf32> to vector<24x1xf32>
    %cst_73 = arith.constant dense<0.000000e+00> : vector<24x128xf32>
    %256 = tpu.matmul %3, %252, %cst_73 {dimension_numbers = #tpu.dot_dimension_numbers<[1], [0], [0], [1], [0, 0, 1, 1], [], []>} : vector<24x24xf32>, vector<24x128xf32>, vector<24x128xf32> -> vector<24x128xf32>
    %cst_74 = arith.constant dense<0.000000e+00> : vector<24xf32>
    %257 = vector.multi_reduction <add>, %256, %cst_74 [1] : vector<24x128xf32> to vector<24xf32>
    %258 = vector.shape_cast %257 : vector<24xf32> to vector<24x1xf32>
    %cst_75 = arith.constant 6.51041686E-4 : f32
    %259 = vector.broadcast %cst_75 : f32 to vector<24x1xf32>
    %260 = arith.mulf %255, %259 : vector<24x1xf32>
    %cst_76 = arith.constant 6.51041686E-4 : f32
    %261 = vector.broadcast %cst_76 : f32 to vector<24x1xf32>
    %262 = arith.mulf %258, %261 : vector<24x1xf32>
    %263 = arith.mulf %260, %260 : vector<24x1xf32>
    %264 = arith.subf %262, %263 : vector<24x1xf32>
    %cst_77 = arith.constant 9.99999974E-6 : f32
    %265 = vector.broadcast %cst_77 : f32 to vector<24x1xf32>
    %266 = arith.addf %264, %265 : vector<24x1xf32>
    %267 = math.rsqrt %266 : vector<24x1xf32>
    %268 = arith.mulf %267, %242 : vector<24x1xf32>
    %269 = vector.broadcast %260 : vector<24x1xf32> to vector<24x256xf32>
    %270 = arith.subf %246, %269 : vector<24x256xf32>
    %271 = vector.broadcast %268 : vector<24x1xf32> to vector<24x256xf32>
    %272 = arith.mulf %270, %271 : vector<24x256xf32>
    %273 = vector.broadcast %244 : vector<24x1xf32> to vector<24x256xf32>
    %274 = arith.addf %272, %273 : vector<24x256xf32>
    %c17_i32_78 = arith.constant 17 : i32
    %275 = tpu.dynamic_rotate %274 by %c17_i32_78 dim 1 : vector<24x256xf32>, i32 -> vector<24x256xf32>
    %276 = vector.extract_strided_slice %1 {offsets = [0, 0], sizes = [1, 256], strides = [1, 1]} : vector<9x256xf32> to vector<1x256xf32>
    %277 = vector.broadcast %276 : vector<1x256xf32> to vector<24x256xf32>
    %278 = arith.mulf %275, %277 : vector<24x256xf32>
    %c16_i32_79 = arith.constant 16 : i32
    %279 = tpu.dynamic_rotate %274 by %c16_i32_79 dim 1 : vector<24x256xf32>, i32 -> vector<24x256xf32>
    %280 = vector.extract_strided_slice %1 {offsets = [1, 0], sizes = [1, 256], strides = [1, 1]} : vector<9x256xf32> to vector<1x256xf32>
    %281 = vector.broadcast %280 : vector<1x256xf32> to vector<24x256xf32>
    %282 = arith.mulf %279, %281 : vector<24x256xf32>
    %c15_i32_80 = arith.constant 15 : i32
    %283 = tpu.dynamic_rotate %274 by %c15_i32_80 dim 1 : vector<24x256xf32>, i32 -> vector<24x256xf32>
    %284 = vector.extract_strided_slice %1 {offsets = [2, 0], sizes = [1, 256], strides = [1, 1]} : vector<9x256xf32> to vector<1x256xf32>
    %285 = vector.broadcast %284 : vector<1x256xf32> to vector<24x256xf32>
    %286 = arith.mulf %283, %285 : vector<24x256xf32>
    %c1_i32_81 = arith.constant 1 : i32
    %287 = tpu.dynamic_rotate %274 by %c1_i32_81 dim 1 : vector<24x256xf32>, i32 -> vector<24x256xf32>
    %288 = vector.extract_strided_slice %1 {offsets = [3, 0], sizes = [1, 256], strides = [1, 1]} : vector<9x256xf32> to vector<1x256xf32>
    %289 = vector.broadcast %288 : vector<1x256xf32> to vector<24x256xf32>
    %290 = arith.mulf %287, %289 : vector<24x256xf32>
    %c255_i32_82 = arith.constant 255 : i32
    %291 = tpu.dynamic_rotate %274 by %c255_i32_82 dim 1 : vector<24x256xf32>, i32 -> vector<24x256xf32>
    %292 = vector.extract_strided_slice %1 {offsets = [5, 0], sizes = [1, 256], strides = [1, 1]} : vector<9x256xf32> to vector<1x256xf32>
    %293 = vector.broadcast %292 : vector<1x256xf32> to vector<24x256xf32>
    %294 = arith.mulf %291, %293 : vector<24x256xf32>
    %c241_i32_83 = arith.constant 241 : i32
    %295 = tpu.dynamic_rotate %274 by %c241_i32_83 dim 1 : vector<24x256xf32>, i32 -> vector<24x256xf32>
    %296 = vector.extract_strided_slice %1 {offsets = [6, 0], sizes = [1, 256], strides = [1, 1]} : vector<9x256xf32> to vector<1x256xf32>
    %297 = vector.broadcast %296 : vector<1x256xf32> to vector<24x256xf32>
    %298 = arith.mulf %295, %297 : vector<24x256xf32>
    %c240_i32_84 = arith.constant 240 : i32
    %299 = tpu.dynamic_rotate %274 by %c240_i32_84 dim 1 : vector<24x256xf32>, i32 -> vector<24x256xf32>
    %300 = vector.extract_strided_slice %1 {offsets = [7, 0], sizes = [1, 256], strides = [1, 1]} : vector<9x256xf32> to vector<1x256xf32>
    %301 = vector.broadcast %300 : vector<1x256xf32> to vector<24x256xf32>
    %302 = arith.mulf %299, %301 : vector<24x256xf32>
    %c239_i32_85 = arith.constant 239 : i32
    %303 = tpu.dynamic_rotate %274 by %c239_i32_85 dim 1 : vector<24x256xf32>, i32 -> vector<24x256xf32>
    %304 = vector.extract_strided_slice %1 {offsets = [8, 0], sizes = [1, 256], strides = [1, 1]} : vector<9x256xf32> to vector<1x256xf32>
    %305 = vector.broadcast %304 : vector<1x256xf32> to vector<24x256xf32>
    %306 = arith.mulf %303, %305 : vector<24x256xf32>
    %307 = tpu.concatenate %278, %282, %286, %290, %274, %294, %298, %302, %306 in 0 : vector<24x256xf32>, vector<24x256xf32>, vector<24x256xf32>, vector<24x256xf32>, vector<24x256xf32>, vector<24x256xf32>, vector<24x256xf32>, vector<24x256xf32>, vector<24x256xf32> -> vector<216x256xf32>
    %308 = arith.truncf %307 : vector<216x256xf32> to vector<216x256xbf16>
    %c0_86 = arith.constant 0 : index
    %c0_87 = arith.constant 0 : index
    %309 = vector.load %arg17[%c0_86, %c0_87] : memref<24x216xbf16, #tpu.memory_space<vmem>>, vector<24x216xbf16>
    %cst_88 = arith.constant dense<0.000000e+00> : vector<24x256xf32>
    %310 = tpu.matmul %309, %308, %cst_88 {dimension_numbers = #tpu.dot_dimension_numbers<[1], [0], [0], [1], [0, 0, 1, 1], [], []>} : vector<24x216xbf16>, vector<216x256xbf16>, vector<24x256xf32> -> vector<24x256xf32>
    %c2 = arith.constant 2 : index
    %c0_89 = arith.constant 0 : index
    %c0_90 = arith.constant 0 : index
    %311 = vector.load %arg9[%c2, %c0_89, %c0_90] : memref<5x24x1xf32, #tpu.memory_space<vmem>>, vector<1x24x1xf32>
    %312 = vector.shape_cast %311 : vector<1x24x1xf32> to vector<24x1xf32>
    %c2_91 = arith.constant 2 : index
    %c0_92 = arith.constant 0 : index
    %c0_93 = arith.constant 0 : index
    %313 = vector.load %arg10[%c2_91, %c0_92, %c0_93] : memref<5x24x1xf32, #tpu.memory_space<vmem>>, vector<1x24x1xf32>
    %314 = vector.shape_cast %313 : vector<1x24x1xf32> to vector<24x1xf32>
    %cst_94 = arith.constant 0.000000e+00 : f32
    %315 = vector.broadcast %cst_94 : f32 to vector<24x256xf32>
    %316 = arith.maximumf %310, %315 : vector<24x256xf32>
    %317 = vector.extract_strided_slice %316 {offsets = [0, 0], sizes = [24, 128], strides = [1, 1]} : vector<24x256xf32> to vector<24x128xf32>
    %318 = arith.mulf %317, %317 : vector<24x128xf32>
    %319 = vector.extract_strided_slice %316 {offsets = [0, 128], sizes = [24, 128], strides = [1, 1]} : vector<24x256xf32> to vector<24x128xf32>
    %320 = arith.addf %317, %319 : vector<24x128xf32>
    %321 = arith.mulf %319, %319 : vector<24x128xf32>
    %322 = arith.addf %318, %321 : vector<24x128xf32>
    %cst_95 = arith.constant dense<0.000000e+00> : vector<24x128xf32>
    %323 = tpu.matmul %3, %320, %cst_95 {dimension_numbers = #tpu.dot_dimension_numbers<[1], [0], [0], [1], [0, 0, 1, 1], [], []>} : vector<24x24xf32>, vector<24x128xf32>, vector<24x128xf32> -> vector<24x128xf32>
    %cst_96 = arith.constant dense<0.000000e+00> : vector<24xf32>
    %324 = vector.multi_reduction <add>, %323, %cst_96 [1] : vector<24x128xf32> to vector<24xf32>
    %325 = vector.shape_cast %324 : vector<24xf32> to vector<24x1xf32>
    %cst_97 = arith.constant dense<0.000000e+00> : vector<24x128xf32>
    %326 = tpu.matmul %3, %322, %cst_97 {dimension_numbers = #tpu.dot_dimension_numbers<[1], [0], [0], [1], [0, 0, 1, 1], [], []>} : vector<24x24xf32>, vector<24x128xf32>, vector<24x128xf32> -> vector<24x128xf32>
    %cst_98 = arith.constant dense<0.000000e+00> : vector<24xf32>
    %327 = vector.multi_reduction <add>, %326, %cst_98 [1] : vector<24x128xf32> to vector<24xf32>
    %328 = vector.shape_cast %327 : vector<24xf32> to vector<24x1xf32>
    %cst_99 = arith.constant 6.51041686E-4 : f32
    %329 = vector.broadcast %cst_99 : f32 to vector<24x1xf32>
    %330 = arith.mulf %325, %329 : vector<24x1xf32>
    %cst_100 = arith.constant 6.51041686E-4 : f32
    %331 = vector.broadcast %cst_100 : f32 to vector<24x1xf32>
    %332 = arith.mulf %328, %331 : vector<24x1xf32>
    %333 = arith.mulf %330, %330 : vector<24x1xf32>
    %334 = arith.subf %332, %333 : vector<24x1xf32>
    %cst_101 = arith.constant 9.99999974E-6 : f32
    %335 = vector.broadcast %cst_101 : f32 to vector<24x1xf32>
    %336 = arith.addf %334, %335 : vector<24x1xf32>
    %337 = math.rsqrt %336 : vector<24x1xf32>
    %338 = arith.mulf %337, %312 : vector<24x1xf32>
    %339 = vector.broadcast %330 : vector<24x1xf32> to vector<24x256xf32>
    %340 = arith.subf %316, %339 : vector<24x256xf32>
    %341 = vector.broadcast %338 : vector<24x1xf32> to vector<24x256xf32>
    %342 = arith.mulf %340, %341 : vector<24x256xf32>
    %343 = vector.broadcast %314 : vector<24x1xf32> to vector<24x256xf32>
    %344 = arith.addf %342, %343 : vector<24x256xf32>
    %c17_i32_102 = arith.constant 17 : i32
    %345 = tpu.dynamic_rotate %344 by %c17_i32_102 dim 1 : vector<24x256xf32>, i32 -> vector<24x256xf32>
    %346 = vector.extract_strided_slice %1 {offsets = [0, 0], sizes = [1, 256], strides = [1, 1]} : vector<9x256xf32> to vector<1x256xf32>
    %347 = vector.broadcast %346 : vector<1x256xf32> to vector<24x256xf32>
    %348 = arith.mulf %345, %347 : vector<24x256xf32>
    %c16_i32_103 = arith.constant 16 : i32
    %349 = tpu.dynamic_rotate %344 by %c16_i32_103 dim 1 : vector<24x256xf32>, i32 -> vector<24x256xf32>
    %350 = vector.extract_strided_slice %1 {offsets = [1, 0], sizes = [1, 256], strides = [1, 1]} : vector<9x256xf32> to vector<1x256xf32>
    %351 = vector.broadcast %350 : vector<1x256xf32> to vector<24x256xf32>
    %352 = arith.mulf %349, %351 : vector<24x256xf32>
    %c15_i32_104 = arith.constant 15 : i32
    %353 = tpu.dynamic_rotate %344 by %c15_i32_104 dim 1 : vector<24x256xf32>, i32 -> vector<24x256xf32>
    %354 = vector.extract_strided_slice %1 {offsets = [2, 0], sizes = [1, 256], strides = [1, 1]} : vector<9x256xf32> to vector<1x256xf32>
    %355 = vector.broadcast %354 : vector<1x256xf32> to vector<24x256xf32>
    %356 = arith.mulf %353, %355 : vector<24x256xf32>
    %c1_i32_105 = arith.constant 1 : i32
    %357 = tpu.dynamic_rotate %344 by %c1_i32_105 dim 1 : vector<24x256xf32>, i32 -> vector<24x256xf32>
    %358 = vector.extract_strided_slice %1 {offsets = [3, 0], sizes = [1, 256], strides = [1, 1]} : vector<9x256xf32> to vector<1x256xf32>
    %359 = vector.broadcast %358 : vector<1x256xf32> to vector<24x256xf32>
    %360 = arith.mulf %357, %359 : vector<24x256xf32>
    %c255_i32_106 = arith.constant 255 : i32
    %361 = tpu.dynamic_rotate %344 by %c255_i32_106 dim 1 : vector<24x256xf32>, i32 -> vector<24x256xf32>
    %362 = vector.extract_strided_slice %1 {offsets = [5, 0], sizes = [1, 256], strides = [1, 1]} : vector<9x256xf32> to vector<1x256xf32>
    %363 = vector.broadcast %362 : vector<1x256xf32> to vector<24x256xf32>
    %364 = arith.mulf %361, %363 : vector<24x256xf32>
    %c241_i32_107 = arith.constant 241 : i32
    %365 = tpu.dynamic_rotate %344 by %c241_i32_107 dim 1 : vector<24x256xf32>, i32 -> vector<24x256xf32>
    %366 = vector.extract_strided_slice %1 {offsets = [6, 0], sizes = [1, 256], strides = [1, 1]} : vector<9x256xf32> to vector<1x256xf32>
    %367 = vector.broadcast %366 : vector<1x256xf32> to vector<24x256xf32>
    %368 = arith.mulf %365, %367 : vector<24x256xf32>
    %c240_i32_108 = arith.constant 240 : i32
    %369 = tpu.dynamic_rotate %344 by %c240_i32_108 dim 1 : vector<24x256xf32>, i32 -> vector<24x256xf32>
    %370 = vector.extract_strided_slice %1 {offsets = [7, 0], sizes = [1, 256], strides = [1, 1]} : vector<9x256xf32> to vector<1x256xf32>
    %371 = vector.broadcast %370 : vector<1x256xf32> to vector<24x256xf32>
    %372 = arith.mulf %369, %371 : vector<24x256xf32>
    %c239_i32_109 = arith.constant 239 : i32
    %373 = tpu.dynamic_rotate %344 by %c239_i32_109 dim 1 : vector<24x256xf32>, i32 -> vector<24x256xf32>
    %374 = vector.extract_strided_slice %1 {offsets = [8, 0], sizes = [1, 256], strides = [1, 1]} : vector<9x256xf32> to vector<1x256xf32>
    %375 = vector.broadcast %374 : vector<1x256xf32> to vector<24x256xf32>
    %376 = arith.mulf %373, %375 : vector<24x256xf32>
    %377 = tpu.concatenate %348, %352, %356, %360, %344, %364, %368, %372, %376 in 0 : vector<24x256xf32>, vector<24x256xf32>, vector<24x256xf32>, vector<24x256xf32>, vector<24x256xf32>, vector<24x256xf32>, vector<24x256xf32>, vector<24x256xf32>, vector<24x256xf32> -> vector<216x256xf32>
    %378 = arith.truncf %377 : vector<216x256xf32> to vector<216x256xbf16>
    %c0_110 = arith.constant 0 : index
    %c0_111 = arith.constant 0 : index
    %379 = vector.load %arg18[%c0_110, %c0_111] : memref<48x216xbf16, #tpu.memory_space<vmem>>, vector<48x216xbf16>
    %cst_112 = arith.constant dense<0.000000e+00> : vector<48x256xf32>
    %380 = tpu.matmul %379, %378, %cst_112 {dimension_numbers = #tpu.dot_dimension_numbers<[1], [0], [0], [1], [0, 0, 1, 1], [], []>} : vector<48x216xbf16>, vector<216x256xbf16>, vector<48x256xf32> -> vector<48x256xf32>
    %c1_113 = arith.constant 1 : index
    %c0_114 = arith.constant 0 : index
    %c0_115 = arith.constant 0 : index
    %381 = vector.load %arg11[%c1_113, %c0_114, %c0_115] : memref<3x48x1xf32, #tpu.memory_space<vmem>>, vector<1x48x1xf32>
    %382 = vector.shape_cast %381 : vector<1x48x1xf32> to vector<48x1xf32>
    %c1_116 = arith.constant 1 : index
    %c0_117 = arith.constant 0 : index
    %c0_118 = arith.constant 0 : index
    %383 = vector.load %arg12[%c1_116, %c0_117, %c0_118] : memref<3x48x1xf32, #tpu.memory_space<vmem>>, vector<1x48x1xf32>
    %384 = vector.shape_cast %383 : vector<1x48x1xf32> to vector<48x1xf32>
    %cst_119 = arith.constant 0.000000e+00 : f32
    %385 = vector.broadcast %cst_119 : f32 to vector<48x256xf32>
    %386 = arith.maximumf %380, %385 : vector<48x256xf32>
    %387 = vector.extract_strided_slice %386 {offsets = [0, 0], sizes = [48, 128], strides = [1, 1]} : vector<48x256xf32> to vector<48x128xf32>
    %388 = arith.mulf %387, %387 : vector<48x128xf32>
    %389 = vector.extract_strided_slice %386 {offsets = [0, 128], sizes = [48, 128], strides = [1, 1]} : vector<48x256xf32> to vector<48x128xf32>
    %390 = arith.addf %387, %389 : vector<48x128xf32>
    %391 = arith.mulf %389, %389 : vector<48x128xf32>
    %392 = arith.addf %388, %391 : vector<48x128xf32>
    %cst_120 = arith.constant dense<0.000000e+00> : vector<48x128xf32>
    %393 = tpu.matmul %4, %390, %cst_120 {dimension_numbers = #tpu.dot_dimension_numbers<[1], [0], [0], [1], [0, 0, 1, 1], [], []>} : vector<48x48xf32>, vector<48x128xf32>, vector<48x128xf32> -> vector<48x128xf32>
    %cst_121 = arith.constant dense<0.000000e+00> : vector<48xf32>
    %394 = vector.multi_reduction <add>, %393, %cst_121 [1] : vector<48x128xf32> to vector<48xf32>
    %395 = vector.shape_cast %394 : vector<48xf32> to vector<48x1xf32>
    %cst_122 = arith.constant dense<0.000000e+00> : vector<48x128xf32>
    %396 = tpu.matmul %4, %392, %cst_122 {dimension_numbers = #tpu.dot_dimension_numbers<[1], [0], [0], [1], [0, 0, 1, 1], [], []>} : vector<48x48xf32>, vector<48x128xf32>, vector<48x128xf32> -> vector<48x128xf32>
    %cst_123 = arith.constant dense<0.000000e+00> : vector<48xf32>
    %397 = vector.multi_reduction <add>, %396, %cst_123 [1] : vector<48x128xf32> to vector<48xf32>
    %398 = vector.shape_cast %397 : vector<48xf32> to vector<48x1xf32>
    %cst_124 = arith.constant 6.51041686E-4 : f32
    %399 = vector.broadcast %cst_124 : f32 to vector<48x1xf32>
    %400 = arith.mulf %395, %399 : vector<48x1xf32>
    %cst_125 = arith.constant 6.51041686E-4 : f32
    %401 = vector.broadcast %cst_125 : f32 to vector<48x1xf32>
    %402 = arith.mulf %398, %401 : vector<48x1xf32>
    %403 = arith.mulf %400, %400 : vector<48x1xf32>
    %404 = arith.subf %402, %403 : vector<48x1xf32>
    %cst_126 = arith.constant 9.99999974E-6 : f32
    %405 = vector.broadcast %cst_126 : f32 to vector<48x1xf32>
    %406 = arith.addf %404, %405 : vector<48x1xf32>
    %407 = math.rsqrt %406 : vector<48x1xf32>
    %408 = arith.mulf %407, %382 : vector<48x1xf32>
    %409 = vector.broadcast %400 : vector<48x1xf32> to vector<48x256xf32>
    %410 = arith.subf %386, %409 : vector<48x256xf32>
    %411 = vector.broadcast %408 : vector<48x1xf32> to vector<48x256xf32>
    %412 = arith.mulf %410, %411 : vector<48x256xf32>
    %413 = vector.broadcast %384 : vector<48x1xf32> to vector<48x256xf32>
    %414 = arith.addf %412, %413 : vector<48x256xf32>
    %c0_127 = arith.constant 0 : index
    %c0_128 = arith.constant 0 : index
    %415 = vector.load %arg19[%c0_127, %c0_128] : memref<16x48xbf16, #tpu.memory_space<vmem>>, vector<16x48xbf16>
    %416 = arith.truncf %414 : vector<48x256xf32> to vector<48x256xbf16>
    %cst_129 = arith.constant dense<0.000000e+00> : vector<16x256xf32>
    %417 = tpu.matmul %415, %416, %cst_129 {dimension_numbers = #tpu.dot_dimension_numbers<[1], [0], [0], [1], [0, 0, 1, 1], [], []>} : vector<16x48xbf16>, vector<48x256xbf16>, vector<16x256xf32> -> vector<16x256xf32>
    %c255_i32_130 = arith.constant 255 : i32
    %418 = tpu.dynamic_rotate %417 by %c255_i32_130 dim 1 : vector<16x256xf32>, i32 -> vector<16x256xf32>
    %419 = arith.maximumf %417, %418 : vector<16x256xf32>
    %c240_i32_131 = arith.constant 240 : i32
    %420 = tpu.dynamic_rotate %419 by %c240_i32_131 dim 1 : vector<16x256xf32>, i32 -> vector<16x256xf32>
    %421 = arith.maximumf %419, %420 : vector<16x256xf32>
    %422 = arith.truncf %421 : vector<16x256xf32> to vector<16x256xbf16>
    %c0_132 = arith.constant 0 : index
    %c0_133 = arith.constant 0 : index
    %423 = vector.load %arg6[%c0_132, %c0_133] : memref<256x128xbf16, #tpu.memory_space<vmem>>, vector<256x128xbf16>
    %cst_134 = arith.constant dense<0.000000e+00> : vector<16x128xf32>
    %424 = tpu.matmul %422, %423, %cst_134 {dimension_numbers = #tpu.dot_dimension_numbers<[1], [0], [0], [1], [0, 0, 1, 1], [], []>} : vector<16x256xbf16>, vector<256x128xbf16>, vector<16x128xf32> -> vector<16x128xf32>
    %425 = vector.extract_strided_slice %2 {offsets = [9, 0], sizes = [1, 128], strides = [1, 1]} : vector<10x128xf32> to vector<1x128xf32>
    %c9_i32 = arith.constant 9 : i32
    %426 = tpu.dynamic_rotate %424 by %c9_i32 dim 1 : vector<16x128xf32>, i32 -> vector<16x128xf32>
    %427 = vector.extract_strided_slice %2 {offsets = [0, 0], sizes = [1, 128], strides = [1, 1]} : vector<10x128xf32> to vector<1x128xf32>
    %428 = vector.broadcast %427 : vector<1x128xf32> to vector<16x128xf32>
    %429 = arith.mulf %426, %428 : vector<16x128xf32>
    %c8_i32 = arith.constant 8 : i32
    %430 = tpu.dynamic_rotate %424 by %c8_i32 dim 1 : vector<16x128xf32>, i32 -> vector<16x128xf32>
    %431 = vector.extract_strided_slice %2 {offsets = [1, 0], sizes = [1, 128], strides = [1, 1]} : vector<10x128xf32> to vector<1x128xf32>
    %432 = vector.broadcast %431 : vector<1x128xf32> to vector<16x128xf32>
    %433 = arith.mulf %430, %432 : vector<16x128xf32>
    %c7_i32 = arith.constant 7 : i32
    %434 = tpu.dynamic_rotate %424 by %c7_i32 dim 1 : vector<16x128xf32>, i32 -> vector<16x128xf32>
    %435 = vector.extract_strided_slice %2 {offsets = [2, 0], sizes = [1, 128], strides = [1, 1]} : vector<10x128xf32> to vector<1x128xf32>
    %436 = vector.broadcast %435 : vector<1x128xf32> to vector<16x128xf32>
    %437 = arith.mulf %434, %436 : vector<16x128xf32>
    %c1_i32_135 = arith.constant 1 : i32
    %438 = tpu.dynamic_rotate %424 by %c1_i32_135 dim 1 : vector<16x128xf32>, i32 -> vector<16x128xf32>
    %439 = vector.extract_strided_slice %2 {offsets = [3, 0], sizes = [1, 128], strides = [1, 1]} : vector<10x128xf32> to vector<1x128xf32>
    %440 = vector.broadcast %439 : vector<1x128xf32> to vector<16x128xf32>
    %441 = arith.mulf %438, %440 : vector<16x128xf32>
    %c127_i32 = arith.constant 127 : i32
    %442 = tpu.dynamic_rotate %424 by %c127_i32 dim 1 : vector<16x128xf32>, i32 -> vector<16x128xf32>
    %443 = vector.extract_strided_slice %2 {offsets = [5, 0], sizes = [1, 128], strides = [1, 1]} : vector<10x128xf32> to vector<1x128xf32>
    %444 = vector.broadcast %443 : vector<1x128xf32> to vector<16x128xf32>
    %445 = arith.mulf %442, %444 : vector<16x128xf32>
    %c121_i32 = arith.constant 121 : i32
    %446 = tpu.dynamic_rotate %424 by %c121_i32 dim 1 : vector<16x128xf32>, i32 -> vector<16x128xf32>
    %447 = vector.extract_strided_slice %2 {offsets = [6, 0], sizes = [1, 128], strides = [1, 1]} : vector<10x128xf32> to vector<1x128xf32>
    %448 = vector.broadcast %447 : vector<1x128xf32> to vector<16x128xf32>
    %449 = arith.mulf %446, %448 : vector<16x128xf32>
    %c120_i32 = arith.constant 120 : i32
    %450 = tpu.dynamic_rotate %424 by %c120_i32 dim 1 : vector<16x128xf32>, i32 -> vector<16x128xf32>
    %451 = vector.extract_strided_slice %2 {offsets = [7, 0], sizes = [1, 128], strides = [1, 1]} : vector<10x128xf32> to vector<1x128xf32>
    %452 = vector.broadcast %451 : vector<1x128xf32> to vector<16x128xf32>
    %453 = arith.mulf %450, %452 : vector<16x128xf32>
    %c119_i32 = arith.constant 119 : i32
    %454 = tpu.dynamic_rotate %424 by %c119_i32 dim 1 : vector<16x128xf32>, i32 -> vector<16x128xf32>
    %455 = vector.extract_strided_slice %2 {offsets = [8, 0], sizes = [1, 128], strides = [1, 1]} : vector<10x128xf32> to vector<1x128xf32>
    %456 = vector.broadcast %455 : vector<1x128xf32> to vector<16x128xf32>
    %457 = arith.mulf %454, %456 : vector<16x128xf32>
    %458 = tpu.concatenate %429, %433, %437, %441, %424, %445, %449, %453, %457 in 0 : vector<16x128xf32>, vector<16x128xf32>, vector<16x128xf32>, vector<16x128xf32>, vector<16x128xf32>, vector<16x128xf32>, vector<16x128xf32>, vector<16x128xf32>, vector<16x128xf32> -> vector<144x128xf32>
    %459 = arith.truncf %458 : vector<144x128xf32> to vector<144x128xbf16>
    %c0_136 = arith.constant 0 : index
    %c0_137 = arith.constant 0 : index
    %460 = vector.load %arg20[%c0_136, %c0_137] : memref<24x144xbf16, #tpu.memory_space<vmem>>, vector<24x144xbf16>
    %cst_138 = arith.constant dense<0.000000e+00> : vector<24x128xf32>
    %461 = tpu.matmul %460, %459, %cst_138 {dimension_numbers = #tpu.dot_dimension_numbers<[1], [0], [0], [1], [0, 0, 1, 1], [], []>} : vector<24x144xbf16>, vector<144x128xbf16>, vector<24x128xf32> -> vector<24x128xf32>
    %c3 = arith.constant 3 : index
    %c0_139 = arith.constant 0 : index
    %c0_140 = arith.constant 0 : index
    %462 = vector.load %arg9[%c3, %c0_139, %c0_140] : memref<5x24x1xf32, #tpu.memory_space<vmem>>, vector<1x24x1xf32>
    %463 = vector.shape_cast %462 : vector<1x24x1xf32> to vector<24x1xf32>
    %c3_141 = arith.constant 3 : index
    %c0_142 = arith.constant 0 : index
    %c0_143 = arith.constant 0 : index
    %464 = vector.load %arg10[%c3_141, %c0_142, %c0_143] : memref<5x24x1xf32, #tpu.memory_space<vmem>>, vector<1x24x1xf32>
    %465 = vector.shape_cast %464 : vector<1x24x1xf32> to vector<24x1xf32>
    %cst_144 = arith.constant 0.000000e+00 : f32
    %466 = vector.broadcast %cst_144 : f32 to vector<24x128xf32>
    %467 = arith.maximumf %461, %466 : vector<24x128xf32>
    %468 = arith.mulf %467, %467 : vector<24x128xf32>
    %cst_145 = arith.constant dense<0.000000e+00> : vector<24x128xf32>
    %469 = tpu.matmul %3, %467, %cst_145 {dimension_numbers = #tpu.dot_dimension_numbers<[1], [0], [0], [1], [0, 0, 1, 1], [], []>} : vector<24x24xf32>, vector<24x128xf32>, vector<24x128xf32> -> vector<24x128xf32>
    %cst_146 = arith.constant dense<0.000000e+00> : vector<24xf32>
    %470 = vector.multi_reduction <add>, %469, %cst_146 [1] : vector<24x128xf32> to vector<24xf32>
    %471 = vector.shape_cast %470 : vector<24xf32> to vector<24x1xf32>
    %cst_147 = arith.constant dense<0.000000e+00> : vector<24x128xf32>
    %472 = tpu.matmul %3, %468, %cst_147 {dimension_numbers = #tpu.dot_dimension_numbers<[1], [0], [0], [1], [0, 0, 1, 1], [], []>} : vector<24x24xf32>, vector<24x128xf32>, vector<24x128xf32> -> vector<24x128xf32>
    %cst_148 = arith.constant dense<0.000000e+00> : vector<24xf32>
    %473 = vector.multi_reduction <add>, %472, %cst_148 [1] : vector<24x128xf32> to vector<24xf32>
    %474 = vector.shape_cast %473 : vector<24xf32> to vector<24x1xf32>
    %cst_149 = arith.constant 0.00260416674 : f32
    %475 = vector.broadcast %cst_149 : f32 to vector<24x1xf32>
    %476 = arith.mulf %471, %475 : vector<24x1xf32>
    %cst_150 = arith.constant 0.00260416674 : f32
    %477 = vector.broadcast %cst_150 : f32 to vector<24x1xf32>
    %478 = arith.mulf %474, %477 : vector<24x1xf32>
    %479 = arith.mulf %476, %476 : vector<24x1xf32>
    %480 = arith.subf %478, %479 : vector<24x1xf32>
    %cst_151 = arith.constant 9.99999974E-6 : f32
    %481 = vector.broadcast %cst_151 : f32 to vector<24x1xf32>
    %482 = arith.addf %480, %481 : vector<24x1xf32>
    %483 = math.rsqrt %482 : vector<24x1xf32>
    %484 = arith.mulf %483, %463 : vector<24x1xf32>
    %485 = vector.broadcast %476 : vector<24x1xf32> to vector<24x128xf32>
    %486 = arith.subf %467, %485 : vector<24x128xf32>
    %487 = vector.broadcast %484 : vector<24x1xf32> to vector<24x128xf32>
    %488 = arith.mulf %486, %487 : vector<24x128xf32>
    %489 = vector.broadcast %465 : vector<24x1xf32> to vector<24x128xf32>
    %490 = arith.addf %488, %489 : vector<24x128xf32>
    %491 = vector.broadcast %425 : vector<1x128xf32> to vector<24x128xf32>
    %492 = arith.mulf %490, %491 : vector<24x128xf32>
    %c9_i32_152 = arith.constant 9 : i32
    %493 = tpu.dynamic_rotate %492 by %c9_i32_152 dim 1 : vector<24x128xf32>, i32 -> vector<24x128xf32>
    %494 = vector.extract_strided_slice %2 {offsets = [0, 0], sizes = [1, 128], strides = [1, 1]} : vector<10x128xf32> to vector<1x128xf32>
    %495 = vector.broadcast %494 : vector<1x128xf32> to vector<24x128xf32>
    %496 = arith.mulf %493, %495 : vector<24x128xf32>
    %c8_i32_153 = arith.constant 8 : i32
    %497 = tpu.dynamic_rotate %492 by %c8_i32_153 dim 1 : vector<24x128xf32>, i32 -> vector<24x128xf32>
    %498 = vector.extract_strided_slice %2 {offsets = [1, 0], sizes = [1, 128], strides = [1, 1]} : vector<10x128xf32> to vector<1x128xf32>
    %499 = vector.broadcast %498 : vector<1x128xf32> to vector<24x128xf32>
    %500 = arith.mulf %497, %499 : vector<24x128xf32>
    %c7_i32_154 = arith.constant 7 : i32
    %501 = tpu.dynamic_rotate %492 by %c7_i32_154 dim 1 : vector<24x128xf32>, i32 -> vector<24x128xf32>
    %502 = vector.extract_strided_slice %2 {offsets = [2, 0], sizes = [1, 128], strides = [1, 1]} : vector<10x128xf32> to vector<1x128xf32>
    %503 = vector.broadcast %502 : vector<1x128xf32> to vector<24x128xf32>
    %504 = arith.mulf %501, %503 : vector<24x128xf32>
    %c1_i32_155 = arith.constant 1 : i32
    %505 = tpu.dynamic_rotate %492 by %c1_i32_155 dim 1 : vector<24x128xf32>, i32 -> vector<24x128xf32>
    %506 = vector.extract_strided_slice %2 {offsets = [3, 0], sizes = [1, 128], strides = [1, 1]} : vector<10x128xf32> to vector<1x128xf32>
    %507 = vector.broadcast %506 : vector<1x128xf32> to vector<24x128xf32>
    %508 = arith.mulf %505, %507 : vector<24x128xf32>
    %c127_i32_156 = arith.constant 127 : i32
    %509 = tpu.dynamic_rotate %492 by %c127_i32_156 dim 1 : vector<24x128xf32>, i32 -> vector<24x128xf32>
    %510 = vector.extract_strided_slice %2 {offsets = [5, 0], sizes = [1, 128], strides = [1, 1]} : vector<10x128xf32> to vector<1x128xf32>
    %511 = vector.broadcast %510 : vector<1x128xf32> to vector<24x128xf32>
    %512 = arith.mulf %509, %511 : vector<24x128xf32>
    %c121_i32_157 = arith.constant 121 : i32
    %513 = tpu.dynamic_rotate %492 by %c121_i32_157 dim 1 : vector<24x128xf32>, i32 -> vector<24x128xf32>
    %514 = vector.extract_strided_slice %2 {offsets = [6, 0], sizes = [1, 128], strides = [1, 1]} : vector<10x128xf32> to vector<1x128xf32>
    %515 = vector.broadcast %514 : vector<1x128xf32> to vector<24x128xf32>
    %516 = arith.mulf %513, %515 : vector<24x128xf32>
    %c120_i32_158 = arith.constant 120 : i32
    %517 = tpu.dynamic_rotate %492 by %c120_i32_158 dim 1 : vector<24x128xf32>, i32 -> vector<24x128xf32>
    %518 = vector.extract_strided_slice %2 {offsets = [7, 0], sizes = [1, 128], strides = [1, 1]} : vector<10x128xf32> to vector<1x128xf32>
    %519 = vector.broadcast %518 : vector<1x128xf32> to vector<24x128xf32>
    %520 = arith.mulf %517, %519 : vector<24x128xf32>
    %c119_i32_159 = arith.constant 119 : i32
    %521 = tpu.dynamic_rotate %492 by %c119_i32_159 dim 1 : vector<24x128xf32>, i32 -> vector<24x128xf32>
    %522 = vector.extract_strided_slice %2 {offsets = [8, 0], sizes = [1, 128], strides = [1, 1]} : vector<10x128xf32> to vector<1x128xf32>
    %523 = vector.broadcast %522 : vector<1x128xf32> to vector<24x128xf32>
    %524 = arith.mulf %521, %523 : vector<24x128xf32>
    %525 = tpu.concatenate %496, %500, %504, %508, %492, %512, %516, %520, %524 in 0 : vector<24x128xf32>, vector<24x128xf32>, vector<24x128xf32>, vector<24x128xf32>, vector<24x128xf32>, vector<24x128xf32>, vector<24x128xf32>, vector<24x128xf32>, vector<24x128xf32> -> vector<216x128xf32>
    %526 = arith.truncf %525 : vector<216x128xf32> to vector<216x128xbf16>
    %c0_160 = arith.constant 0 : index
    %c0_161 = arith.constant 0 : index
    %527 = vector.load %arg21[%c0_160, %c0_161] : memref<24x216xbf16, #tpu.memory_space<vmem>>, vector<24x216xbf16>
    %cst_162 = arith.constant dense<0.000000e+00> : vector<24x128xf32>
    %528 = tpu.matmul %527, %526, %cst_162 {dimension_numbers = #tpu.dot_dimension_numbers<[1], [0], [0], [1], [0, 0, 1, 1], [], []>} : vector<24x216xbf16>, vector<216x128xbf16>, vector<24x128xf32> -> vector<24x128xf32>
    %c4 = arith.constant 4 : index
    %c0_163 = arith.constant 0 : index
    %c0_164 = arith.constant 0 : index
    %529 = vector.load %arg9[%c4, %c0_163, %c0_164] : memref<5x24x1xf32, #tpu.memory_space<vmem>>, vector<1x24x1xf32>
    %530 = vector.shape_cast %529 : vector<1x24x1xf32> to vector<24x1xf32>
    %c4_165 = arith.constant 4 : index
    %c0_166 = arith.constant 0 : index
    %c0_167 = arith.constant 0 : index
    %531 = vector.load %arg10[%c4_165, %c0_166, %c0_167] : memref<5x24x1xf32, #tpu.memory_space<vmem>>, vector<1x24x1xf32>
    %532 = vector.shape_cast %531 : vector<1x24x1xf32> to vector<24x1xf32>
    %cst_168 = arith.constant 0.000000e+00 : f32
    %533 = vector.broadcast %cst_168 : f32 to vector<24x128xf32>
    %534 = arith.maximumf %528, %533 : vector<24x128xf32>
    %535 = arith.mulf %534, %534 : vector<24x128xf32>
    %cst_169 = arith.constant dense<0.000000e+00> : vector<24x128xf32>
    %536 = tpu.matmul %3, %534, %cst_169 {dimension_numbers = #tpu.dot_dimension_numbers<[1], [0], [0], [1], [0, 0, 1, 1], [], []>} : vector<24x24xf32>, vector<24x128xf32>, vector<24x128xf32> -> vector<24x128xf32>
    %cst_170 = arith.constant dense<0.000000e+00> : vector<24xf32>
    %537 = vector.multi_reduction <add>, %536, %cst_170 [1] : vector<24x128xf32> to vector<24xf32>
    %538 = vector.shape_cast %537 : vector<24xf32> to vector<24x1xf32>
    %cst_171 = arith.constant dense<0.000000e+00> : vector<24x128xf32>
    %539 = tpu.matmul %3, %535, %cst_171 {dimension_numbers = #tpu.dot_dimension_numbers<[1], [0], [0], [1], [0, 0, 1, 1], [], []>} : vector<24x24xf32>, vector<24x128xf32>, vector<24x128xf32> -> vector<24x128xf32>
    %cst_172 = arith.constant dense<0.000000e+00> : vector<24xf32>
    %540 = vector.multi_reduction <add>, %539, %cst_172 [1] : vector<24x128xf32> to vector<24xf32>
    %541 = vector.shape_cast %540 : vector<24xf32> to vector<24x1xf32>
    %cst_173 = arith.constant 0.00260416674 : f32
    %542 = vector.broadcast %cst_173 : f32 to vector<24x1xf32>
    %543 = arith.mulf %538, %542 : vector<24x1xf32>
    %cst_174 = arith.constant 0.00260416674 : f32
    %544 = vector.broadcast %cst_174 : f32 to vector<24x1xf32>
    %545 = arith.mulf %541, %544 : vector<24x1xf32>
    %546 = arith.mulf %543, %543 : vector<24x1xf32>
    %547 = arith.subf %545, %546 : vector<24x1xf32>
    %cst_175 = arith.constant 9.99999974E-6 : f32
    %548 = vector.broadcast %cst_175 : f32 to vector<24x1xf32>
    %549 = arith.addf %547, %548 : vector<24x1xf32>
    %550 = math.rsqrt %549 : vector<24x1xf32>
    %551 = arith.mulf %550, %530 : vector<24x1xf32>
    %552 = vector.broadcast %543 : vector<24x1xf32> to vector<24x128xf32>
    %553 = arith.subf %534, %552 : vector<24x128xf32>
    %554 = vector.broadcast %551 : vector<24x1xf32> to vector<24x128xf32>
    %555 = arith.mulf %553, %554 : vector<24x128xf32>
    %556 = vector.broadcast %532 : vector<24x1xf32> to vector<24x128xf32>
    %557 = arith.addf %555, %556 : vector<24x128xf32>
    %558 = vector.broadcast %425 : vector<1x128xf32> to vector<24x128xf32>
    %559 = arith.mulf %557, %558 : vector<24x128xf32>
    %c9_i32_176 = arith.constant 9 : i32
    %560 = tpu.dynamic_rotate %559 by %c9_i32_176 dim 1 : vector<24x128xf32>, i32 -> vector<24x128xf32>
    %561 = vector.extract_strided_slice %2 {offsets = [0, 0], sizes = [1, 128], strides = [1, 1]} : vector<10x128xf32> to vector<1x128xf32>
    %562 = vector.broadcast %561 : vector<1x128xf32> to vector<24x128xf32>
    %563 = arith.mulf %560, %562 : vector<24x128xf32>
    %c8_i32_177 = arith.constant 8 : i32
    %564 = tpu.dynamic_rotate %559 by %c8_i32_177 dim 1 : vector<24x128xf32>, i32 -> vector<24x128xf32>
    %565 = vector.extract_strided_slice %2 {offsets = [1, 0], sizes = [1, 128], strides = [1, 1]} : vector<10x128xf32> to vector<1x128xf32>
    %566 = vector.broadcast %565 : vector<1x128xf32> to vector<24x128xf32>
    %567 = arith.mulf %564, %566 : vector<24x128xf32>
    %c7_i32_178 = arith.constant 7 : i32
    %568 = tpu.dynamic_rotate %559 by %c7_i32_178 dim 1 : vector<24x128xf32>, i32 -> vector<24x128xf32>
    %569 = vector.extract_strided_slice %2 {offsets = [2, 0], sizes = [1, 128], strides = [1, 1]} : vector<10x128xf32> to vector<1x128xf32>
    %570 = vector.broadcast %569 : vector<1x128xf32> to vector<24x128xf32>
    %571 = arith.mulf %568, %570 : vector<24x128xf32>
    %c1_i32_179 = arith.constant 1 : i32
    %572 = tpu.dynamic_rotate %559 by %c1_i32_179 dim 1 : vector<24x128xf32>, i32 -> vector<24x128xf32>
    %573 = vector.extract_strided_slice %2 {offsets = [3, 0], sizes = [1, 128], strides = [1, 1]} : vector<10x128xf32> to vector<1x128xf32>
    %574 = vector.broadcast %573 : vector<1x128xf32> to vector<24x128xf32>
    %575 = arith.mulf %572, %574 : vector<24x128xf32>
    %c127_i32_180 = arith.constant 127 : i32
    %576 = tpu.dynamic_rotate %559 by %c127_i32_180 dim 1 : vector<24x128xf32>, i32 -> vector<24x128xf32>
    %577 = vector.extract_strided_slice %2 {offsets = [5, 0], sizes = [1, 128], strides = [1, 1]} : vector<10x128xf32> to vector<1x128xf32>
    %578 = vector.broadcast %577 : vector<1x128xf32> to vector<24x128xf32>
    %579 = arith.mulf %576, %578 : vector<24x128xf32>
    %c121_i32_181 = arith.constant 121 : i32
    %580 = tpu.dynamic_rotate %559 by %c121_i32_181 dim 1 : vector<24x128xf32>, i32 -> vector<24x128xf32>
    %581 = vector.extract_strided_slice %2 {offsets = [6, 0], sizes = [1, 128], strides = [1, 1]} : vector<10x128xf32> to vector<1x128xf32>
    %582 = vector.broadcast %581 : vector<1x128xf32> to vector<24x128xf32>
    %583 = arith.mulf %580, %582 : vector<24x128xf32>
    %c120_i32_182 = arith.constant 120 : i32
    %584 = tpu.dynamic_rotate %559 by %c120_i32_182 dim 1 : vector<24x128xf32>, i32 -> vector<24x128xf32>
    %585 = vector.extract_strided_slice %2 {offsets = [7, 0], sizes = [1, 128], strides = [1, 1]} : vector<10x128xf32> to vector<1x128xf32>
    %586 = vector.broadcast %585 : vector<1x128xf32> to vector<24x128xf32>
    %587 = arith.mulf %584, %586 : vector<24x128xf32>
    %c119_i32_183 = arith.constant 119 : i32
    %588 = tpu.dynamic_rotate %559 by %c119_i32_183 dim 1 : vector<24x128xf32>, i32 -> vector<24x128xf32>
    %589 = vector.extract_strided_slice %2 {offsets = [8, 0], sizes = [1, 128], strides = [1, 1]} : vector<10x128xf32> to vector<1x128xf32>
    %590 = vector.broadcast %589 : vector<1x128xf32> to vector<24x128xf32>
    %591 = arith.mulf %588, %590 : vector<24x128xf32>
    %592 = tpu.concatenate %563, %567, %571, %575, %559, %579, %583, %587, %591 in 0 : vector<24x128xf32>, vector<24x128xf32>, vector<24x128xf32>, vector<24x128xf32>, vector<24x128xf32>, vector<24x128xf32>, vector<24x128xf32>, vector<24x128xf32>, vector<24x128xf32> -> vector<216x128xf32>
    %593 = arith.truncf %592 : vector<216x128xf32> to vector<216x128xbf16>
    %c0_184 = arith.constant 0 : index
    %c0_185 = arith.constant 0 : index
    %594 = vector.load %arg22[%c0_184, %c0_185] : memref<48x216xbf16, #tpu.memory_space<vmem>>, vector<48x216xbf16>
    %cst_186 = arith.constant dense<0.000000e+00> : vector<48x128xf32>
    %595 = tpu.matmul %594, %593, %cst_186 {dimension_numbers = #tpu.dot_dimension_numbers<[1], [0], [0], [1], [0, 0, 1, 1], [], []>} : vector<48x216xbf16>, vector<216x128xbf16>, vector<48x128xf32> -> vector<48x128xf32>
    %c2_187 = arith.constant 2 : index
    %c0_188 = arith.constant 0 : index
    %c0_189 = arith.constant 0 : index
    %596 = vector.load %arg11[%c2_187, %c0_188, %c0_189] : memref<3x48x1xf32, #tpu.memory_space<vmem>>, vector<1x48x1xf32>
    %597 = vector.shape_cast %596 : vector<1x48x1xf32> to vector<48x1xf32>
    %c2_190 = arith.constant 2 : index
    %c0_191 = arith.constant 0 : index
    %c0_192 = arith.constant 0 : index
    %598 = vector.load %arg12[%c2_190, %c0_191, %c0_192] : memref<3x48x1xf32, #tpu.memory_space<vmem>>, vector<1x48x1xf32>
    %599 = vector.shape_cast %598 : vector<1x48x1xf32> to vector<48x1xf32>
    %cst_193 = arith.constant 0.000000e+00 : f32
    %600 = vector.broadcast %cst_193 : f32 to vector<48x128xf32>
    %601 = arith.maximumf %595, %600 : vector<48x128xf32>
    %602 = arith.mulf %601, %601 : vector<48x128xf32>
    %cst_194 = arith.constant dense<0.000000e+00> : vector<48x128xf32>
    %603 = tpu.matmul %4, %601, %cst_194 {dimension_numbers = #tpu.dot_dimension_numbers<[1], [0], [0], [1], [0, 0, 1, 1], [], []>} : vector<48x48xf32>, vector<48x128xf32>, vector<48x128xf32> -> vector<48x128xf32>
    %cst_195 = arith.constant dense<0.000000e+00> : vector<48xf32>
    %604 = vector.multi_reduction <add>, %603, %cst_195 [1] : vector<48x128xf32> to vector<48xf32>
    %605 = vector.shape_cast %604 : vector<48xf32> to vector<48x1xf32>
    %cst_196 = arith.constant dense<0.000000e+00> : vector<48x128xf32>
    %606 = tpu.matmul %4, %602, %cst_196 {dimension_numbers = #tpu.dot_dimension_numbers<[1], [0], [0], [1], [0, 0, 1, 1], [], []>} : vector<48x48xf32>, vector<48x128xf32>, vector<48x128xf32> -> vector<48x128xf32>
    %cst_197 = arith.constant dense<0.000000e+00> : vector<48xf32>
    %607 = vector.multi_reduction <add>, %606, %cst_197 [1] : vector<48x128xf32> to vector<48xf32>
    %608 = vector.shape_cast %607 : vector<48xf32> to vector<48x1xf32>
    %cst_198 = arith.constant 0.00260416674 : f32
    %609 = vector.broadcast %cst_198 : f32 to vector<48x1xf32>
    %610 = arith.mulf %605, %609 : vector<48x1xf32>
    %cst_199 = arith.constant 0.00260416674 : f32
    %611 = vector.broadcast %cst_199 : f32 to vector<48x1xf32>
    %612 = arith.mulf %608, %611 : vector<48x1xf32>
    %613 = arith.mulf %610, %610 : vector<48x1xf32>
    %614 = arith.subf %612, %613 : vector<48x1xf32>
    %cst_200 = arith.constant 9.99999974E-6 : f32
    %615 = vector.broadcast %cst_200 : f32 to vector<48x1xf32>
    %616 = arith.addf %614, %615 : vector<48x1xf32>
    %617 = math.rsqrt %616 : vector<48x1xf32>
    %618 = arith.mulf %617, %597 : vector<48x1xf32>
    %619 = vector.broadcast %610 : vector<48x1xf32> to vector<48x128xf32>
    %620 = arith.subf %601, %619 : vector<48x128xf32>
    %621 = vector.broadcast %618 : vector<48x1xf32> to vector<48x128xf32>
    %622 = arith.mulf %620, %621 : vector<48x128xf32>
    %623 = vector.broadcast %599 : vector<48x1xf32> to vector<48x128xf32>
    %624 = arith.addf %622, %623 : vector<48x128xf32>
    %625 = vector.broadcast %425 : vector<1x128xf32> to vector<48x128xf32>
    %626 = arith.mulf %624, %625 : vector<48x128xf32>
    %c0_201 = arith.constant 0 : index
    %c0_202 = arith.constant 0 : index
    %627 = vector.load %arg23[%c0_201, %c0_202] : memref<10x48xf32, #tpu.memory_space<vmem>>, vector<10x48xf32>
    %cst_203 = arith.constant dense<0.000000e+00> : vector<10x128xf32>
    %628 = tpu.matmul %627, %626, %cst_203 {dimension_numbers = #tpu.dot_dimension_numbers<[1], [0], [0], [1], [0, 0, 1, 1], [], []>} : vector<10x48xf32>, vector<48x128xf32>, vector<10x128xf32> -> vector<10x128xf32>
    %cst_204 = arith.constant dense<0.000000e+00> : vector<10xf32>
    %629 = vector.multi_reduction <add>, %628, %cst_204 [1] : vector<10x128xf32> to vector<10xf32>
    %630 = vector.shape_cast %629 : vector<10xf32> to vector<10x1xf32>
    %cst_205 = arith.constant 1.562500e-02 : f32
    %631 = vector.broadcast %cst_205 : f32 to vector<10x1xf32>
    %632 = arith.mulf %630, %631 : vector<10x1xf32>
    %cst_206 = arith.constant dense<0xFF800000> : vector<1xf32>
    %633 = vector.multi_reduction <maximumf>, %632, %cst_206 [0] : vector<10x1xf32> to vector<1xf32>
    %634 = vector.shape_cast %633 : vector<1xf32> to vector<1x1xf32>
    %635 = vector.broadcast %634 : vector<1x1xf32> to vector<10x1xf32>
    %636 = arith.subf %632, %635 : vector<10x1xf32>
    %637 = math.exp %636 : vector<10x1xf32>
    %cst_207 = arith.constant dense<0.000000e+00> : vector<1xf32>
    %638 = vector.multi_reduction <add>, %637, %cst_207 [0] : vector<10x1xf32> to vector<1xf32>
    %639 = vector.shape_cast %638 : vector<1xf32> to vector<1x1xf32>
    %640 = math.log %639 : vector<1x1xf32>
    %641 = vector.broadcast %640 : vector<1x1xf32> to vector<10x1xf32>
    %642 = arith.subf %636, %641 : vector<10x1xf32>
    %c0_208 = arith.constant 0 : index
    %c0_209 = arith.constant 0 : index
    %c0_210 = arith.constant 0 : index
    %643 = vector.load %arg24[%c0_208, %c0_209, %c0_210] : memref<1x10x1xf32, #tpu.memory_space<vmem>>, vector<1x10x1xf32>
    %644 = vector.shape_cast %643 : vector<1x10x1xf32> to vector<10x1xf32>
    %645 = vector.shape_cast %642 : vector<10x1xf32> to vector<1x10x1xf32>
    tpu.vector_store %arg24[%c0_208, %c0_209, %c0_210], %645 {strides = array<i32>} : memref<1x10x1xf32, #tpu.memory_space<vmem>>, vector<1x10x1xf32>,
    return
  }
  func.func @transform_0(%arg0: i32) -> (i32, i32, i32) {
    %c0_i32 = arith.constant 0 : i32
    %c0_i32_0 = arith.constant 0 : i32
    %c0_i32_1 = arith.constant 0 : i32
    return %arg0, %c0_i32, %c0_i32_0 : i32, i32, i32
  }
  func.func @transform_1(%arg0: i32) -> (i32, i32) {
    %c0_i32 = arith.constant 0 : i32
    %c0_i32_0 = arith.constant 0 : i32
    %c0_i32_1 = arith.constant 0 : i32
    return %c0_i32, %c0_i32_0 : i32, i32
  }
  func.func @transform_2(%arg0: i32) -> (i32, i32) {
    %c0_i32 = arith.constant 0 : i32
    %c0_i32_0 = arith.constant 0 : i32
    %c0_i32_1 = arith.constant 0 : i32
    return %c0_i32, %c0_i32_0 : i32, i32
  }
  func.func @transform_3(%arg0: i32) -> (i32, i32) {
    %c0_i32 = arith.constant 0 : i32
    %c0_i32_0 = arith.constant 0 : i32
    %c0_i32_1 = arith.constant 0 : i32
    return %c0_i32, %c0_i32_0 : i32, i32
  }
  func.func @transform_4(%arg0: i32) -> (i32, i32) {
    %c0_i32 = arith.constant 0 : i32
    %c0_i32_0 = arith.constant 0 : i32
    %c0_i32_1 = arith.constant 0 : i32
    return %c0_i32, %c0_i32_0 : i32, i32
  }
  func.func @transform_5(%arg0: i32) -> (i32, i32) {
    %c0_i32 = arith.constant 0 : i32
    %c0_i32_0 = arith.constant 0 : i32
    %c0_i32_1 = arith.constant 0 : i32
    return %c0_i32, %c0_i32_0 : i32, i32
  }
  func.func @transform_6(%arg0: i32) -> (i32, i32) {
    %c0_i32 = arith.constant 0 : i32
    %c0_i32_0 = arith.constant 0 : i32
    %c0_i32_1 = arith.constant 0 : i32
    return %c0_i32, %c0_i32_0 : i32, i32
  }
  func.func @transform_7(%arg0: i32) -> (i32, i32) {
    %c0_i32 = arith.constant 0 : i32
    %c0_i32_0 = arith.constant 0 : i32
    %c0_i32_1 = arith.constant 0 : i32
    return %c0_i32, %c0_i32_0 : i32, i32
  }
  func.func @transform_8(%arg0: i32) -> (i32, i32, i32) {
    %c0_i32 = arith.constant 0 : i32
    %c0_i32_0 = arith.constant 0 : i32
    %c0_i32_1 = arith.constant 0 : i32
    %c0_i32_2 = arith.constant 0 : i32
    return %c0_i32, %c0_i32_0, %c0_i32_1 : i32, i32, i32
  }
  func.func @transform_9(%arg0: i32) -> (i32, i32, i32) {
    %c0_i32 = arith.constant 0 : i32
    %c0_i32_0 = arith.constant 0 : i32
    %c0_i32_1 = arith.constant 0 : i32
    %c0_i32_2 = arith.constant 0 : i32
    return %c0_i32, %c0_i32_0, %c0_i32_1 : i32, i32, i32
  }
  func.func @transform_10(%arg0: i32) -> (i32, i32, i32) {
    %c0_i32 = arith.constant 0 : i32
    %c0_i32_0 = arith.constant 0 : i32
    %c0_i32_1 = arith.constant 0 : i32
    %c0_i32_2 = arith.constant 0 : i32
    return %c0_i32, %c0_i32_0, %c0_i32_1 : i32, i32, i32
  }
  func.func @transform_11(%arg0: i32) -> (i32, i32, i32) {
    %c0_i32 = arith.constant 0 : i32
    %c0_i32_0 = arith.constant 0 : i32
    %c0_i32_1 = arith.constant 0 : i32
    %c0_i32_2 = arith.constant 0 : i32
    return %c0_i32, %c0_i32_0, %c0_i32_1 : i32, i32, i32
  }
  func.func @transform_12(%arg0: i32) -> (i32, i32) {
    %c0_i32 = arith.constant 0 : i32
    %c0_i32_0 = arith.constant 0 : i32
    %c0_i32_1 = arith.constant 0 : i32
    return %c0_i32, %c0_i32_0 : i32, i32
  }
  func.func @transform_13(%arg0: i32) -> (i32, i32) {
    %c0_i32 = arith.constant 0 : i32
    %c0_i32_0 = arith.constant 0 : i32
    %c0_i32_1 = arith.constant 0 : i32
    return %c0_i32, %c0_i32_0 : i32, i32
  }
  func.func @transform_14(%arg0: i32) -> (i32, i32) {
    %c0_i32 = arith.constant 0 : i32
    %c0_i32_0 = arith.constant 0 : i32
    %c0_i32_1 = arith.constant 0 : i32
    return %c0_i32, %c0_i32_0 : i32, i32
  }
  func.func @transform_15(%arg0: i32) -> (i32, i32) {
    %c0_i32 = arith.constant 0 : i32
    %c0_i32_0 = arith.constant 0 : i32
    %c0_i32_1 = arith.constant 0 : i32
    return %c0_i32, %c0_i32_0 : i32, i32
  }
  func.func @transform_16(%arg0: i32) -> (i32, i32) {
    %c0_i32 = arith.constant 0 : i32
    %c0_i32_0 = arith.constant 0 : i32
    %c0_i32_1 = arith.constant 0 : i32
    return %c0_i32, %c0_i32_0 : i32, i32
  }
  func.func @transform_17(%arg0: i32) -> (i32, i32) {
    %c0_i32 = arith.constant 0 : i32
    %c0_i32_0 = arith.constant 0 : i32
    %c0_i32_1 = arith.constant 0 : i32
    return %c0_i32, %c0_i32_0 : i32, i32
  }
  func.func @transform_18(%arg0: i32) -> (i32, i32) {
    %c0_i32 = arith.constant 0 : i32
    %c0_i32_0 = arith.constant 0 : i32
    %c0_i32_1 = arith.constant 0 : i32
    return %c0_i32, %c0_i32_0 : i32, i32
  }
  func.func @transform_19(%arg0: i32) -> (i32, i32) {
    %c0_i32 = arith.constant 0 : i32
    %c0_i32_0 = arith.constant 0 : i32
    %c0_i32_1 = arith.constant 0 : i32
    return %c0_i32, %c0_i32_0 : i32, i32
  }
  func.func @transform_20(%arg0: i32) -> (i32, i32) {
    %c0_i32 = arith.constant 0 : i32
    %c0_i32_0 = arith.constant 0 : i32
    %c0_i32_1 = arith.constant 0 : i32
    return %c0_i32, %c0_i32_0 : i32, i32
  }
  func.func @transform_21(%arg0: i32) -> (i32, i32) {
    %c0_i32 = arith.constant 0 : i32
    %c0_i32_0 = arith.constant 0 : i32
    %c0_i32_1 = arith.constant 0 : i32
    return %c0_i32, %c0_i32_0 : i32, i32
  }
  func.func @transform_22(%arg0: i32) -> (i32, i32) {
    %c0_i32 = arith.constant 0 : i32
    %c0_i32_0 = arith.constant 0 : i32
    %c0_i32_1 = arith.constant 0 : i32
    return %c0_i32, %c0_i32_0 : i32, i32
  }
  func.func @transform_23(%arg0: i32) -> (i32, i32, i32) {
    %c0_i32 = arith.constant 0 : i32
    %c0_i32_0 = arith.constant 0 : i32
    %c0_i32_1 = arith.constant 0 : i32
    return %arg0, %c0_i32, %c0_i32_0 : i32, i32, i32
  }
}

</mosaic_0001>

<llo_original>
// kernel: group_norm_net_forward.1
$region0: #{group_norm_net_forward.1}
  #allocation0 [shape = 'u32[]', space=smem, size = 0x4, offset = 0x4, fixed_abs, tag = 'smem constant byte address 0x4 - core index']
  #allocation1 [shape = 'u32[72,128]{1,0:T(1,128)}', space=vmem, size = 0x9000, scoped, tag = 'internal scratch']
  %s0 = inlined_call_operand.vmem [shape: f32[2,8,1024], index: 0, kind: input, shape index: {}]
  %s1 = inlined_call_operand.vmem [shape: f32[9,1024], index: 1, kind: input, shape index: {}]
  %s2 = inlined_call_operand.vmem [shape: f32[9,256], index: 2, kind: input, shape index: {}]
  %s3 = inlined_call_operand.vmem [shape: f32[10,128], index: 3, kind: input, shape index: {}]
  %s4 = inlined_call_operand.hbm [shape: bf16[1024,256], index: 4, kind: input, shape index: {}]
  %s5 = inlined_call_operand.vmem [shape: bf16[256,128], index: 5, kind: input, shape index: {}]
  %s6 = inlined_call_operand.vmem [shape: f32[24,24], index: 6, kind: input, shape index: {}]
  %s7 = inlined_call_operand.vmem [shape: f32[48,48], index: 7, kind: input, shape index: {}]
  %s8 = inlined_call_operand.vmem [shape: f32[5,24,1], index: 8, kind: input, shape index: {}]
  %s9 = inlined_call_operand.vmem [shape: f32[5,24,1], index: 9, kind: input, shape index: {}]
  %s10 = inlined_call_operand.vmem [shape: f32[3,48,1], index: 10, kind: input, shape index: {}]
  %s11 = inlined_call_operand.vmem [shape: f32[3,48,1], index: 11, kind: input, shape index: {}]
  %s12 = inlined_call_operand.vmem [shape: bf16[24,72], index: 12, kind: input, shape index: {}]
  %s13 = inlined_call_operand.vmem [shape: bf16[48,216], index: 13, kind: input, shape index: {}]
  %s14 = inlined_call_operand.vmem [shape: bf16[16,48], index: 14, kind: input, shape index: {}]
  %s15 = inlined_call_operand.vmem [shape: bf16[24,144], index: 15, kind: input, shape index: {}]
  %s16 = inlined_call_operand.vmem [shape: bf16[24,216], index: 16, kind: input, shape index: {}]
  %s17 = inlined_call_operand.vmem [shape: bf16[48,216], index: 17, kind: input, shape index: {}]
  %s18 = inlined_call_operand.vmem [shape: bf16[16,48], index: 18, kind: input, shape index: {}]
  %s19 = inlined_call_operand.vmem [shape: bf16[24,144], index: 19, kind: input, shape index: {}]
  %s20 = inlined_call_operand.vmem [shape: bf16[24,216], index: 20, kind: input, shape index: {}]
  %s21 = inlined_call_operand.vmem [shape: bf16[48,216], index: 21, kind: input, shape index: {}]
  %s22 = inlined_call_operand.vmem [shape: f32[10,48], index: 22, kind: input, shape index: {}]
  %s23 = inlined_call_operand.vmem [shape: f32[2,10,1], index: 23, kind: output, shape index: {}]
  %s24 = sld [smem:[#allocation0]]
  $region129: #{group_norm_net_forward.1} parent=0
    _
  %s26 = ssub.s32 1, %s24
  %s27 = scalar_select 0, %s26, %s24
  $region1: #{group_norm_net_forward.1} parent=0
    #allocation2 [shape = 'u8[524288]{0}', space=vmem, size = 0x80000, scoped, tag = 'input window, operand 4, single buffered']
    #allocation3 [shape = 's32[2]{0}', space=sflag, size = 0x8, scoped, tag = 'scoped memory for group_norm_net_forward.1']
    %28 = vsyncpa [#allocation3], 0
    loop: start=0, step=1, limit=4
    $region2: #{group_norm_net_forward.1} parent=1 // loop_pre_header
      _
    $region3: #{group_norm_net_forward.1} parent=1 // loop_header
      %s30 = sphi 0, %s34
      %p31 = scmp.ge.s32.totalorder %s30, 4
      %s40 = sphi 0, %s42
      %s43 = sphi 0, %s40
      %s44 = sphi 0, %s43
      %s60 = sphi 0, %s44
      %s64 = sphi 0, %s64
      %s66 = sphi 0, %s64
      %s67 = sphi 0, %s66
      %s81 = sphi 0, %s67
      %s85 = sphi 0, %s85
      %s87 = sphi 0, %s85
      %s88 = sphi 0, %s87
      %s102 = sphi 0, %s88
      %s106 = sphi 0, %s106
      %s108 = sphi 0, %s106
      %s109 = sphi 0, %s108
      %s123 = sphi 0, %s109
      %s127 = sphi 0, %s127
      %s129 = sphi 0, %s127
      %s130 = sphi 0, %s129
      %s144 = sphi 0, %s130
      %s148 = sphi 0, %s148
      %s150 = sphi 0, %s148
      %s151 = sphi 0, %s150
      %s165 = sphi 0, %s151
      %s169 = sphi 0, %s169
      %s171 = sphi 0, %s169
      %s172 = sphi 0, %s171
      %s186 = sphi 0, %s172
      %s190 = sphi 0, %s190
      %s192 = sphi 0, %s190
      %s193 = sphi 0, %s192
      %s207 = sphi 0, %s193
      %s211 = sphi 0, %s211
      %s213 = sphi 0, %s211
      %s214 = sphi 0, %s213
      %s228 = sphi 0, %s214
      %s232 = sphi 0, %s232
      %s234 = sphi 0, %s232
      %s235 = sphi 0, %s234
      %s249 = sphi 0, %s235
      %s253 = sphi 0, %s253
      %s255 = sphi 0, %s253
      %s256 = sphi 0, %s255
      %s270 = sphi 0, %s256
      %s274 = sphi 0, %s274
      %s276 = sphi 0, %s274
      %s277 = sphi 0, %s276
      %s291 = sphi 0, %s277
      %s295 = sphi 0, %s295
      %s297 = sphi 0, %s295
      %s298 = sphi 0, %s297
      %s312 = sphi 0, %s298
      %s316 = sphi 0, %s316
      %s318 = sphi 0, %s316
      %s319 = sphi 0, %s318
      %s333 = sphi 0, %s319
      %s337 = sphi 0, %s337
      %s339 = sphi 0, %s337
      %s340 = sphi 0, %s339
      %s354 = sphi 0, %s340
      %s358 = sphi 0, %s358
      %s360 = sphi 0, %s358
      %s361 = sphi 0, %s360
      %s375 = sphi 0, %s361
      %s379 = sphi 0, %s379
      %s381 = sphi 0, %s379
      %s382 = sphi 0, %s381
      %s396 = sphi 0, %s382
      %s400 = sphi 0, %s400
      %s402 = sphi 0, %s400
      %s403 = sphi 0, %s402
      %s417 = sphi 0, %s403
      %s421 = sphi 0, %s421
      %s423 = sphi 0, %s421
      %s424 = sphi 0, %s423
      %s438 = sphi 0, %s424
      %s442 = sphi 0, %s442
      %s444 = sphi 0, %s442
      %s445 = sphi 0, %s444
      %s459 = sphi 0, %s445
      %s463 = sphi 0, %s463
      %s465 = sphi 0, %s463
      %s466 = sphi 0, %s465
      %s480 = sphi 0, %s466
      %s484 = sphi 0, %s484
      %s486 = sphi 0, %s484
      %s487 = sphi 0, %s486
      %s501 = sphi 0, %s487
      %s505 = sphi 0, %s505
      %s507 = sphi 0, %s505
      %s508 = sphi 0, %s507
      %s522 = sphi 0, %s508
      %s528 = sphi 0, %s530
      %s531 = sphi 0, %s528
      %s532 = sphi 0, %s531
      %s548 = sphi 0, %s532
    $region4: #{group_norm_net_forward.1} parent=1 // loop_header_branch
      %33 = sbr.rel (%p31) target = $region8
    $region5: #{group_norm_net_forward.1} parent=1 // loop_body
      %s35 = ssub.s32 %s30, 1
      %s36 = ssub.s32 %s30, 2
      %s37 = sadd.s32 %s30, 1
      %s38 = ssub.s32 %s30, %s37
      %p39 = scmp.eq.s32.totalorder %s38, 0
      %s41 = sadd.s32 %s40, 1
      %s42 = scalar_select %p39, %s40, %s41
      %p45 = pneg %p39
      %p46 = scmp.eq.s32.totalorder %s30, 1
      %p47 = por %p45, %p46
      %p48 = scmp.ne.s32.totalorder %s40, %s43
      %p49 = scmp.eq.s32.totalorder %s30, 0
      %p50 = por %p48, %p49
      %p51 = scmp.ne.s32.totalorder %s40, %s43
      %p52 = scmp.eq.s32.totalorder %s35, 1
      %p53 = por %p51, %p52
      %p54 = scmp.ne.s32.totalorder %s43, %s44
      %p55 = scmp.eq.s32.totalorder %s35, 0
      %p56 = por %p54, %p55
      %p57 = scmp.ne.s32.totalorder %s43, %s44
      %p58 = scmp.eq.s32.totalorder %s36, 1
      %p59 = por %p57, %p58
      %p61 = scmp.ne.s32.totalorder %s44, %s60
      %p62 = scmp.eq.s32.totalorder %s36, 0
      %p63 = por %p61, %p62
      %s65 = sadd.s32 %s64, 1
      %p68 = scmp.eq.s32.totalorder %s30, 1
      %p69 = scmp.ne.s32.totalorder %s64, %s66
      %p70 = scmp.eq.s32.totalorder %s30, 0
      %p71 = por %p69, %p70
      %p72 = scmp.ne.s32.totalorder %s64, %s66
      %p73 = scmp.eq.s32.totalorder %s35, 1
      %p74 = por %p72, %p73
      %p75 = scmp.ne.s32.totalorder %s66, %s67
      %p76 = scmp.eq.s32.totalorder %s35, 0
      %p77 = por %p75, %p76
      %p78 = scmp.ne.s32.totalorder %s66, %s67
      %p79 = scmp.eq.s32.totalorder %s36, 1
      %p80 = por %p78, %p79
      %p82 = scmp.ne.s32.totalorder %s67, %s81
      %p83 = scmp.eq.s32.totalorder %s36, 0
      %p84 = por %p82, %p83
      %s86 = sadd.s32 %s85, 1
      %p89 = scmp.eq.s32.totalorder %s30, 1
      %p90 = scmp.ne.s32.totalorder %s85, %s87
      %p91 = scmp.eq.s32.totalorder %s30, 0
      %p92 = por %p90, %p91
      %p93 = scmp.ne.s32.totalorder %s85, %s87
      %p94 = scmp.eq.s32.totalorder %s35, 1
      %p95 = por %p93, %p94
      %p96 = scmp.ne.s32.totalorder %s87, %s88
      %p97 = scmp.eq.s32.totalorder %s35, 0
      %p98 = por %p96, %p97
      %p99 = scmp.ne.s32.totalorder %s87, %s88
      %p100 = scmp.eq.s32.totalorder %s36, 1
      %p101 = por %p99, %p100
      %p103 = scmp.ne.s32.totalorder %s88, %s102
      %p104 = scmp.eq.s32.totalorder %s36, 0
      %p105 = por %p103, %p104
      %s107 = sadd.s32 %s106, 1
      %p110 = scmp.eq.s32.totalorder %s30, 1
      %p111 = scmp.ne.s32.totalorder %s106, %s108
      %p112 = scmp.eq.s32.totalorder %s30, 0
      %p113 = por %p111, %p112
      %p114 = scmp.ne.s32.totalorder %s106, %s108
      %p115 = scmp.eq.s32.totalorder %s35, 1
      %p116 = por %p114, %p115
      %p117 = scmp.ne.s32.totalorder %s108, %s109
      %p118 = scmp.eq.s32.totalorder %s35, 0
      %p119 = por %p117, %p118
      %p120 = scmp.ne.s32.totalorder %s108, %s109
      %p121 = scmp.eq.s32.totalorder %s36, 1
      %p122 = por %p120, %p121
      %p124 = scmp.ne.s32.totalorder %s109, %s123
      %p125 = scmp.eq.s32.totalorder %s36, 0
      %p126 = por %p124, %p125
      %s128 = sadd.s32 %s127, 1
      %p131 = scmp.eq.s32.totalorder %s30, 1
      %p132 = scmp.ne.s32.totalorder %s127, %s129
      %p133 = scmp.eq.s32.totalorder %s30, 0
      %p134 = por %p132, %p133
      %p135 = scmp.ne.s32.totalorder %s127, %s129
      %p136 = scmp.eq.s32.totalorder %s35, 1
      %p137 = por %p135, %p136
      %p138 = scmp.ne.s32.totalorder %s129, %s130
      %p139 = scmp.eq.s32.totalorder %s35, 0
      %p140 = por %p138, %p139
      %p141 = scmp.ne.s32.totalorder %s129, %s130
      %p142 = scmp.eq.s32.totalorder %s36, 1
      %p143 = por %p141, %p142
      %p145 = scmp.ne.s32.totalorder %s130, %s144
      %p146 = scmp.eq.s32.totalorder %s36, 0
      %p147 = por %p145, %p146
      %s149 = sadd.s32 %s148, 1
      %p152 = scmp.eq.s32.totalorder %s30, 1
      %p153 = scmp.ne.s32.totalorder %s148, %s150
      %p154 = scmp.eq.s32.totalorder %s30, 0
      %p155 = por %p153, %p154
      %p156 = scmp.ne.s32.totalorder %s148, %s150
      %p157 = scmp.eq.s32.totalorder %s35, 1
      %p158 = por %p156, %p157
      %p159 = scmp.ne.s32.totalorder %s150, %s151
      %p160 = scmp.eq.s32.totalorder %s35, 0
      %p161 = por %p159, %p160
      %p162 = scmp.ne.s32.totalorder %s150, %s151
      %p163 = scmp.eq.s32.totalorder %s36, 1
      %p164 = por %p162, %p163
      %p166 = scmp.ne.s32.totalorder %s151, %s165
      %p167 = scmp.eq.s32.totalorder %s36, 0
      %p168 = por %p166, %p167
      %s170 = sadd.s32 %s169, 1
      %p173 = scmp.eq.s32.totalorder %s30, 1
      %p174 = scmp.ne.s32.totalorder %s169, %s171
      %p175 = scmp.eq.s32.totalorder %s30, 0
      %p176 = por %p174, %p175
      %p177 = scmp.ne.s32.totalorder %s169, %s171
      %p178 = scmp.eq.s32.totalorder %s35, 1
      %p179 = por %p177, %p178
      %p180 = scmp.ne.s32.totalorder %s171, %s172
      %p181 = scmp.eq.s32.totalorder %s35, 0
      %p182 = por %p180, %p181
      %p183 = scmp.ne.s32.totalorder %s171, %s172
      %p184 = scmp.eq.s32.totalorder %s36, 1
      %p185 = por %p183, %p184
      %p187 = scmp.ne.s32.totalorder %s172, %s186
      %p188 = scmp.eq.s32.totalorder %s36, 0
      %p189 = por %p187, %p188
      %s191 = sadd.s32 %s190, 1
      %p194 = scmp.eq.s32.totalorder %s30, 1
      %p195 = scmp.ne.s32.totalorder %s190, %s192
      %p196 = scmp.eq.s32.totalorder %s30, 0
      %p197 = por %p195, %p196
      %p198 = scmp.ne.s32.totalorder %s190, %s192
      %p199 = scmp.eq.s32.totalorder %s35, 1
      %p200 = por %p198, %p199
      %p201 = scmp.ne.s32.totalorder %s192, %s193
      %p202 = scmp.eq.s32.totalorder %s35, 0
      %p203 = por %p201, %p202
      %p204 = scmp.ne.s32.totalorder %s192, %s193
      %p205 = scmp.eq.s32.totalorder %s36, 1
      %p206 = por %p204, %p205
      %p208 = scmp.ne.s32.totalorder %s193, %s207
      %p209 = scmp.eq.s32.totalorder %s36, 0
      %p210 = por %p208, %p209
      %s212 = sadd.s32 %s211, 1
      %p215 = scmp.eq.s32.totalorder %s30, 1
      %p216 = scmp.ne.s32.totalorder %s211, %s213
      %p217 = scmp.eq.s32.totalorder %s30, 0
      %p218 = por %p216, %p217
      %p219 = scmp.ne.s32.totalorder %s211, %s213
      %p220 = scmp.eq.s32.totalorder %s35, 1
      %p221 = por %p219, %p220
      %p222 = scmp.ne.s32.totalorder %s213, %s214
      %p223 = scmp.eq.s32.totalorder %s35, 0
      %p224 = por %p222, %p223
      %p225 = scmp.ne.s32.totalorder %s213, %s214
      %p226 = scmp.eq.s32.totalorder %s36, 1
      %p227 = por %p225, %p226
      %p229 = scmp.ne.s32.totalorder %s214, %s228
      %p230 = scmp.eq.s32.totalorder %s36, 0
      %p231 = por %p229, %p230
      %s233 = sadd.s32 %s232, 1
      %p236 = scmp.eq.s32.totalorder %s30, 1
      %p237 = scmp.ne.s32.totalorder %s232, %s234
      %p238 = scmp.eq.s32.totalorder %s30, 0
      %p239 = por %p237, %p238
      %p240 = scmp.ne.s32.totalorder %s232, %s234
      %p241 = scmp.eq.s32.totalorder %s35, 1
      %p242 = por %p240, %p241
      %p243 = scmp.ne.s32.totalorder %s234, %s235
      %p244 = scmp.eq.s32.totalorder %s35, 0
      %p245 = por %p243, %p244
      %p246 = scmp.ne.s32.totalorder %s234, %s235
      %p247 = scmp.eq.s32.totalorder %s36, 1
      %p248 = por %p246, %p247
      %p250 = scmp.ne.s32.totalorder %s235, %s249
      %p251 = scmp.eq.s32.totalorder %s36, 0
      %p252 = por %p250, %p251
      %s254 = sadd.s32 %s253, 1
      %p257 = scmp.eq.s32.totalorder %s30, 1
      %p258 = scmp.ne.s32.totalorder %s253, %s255
      %p259 = scmp.eq.s32.totalorder %s30, 0
      %p260 = por %p258, %p259
      %p261 = scmp.ne.s32.totalorder %s253, %s255
      %p262 = scmp.eq.s32.totalorder %s35, 1
      %p263 = por %p261, %p262
      %p264 = scmp.ne.s32.totalorder %s255, %s256
      %p265 = scmp.eq.s32.totalorder %s35, 0
      %p266 = por %p264, %p265
      %p267 = scmp.ne.s32.totalorder %s255, %s256
      %p268 = scmp.eq.s32.totalorder %s36, 1
      %p269 = por %p267, %p268
      %p271 = scmp.ne.s32.totalorder %s256, %s270
      %p272 = scmp.eq.s32.totalorder %s36, 0
      %p273 = por %p271, %p272
      %s275 = sadd.s32 %s274, 1
      %p278 = scmp.eq.s32.totalorder %s30, 1
      %p279 = scmp.ne.s32.totalorder %s274, %s276
      %p280 = scmp.eq.s32.totalorder %s30, 0
      %p281 = por %p279, %p280
      %p282 = scmp.ne.s32.totalorder %s274, %s276
      %p283 = scmp.eq.s32.totalorder %s35, 1
      %p284 = por %p282, %p283
      %p285 = scmp.ne.s32.totalorder %s276, %s277
      %p286 = scmp.eq.s32.totalorder %s35, 0
      %p287 = por %p285, %p286
      %p288 = scmp.ne.s32.totalorder %s276, %s277
      %p289 = scmp.eq.s32.totalorder %s36, 1
      %p290 = por %p288, %p289
      %p292 = scmp.ne.s32.totalorder %s277, %s291
      %p293 = scmp.eq.s32.totalorder %s36, 0
      %p294 = por %p292, %p293
      %s296 = sadd.s32 %s295, 1
      %p299 = scmp.eq.s32.totalorder %s30, 1
      %p300 = scmp.ne.s32.totalorder %s295, %s297
      %p301 = scmp.eq.s32.totalorder %s30, 0
      %p302 = por %p300, %p301
      %p303 = scmp.ne.s32.totalorder %s295, %s297
      %p304 = scmp.eq.s32.totalorder %s35, 1
      %p305 = por %p303, %p304
      %p306 = scmp.ne.s32.totalorder %s297, %s298
      %p307 = scmp.eq.s32.totalorder %s35, 0
      %p308 = por %p306, %p307
      %p309 = scmp.ne.s32.totalorder %s297, %s298
      %p310 = scmp.eq.s32.totalorder %s36, 1
      %p311 = por %p309, %p310
      %p313 = scmp.ne.s32.totalorder %s298, %s312
      %p314 = scmp.eq.s32.totalorder %s36, 0
      %p315 = por %p313, %p314
      %s317 = sadd.s32 %s316, 1
      %p320 = scmp.eq.s32.totalorder %s30, 1
      %p321 = scmp.ne.s32.totalorder %s316, %s318
      %p322 = scmp.eq.s32.totalorder %s30, 0
      %p323 = por %p321, %p322
      %p324 = scmp.ne.s32.totalorder %s316, %s318
      %p325 = scmp.eq.s32.totalorder %s35, 1
      %p326 = por %p324, %p325
      %p327 = scmp.ne.s32.totalorder %s318, %s319
      %p328 = scmp.eq.s32.totalorder %s35, 0
      %p329 = por %p327, %p328
      %p330 = scmp.ne.s32.totalorder %s318, %s319
      %p331 = scmp.eq.s32.totalorder %s36, 1
      %p332 = por %p330, %p331
      %p334 = scmp.ne.s32.totalorder %s319, %s333
      %p335 = scmp.eq.s32.totalorder %s36, 0
      %p336 = por %p334, %p335
      %s338 = sadd.s32 %s337, 1
      %p341 = scmp.eq.s32.totalorder %s30, 1
      %p342 = scmp.ne.s32.totalorder %s337, %s339
      %p343 = scmp.eq.s32.totalorder %s30, 0
      %p344 = por %p342, %p343
      %p345 = scmp.ne.s32.totalorder %s337, %s339
      %p346 = scmp.eq.s32.totalorder %s35, 1
      %p347 = por %p345, %p346
      %p348 = scmp.ne.s32.totalorder %s339, %s340
      %p349 = scmp.eq.s32.totalorder %s35, 0
      %p350 = por %p348, %p349
      %p351 = scmp.ne.s32.totalorder %s339, %s340
      %p352 = scmp.eq.s32.totalorder %s36, 1
      %p353 = por %p351, %p352
      %p355 = scmp.ne.s32.totalorder %s340, %s354
      %p356 = scmp.eq.s32.totalorder %s36, 0
      %p357 = por %p355, %p356
      %s359 = sadd.s32 %s358, 1
      %p362 = scmp.eq.s32.totalorder %s30, 1
      %p363 = scmp.ne.s32.totalorder %s358, %s360
      %p364 = scmp.eq.s32.totalorder %s30, 0
      %p365 = por %p363, %p364
      %p366 = scmp.ne.s32.totalorder %s358, %s360
      %p367 = scmp.eq.s32.totalorder %s35, 1
      %p368 = por %p366, %p367
      %p369 = scmp.ne.s32.totalorder %s360, %s361
      %p370 = scmp.eq.s32.totalorder %s35, 0
      %p371 = por %p369, %p370
      %p372 = scmp.ne.s32.totalorder %s360, %s361
      %p373 = scmp.eq.s32.totalorder %s36, 1
      %p374 = por %p372, %p373
      %p376 = scmp.ne.s32.totalorder %s361, %s375
      %p377 = scmp.eq.s32.totalorder %s36, 0
      %p378 = por %p376, %p377
      %s380 = sadd.s32 %s379, 1
      %p383 = scmp.eq.s32.totalorder %s30, 1
      %p384 = scmp.ne.s32.totalorder %s379, %s381
      %p385 = scmp.eq.s32.totalorder %s30, 0
      %p386 = por %p384, %p385
      %p387 = scmp.ne.s32.totalorder %s379, %s381
      %p388 = scmp.eq.s32.totalorder %s35, 1
      %p389 = por %p387, %p388
      %p390 = scmp.ne.s32.totalorder %s381, %s382
      %p391 = scmp.eq.s32.totalorder %s35, 0
      %p392 = por %p390, %p391
      %p393 = scmp.ne.s32.totalorder %s381, %s382
      %p394 = scmp.eq.s32.totalorder %s36, 1
      %p395 = por %p393, %p394
      %p397 = scmp.ne.s32.totalorder %s382, %s396
      %p398 = scmp.eq.s32.totalorder %s36, 0
      %p399 = por %p397, %p398
      %s401 = sadd.s32 %s400, 1
      %p404 = scmp.eq.s32.totalorder %s30, 1
      %p405 = scmp.ne.s32.totalorder %s400, %s402
      %p406 = scmp.eq.s32.totalorder %s30, 0
      %p407 = por %p405, %p406
      %p408 = scmp.ne.s32.totalorder %s400, %s402
      %p409 = scmp.eq.s32.totalorder %s35, 1
      %p410 = por %p408, %p409
      %p411 = scmp.ne.s32.totalorder %s402, %s403
      %p412 = scmp.eq.s32.totalorder %s35, 0
      %p413 = por %p411, %p412
      %p414 = scmp.ne.s32.totalorder %s402, %s403
      %p415 = scmp.eq.s32.totalorder %s36, 1
      %p416 = por %p414, %p415
      %p418 = scmp.ne.s32.totalorder %s403, %s417
      %p419 = scmp.eq.s32.totalorder %s36, 0
      %p420 = por %p418, %p419
      %s422 = sadd.s32 %s421, 1
      %p425 = scmp.eq.s32.totalorder %s30, 1
      %p426 = scmp.ne.s32.totalorder %s421, %s423
      %p427 = scmp.eq.s32.totalorder %s30, 0
      %p428 = por %p426, %p427
      %p429 = scmp.ne.s32.totalorder %s421, %s423
      %p430 = scmp.eq.s32.totalorder %s35, 1
      %p431 = por %p429, %p430
      %p432 = scmp.ne.s32.totalorder %s423, %s424
      %p433 = scmp.eq.s32.totalorder %s35, 0
      %p434 = por %p432, %p433
      %p435 = scmp.ne.s32.totalorder %s423, %s424
      %p436 = scmp.eq.s32.totalorder %s36, 1
      %p437 = por %p435, %p436
      %p439 = scmp.ne.s32.totalorder %s424, %s438
      %p440 = scmp.eq.s32.totalorder %s36, 0
      %p441 = por %p439, %p440
      %s443 = sadd.s32 %s442, 1
      %p446 = scmp.eq.s32.totalorder %s30, 1
      %p447 = scmp.ne.s32.totalorder %s442, %s444
      %p448 = scmp.eq.s32.totalorder %s30, 0
      %p449 = por %p447, %p448
      %p450 = scmp.ne.s32.totalorder %s442, %s444
      %p451 = scmp.eq.s32.totalorder %s35, 1
      %p452 = por %p450, %p451
      %p453 = scmp.ne.s32.totalorder %s444, %s445
      %p454 = scmp.eq.s32.totalorder %s35, 0
      %p455 = por %p453, %p454
      %p456 = scmp.ne.s32.totalorder %s444, %s445
      %p457 = scmp.eq.s32.totalorder %s36, 1
      %p458 = por %p456, %p457
      %p460 = scmp.ne.s32.totalorder %s445, %s459
      %p461 = scmp.eq.s32.totalorder %s36, 0
      %p462 = por %p460, %p461
      %s464 = sadd.s32 %s463, 1
      %p467 = scmp.eq.s32.totalorder %s30, 1
      %p468 = scmp.ne.s32.totalorder %s463, %s465
      %p469 = scmp.eq.s32.totalorder %s30, 0
      %p470 = por %p468, %p469
      %p471 = scmp.ne.s32.totalorder %s463, %s465
      %p472 = scmp.eq.s32.totalorder %s35, 1
      %p473 = por %p471, %p472
      %p474 = scmp.ne.s32.totalorder %s465, %s466
      %p475 = scmp.eq.s32.totalorder %s35, 0
      %p476 = por %p474, %p475
      %p477 = scmp.ne.s32.totalorder %s465, %s466
      %p478 = scmp.eq.s32.totalorder %s36, 1
      %p479 = por %p477, %p478
      %p481 = scmp.ne.s32.totalorder %s466, %s480
      %p482 = scmp.eq.s32.totalorder %s36, 0
      %p483 = por %p481, %p482
      %s485 = sadd.s32 %s484, 1
      %p488 = scmp.eq.s32.totalorder %s30, 1
      %p489 = scmp.ne.s32.totalorder %s484, %s486
      %p490 = scmp.eq.s32.totalorder %s30, 0
      %p491 = por %p489, %p490
      %p492 = scmp.ne.s32.totalorder %s484, %s486
      %p493 = scmp.eq.s32.totalorder %s35, 1
      %p494 = por %p492, %p493
      %p495 = scmp.ne.s32.totalorder %s486, %s487
      %p496 = scmp.eq.s32.totalorder %s35, 0
      %p497 = por %p495, %p496
      %p498 = scmp.ne.s32.totalorder %s486, %s487
      %p499 = scmp.eq.s32.totalorder %s36, 1
      %p500 = por %p498, %p499
      %p502 = scmp.ne.s32.totalorder %s487, %s501
      %p503 = scmp.eq.s32.totalorder %s36, 0
      %p504 = por %p502, %p503
      %s506 = sadd.s32 %s505, 1
      %p509 = scmp.eq.s32.totalorder %s30, 1
      %p510 = scmp.ne.s32.totalorder %s505, %s507
      %p511 = scmp.eq.s32.totalorder %s30, 0
      %p512 = por %p510, %p511
      %p513 = scmp.ne.s32.totalorder %s505, %s507
      %p514 = scmp.eq.s32.totalorder %s35, 1
      %p515 = por %p513, %p514
      %p516 = scmp.ne.s32.totalorder %s507, %s508
      %p517 = scmp.eq.s32.totalorder %s35, 0
      %p518 = por %p516, %p517
      %p519 = scmp.ne.s32.totalorder %s507, %s508
      %p520 = scmp.eq.s32.totalorder %s36, 1
      %p521 = por %p519, %p520
      %p523 = scmp.ne.s32.totalorder %s508, %s522
      %p524 = scmp.eq.s32.totalorder %s36, 0
      %p525 = por %p523, %p524
      %s526 = ssub.s32 %s30, %s37
      %p527 = scmp.eq.s32.totalorder %s526, 0
      %s529 = sadd.s32 %s528, 1
      %s530 = scalar_select %p527, %s528, %s529
      %p533 = pneg %p527
      %p534 = scmp.eq.s32.totalorder %s30, 1
      %p535 = por %p533, %p534
      %p536 = scmp.ne.s32.totalorder %s528, %s531
      %p537 = scmp.eq.s32.totalorder %s30, 0
      %p538 = por %p536, %p537
      %p539 = scmp.ne.s32.totalorder %s528, %s531
      %p540 = scmp.eq.s32.totalorder %s35, 1
      %p541 = por %p539, %p540
      %p542 = scmp.ne.s32.totalorder %s531, %s532
      %p543 = scmp.eq.s32.totalorder %s35, 0
      %p544 = por %p542, %p543
      %p545 = scmp.ne.s32.totalorder %s531, %s532
      %p546 = scmp.eq.s32.totalorder %s36, 1
      %p547 = por %p545, %p546
      %p549 = scmp.ne.s32.totalorder %s532, %s548
      %p550 = scmp.eq.s32.totalorder %s36, 0
      %p551 = por %p549, %p550
      %p552 = scmp.le.s32.totalorder 1, %s30
      %p553 = scmp.lt.s32.totalorder %s30, 3
      %p554 = pnand %p552, %p553
      %p555 = pneg %p554
      // Predicated region
      $region9: #{group_norm_net_forward.1} parent=5 // pred_check
        _
      $region10: #{group_norm_net_forward.1} parent=5 // pred_check_branch
        %557 = sbr.rel (%p554) target = $region12
      $region11: #{group_norm_net_forward.1} parent=5 // pred_region
        %s558 = ssub.s32 %s30, 1
        // Predicated region
        $region13: #{group_norm_net_forward.1} parent=11 // pred_check
          %p559 = pneg %p77
        $region14: #{group_norm_net_forward.1} parent=11 // pred_check_branch
          %561 = sbr.rel (%p559) target = $region16
        $region15: #{group_norm_net_forward.1} parent=11 // pred_region
          _
        $region16: #{group_norm_net_forward.1} parent=11 // pred_fallthru
          _
        // Predicated region
        $region17: #{group_norm_net_forward.1} parent=11 // pred_check
          %p562 = pneg %p98
        $region18: #{group_norm_net_forward.1} parent=11 // pred_check_branch
          %564 = sbr.rel (%p562) target = $region20
        $region19: #{group_norm_net_forward.1} parent=11 // pred_region
          _
        $region20: #{group_norm_net_forward.1} parent=11 // pred_fallthru
          _
        // Predicated region
        $region21: #{group_norm_net_forward.1} parent=11 // pred_check
          %p565 = pneg %p119
        $region22: #{group_norm_net_forward.1} parent=11 // pred_check_branch
          %567 = sbr.rel (%p565) target = $region24
        $region23: #{group_norm_net_forward.1} parent=11 // pred_region
          _
        $region24: #{group_norm_net_forward.1} parent=11 // pred_fallthru
          _
        // Predicated region
        $region25: #{group_norm_net_forward.1} parent=11 // pred_check
          %p568 = pneg %p140
        $region26: #{group_norm_net_forward.1} parent=11 // pred_check_branch
          %570 = sbr.rel (%p568) target = $region28
        $region27: #{group_norm_net_forward.1} parent=11 // pred_region
          %572 = vsyncadd [#allocation3], 0
          %s573 = sshll.u32 %s4, 4
          %s574 = int_to_ptr.hbm [resolvable:$true] %s573
          %s575 = sshll.u32 [#allocation2], 4
          %s576 = int_to_ptr.vmem [resolvable:$true] %s575
          %581 = dma.hbm_to_vmem [thread:$0]  %s574, 16384, %s576, [#allocation3], 128, 128, 8
        $region28: #{group_norm_net_forward.1} parent=11 // pred_fallthru
          _
        // Predicated region
        $region29: #{group_norm_net_forward.1} parent=11 // pred_check
          %p582 = pneg %p161
        $region30: #{group_norm_net_forward.1} parent=11 // pred_check_branch
          %584 = sbr.rel (%p582) target = $region32
        $region31: #{group_norm_net_forward.1} parent=11 // pred_region
          _
        $region32: #{group_norm_net_forward.1} parent=11 // pred_fallthru
          _
        // Predicated region
        $region33: #{group_norm_net_forward.1} parent=11 // pred_check
          %p585 = pneg %p182
        $region34: #{group_norm_net_forward.1} parent=11 // pred_check_branch
          %587 = sbr.rel (%p585) target = $region36
        $region35: #{group_norm_net_forward.1} parent=11 // pred_region
          _
        $region36: #{group_norm_net_forward.1} parent=11 // pred_fallthru
          _
        // Predicated region
        $region37: #{group_norm_net_forward.1} parent=11 // pred_check
          %p588 = pneg %p203
        $region38: #{group_norm_net_forward.1} parent=11 // pred_check_branch
          %590 = sbr.rel (%p588) target = $region40
        $region39: #{group_norm_net_forward.1} parent=11 // pred_region
          _
        $region40: #{group_norm_net_forward.1} parent=11 // pred_fallthru
          _
        // Predicated region
        $region41: #{group_norm_net_forward.1} parent=11 // pred_check
          %p591 = pneg %p224
        $region42: #{group_norm_net_forward.1} parent=11 // pred_check_branch
          %593 = sbr.rel (%p591) target = $region44
        $region43: #{group_norm_net_forward.1} parent=11 // pred_region
          _
        $region44: #{group_norm_net_forward.1} parent=11 // pred_fallthru
          _
        // Predicated region
        $region45: #{group_norm_net_forward.1} parent=11 // pred_check
          %p594 = pneg %p245
        $region46: #{group_norm_net_forward.1} parent=11 // pred_check_branch
          %596 = sbr.rel (%p594) target = $region48
        $region47: #{group_norm_net_forward.1} parent=11 // pred_region
          _
        $region48: #{group_norm_net_forward.1} parent=11 // pred_fallthru
          _
        // Predicated region
        $region49: #{group_norm_net_forward.1} parent=11 // pred_check
          %p597 = pneg %p266
        $region50: #{group_norm_net_forward.1} parent=11 // pred_check_branch
          %599 = sbr.rel (%p597) target = $region52
        $region51: #{group_norm_net_forward.1} parent=11 // pred_region
          _
        $region52: #{group_norm_net_forward.1} parent=11 // pred_fallthru
          _
        // Predicated region
        $region53: #{group_norm_net_forward.1} parent=11 // pred_check
          %p600 = pneg %p287
        $region54: #{group_norm_net_forward.1} parent=11 // pred_check_branch
          %602 = sbr.rel (%p600) target = $region56
        $region55: #{group_norm_net_forward.1} parent=11 // pred_region
          _
        $region56: #{group_norm_net_forward.1} parent=11 // pred_fallthru
          _
        // Predicated region
        $region57: #{group_norm_net_forward.1} parent=11 // pred_check
          %p603 = pneg %p308
        $region58: #{group_norm_net_forward.1} parent=11 // pred_check_branch
          %605 = sbr.rel (%p603) target = $region60
        $region59: #{group_norm_net_forward.1} parent=11 // pred_region
          _
        $region60: #{group_norm_net_forward.1} parent=11 // pred_fallthru
          _
        // Predicated region
        $region61: #{group_norm_net_forward.1} parent=11 // pred_check
          %p606 = pneg %p329
        $region62: #{group_norm_net_forward.1} parent=11 // pred_check_branch
          %608 = sbr.rel (%p606) target = $region64
        $region63: #{group_norm_net_forward.1} parent=11 // pred_region
          _
        $region64: #{group_norm_net_forward.1} parent=11 // pred_fallthru
          _
        // Predicated region
        $region65: #{group_norm_net_forward.1} parent=11 // pred_check
          %p609 = pneg %p350
        $region66: #{group_norm_net_forward.1} parent=11 // pred_check_branch
          %611 = sbr.rel (%p609) target = $region68
        $region67: #{group_norm_net_forward.1} parent=11 // pred_region
          _
        $region68: #{group_norm_net_forward.1} parent=11 // pred_fallthru
          _
        // Predicated region
        $region69: #{group_norm_net_forward.1} parent=11 // pred_check
          %p612 = pneg %p371
        $region70: #{group_norm_net_forward.1} parent=11 // pred_check_branch
          %614 = sbr.rel (%p612) target = $region72
        $region71: #{group_norm_net_forward.1} parent=11 // pred_region
          _
        $region72: #{group_norm_net_forward.1} parent=11 // pred_fallthru
          _
        // Predicated region
        $region73: #{group_norm_net_forward.1} parent=11 // pred_check
          %p615 = pneg %p392
        $region74: #{group_norm_net_forward.1} parent=11 // pred_check_branch
          %617 = sbr.rel (%p615) target = $region76
        $region75: #{group_norm_net_forward.1} parent=11 // pred_region
          _
        $region76: #{group_norm_net_forward.1} parent=11 // pred_fallthru
          _
        // Predicated region
        $region77: #{group_norm_net_forward.1} parent=11 // pred_check
          %p618 = pneg %p413
        $region78: #{group_norm_net_forward.1} parent=11 // pred_check_branch
          %620 = sbr.rel (%p618) target = $region80
        $region79: #{group_norm_net_forward.1} parent=11 // pred_region
          _
        $region80: #{group_norm_net_forward.1} parent=11 // pred_fallthru
          _
        // Predicated region
        $region81: #{group_norm_net_forward.1} parent=11 // pred_check
          %p621 = pneg %p434
        $region82: #{group_norm_net_forward.1} parent=11 // pred_check_branch
          %623 = sbr.rel (%p621) target = $region84
        $region83: #{group_norm_net_forward.1} parent=11 // pred_region
          _
        $region84: #{group_norm_net_forward.1} parent=11 // pred_fallthru
          _
        // Predicated region
        $region85: #{group_norm_net_forward.1} parent=11 // pred_check
          %p624 = pneg %p455
        $region86: #{group_norm_net_forward.1} parent=11 // pred_check_branch
          %626 = sbr.rel (%p624) target = $region88
        $region87: #{group_norm_net_forward.1} parent=11 // pred_region
          _
        $region88: #{group_norm_net_forward.1} parent=11 // pred_fallthru
          _
        // Predicated region
        $region89: #{group_norm_net_forward.1} parent=11 // pred_check
          %p627 = pneg %p476
        $region90: #{group_norm_net_forward.1} parent=11 // pred_check_branch
          %629 = sbr.rel (%p627) target = $region92
        $region91: #{group_norm_net_forward.1} parent=11 // pred_region
          _
        $region92: #{group_norm_net_forward.1} parent=11 // pred_fallthru
          _
        // Predicated region
        $region93: #{group_norm_net_forward.1} parent=11 // pred_check
          %p630 = pneg %p497
        $region94: #{group_norm_net_forward.1} parent=11 // pred_check_branch
          %632 = sbr.rel (%p630) target = $region96
        $region95: #{group_norm_net_forward.1} parent=11 // pred_region
          _
        $region96: #{group_norm_net_forward.1} parent=11 // pred_fallthru
          _
        // Predicated region
        $region97: #{group_norm_net_forward.1} parent=11 // pred_check
          %p633 = pneg %p518
        $region98: #{group_norm_net_forward.1} parent=11 // pred_check_branch
          %635 = sbr.rel (%p633) target = $region100
        $region99: #{group_norm_net_forward.1} parent=11 // pred_region
          _
        $region100: #{group_norm_net_forward.1} parent=11 // pred_fallthru
          _
      $region12: #{group_norm_net_forward.1} parent=5 // pred_fallthru
        _
      %p636 = scmp.lt.s32.totalorder %s30, 2
      // Predicated region
      $region101: #{group_norm_net_forward.1} parent=5 // pred_check
        %p637 = pneg %p636
      $region102: #{group_norm_net_forward.1} parent=5 // pred_check_branch
        %639 = sbr.rel (%p637) target = $region104
      $region103: #{group_norm_net_forward.1} parent=5 // pred_region
        // Predicated region
        $region105: #{group_norm_net_forward.1} parent=103 // pred_check
          %p640 = pneg %p50
        $region106: #{group_norm_net_forward.1} parent=103 // pred_check_branch
          %642 = sbr.rel (%p640) target = $region108
        $region107: #{group_norm_net_forward.1} parent=103 // pred_region
          %p643 = scmp.lt.s32.totalorder %s30, 1
          %s644 = scalar_select %p643, %s30, 1
          %s645 = smul.addr %s644, 8
          %s646 = smul.addr %s645, 8
          %s647 = scalar_lea.vmem %s0, %s646
        $region108: #{group_norm_net_forward.1} parent=103 // pred_fallthru
          _
      $region104: #{group_norm_net_forward.1} parent=5 // pred_fallthru
        _
      %p648 = scmp.le.s32.totalorder 1, %s30
      %p649 = scmp.lt.s32.totalorder %s30, 3
      %p650 = pnand %p648, %p649
      %p651 = pneg %p650
      // Predicated region
      $region109: #{group_norm_net_forward.1} parent=5 // pred_check
        _
      $region110: #{group_norm_net_forward.1} parent=5 // pred_check_branch
        %653 = sbr.rel (%p650) target = $region112
      $region111: #{group_norm_net_forward.1} parent=5 // pred_region
        %s654 = ssub.s32 %s30, 1
        // Predicated region
        $region113: #{group_norm_net_forward.1} parent=111 // pred_check
          %p655 = pneg %p140
        $region114: #{group_norm_net_forward.1} parent=111 // pred_check_branch
          %657 = sbr.rel (%p655) target = $region116
        $region115: #{group_norm_net_forward.1} parent=111 // pred_region
          %659 = dma.done [#allocation3], 16384
        $region116: #{group_norm_net_forward.1} parent=111 // pred_fallthru
          _
        %p660 = scmp.lt.s32.totalorder %s35, 1
        %s661 = scalar_select %p660, %s35, 1
        %s662 = smul.addr %s661, 8
        %s663 = smul.addr %s662, 8
        %s664 = scalar_lea.vmem %s0, %s663
        %p665 = pneg %p56
        %p666 = pneg %p53
        %p667 = pneg %p77
        %p668 = pneg %p74
        %p669 = pneg %p98
        %p670 = pneg %p95
        %p671 = pneg %p119
        %p672 = pneg %p116
        %p673 = pneg %p140
        %p674 = pneg %p137
        %p675 = pneg %p161
        %p676 = pneg %p158
        %p677 = pneg %p182
        %p678 = pneg %p179
        %p679 = pneg %p203
        %p680 = pneg %p200
        %p681 = pneg %p224
        %p682 = pneg %p221
        %p683 = pneg %p245
        %p684 = pneg %p242
        %p685 = pneg %p266
        %p686 = pneg %p263
        %p687 = pneg %p287
        %p688 = pneg %p284
        %p689 = pneg %p308
        %p690 = pneg %p305
        %p691 = pneg %p329
        %p692 = pneg %p326
        %p693 = pneg %p350
        %p694 = pneg %p347
        %p695 = pneg %p371
        %p696 = pneg %p368
        %p697 = pneg %p392
        %p698 = pneg %p389
        %p699 = pneg %p413
        %p700 = pneg %p410
        %p701 = pneg %p434
        %p702 = pneg %p431
        %p703 = pneg %p455
        %p704 = pneg %p452
        %p705 = pneg %p476
        %p706 = pneg %p473
        %p707 = pneg %p497
        %p708 = pneg %p494
        %p709 = pneg %p518
        %p710 = pneg %p515
        %p711 = pneg %p544
        %p712 = pneg %p541
        %p713 = scmp.lt.s32.totalorder %s35, 1
        %s714 = scalar_select %p713, %s35, 1
        %s715 = smul.addr %s714, 2
        %s716 = smul.addr %s715, 8
        %s717 = scalar_lea.vmem %s23, %s716
        %p718 = scmp.lt.s32.totalorder %s35, 1
        %s719 = scalar_select %p718, %s35, 1
        %s720 = smul.addr %s719, 8
        %s721 = smul.addr %s720, 8
        %s722 = scalar_lea.vmem %s0, %s721
        %p723 = scmp.lt.s32.totalorder %s35, 1
        %s724 = scalar_select %p723, %s35, 1
        %s725 = smul.addr %s724, 2
        %s726 = smul.addr %s725, 8
        %s727 = scalar_lea.vmem %s23, %s726
        %v729 = vld [vmem:[%s1] sm:$0xff]
        %v730 = vld [vmem:[%s1 + $0x8] sm:$0xff]
        %v731 = vld [vmem:[%s1 + $0x10] sm:$0xff]
        %v732 = vld [vmem:[%s1 + $0x18] sm:$0xff]
        %v733 = vld [vmem:[%s1 + $0x20] sm:$0xff]
        %v734 = vld [vmem:[%s1 + $0x28] sm:$0xff]
        %v735 = vld [vmem:[%s1 + $0x30] sm:$0xff]
        %v736 = vld [vmem:[%s1 + $0x38] sm:$0xff]
        %v737 = vld [vmem:[%s1 + $0x40] sm:$0x1]
        %v738 = vld [vmem:[%s1 + $0x48] sm:$0x1]
        %v739 = vld [vmem:[%s1 + $0x50] sm:$0x1]
        %v740 = vld [vmem:[%s1 + $0x58] sm:$0x1]
        %v741 = vld [vmem:[%s1 + $0x60] sm:$0x1]
        %v742 = vld [vmem:[%s1 + $0x68] sm:$0x1]
        %v743 = vld [vmem:[%s1 + $0x70] sm:$0x1]
        %v744 = vld [vmem:[%s1 + $0x78] sm:$0x1]
        %v745 = vld [vmem:[%s2] sm:$0xff]
        %v746 = vld [vmem:[%s2 + $0x8] sm:$0xff]
        %v747 = vld [vmem:[%s2 + $0x10] sm:$0x1]
        %v748 = vld [vmem:[%s2 + $0x18] sm:$0x1]
        %v749 = vld [vmem:[%s3] sm:$0xff]
        %v750 = vld [vmem:[%s3 + $0x8] sm:$0x3]
        %v751 = vld [vmem:[%s6] sm:$0xff]
        %v752 = vld [vmem:[%s6 + $0x8] sm:$0xff]
        %v753 = vld [vmem:[%s6 + $0x10] sm:$0xff]
        %v754 = vld [vmem:[%s7] sm:$0xff]
        %v755 = vld [vmem:[%s7 + $0x8] sm:$0xff]
        %v756 = vld [vmem:[%s7 + $0x10] sm:$0xff]
        %v757 = vld [vmem:[%s7 + $0x18] sm:$0xff]
        %v758 = vld [vmem:[%s7 + $0x20] sm:$0xff]
        %v759 = vld [vmem:[%s7 + $0x28] sm:$0xff]
        %v760 = vld [vmem:[%s722] sm:$0xff]
        %v761 = vld [vmem:[%s722 + $0x8] sm:$0xff]
        %v762 = vld [vmem:[%s722 + $0x10] sm:$0xff]
        %v763 = vld [vmem:[%s722 + $0x18] sm:$0xff]
        %v764 = vld [vmem:[%s722 + $0x20] sm:$0xff]
        %v765 = vld [vmem:[%s722 + $0x28] sm:$0xff]
        %v766 = vld [vmem:[%s722 + $0x30] sm:$0xff]
        %v767 = vld [vmem:[%s722 + $0x38] sm:$0xff]
        %768 = vrot.lane.b32.xlu0 %v760, 33
        %v769 = vpop.permute.xlu0 %768
        %770 = vrot.lane.b32.xlu0 %v761, 33
        %v771 = vpop.permute.xlu0 %770
        %772 = vrot.lane.b32.xlu0 %v762, 33
        %v773 = vpop.permute.xlu0 %772
        %774 = vrot.lane.b32.xlu0 %v763, 33
        %v775 = vpop.permute.xlu0 %774
        %776 = vrot.lane.b32.xlu0 %v764, 33
        %v777 = vpop.permute.xlu0 %776
        %778 = vrot.lane.b32.xlu0 %v765, 33
        %v779 = vpop.permute.xlu0 %778
        %780 = vrot.lane.b32.xlu0 %v766, 33
        %v781 = vpop.permute.xlu0 %780
        %782 = vrot.lane.b32.xlu0 %v767, 33
        %v783 = vpop.permute.xlu0 %782
        %v784 = vlaneseq
        %v785 = vand.u32 %v784, 127
        %vm786 = vcmp.lt.s32.totalorder %v785, 33
        %v787 = vsel %vm786, %v781, %v783
        %v788 = vsel %vm786, %v779, %v781
        %v789 = vsel %vm786, %v777, %v779
        %v790 = vsel %vm786, %v775, %v777
        %v791 = vsel %vm786, %v773, %v775
        %v792 = vsel %vm786, %v771, %v773
        %v793 = vsel %vm786, %v769, %v771
        %v794 = vsel %vm786, %v783, %v769
        %v795 = vperm.slane %v729, 0
        %v796 = vperm.slane %v730, 0
        %v797 = vperm.slane %v731, 0
        %v798 = vperm.slane %v732, 0
        %v799 = vperm.slane %v733, 0
        %v800 = vperm.slane %v734, 0
        %v801 = vperm.slane %v735, 0
        %v802 = vperm.slane %v736, 0
        %v803 = vmul.f32 %v794, %v795
        %v804 = vmul.f32 %v793, %v796
        %v805 = vmul.f32 %v792, %v797
        %v806 = vmul.f32 %v791, %v798
        %v807 = vmul.f32 %v790, %v799
        %v808 = vmul.f32 %v789, %v800
        %v809 = vmul.f32 %v788, %v801
        %v810 = vmul.f32 %v787, %v802
        %811 = vrot.lane.b32.xlu0 %v760, 32
        %v812 = vpop.permute.xlu0 %811
        %813 = vrot.lane.b32.xlu0 %v761, 32
        %v814 = vpop.permute.xlu0 %813
        %815 = vrot.lane.b32.xlu0 %v762, 32
        %v816 = vpop.permute.xlu0 %815
        %817 = vrot.lane.b32.xlu0 %v763, 32
        %v818 = vpop.permute.xlu0 %817
        %819 = vrot.lane.b32.xlu0 %v764, 32
        %v820 = vpop.permute.xlu0 %819
        %821 = vrot.lane.b32.xlu0 %v765, 32
        %v822 = vpop.permute.xlu0 %821
        %823 = vrot.lane.b32.xlu0 %v766, 32
        %v824 = vpop.permute.xlu0 %823
        %825 = vrot.lane.b32.xlu0 %v767, 32
        %v826 = vpop.permute.xlu0 %825
        %vm827 = vcmp.lt.s32.totalorder %v785, 32
        %v828 = vsel %vm827, %v824, %v826
        %v829 = vsel %vm827, %v822, %v824
        %v830 = vsel %vm827, %v820, %v822
        %v831 = vsel %vm827, %v818, %v820
        %v832 = vsel %vm827, %v816, %v818
        %v833 = vsel %vm827, %v814, %v816
        %v834 = vsel %vm827, %v812, %v814
        %v835 = vsel %vm827, %v826, %v812
        %v836 = vperm.slane %v729, 1
        %v837 = vperm.slane %v730, 1
        %v838 = vperm.slane %v731, 1
        %v839 = vperm.slane %v732, 1
        %v840 = vperm.slane %v733, 1
        %v841 = vperm.slane %v734, 1
        %v842 = vperm.slane %v735, 1
        %v843 = vperm.slane %v736, 1
        %v844 = vmul.f32 %v835, %v836
        %v845 = vmul.f32 %v834, %v837
        %v846 = vmul.f32 %v833, %v838
        %v847 = vmul.f32 %v832, %v839
        %v848 = vmul.f32 %v831, %v840
        %v849 = vmul.f32 %v830, %v841
        %v850 = vmul.f32 %v829, %v842
        %v851 = vmul.f32 %v828, %v843
        %852 = vrot.lane.b32.xlu0 %v760, 31
        %v853 = vpop.permute.xlu0 %852
        %854 = vrot.lane.b32.xlu0 %v761, 31
        %v855 = vpop.permute.xlu0 %854
        %856 = vrot.lane.b32.xlu0 %v762, 31
        %v857 = vpop.permute.xlu0 %856
        %858 = vrot.lane.b32.xlu0 %v763, 31
        %v859 = vpop.permute.xlu0 %858
        %860 = vrot.lane.b32.xlu0 %v764, 31
        %v861 = vpop.permute.xlu0 %860
        %862 = vrot.lane.b32.xlu0 %v765, 31
        %v863 = vpop.permute.xlu0 %862
        %864 = vrot.lane.b32.xlu0 %v766, 31
        %v865 = vpop.permute.xlu0 %864
        %866 = vrot.lane.b32.xlu0 %v767, 31
        %v867 = vpop.permute.xlu0 %866
        %vm868 = vcmp.lt.s32.totalorder %v785, 31
        %v869 = vsel %vm868, %v865, %v867
        %v870 = vsel %vm868, %v863, %v865
        %v871 = vsel %vm868, %v861, %v863
        %v872 = vsel %vm868, %v859, %v861
        %v873 = vsel %vm868, %v857, %v859
        %v874 = vsel %vm868, %v855, %v857
        %v875 = vsel %vm868, %v853, %v855
        %v876 = vsel %vm868, %v867, %v853
        %v877 = vperm.slane %v729, 2
        %v878 = vperm.slane %v730, 2
        %v879 = vperm.slane %v731, 2
        %v880 = vperm.slane %v732, 2
        %v881 = vperm.slane %v733, 2
        %v882 = vperm.slane %v734, 2
        %v883 = vperm.slane %v735, 2
        %v884 = vperm.slane %v736, 2
        %v885 = vmul.f32 %v876, %v877
        %v886 = vmul.f32 %v875, %v878
        %v887 = vmul.f32 %v874, %v879
        %v888 = vmul.f32 %v873, %v880
        %v889 = vmul.f32 %v872, %v881
        %v890 = vmul.f32 %v871, %v882
        %v891 = vmul.f32 %v870, %v883
        %v892 = vmul.f32 %v869, %v884
        %893 = vrot.lane.b32.xlu0 %v760, 1
        %v894 = vpop.permute.xlu0 %893
        %895 = vrot.lane.b32.xlu0 %v761, 1
        %v896 = vpop.permute.xlu0 %895
        %897 = vrot.lane.b32.xlu0 %v762, 1
        %v898 = vpop.permute.xlu0 %897
        %899 = vrot.lane.b32.xlu0 %v763, 1
        %v900 = vpop.permute.xlu0 %899
        %901 = vrot.lane.b32.xlu0 %v764, 1
        %v902 = vpop.permute.xlu0 %901
        %903 = vrot.lane.b32.xlu0 %v765, 1
        %v904 = vpop.permute.xlu0 %903
        %905 = vrot.lane.b32.xlu0 %v766, 1
        %v906 = vpop.permute.xlu0 %905
        %907 = vrot.lane.b32.xlu0 %v767, 1
        %v908 = vpop.permute.xlu0 %907
        %vm909 = vcmp.lt.s32.totalorder %v785, 1
        %v910 = vsel %vm909, %v906, %v908
        %v911 = vsel %vm909, %v904, %v906
        %v912 = vsel %vm909, %v902, %v904
        %v913 = vsel %vm909, %v900, %v902
        %v914 = vsel %vm909, %v898, %v900
        %v915 = vsel %vm909, %v896, %v898
        %v916 = vsel %vm909, %v894, %v896
        %v917 = vsel %vm909, %v908, %v894
        %v918 = vperm.slane %v729, 3
        %v919 = vperm.slane %v730, 3
        %v920 = vperm.slane %v731, 3
        %v921 = vperm.slane %v732, 3
        %v922 = vperm.slane %v733, 3
        %v923 = vperm.slane %v734, 3
        %v924 = vperm.slane %v735, 3
        %v925 = vperm.slane %v736, 3
        %v926 = vmul.f32 %v917, %v918
        %v927 = vmul.f32 %v916, %v919
        %v928 = vmul.f32 %v915, %v920
        %v929 = vmul.f32 %v914, %v921
        %v930 = vmul.f32 %v913, %v922
        %v931 = vmul.f32 %v912, %v923
        %v932 = vmul.f32 %v911, %v924
        %v933 = vmul.f32 %v910, %v925
        %934 = vrot.lane.b32.xlu0 %v760, 127
        %v935 = vpop.permute.xlu0 %934
        %936 = vrot.lane.b32.xlu0 %v761, 127
        %v937 = vpop.permute.xlu0 %936
        %938 = vrot.lane.b32.xlu0 %v762, 127
        %v939 = vpop.permute.xlu0 %938
        %940 = vrot.lane.b32.xlu0 %v763, 127
        %v941 = vpop.permute.xlu0 %940
        %942 = vrot.lane.b32.xlu0 %v764, 127
        %v943 = vpop.permute.xlu0 %942
        %944 = vrot.lane.b32.xlu0 %v765, 127
        %v945 = vpop.permute.xlu0 %944
        %946 = vrot.lane.b32.xlu0 %v766, 127
        %v947 = vpop.permute.xlu0 %946
        %948 = vrot.lane.b32.xlu0 %v767, 127
        %v949 = vpop.permute.xlu0 %948
        %vm950 = vcmp.lt.s32.totalorder %v785, 127
        %v951 = vsel %vm950, %v947, %v949
        %v952 = vsel %vm950, %v945, %v947
        %v953 = vsel %vm950, %v943, %v945
        %v954 = vsel %vm950, %v941, %v943
        %v955 = vsel %vm950, %v939, %v941
        %v956 = vsel %vm950, %v937, %v939
        %v957 = vsel %vm950, %v935, %v937
        %v958 = vsel %vm950, %v949, %v935
        %v959 = vperm.slane %v729, 5
        %v960 = vperm.slane %v730, 5
        %v961 = vperm.slane %v731, 5
        %v962 = vperm.slane %v732, 5
        %v963 = vperm.slane %v733, 5
        %v964 = vperm.slane %v734, 5
        %v965 = vperm.slane %v735, 5
        %v966 = vperm.slane %v736, 5
        %v967 = vmul.f32 %v957, %v959
        %v968 = vmul.f32 %v956, %v960
        %v969 = vmul.f32 %v955, %v961
        %v970 = vmul.f32 %v954, %v962
        %v971 = vmul.f32 %v953, %v963
        %v972 = vmul.f32 %v952, %v964
        %v973 = vmul.f32 %v951, %v965
        %v974 = vmul.f32 %v958, %v966
        %975 = vrot.lane.b32.xlu0 %v760, 97
        %v976 = vpop.permute.xlu0 %975
        %977 = vrot.lane.b32.xlu0 %v761, 97
        %v978 = vpop.permute.xlu0 %977
        %979 = vrot.lane.b32.xlu0 %v762, 97
        %v980 = vpop.permute.xlu0 %979
        %981 = vrot.lane.b32.xlu0 %v763, 97
        %v982 = vpop.permute.xlu0 %981
        %983 = vrot.lane.b32.xlu0 %v764, 97
        %v984 = vpop.permute.xlu0 %983
        %985 = vrot.lane.b32.xlu0 %v765, 97
        %v986 = vpop.permute.xlu0 %985
        %987 = vrot.lane.b32.xlu0 %v766, 97
        %v988 = vpop.permute.xlu0 %987
        %989 = vrot.lane.b32.xlu0 %v767, 97
        %v990 = vpop.permute.xlu0 %989
        %vm991 = vcmp.lt.s32.totalorder %v785, 97
        %v992 = vsel %vm991, %v988, %v990
        %v993 = vsel %vm991, %v986, %v988
        %v994 = vsel %vm991, %v984, %v986
        %v995 = vsel %vm991, %v982, %v984
        %v996 = vsel %vm991, %v980, %v982
        %v997 = vsel %vm991, %v978, %v980
        %v998 = vsel %vm991, %v976, %v978
        %v999 = vsel %vm991, %v990, %v976
        %v1000 = vperm.slane %v729, 6
        %v1001 = vperm.slane %v730, 6
        %v1002 = vperm.slane %v731, 6
        %v1003 = vperm.slane %v732, 6
        %v1004 = vperm.slane %v733, 6
        %v1005 = vperm.slane %v734, 6
        %v1006 = vperm.slane %v735, 6
        %v1007 = vperm.slane %v736, 6
        %v1008 = vmul.f32 %v998, %v1000
        %v1009 = vmul.f32 %v997, %v1001
        %v1010 = vmul.f32 %v996, %v1002
        %v1011 = vmul.f32 %v995, %v1003
        %v1012 = vmul.f32 %v994, %v1004
        %v1013 = vmul.f32 %v993, %v1005
        %v1014 = vmul.f32 %v992, %v1006
        %v1015 = vmul.f32 %v999, %v1007
        %1016 = vrot.lane.b32.xlu0 %v760, 96
        %v1017 = vpop.permute.xlu0 %1016
        %1018 = vrot.lane.b32.xlu0 %v761, 96
        %v1019 = vpop.permute.xlu0 %1018
        %1020 = vrot.lane.b32.xlu0 %v762, 96
        %v1021 = vpop.permute.xlu0 %1020
        %1022 = vrot.lane.b32.xlu0 %v763, 96
        %v1023 = vpop.permute.xlu0 %1022
        %1024 = vrot.lane.b32.xlu0 %v764, 96
        %v1025 = vpop.permute.xlu0 %1024
        %1026 = vrot.lane.b32.xlu0 %v765, 96
        %v1027 = vpop.permute.xlu0 %1026
        %1028 = vrot.lane.b32.xlu0 %v766, 96
        %v1029 = vpop.permute.xlu0 %1028
        %1030 = vrot.lane.b32.xlu0 %v767, 96
        %v1031 = vpop.permute.xlu0 %1030
        %vm1032 = vcmp.lt.s32.totalorder %v785, 96
        %v1033 = vsel %vm1032, %v1029, %v1031
        %v1034 = vsel %vm1032, %v1027, %v1029
        %v1035 = vsel %vm1032, %v1025, %v1027
        %v1036 = vsel %vm1032, %v1023, %v1025
        %v1037 = vsel %vm1032, %v1021, %v1023
        %v1038 = vsel %vm1032, %v1019, %v1021
        %v1039 = vsel %vm1032, %v1017, %v1019
        %v1040 = vsel %vm1032, %v1031, %v1017
        %v1041 = vperm.slane %v729, 7
        %v1042 = vperm.slane %v730, 7
        %v1043 = vperm.slane %v731, 7
        %v1044 = vperm.slane %v732, 7
        %v1045 = vperm.slane %v733, 7
        %v1046 = vperm.slane %v734, 7
        %v1047 = vperm.slane %v735, 7
        %v1048 = vperm.slane %v736, 7
        %v1049 = vmul.f32 %v1039, %v1041
        %v1050 = vmul.f32 %v1038, %v1042
        %v1051 = vmul.f32 %v1037, %v1043
        %v1052 = vmul.f32 %v1036, %v1044
        %v1053 = vmul.f32 %v1035, %v1045
        %v1054 = vmul.f32 %v1034, %v1046
        %v1055 = vmul.f32 %v1033, %v1047
        %v1056 = vmul.f32 %v1040, %v1048
        %1057 = vrot.lane.b32.xlu0 %v760, 95
        %v1058 = vpop.permute.xlu0 %1057
        %1059 = vrot.lane.b32.xlu0 %v761, 95
        %v1060 = vpop.permute.xlu0 %1059
        %1061 = vrot.lane.b32.xlu0 %v762, 95
        %v1062 = vpop.permute.xlu0 %1061
        %1063 = vrot.lane.b32.xlu0 %v763, 95
        %v1064 = vpop.permute.xlu0 %1063
        %1065 = vrot.lane.b32.xlu0 %v764, 95
        %v1066 = vpop.permute.xlu0 %1065
        %1067 = vrot.lane.b32.xlu0 %v765, 95
        %v1068 = vpop.permute.xlu0 %1067
        %1069 = vrot.lane.b32.xlu0 %v766, 95
        %v1070 = vpop.permute.xlu0 %1069
        %1071 = vrot.lane.b32.xlu0 %v767, 95
        %v1072 = vpop.permute.xlu0 %1071
        %vm1073 = vcmp.lt.s32.totalorder %v785, 95
        %v1074 = vsel %vm1073, %v1070, %v1072
        %v1075 = vsel %vm1073, %v1068, %v1070
        %v1076 = vsel %vm1073, %v1066, %v1068
        %v1077 = vsel %vm1073, %v1064, %v1066
        %v1078 = vsel %vm1073, %v1062, %v1064
        %v1079 = vsel %vm1073, %v1060, %v1062
        %v1080 = vsel %vm1073, %v1058, %v1060
        %v1081 = vsel %vm1073, %v1072, %v1058
        %v1082 = vperm.slane %v737, 0
        %v1083 = vperm.slane %v738, 0
        %v1084 = vperm.slane %v739, 0
        %v1085 = vperm.slane %v740, 0
        %v1086 = vperm.slane %v741, 0
        %v1087 = vperm.slane %v742, 0
        %v1088 = vperm.slane %v743, 0
        %v1089 = vperm.slane %v744, 0
        %v1090 = vmul.f32 %v1080, %v1082
        %v1091 = vmul.f32 %v1079, %v1083
        %v1092 = vmul.f32 %v1078, %v1084
        %v1093 = vmul.f32 %v1077, %v1085
        %v1094 = vmul.f32 %v1076, %v1086
        %v1095 = vmul.f32 %v1075, %v1087
        %v1096 = vmul.f32 %v1074, %v1088
        %v1097 = vmul.f32 %v1081, %v1089
        %v1098 = vpack.c.bf16 %v844, %v803
        %v1099 = vpack.c.bf16 %v845, %v804
        %v1100 = vpack.c.bf16 %v846, %v805
        %v1101 = vpack.c.bf16 %v847, %v806
        %v1102 = vpack.c.bf16 %v848, %v807
        %v1103 = vpack.c.bf16 %v849, %v808
        %v1104 = vpack.c.bf16 %v850, %v809
        %v1105 = vpack.c.bf16 %v851, %v810
        %v1106 = vpack.c.bf16 %v926, %v885
        %v1107 = vpack.c.bf16 %v927, %v886
        %v1108 = vpack.c.bf16 %v928, %v887
        %v1109 = vpack.c.bf16 %v929, %v888
        %v1110 = vpack.c.bf16 %v930, %v889
        %v1111 = vpack.c.bf16 %v931, %v890
        %v1112 = vpack.c.bf16 %v932, %v891
        %v1113 = vpack.c.bf16 %v933, %v892
        %v1114 = vpack.c.bf16 %v967, %v760
        %v1115 = vpack.c.bf16 %v968, %v761
        %v1116 = vpack.c.bf16 %v969, %v762
        %v1117 = vpack.c.bf16 %v970, %v763
        %v1118 = vpack.c.bf16 %v971, %v764
        %v1119 = vpack.c.bf16 %v972, %v765
        %v1120 = vpack.c.bf16 %v973, %v766
        %v1121 = vpack.c.bf16 %v974, %v767
        %v1122 = vpack.c.bf16 %v1049, %v1008
        %v1123 = vpack.c.bf16 %v1050, %v1009
        %v1124 = vpack.c.bf16 %v1051, %v1010
        %v1125 = vpack.c.bf16 %v1052, %v1011
        %v1126 = vpack.c.bf16 %v1053, %v1012
        %v1127 = vpack.c.bf16 %v1054, %v1013
        %v1128 = vpack.c.bf16 %v1055, %v1014
        %v1129 = vpack.c.bf16 %v1056, %v1015
        %v1130 = vpack.c.bf16 %v1090, %v1090
        %v1131 = vpack.c.bf16 %v1091, %v1091
        %v1132 = vpack.c.bf16 %v1092, %v1092
        %v1133 = vpack.c.bf16 %v1093, %v1093
        %v1134 = vpack.c.bf16 %v1094, %v1094
        %v1135 = vpack.c.bf16 %v1095, %v1095
        %v1136 = vpack.c.bf16 %v1096, %v1096
        %v1137 = vpack.c.bf16 %v1097, %v1097
        %v1138 = vld [vmem:[%s12] sm:$0xf]
        %v1139 = vld [vmem:[%s12 + $0x4] sm:$0xf]
        %v1140 = vld [vmem:[%s12 + $0x8] sm:$0xf]
        %v1144 = vunpack.c.l.b16 %v1138
        %v1145 = vunpack.c.l.b16 %v1139
        %v1146 = vunpack.c.l.b16 %v1140
        %v1147 = vpack.c.b16 %v1145, %v1144
        %v1148 = vpack.c.b16 %v1146, %v1146
        %vm1149 = vcmask 588800
        %v1151 = vsel %vm1149, %v1147, 0
        %v1154 = vsel %vm1149, %v1148, 0
        %vm1156 = vcmask 1043456
        %v1158 = vsel %vm1156, %v1130, 0
        %v1161 = vsel %vm1156, %v1131, 0
        %v1164 = vsel %vm1156, %v1132, 0
        %v1167 = vsel %vm1156, %v1133, 0
        %v1170 = vsel %vm1156, %v1134, 0
        %v1173 = vsel %vm1156, %v1135, 0
        %v1176 = vsel %vm1156, %v1136, 0
        %v1179 = vsel %vm1156, %v1137, 0
        %1181 = vmatpush.bf16.msra.mxu0 0
        %1182 = vmatpush.bf16.msra.mxu0 0
        %1183 = vmatpush.bf16.msra.mxu0 0
        %1184 = vmatpush.bf16.msra.mxu0 %v1158
        %1185 = vmatpush.bf16.msra.mxu0 %v1122
        %1186 = vmatpush.bf16.msra.mxu0 %v1114
        %1187 = vmatpush.bf16.msra.mxu0 %v1106
        %1188 = vmatpush.bf16.msra.mxu0 %v1098
        %1189 = vmatmul.bf16.gmra.mxu0 %v1151
        %v1190 = vpop.f32.mrf.mxu0
        %v1191 = vadd.f32 0.0, %v1190
        %v1192 = vpop.f32.mrf.mxu0
        %v1193 = vadd.f32 0.0, %v1192
        %1194 = vmatmul.bf16.gmra.mxu0 %v1154
        %v1195 = vpop.f32.mrf.mxu0
        %v1196 = vadd.f32 0.0, %v1195
        %v1197 = vpop.f32.mrf.mxu0
        %1198 = vdwg.mxu0
        %1199 = vmatpush.bf16.msra.mxu0 0
        %1200 = vmatpush.bf16.msra.mxu0 0
        %1201 = vmatpush.bf16.msra.mxu0 0
        %1202 = vmatpush.bf16.msra.mxu0 %v1161
        %1203 = vmatpush.bf16.msra.mxu0 %v1123
        %1204 = vmatpush.bf16.msra.mxu0 %v1115
        %1205 = vmatpush.bf16.msra.mxu0 %v1107
        %1206 = vmatpush.bf16.msra.mxu0 %v1099
        %1207 = vmatmul.bf16.gmra.mxu0 %v1151
        %v1208 = vpop.f32.mrf.mxu0
        %v1209 = vadd.f32 0.0, %v1208
        %v1210 = vpop.f32.mrf.mxu0
        %v1211 = vadd.f32 0.0, %v1210
        %1212 = vmatmul.bf16.gmra.mxu0 %v1154
        %v1213 = vpop.f32.mrf.mxu0
        %v1214 = vadd.f32 0.0, %v1213
        %v1215 = vpop.f32.mrf.mxu0
        %1216 = vdwg.mxu0
        %1217 = vmatpush.bf16.msra.mxu0 0
        %1218 = vmatpush.bf16.msra.mxu0 0
        %1219 = vmatpush.bf16.msra.mxu0 0
        %1220 = vmatpush.bf16.msra.mxu0 %v1164
        %1221 = vmatpush.bf16.msra.mxu0 %v1124
        %1222 = vmatpush.bf16.msra.mxu0 %v1116
        %1223 = vmatpush.bf16.msra.mxu0 %v1108
        %1224 = vmatpush.bf16.msra.mxu0 %v1100
        %1225 = vmatmul.bf16.gmra.mxu0 %v1151
        %v1226 = vpop.f32.mrf.mxu0
        %v1227 = vadd.f32 0.0, %v1226
        %v1228 = vpop.f32.mrf.mxu0
        %v1229 = vadd.f32 0.0, %v1228
        %1230 = vmatmul.bf16.gmra.mxu0 %v1154
        %v1231 = vpop.f32.mrf.mxu0
        %v1232 = vadd.f32 0.0, %v1231
        %v1233 = vpop.f32.mrf.mxu0
        %1234 = vdwg.mxu0
        %1235 = vmatpush.bf16.msra.mxu0 0
        %1236 = vmatpush.bf16.msra.mxu0 0
        %1237 = vmatpush.bf16.msra.mxu0 0
        %1238 = vmatpush.bf16.msra.mxu0 %v1167
        %1239 = vmatpush.bf16.msra.mxu0 %v1125
        %1240 = vmatpush.bf16.msra.mxu0 %v1117
        %1241 = vmatpush.bf16.msra.mxu0 %v1109
        %1242 = vmatpush.bf16.msra.mxu0 %v1101
        %1243 = vmatmul.bf16.gmra.mxu0 %v1151
        %v1244 = vpop.f32.mrf.mxu0
        %v1245 = vadd.f32 0.0, %v1244
        %v1246 = vpop.f32.mrf.mxu0
        %v1247 = vadd.f32 0.0, %v1246
        %1248 = vmatmul.bf16.gmra.mxu0 %v1154
        %v1249 = vpop.f32.mrf.mxu0
        %v1250 = vadd.f32 0.0, %v1249
        %v1251 = vpop.f32.mrf.mxu0
        %1252 = vdwg.mxu0
        %1253 = vmatpush.bf16.msra.mxu0 0
        %1254 = vmatpush.bf16.msra.mxu0 0
        %1255 = vmatpush.bf16.msra.mxu0 0
        %1256 = vmatpush.bf16.msra.mxu0 %v1170
        %1257 = vmatpush.bf16.msra.mxu0 %v1126
        %1258 = vmatpush.bf16.msra.mxu0 %v1118
        %1259 = vmatpush.bf16.msra.mxu0 %v1110
        %1260 = vmatpush.bf16.msra.mxu0 %v1102
        %1261 = vmatmul.bf16.gmra.mxu0 %v1151
        %v1262 = vpop.f32.mrf.mxu0
        %v1263 = vadd.f32 0.0, %v1262
        %v1264 = vpop.f32.mrf.mxu0
        %v1265 = vadd.f32 0.0, %v1264
        %1266 = vmatmul.bf16.gmra.mxu0 %v1154
        %v1267 = vpop.f32.mrf.mxu0
        %v1268 = vadd.f32 0.0, %v1267
        %v1269 = vpop.f32.mrf.mxu0
        %1270 = vdwg.mxu0
        %1271 = vmatpush.bf16.msra.mxu0 0
        %1272 = vmatpush.bf16.msra.mxu0 0
        %1273 = vmatpush.bf16.msra.mxu0 0
        %1274 = vmatpush.bf16.msra.mxu0 %v1173
        %1275 = vmatpush.bf16.msra.mxu0 %v1127
        %1276 = vmatpush.bf16.msra.mxu0 %v1119
        %1277 = vmatpush.bf16.msra.mxu0 %v1111
        %1278 = vmatpush.bf16.msra.mxu0 %v1103
        %1279 = vmatmul.bf16.gmra.mxu0 %v1151
        %v1280 = vpop.f32.mrf.mxu0
        %v1281 = vadd.f32 0.0, %v1280
        %v1282 = vpop.f32.mrf.mxu0
        %v1283 = vadd.f32 0.0, %v1282
        %1284 = vmatmul.bf16.gmra.mxu0 %v1154
        %v1285 = vpop.f32.mrf.mxu0
        %v1286 = vadd.f32 0.0, %v1285
        %v1287 = vpop.f32.mrf.mxu0
        %1288 = vdwg.mxu0
        %1289 = vmatpush.bf16.msra.mxu0 0
        %1290 = vmatpush.bf16.msra.mxu0 0
        %1291 = vmatpush.bf16.msra.mxu0 0
        %1292 = vmatpush.bf16.msra.mxu0 %v1176
        %1293 = vmatpush.bf16.msra.mxu0 %v1128
        %1294 = vmatpush.bf16.msra.mxu0 %v1120
        %1295 = vmatpush.bf16.msra.mxu0 %v1112
        %1296 = vmatpush.bf16.msra.mxu0 %v1104
        %1297 = vmatmul.bf16.gmra.mxu0 %v1151
        %v1298 = vpop.f32.mrf.mxu0
        %v1299 = vadd.f32 0.0, %v1298
        %v1300 = vpop.f32.mrf.mxu0
        %v1301 = vadd.f32 0.0, %v1300
        %1302 = vmatmul.bf16.gmra.mxu0 %v1154
        %v1303 = vpop.f32.mrf.mxu0
        %v1304 = vadd.f32 0.0, %v1303
        %v1305 = vpop.f32.mrf.mxu0
        %1306 = vdwg.mxu0
        %1307 = vmatpush.bf16.msra.mxu0 0
        %1308 = vmatpush.bf16.msra.mxu0 0
        %1309 = vmatpush.bf16.msra.mxu0 0
        %1310 = vmatpush.bf16.msra.mxu0 %v1179
        %1311 = vmatpush.bf16.msra.mxu0 %v1129
        %1312 = vmatpush.bf16.msra.mxu0 %v1121
        %1313 = vmatpush.bf16.msra.mxu0 %v1113
        %1314 = vmatpush.bf16.msra.mxu0 %v1105
        %1315 = vmatmul.bf16.gmra.mxu0 %v1151
        %v1316 = vpop.f32.mrf.mxu0
        %v1317 = vadd.f32 0.0, %v1316
        %v1318 = vpop.f32.mrf.mxu0
        %v1319 = vadd.f32 0.0, %v1318
        %1320 = vmatmul.bf16.gmra.mxu0 %v1154
        %v1321 = vpop.f32.mrf.mxu0
        %v1322 = vadd.f32 0.0, %v1321
        %v1323 = vpop.f32.mrf.mxu0
        %1324 = vdwg.mxu0
        %v1325 = vld [vmem:[%s8] sm:$0xff]
        %v1326 = vld [vmem:[%s8 + $0x8] sm:$0xff]
        %v1327 = vld [vmem:[%s8 + $0x10] sm:$0xff]
        %v1328 = vld [vmem:[%s9] sm:$0xff]
        %v1329 = vld [vmem:[%s9 + $0x8] sm:$0xff]
        %v1330 = vld [vmem:[%s9 + $0x10] sm:$0xff]
        %v1331 = vmax.f32 %v1191, 0.0
        %v1332 = vmax.f32 %v1209, 0.0
        %v1333 = vmax.f32 %v1227, 0.0
        %v1334 = vmax.f32 %v1245, 0.0
        %v1335 = vmax.f32 %v1263, 0.0
        %v1336 = vmax.f32 %v1281, 0.0
        %v1337 = vmax.f32 %v1299, 0.0
        %v1338 = vmax.f32 %v1317, 0.0
        %v1339 = vmax.f32 %v1193, 0.0
        %v1340 = vmax.f32 %v1211, 0.0
        %v1341 = vmax.f32 %v1229, 0.0
        %v1342 = vmax.f32 %v1247, 0.0
        %v1343 = vmax.f32 %v1265, 0.0
        %v1344 = vmax.f32 %v1283, 0.0
        %v1345 = vmax.f32 %v1301, 0.0
        %v1346 = vmax.f32 %v1319, 0.0
        %v1347 = vmax.f32 %v1196, 0.0
        %v1348 = vmax.f32 %v1214, 0.0
        %v1349 = vmax.f32 %v1232, 0.0
        %v1350 = vmax.f32 %v1250, 0.0
        %v1351 = vmax.f32 %v1268, 0.0
        %v1352 = vmax.f32 %v1286, 0.0
        %v1353 = vmax.f32 %v1304, 0.0
        %v1354 = vmax.f32 %v1322, 0.0
        %v1355 = vmul.f32 %v1331, %v1331
        %v1356 = vmul.f32 %v1339, %v1339
        %v1357 = vmul.f32 %v1347, %v1347
        %v1358 = vadd.f32 %v1331, %v1332
        %v1359 = vadd.f32 %v1339, %v1340
        %v1360 = vadd.f32 %v1347, %v1348
        %v1361 = vmul.f32 %v1332, %v1332
        %v1362 = vmul.f32 %v1340, %v1340
        %v1363 = vmul.f32 %v1348, %v1348
        %v1364 = vadd.f32 %v1355, %v1361
        %v1365 = vadd.f32 %v1356, %v1362
        %v1366 = vadd.f32 %v1357, %v1363
        %v1367 = vadd.f32 %v1358, %v1333
        %v1368 = vadd.f32 %v1359, %v1341
        %v1369 = vadd.f32 %v1360, %v1349
        %v1370 = vmul.f32 %v1333, %v1333
        %v1371 = vmul.f32 %v1341, %v1341
        %v1372 = vmul.f32 %v1349, %v1349
        %v1373 = vadd.f32 %v1364, %v1370
        %v1374 = vadd.f32 %v1365, %v1371
        %v1375 = vadd.f32 %v1366, %v1372
        %v1376 = vadd.f32 %v1367, %v1334
        %v1377 = vadd.f32 %v1368, %v1342
        %v1378 = vadd.f32 %v1369, %v1350
        %v1379 = vmul.f32 %v1334, %v1334
        %v1380 = vmul.f32 %v1342, %v1342
        %v1381 = vmul.f32 %v1350, %v1350
        %v1382 = vadd.f32 %v1373, %v1379
        %v1383 = vadd.f32 %v1374, %v1380
        %v1384 = vadd.f32 %v1375, %v1381
        %v1385 = vadd.f32 %v1376, %v1335
        %v1386 = vadd.f32 %v1377, %v1343
        %v1387 = vadd.f32 %v1378, %v1351
        %v1388 = vmul.f32 %v1335, %v1335
        %v1389 = vmul.f32 %v1343, %v1343
        %v1390 = vmul.f32 %v1351, %v1351
        %v1391 = vadd.f32 %v1382, %v1388
        %v1392 = vadd.f32 %v1383, %v1389
        %v1393 = vadd.f32 %v1384, %v1390
        %v1394 = vadd.f32 %v1385, %v1336
        %v1395 = vadd.f32 %v1386, %v1344
        %v1396 = vadd.f32 %v1387, %v1352
        %v1397 = vmul.f32 %v1336, %v1336
        %v1398 = vmul.f32 %v1344, %v1344
        %v1399 = vmul.f32 %v1352, %v1352
        %v1400 = vadd.f32 %v1391, %v1397
        %v1401 = vadd.f32 %v1392, %v1398
        %v1402 = vadd.f32 %v1393, %v1399
        %v1403 = vadd.f32 %v1394, %v1337
        %v1404 = vadd.f32 %v1395, %v1345
        %v1405 = vadd.f32 %v1396, %v1353
        %v1406 = vmul.f32 %v1337, %v1337
        %v1407 = vmul.f32 %v1345, %v1345
        %v1408 = vmul.f32 %v1353, %v1353
        %v1409 = vadd.f32 %v1400, %v1406
        %v1410 = vadd.f32 %v1401, %v1407
        %v1411 = vadd.f32 %v1402, %v1408
        %v1412 = vadd.f32 %v1403, %v1338
        %v1413 = vadd.f32 %v1404, %v1346
        %v1414 = vadd.f32 %v1405, %v1354
        %v1415 = vmul.f32 %v1338, %v1338
        %v1416 = vmul.f32 %v1346, %v1346
        %v1417 = vmul.f32 %v1354, %v1354
        %v1418 = vadd.f32 %v1409, %v1415
        %v1419 = vadd.f32 %v1410, %v1416
        %v1420 = vadd.f32 %v1411, %v1417
        %vm1421 = vcmask 195584
        %v1423 = vsel %vm1421, %v751, 0
        %v1426 = vsel %vm1421, %v752, 0
        %v1429 = vsel %vm1421, %v753, 0
        %1431 = vmatpush.msra.mxu0 0.0
        %1432 = vmatpush.msra.mxu0 0.0
        %1433 = vmatpush.msra.mxu0 0.0
        %1434 = vmatpush.msra.mxu0 0.0
        %1435 = vmatpush.msra.mxu0 0.0
        %1436 = vmatpush.msra.mxu0 0.0
        %1437 = vmatpush.msra.mxu0 0.0
        %1438 = vmatpush.msra.mxu0 0.0
        %1439 = vmatpush.msra.mxu0 0.0
        %1440 = vmatpush.msra.mxu0 0.0
        %1441 = vmatpush.msra.mxu0 0.0
        %1442 = vmatpush.msra.mxu0 0.0
        %1443 = vmatpush.msra.mxu0 0.0
        %1444 = vmatpush.msra.mxu0 %v1414
        %1445 = vmatpush.msra.mxu0 %v1413
        %1446 = vmatpush.msra.mxu0 %v1412
        %1447 = vmatmul.f32.gmra.mxu0 %v1423
        %v1448 = vpop.f32.mrf.mxu0
        %v1449 = vadd.f32 0.0, %v1448
        %1450 = vmatmul.f32.gmra.mxu0 %v1426
        %v1451 = vpop.f32.mrf.mxu0
        %v1452 = vadd.f32 0.0, %v1451
        %1453 = vmatmul.f32.gmra.mxu0 %v1429
        %v1454 = vpop.f32.mrf.mxu0
        %v1455 = vadd.f32 0.0, %v1454
        %1456 = vdwg.mxu0
        %1457 = vadd.xlane.f32.xlu0 %v1449
        %v1458 = vpop.xlane.xlu0 %1457
        %1459 = vadd.xlane.f32.xlu0 %v1452
        %v1460 = vpop.xlane.xlu0 %1459
        %1461 = vadd.xlane.f32.xlu0 %v1455
        %v1462 = vpop.xlane.xlu0 %1461
        %1463 = vmatpush.msra.mxu0 0.0
        %1464 = vmatpush.msra.mxu0 0.0
        %1465 = vmatpush.msra.mxu0 0.0
        %1466 = vmatpush.msra.mxu0 0.0
        %1467 = vmatpush.msra.mxu0 0.0
        %1468 = vmatpush.msra.mxu0 0.0
        %1469 = vmatpush.msra.mxu0 0.0
        %1470 = vmatpush.msra.mxu0 0.0
        %1471 = vmatpush.msra.mxu0 0.0
        %1472 = vmatpush.msra.mxu0 0.0
        %1473 = vmatpush.msra.mxu0 0.0
        %1474 = vmatpush.msra.mxu0 0.0
        %1475 = vmatpush.msra.mxu0 0.0
        %1476 = vmatpush.msra.mxu0 %v1420
        %1477 = vmatpush.msra.mxu0 %v1419
        %1478 = vmatpush.msra.mxu0 %v1418
        %1479 = vmatmul.f32.gmra.mxu0 %v1423
        %v1480 = vpop.f32.mrf.mxu0
        %v1481 = vadd.f32 0.0, %v1480
        %1482 = vmatmul.f32.gmra.mxu0 %v1426
        %v1483 = vpop.f32.mrf.mxu0
        %v1484 = vadd.f32 0.0, %v1483
        %1485 = vmatmul.f32.gmra.mxu0 %v1429
        %v1486 = vpop.f32.mrf.mxu0
        %v1487 = vadd.f32 0.0, %v1486
        %1488 = vdwg.mxu0
        %1489 = vadd.xlane.f32.xlu0 %v1481
        %v1490 = vpop.xlane.xlu0 %1489
        %1491 = vadd.xlane.f32.xlu0 %v1484
        %v1492 = vpop.xlane.xlu0 %1491
        %1493 = vadd.xlane.f32.xlu0 %v1487
        %v1494 = vpop.xlane.xlu0 %1493
        %v1495 = vmul.f32 %v1458, 0.00016276042
        %v1496 = vmul.f32 %v1460, 0.00016276042
        %v1497 = vmul.f32 %v1462, 0.00016276042
        %v1498 = vmul.f32 %v1490, 0.00016276042
        %v1499 = vmul.f32 %v1492, 0.00016276042
        %v1500 = vmul.f32 %v1494, 0.00016276042
        %v1501 = vmul.f32 %v1495, %v1495
        %v1502 = vmul.f32 %v1496, %v1496
        %v1503 = vmul.f32 %v1497, %v1497
        %v1504 = vsub.f32 %v1498, %v1501
        %v1505 = vsub.f32 %v1499, %v1502
        %v1506 = vsub.f32 %v1500, %v1503
        %v1507 = vadd.f32 %v1504, 1e-05
        %v1508 = vadd.f32 %v1505, 1e-05
        %v1509 = vadd.f32 %v1506, 1e-05
        %v1510 = vrsqrt.pop %v1507
        %v1511 = vmul.f32 %v1510, %v1507
        %v1512 = vmul.f32 %v1511, %v1510
        %v1513 = vmul.f32 0.5, %v1512
        %v1514 = vsub.f32 1.5, %v1513
        %v1515 = vmul.f32 %v1510, %v1514
        %vm1516 = vweird.f32 %v1507
        %vm1517 = vweird.f32 %v1510
        %vm1518 = vmor %vm1516, %vm1517
        %v1519 = vsel %vm1518, %v1510, %v1515
        %v1520 = vrsqrt.pop %v1508
        %v1521 = vmul.f32 %v1520, %v1508
        %v1522 = vmul.f32 %v1521, %v1520
        %v1523 = vmul.f32 0.5, %v1522
        %v1524 = vsub.f32 1.5, %v1523
        %v1525 = vmul.f32 %v1520, %v1524
        %vm1526 = vweird.f32 %v1508
        %vm1527 = vweird.f32 %v1520
        %vm1528 = vmor %vm1526, %vm1527
        %v1529 = vsel %vm1528, %v1520, %v1525
        %v1530 = vrsqrt.pop %v1509
        %v1531 = vmul.f32 %v1530, %v1509
        %v1532 = vmul.f32 %v1531, %v1530
        %v1533 = vmul.f32 0.5, %v1532
        %v1534 = vsub.f32 1.5, %v1533
        %v1535 = vmul.f32 %v1530, %v1534
        %vm1536 = vweird.f32 %v1509
        %vm1537 = vweird.f32 %v1530
        %vm1538 = vmor %vm1536, %vm1537
        %v1539 = vsel %vm1538, %v1530, %v1535
        %v1540 = vmul.f32 %v1519, %v1325
        %v1541 = vmul.f32 %v1529, %v1326
        %v1542 = vmul.f32 %v1539, %v1327
        %v1543 = vsub.f32 %v1331, %v1495
        %v1544 = vsub.f32 %v1332, %v1495
        %v1545 = vsub.f32 %v1333, %v1495
        %v1546 = vsub.f32 %v1334, %v1495
        %v1547 = vsub.f32 %v1335, %v1495
        %v1548 = vsub.f32 %v1336, %v1495
        %v1549 = vsub.f32 %v1337, %v1495
        %v1550 = vsub.f32 %v1338, %v1495
        %v1551 = vsub.f32 %v1339, %v1496
        %v1552 = vsub.f32 %v1340, %v1496
        %v1553 = vsub.f32 %v1341, %v1496
        %v1554 = vsub.f32 %v1342, %v1496
        %v1555 = vsub.f32 %v1343, %v1496
        %v1556 = vsub.f32 %v1344, %v1496
        %v1557 = vsub.f32 %v1345, %v1496
        %v1558 = vsub.f32 %v1346, %v1496
        %v1559 = vsub.f32 %v1347, %v1497
        %v1560 = vsub.f32 %v1348, %v1497
        %v1561 = vsub.f32 %v1349, %v1497
        %v1562 = vsub.f32 %v1350, %v1497
        %v1563 = vsub.f32 %v1351, %v1497
        %v1564 = vsub.f32 %v1352, %v1497
        %v1565 = vsub.f32 %v1353, %v1497
        %v1566 = vsub.f32 %v1354, %v1497
        %1568 = vset.pattern.permute.xlu0 0
        %1569 = vperm.xlu0 %1568, %v1540
        %v1570 = vpop.permute.xlu0 %1569
        %1573 = vset.pattern.permute.xlu0 0
        %1574 = vperm.xlu0 %1573, %v1541
        %v1575 = vpop.permute.xlu0 %1574
        %1578 = vset.pattern.permute.xlu0 0
        %1579 = vperm.xlu0 %1578, %v1542
        %v1580 = vpop.permute.xlu0 %1579
        %v1582 = vmul.f32 %v1543, %v1570
        %v1583 = vmul.f32 %v1544, %v1570
        %v1584 = vmul.f32 %v1545, %v1570
        %v1585 = vmul.f32 %v1546, %v1570
        %v1586 = vmul.f32 %v1547, %v1570
        %v1587 = vmul.f32 %v1548, %v1570
        %v1588 = vmul.f32 %v1549, %v1570
        %v1589 = vmul.f32 %v1550, %v1570
        %v1590 = vmul.f32 %v1551, %v1575
        %v1591 = vmul.f32 %v1552, %v1575
        %v1592 = vmul.f32 %v1553, %v1575
        %v1593 = vmul.f32 %v1554, %v1575
        %v1594 = vmul.f32 %v1555, %v1575
        %v1595 = vmul.f32 %v1556, %v1575
        %v1596 = vmul.f32 %v1557, %v1575
        %v1597 = vmul.f32 %v1558, %v1575
        %v1598 = vmul.f32 %v1559, %v1580
        %v1599 = vmul.f32 %v1560, %v1580
        %v1600 = vmul.f32 %v1561, %v1580
        %v1601 = vmul.f32 %v1562, %v1580
        %v1602 = vmul.f32 %v1563, %v1580
        %v1603 = vmul.f32 %v1564, %v1580
        %v1604 = vmul.f32 %v1565, %v1580
        %v1605 = vmul.f32 %v1566, %v1580
        %1607 = vset.pattern.permute.xlu0 0
        %1608 = vperm.xlu0 %1607, %v1328
        %v1609 = vpop.permute.xlu0 %1608
        %1612 = vset.pattern.permute.xlu0 0
        %1613 = vperm.xlu0 %1612, %v1329
        %v1614 = vpop.permute.xlu0 %1613
        %1617 = vset.pattern.permute.xlu0 0
        %1618 = vperm.xlu0 %1617, %v1330
        %v1619 = vpop.permute.xlu0 %1618
        %v1621 = vadd.f32 %v1582, %v1609
        %v1622 = vadd.f32 %v1583, %v1609
        %v1623 = vadd.f32 %v1584, %v1609
        %v1624 = vadd.f32 %v1585, %v1609
        %v1625 = vadd.f32 %v1586, %v1609
        %v1626 = vadd.f32 %v1587, %v1609
        %v1627 = vadd.f32 %v1588, %v1609
        %v1628 = vadd.f32 %v1589, %v1609
        %v1629 = vadd.f32 %v1590, %v1614
        %v1630 = vadd.f32 %v1591, %v1614
        %v1631 = vadd.f32 %v1592, %v1614
        %v1632 = vadd.f32 %v1593, %v1614
        %v1633 = vadd.f32 %v1594, %v1614
        %v1634 = vadd.f32 %v1595, %v1614
        %v1635 = vadd.f32 %v1596, %v1614
        %v1636 = vadd.f32 %v1597, %v1614
        %v1637 = vadd.f32 %v1598, %v1619
        %v1638 = vadd.f32 %v1599, %v1619
        %v1639 = vadd.f32 %v1600, %v1619
        %v1640 = vadd.f32 %v1601, %v1619
        %v1641 = vadd.f32 %v1602, %v1619
        %v1642 = vadd.f32 %v1603, %v1619
        %v1643 = vadd.f32 %v1604, %v1619
        %v1644 = vadd.f32 %v1605, %v1619
        %1645 = vrot.lane.b32.xlu0 %v1621, 33
        %v1646 = vpop.permute.xlu0 %1645
        %1647 = vrot.lane.b32.xlu0 %v1629, 33
        %v1648 = vpop.permute.xlu0 %1647
        %1649 = vrot.lane.b32.xlu0 %v1637, 33
        %v1650 = vpop.permute.xlu0 %1649
        %1651 = vrot.lane.b32.xlu0 %v1622, 33
        %v1652 = vpop.permute.xlu0 %1651
        %1653 = vrot.lane.b32.xlu0 %v1630, 33
        %v1654 = vpop.permute.xlu0 %1653
        %1655 = vrot.lane.b32.xlu0 %v1638, 33
        %v1656 = vpop.permute.xlu0 %1655
        %1657 = vrot.lane.b32.xlu0 %v1623, 33
        %v1658 = vpop.permute.xlu0 %1657
        %1659 = vrot.lane.b32.xlu0 %v1631, 33
        %v1660 = vpop.permute.xlu0 %1659
        %1661 = vrot.lane.b32.xlu0 %v1639, 33
        %v1662 = vpop.permute.xlu0 %1661
        %1663 = vrot.lane.b32.xlu0 %v1624, 33
        %v1664 = vpop.permute.xlu0 %1663
        %1665 = vrot.lane.b32.xlu0 %v1632, 33
        %v1666 = vpop.permute.xlu0 %1665
        %1667 = vrot.lane.b32.xlu0 %v1640, 33
        %v1668 = vpop.permute.xlu0 %1667
        %1669 = vrot.lane.b32.xlu0 %v1625, 33
        %v1670 = vpop.permute.xlu0 %1669
        %1671 = vrot.lane.b32.xlu0 %v1633, 33
        %v1672 = vpop.permute.xlu0 %1671
        %1673 = vrot.lane.b32.xlu0 %v1641, 33
        %v1674 = vpop.permute.xlu0 %1673
        %1675 = vrot.lane.b32.xlu0 %v1626, 33
        %v1676 = vpop.permute.xlu0 %1675
        %1677 = vrot.lane.b32.xlu0 %v1634, 33
        %v1678 = vpop.permute.xlu0 %1677
        %1679 = vrot.lane.b32.xlu0 %v1642, 33
        %v1680 = vpop.permute.xlu0 %1679
        %1681 = vrot.lane.b32.xlu0 %v1627, 33
        %v1682 = vpop.permute.xlu0 %1681
        %1683 = vrot.lane.b32.xlu0 %v1635, 33
        %v1684 = vpop.permute.xlu0 %1683
        %1685 = vrot.lane.b32.xlu0 %v1643, 33
        %v1686 = vpop.permute.xlu0 %1685
        %1687 = vrot.lane.b32.xlu0 %v1628, 33
        %v1688 = vpop.permute.xlu0 %1687
        %1689 = vrot.lane.b32.xlu0 %v1636, 33
        %v1690 = vpop.permute.xlu0 %1689
        %1691 = vrot.lane.b32.xlu0 %v1644, 33
        %v1692 = vpop.permute.xlu0 %1691
        %v1693 = vsel %vm786, %v1682, %v1688
        %v1694 = vsel %vm786, %v1684, %v1690
        %v1695 = vsel %vm786, %v1686, %v1692
        %v1696 = vsel %vm786, %v1676, %v1682
        %v1697 = vsel %vm786, %v1678, %v1684
        %v1698 = vsel %vm786, %v1680, %v1686
        %v1699 = vsel %vm786, %v1670, %v1676
        %v1700 = vsel %vm786, %v1672, %v1678
        %v1701 = vsel %vm786, %v1674, %v1680
        %v1702 = vsel %vm786, %v1664, %v1670
        %v1703 = vsel %vm786, %v1666, %v1672
        %v1704 = vsel %vm786, %v1668, %v1674
        %v1705 = vsel %vm786, %v1658, %v1664
        %v1706 = vsel %vm786, %v1660, %v1666
        %v1707 = vsel %vm786, %v1662, %v1668
        %v1708 = vsel %vm786, %v1652, %v1658
        %v1709 = vsel %vm786, %v1654, %v1660
        %v1710 = vsel %vm786, %v1656, %v1662
        %v1711 = vsel %vm786, %v1646, %v1652
        %v1712 = vsel %vm786, %v1648, %v1654
        %v1713 = vsel %vm786, %v1650, %v1656
        %v1714 = vsel %vm786, %v1688, %v1646
        %v1715 = vsel %vm786, %v1690, %v1648
        %v1716 = vsel %vm786, %v1692, %v1650
        %v1717 = vmul.f32 %v1714, %v795
        %v1718 = vmul.f32 %v1711, %v796
        %v1719 = vmul.f32 %v1708, %v797
        %v1720 = vmul.f32 %v1705, %v798
        %v1721 = vmul.f32 %v1702, %v799
        %v1722 = vmul.f32 %v1699, %v800
        %v1723 = vmul.f32 %v1696, %v801
        %v1724 = vmul.f32 %v1693, %v802
        %v1725 = vmul.f32 %v1715, %v795
        %v1726 = vmul.f32 %v1712, %v796
        %v1727 = vmul.f32 %v1709, %v797
        %v1728 = vmul.f32 %v1706, %v798
        %v1729 = vmul.f32 %v1703, %v799
        %v1730 = vmul.f32 %v1700, %v800
        %v1731 = vmul.f32 %v1697, %v801
        %v1732 = vmul.f32 %v1694, %v802
        %v1733 = vmul.f32 %v1716, %v795
        %v1734 = vmul.f32 %v1713, %v796
        %v1735 = vmul.f32 %v1710, %v797
        %v1736 = vmul.f32 %v1707, %v798
        %v1737 = vmul.f32 %v1704, %v799
        %v1738 = vmul.f32 %v1701, %v800
        %v1739 = vmul.f32 %v1698, %v801
        %v1740 = vmul.f32 %v1695, %v802
        %1741 = vrot.lane.b32.xlu0 %v1621, 32
        %v1742 = vpop.permute.xlu0 %1741
        %1743 = vrot.lane.b32.xlu0 %v1629, 32
        %v1744 = vpop.permute.xlu0 %1743
        %1745 = vrot.lane.b32.xlu0 %v1637, 32
        %v1746 = vpop.permute.xlu0 %1745
        %1747 = vrot.lane.b32.xlu0 %v1622, 32
        %v1748 = vpop.permute.xlu0 %1747
        %1749 = vrot.lane.b32.xlu0 %v1630, 32
        %v1750 = vpop.permute.xlu0 %1749
        %1751 = vrot.lane.b32.xlu0 %v1638, 32
        %v1752 = vpop.permute.xlu0 %1751
        %1753 = vrot.lane.b32.xlu0 %v1623, 32
        %v1754 = vpop.permute.xlu0 %1753
        %1755 = vrot.lane.b32.xlu0 %v1631, 32
        %v1756 = vpop.permute.xlu0 %1755
        %1757 = vrot.lane.b32.xlu0 %v1639, 32
        %v1758 = vpop.permute.xlu0 %1757
        %1759 = vrot.lane.b32.xlu0 %v1624, 32
        %v1760 = vpop.permute.xlu0 %1759
        %1761 = vrot.lane.b32.xlu0 %v1632, 32
        %v1762 = vpop.permute.xlu0 %1761
        %1763 = vrot.lane.b32.xlu0 %v1640, 32
        %v1764 = vpop.permute.xlu0 %1763
        %1765 = vrot.lane.b32.xlu0 %v1625, 32
        %v1766 = vpop.permute.xlu0 %1765
        %1767 = vrot.lane.b32.xlu0 %v1633, 32
        %v1768 = vpop.permute.xlu0 %1767
        %1769 = vrot.lane.b32.xlu0 %v1641, 32
        %v1770 = vpop.permute.xlu0 %1769
        %1771 = vrot.lane.b32.xlu0 %v1626, 32
        %v1772 = vpop.permute.xlu0 %1771
        %1773 = vrot.lane.b32.xlu0 %v1634, 32
        %v1774 = vpop.permute.xlu0 %1773
        %1775 = vrot.lane.b32.xlu0 %v1642, 32
        %v1776 = vpop.permute.xlu0 %1775
        %1777 = vrot.lane.b32.xlu0 %v1627, 32
        %v1778 = vpop.permute.xlu0 %1777
        %1779 = vrot.lane.b32.xlu0 %v1635, 32
        %v1780 = vpop.permute.xlu0 %1779
        %1781 = vrot.lane.b32.xlu0 %v1643, 32
        %v1782 = vpop.permute.xlu0 %1781
        %1783 = vrot.lane.b32.xlu0 %v1628, 32
        %v1784 = vpop.permute.xlu0 %1783
        %1785 = vrot.lane.b32.xlu0 %v1636, 32
        %v1786 = vpop.permute.xlu0 %1785
        %1787 = vrot.lane.b32.xlu0 %v1644, 32
        %v1788 = vpop.permute.xlu0 %1787
        %v1789 = vsel %vm827, %v1778, %v1784
        %v1790 = vsel %vm827, %v1780, %v1786
        %v1791 = vsel %vm827, %v1782, %v1788
        %v1792 = vsel %vm827, %v1772, %v1778
        %v1793 = vsel %vm827, %v1774, %v1780
        %v1794 = vsel %vm827, %v1776, %v1782
        %v1795 = vsel %vm827, %v1766, %v1772
        %v1796 = vsel %vm827, %v1768, %v1774
        %v1797 = vsel %vm827, %v1770, %v1776
        %v1798 = vsel %vm827, %v1760, %v1766
        %v1799 = vsel %vm827, %v1762, %v1768
        %v1800 = vsel %vm827, %v1764, %v1770
        %v1801 = vsel %vm827, %v1754, %v1760
        %v1802 = vsel %vm827, %v1756, %v1762
        %v1803 = vsel %vm827, %v1758, %v1764
        %v1804 = vsel %vm827, %v1748, %v1754
        %v1805 = vsel %vm827, %v1750, %v1756
        %v1806 = vsel %vm827, %v1752, %v1758
        %v1807 = vsel %vm827, %v1742, %v1748
        %v1808 = vsel %vm827, %v1744, %v1750
        %v1809 = vsel %vm827, %v1746, %v1752
        %v1810 = vsel %vm827, %v1784, %v1742
        %v1811 = vsel %vm827, %v1786, %v1744
        %v1812 = vsel %vm827, %v1788, %v1746
        %v1813 = vmul.f32 %v1810, %v836
        %v1814 = vmul.f32 %v1807, %v837
        %v1815 = vmul.f32 %v1804, %v838
        %v1816 = vmul.f32 %v1801, %v839
        %v1817 = vmul.f32 %v1798, %v840
        %v1818 = vmul.f32 %v1795, %v841
        %v1819 = vmul.f32 %v1792, %v842
        %v1820 = vmul.f32 %v1789, %v843
        %v1821 = vmul.f32 %v1811, %v836
        %v1822 = vmul.f32 %v1808, %v837
        %v1823 = vmul.f32 %v1805, %v838
        %v1824 = vmul.f32 %v1802, %v839
        %v1825 = vmul.f32 %v1799, %v840
        %v1826 = vmul.f32 %v1796, %v841
        %v1827 = vmul.f32 %v1793, %v842
        %v1828 = vmul.f32 %v1790, %v843
        %v1829 = vmul.f32 %v1812, %v836
        %v1830 = vmul.f32 %v1809, %v837
        %v1831 = vmul.f32 %v1806, %v838
        %v1832 = vmul.f32 %v1803, %v839
        %v1833 = vmul.f32 %v1800, %v840
        %v1834 = vmul.f32 %v1797, %v841
        %v1835 = vmul.f32 %v1794, %v842
        %v1836 = vmul.f32 %v1791, %v843
        %1837 = vrot.lane.b32.xlu0 %v1621, 31
        %v1838 = vpop.permute.xlu0 %1837
        %1839 = vrot.lane.b32.xlu0 %v1629, 31
        %v1840 = vpop.permute.xlu0 %1839
        %1841 = vrot.lane.b32.xlu0 %v1637, 31
        %v1842 = vpop.permute.xlu0 %1841
        %1843 = vrot.lane.b32.xlu0 %v1622, 31
        %v1844 = vpop.permute.xlu0 %1843
        %1845 = vrot.lane.b32.xlu0 %v1630, 31
        %v1846 = vpop.permute.xlu0 %1845
        %1847 = vrot.lane.b32.xlu0 %v1638, 31
        %v1848 = vpop.permute.xlu0 %1847
        %1849 = vrot.lane.b32.xlu0 %v1623, 31
        %v1850 = vpop.permute.xlu0 %1849
        %1851 = vrot.lane.b32.xlu0 %v1631, 31
        %v1852 = vpop.permute.xlu0 %1851
        %1853 = vrot.lane.b32.xlu0 %v1639, 31
        %v1854 = vpop.permute.xlu0 %1853
        %1855 = vrot.lane.b32.xlu0 %v1624, 31
        %v1856 = vpop.permute.xlu0 %1855
        %1857 = vrot.lane.b32.xlu0 %v1632, 31
        %v1858 = vpop.permute.xlu0 %1857
        %1859 = vrot.lane.b32.xlu0 %v1640, 31
        %v1860 = vpop.permute.xlu0 %1859
        %1861 = vrot.lane.b32.xlu0 %v1625, 31
        %v1862 = vpop.permute.xlu0 %1861
        %1863 = vrot.lane.b32.xlu0 %v1633, 31
        %v1864 = vpop.permute.xlu0 %1863
        %1865 = vrot.lane.b32.xlu0 %v1641, 31
        %v1866 = vpop.permute.xlu0 %1865
        %1867 = vrot.lane.b32.xlu0 %v1626, 31
        %v1868 = vpop.permute.xlu0 %1867
        %1869 = vrot.lane.b32.xlu0 %v1634, 31
        %v1870 = vpop.permute.xlu0 %1869
        %1871 = vrot.lane.b32.xlu0 %v1642, 31
        %v1872 = vpop.permute.xlu0 %1871
        %1873 = vrot.lane.b32.xlu0 %v1627, 31
        %v1874 = vpop.permute.xlu0 %1873
        %1875 = vrot.lane.b32.xlu0 %v1635, 31
        %v1876 = vpop.permute.xlu0 %1875
        %1877 = vrot.lane.b32.xlu0 %v1643, 31
        %v1878 = vpop.permute.xlu0 %1877
        %1879 = vrot.lane.b32.xlu0 %v1628, 31
        %v1880 = vpop.permute.xlu0 %1879
        %1881 = vrot.lane.b32.xlu0 %v1636, 31
        %v1882 = vpop.permute.xlu0 %1881
        %1883 = vrot.lane.b32.xlu0 %v1644, 31
        %v1884 = vpop.permute.xlu0 %1883
        %v1885 = vsel %vm868, %v1874, %v1880
        %v1886 = vsel %vm868, %v1876, %v1882
        %v1887 = vsel %vm868, %v1878, %v1884
        %v1888 = vsel %vm868, %v1868, %v1874
        %v1889 = vsel %vm868, %v1870, %v1876
        %v1890 = vsel %vm868, %v1872, %v1878
        %v1891 = vsel %vm868, %v1862, %v1868
        %v1892 = vsel %vm868, %v1864, %v1870
        %v1893 = vsel %vm868, %v1866, %v1872
        %v1894 = vsel %vm868, %v1856, %v1862
        %v1895 = vsel %vm868, %v1858, %v1864
        %v1896 = vsel %vm868, %v1860, %v1866
        %v1897 = vsel %vm868, %v1850, %v1856
        %v1898 = vsel %vm868, %v1852, %v1858
        %v1899 = vsel %vm868, %v1854, %v1860
        %v1900 = vsel %vm868, %v1844, %v1850
        %v1901 = vsel %vm868, %v1846, %v1852
        %v1902 = vsel %vm868, %v1848, %v1854
        %v1903 = vsel %vm868, %v1838, %v1844
        %v1904 = vsel %vm868, %v1840, %v1846
        %v1905 = vsel %vm868, %v1842, %v1848
        %v1906 = vsel %vm868, %v1880, %v1838
        %v1907 = vsel %vm868, %v1882, %v1840
        %v1908 = vsel %vm868, %v1884, %v1842
        %v1909 = vmul.f32 %v1906, %v877
        %v1910 = vmul.f32 %v1903, %v878
        %v1911 = vmul.f32 %v1900, %v879
        %v1912 = vmul.f32 %v1897, %v880
        %v1913 = vmul.f32 %v1894, %v881
        %v1914 = vmul.f32 %v1891, %v882
        %v1915 = vmul.f32 %v1888, %v883
        %v1916 = vmul.f32 %v1885, %v884
        %v1917 = vmul.f32 %v1907, %v877
        %v1918 = vmul.f32 %v1904, %v878
        %v1919 = vmul.f32 %v1901, %v879
        %v1920 = vmul.f32 %v1898, %v880
        %v1921 = vmul.f32 %v1895, %v881
        %v1922 = vmul.f32 %v1892, %v882
        %v1923 = vmul.f32 %v1889, %v883
        %v1924 = vmul.f32 %v1886, %v884
        %v1925 = vmul.f32 %v1908, %v877
        %v1926 = vmul.f32 %v1905, %v878
        %v1927 = vmul.f32 %v1902, %v879
        %v1928 = vmul.f32 %v1899, %v880
        %v1929 = vmul.f32 %v1896, %v881
        %v1930 = vmul.f32 %v1893, %v882
        %v1931 = vmul.f32 %v1890, %v883
        %v1932 = vmul.f32 %v1887, %v884
        %1933 = vrot.lane.b32.xlu0 %v1621, 1
        %v1934 = vpop.permute.xlu0 %1933
        %1935 = vrot.lane.b32.xlu0 %v1629, 1
        %v1936 = vpop.permute.xlu0 %1935
        %1937 = vrot.lane.b32.xlu0 %v1637, 1
        %v1938 = vpop.permute.xlu0 %1937
        %1939 = vrot.lane.b32.xlu0 %v1622, 1
        %v1940 = vpop.permute.xlu0 %1939
        %1941 = vrot.lane.b32.xlu0 %v1630, 1
        %v1942 = vpop.permute.xlu0 %1941
        %1943 = vrot.lane.b32.xlu0 %v1638, 1
        %v1944 = vpop.permute.xlu0 %1943
        %1945 = vrot.lane.b32.xlu0 %v1623, 1
        %v1946 = vpop.permute.xlu0 %1945
        %1947 = vrot.lane.b32.xlu0 %v1631, 1
        %v1948 = vpop.permute.xlu0 %1947
        %1949 = vrot.lane.b32.xlu0 %v1639, 1
        %v1950 = vpop.permute.xlu0 %1949
        %1951 = vrot.lane.b32.xlu0 %v1624, 1
        %v1952 = vpop.permute.xlu0 %1951
        %1953 = vrot.lane.b32.xlu0 %v1632, 1
        %v1954 = vpop.permute.xlu0 %1953
        %1955 = vrot.lane.b32.xlu0 %v1640, 1
        %v1956 = vpop.permute.xlu0 %1955
        %1957 = vrot.lane.b32.xlu0 %v1625, 1
        %v1958 = vpop.permute.xlu0 %1957
        %1959 = vrot.lane.b32.xlu0 %v1633, 1
        %v1960 = vpop.permute.xlu0 %1959
        %1961 = vrot.lane.b32.xlu0 %v1641, 1
        %v1962 = vpop.permute.xlu0 %1961
        %1963 = vrot.lane.b32.xlu0 %v1626, 1
        %v1964 = vpop.permute.xlu0 %1963
        %1965 = vrot.lane.b32.xlu0 %v1634, 1
        %v1966 = vpop.permute.xlu0 %1965
        %1967 = vrot.lane.b32.xlu0 %v1642, 1
        %v1968 = vpop.permute.xlu0 %1967
        %1969 = vrot.lane.b32.xlu0 %v1627, 1
        %v1970 = vpop.permute.xlu0 %1969
        %1971 = vrot.lane.b32.xlu0 %v1635, 1
        %v1972 = vpop.permute.xlu0 %1971
        %1973 = vrot.lane.b32.xlu0 %v1643, 1
        %v1974 = vpop.permute.xlu0 %1973
        %1975 = vrot.lane.b32.xlu0 %v1628, 1
        %v1976 = vpop.permute.xlu0 %1975
        %1977 = vrot.lane.b32.xlu0 %v1636, 1
        %v1978 = vpop.permute.xlu0 %1977
        %1979 = vrot.lane.b32.xlu0 %v1644, 1
        %v1980 = vpop.permute.xlu0 %1979
        %v1981 = vsel %vm909, %v1970, %v1976
        %v1982 = vsel %vm909, %v1972, %v1978
        %v1983 = vsel %vm909, %v1974, %v1980
        %v1984 = vsel %vm909, %v1964, %v1970
        %v1985 = vsel %vm909, %v1966, %v1972
        %v1986 = vsel %vm909, %v1968, %v1974
        %v1987 = vsel %vm909, %v1958, %v1964
        %v1988 = vsel %vm909, %v1960, %v1966
        %v1989 = vsel %vm909, %v1962, %v1968
        %v1990 = vsel %vm909, %v1952, %v1958
        %v1991 = vsel %vm909, %v1954, %v1960
        %v1992 = vsel %vm909, %v1956, %v1962
        %v1993 = vsel %vm909, %v1946, %v1952
        %v1994 = vsel %vm909, %v1948, %v1954
        %v1995 = vsel %vm909, %v1950, %v1956
        %v1996 = vsel %vm909, %v1940, %v1946
        %v1997 = vsel %vm909, %v1942, %v1948
        %v1998 = vsel %vm909, %v1944, %v1950
        %v1999 = vsel %vm909, %v1934, %v1940
        %v2000 = vsel %vm909, %v1936, %v1942
        %v2001 = vsel %vm909, %v1938, %v1944
        %v2002 = vsel %vm909, %v1976, %v1934
        %v2003 = vsel %vm909, %v1978, %v1936
        %v2004 = vsel %vm909, %v1980, %v1938
        %v2005 = vmul.f32 %v2002, %v918
        %v2006 = vmul.f32 %v1999, %v919
        %v2007 = vmul.f32 %v1996, %v920
        %v2008 = vmul.f32 %v1993, %v921
        %v2009 = vmul.f32 %v1990, %v922
        %v2010 = vmul.f32 %v1987, %v923
        %v2011 = vmul.f32 %v1984, %v924
        %v2012 = vmul.f32 %v1981, %v925
        %v2013 = vmul.f32 %v2003, %v918
        %v2014 = vmul.f32 %v2000, %v919
        %v2015 = vmul.f32 %v1997, %v920
        %v2016 = vmul.f32 %v1994, %v921
        %v2017 = vmul.f32 %v1991, %v922
        %v2018 = vmul.f32 %v1988, %v923
        %v2019 = vmul.f32 %v1985, %v924
        %v2020 = vmul.f32 %v1982, %v925
        %v2021 = vmul.f32 %v2004, %v918
        %v2022 = vmul.f32 %v2001, %v919
        %v2023 = vmul.f32 %v1998, %v920
        %v2024 = vmul.f32 %v1995, %v921
        %v2025 = vmul.f32 %v1992, %v922
        %v2026 = vmul.f32 %v1989, %v923
        %v2027 = vmul.f32 %v1986, %v924
        %v2028 = vmul.f32 %v1983, %v925
        %2029 = vrot.lane.b32.xlu0 %v1621, 127
        %v2030 = vpop.permute.xlu0 %2029
        %2031 = vrot.lane.b32.xlu0 %v1629, 127
        %v2032 = vpop.permute.xlu0 %2031
        %2033 = vrot.lane.b32.xlu0 %v1637, 127
        %v2034 = vpop.permute.xlu0 %2033
        %2035 = vrot.lane.b32.xlu0 %v1622, 127
        %v2036 = vpop.permute.xlu0 %2035
        %2037 = vrot.lane.b32.xlu0 %v1630, 127
        %v2038 = vpop.permute.xlu0 %2037
        %2039 = vrot.lane.b32.xlu0 %v1638, 127
        %v2040 = vpop.permute.xlu0 %2039
        %2041 = vrot.lane.b32.xlu0 %v1623, 127
        %v2042 = vpop.permute.xlu0 %2041
        %2043 = vrot.lane.b32.xlu0 %v1631, 127
        %v2044 = vpop.permute.xlu0 %2043
        %2045 = vrot.lane.b32.xlu0 %v1639, 127
        %v2046 = vpop.permute.xlu0 %2045
        %2047 = vrot.lane.b32.xlu0 %v1624, 127
        %v2048 = vpop.permute.xlu0 %2047
        %2049 = vrot.lane.b32.xlu0 %v1632, 127
        %v2050 = vpop.permute.xlu0 %2049
        %2051 = vrot.lane.b32.xlu0 %v1640, 127
        %v2052 = vpop.permute.xlu0 %2051
        %2053 = vrot.lane.b32.xlu0 %v1625, 127
        %v2054 = vpop.permute.xlu0 %2053
        %2055 = vrot.lane.b32.xlu0 %v1633, 127
        %v2056 = vpop.permute.xlu0 %2055
        %2057 = vrot.lane.b32.xlu0 %v1641, 127
        %v2058 = vpop.permute.xlu0 %2057
        %2059 = vrot.lane.b32.xlu0 %v1626, 127
        %v2060 = vpop.permute.xlu0 %2059
        %2061 = vrot.lane.b32.xlu0 %v1634, 127
        %v2062 = vpop.permute.xlu0 %2061
        %2063 = vrot.lane.b32.xlu0 %v1642, 127
        %v2064 = vpop.permute.xlu0 %2063
        %2065 = vrot.lane.b32.xlu0 %v1627, 127
        %v2066 = vpop.permute.xlu0 %2065
        %2067 = vrot.lane.b32.xlu0 %v1635, 127
        %v2068 = vpop.permute.xlu0 %2067
        %2069 = vrot.lane.b32.xlu0 %v1643, 127
        %v2070 = vpop.permute.xlu0 %2069
        %2071 = vrot.lane.b32.xlu0 %v1628, 127
        %v2072 = vpop.permute.xlu0 %2071
        %2073 = vrot.lane.b32.xlu0 %v1636, 127
        %v2074 = vpop.permute.xlu0 %2073
        %2075 = vrot.lane.b32.xlu0 %v1644, 127
        %v2076 = vpop.permute.xlu0 %2075
        %v2077 = vsel %vm950, %v2066, %v2072
        %v2078 = vsel %vm950, %v2068, %v2074
        %v2079 = vsel %vm950, %v2070, %v2076
        %v2080 = vsel %vm950, %v2060, %v2066
        %v2081 = vsel %vm950, %v2062, %v2068
        %v2082 = vsel %vm950, %v2064, %v2070
        %v2083 = vsel %vm950, %v2054, %v2060
        %v2084 = vsel %vm950, %v2056, %v2062
        %v2085 = vsel %vm950, %v2058, %v2064
        %v2086 = vsel %vm950, %v2048, %v2054
        %v2087 = vsel %vm950, %v2050, %v2056
        %v2088 = vsel %vm950, %v2052, %v2058
        %v2089 = vsel %vm950, %v2042, %v2048
        %v2090 = vsel %vm950, %v2044, %v2050
        %v2091 = vsel %vm950, %v2046, %v2052
        %v2092 = vsel %vm950, %v2036, %v2042
        %v2093 = vsel %vm950, %v2038, %v2044
        %v2094 = vsel %vm950, %v2040, %v2046
        %v2095 = vsel %vm950, %v2030, %v2036
        %v2096 = vsel %vm950, %v2032, %v2038
        %v2097 = vsel %vm950, %v2034, %v2040
        %v2098 = vsel %vm950, %v2072, %v2030
        %v2099 = vsel %vm950, %v2074, %v2032
        %v2100 = vsel %vm950, %v2076, %v2034
        %v2101 = vmul.f32 %v2095, %v959
        %v2102 = vmul.f32 %v2092, %v960
        %v2103 = vmul.f32 %v2089, %v961
        %v2104 = vmul.f32 %v2086, %v962
        %v2105 = vmul.f32 %v2083, %v963
        %v2106 = vmul.f32 %v2080, %v964
        %v2107 = vmul.f32 %v2077, %v965
        %v2108 = vmul.f32 %v2098, %v966
        %v2109 = vmul.f32 %v2096, %v959
        %v2110 = vmul.f32 %v2093, %v960
        %v2111 = vmul.f32 %v2090, %v961
        %v2112 = vmul.f32 %v2087, %v962
        %v2113 = vmul.f32 %v2084, %v963
        %v2114 = vmul.f32 %v2081, %v964
        %v2115 = vmul.f32 %v2078, %v965
        %v2116 = vmul.f32 %v2099, %v966
        %v2117 = vmul.f32 %v2097, %v959
        %v2118 = vmul.f32 %v2094, %v960
        %v2119 = vmul.f32 %v2091, %v961
        %v2120 = vmul.f32 %v2088, %v962
        %v2121 = vmul.f32 %v2085, %v963
        %v2122 = vmul.f32 %v2082, %v964
        %v2123 = vmul.f32 %v2079, %v965
        %v2124 = vmul.f32 %v2100, %v966
        %2125 = vrot.lane.b32.xlu0 %v1621, 97
        %v2126 = vpop.permute.xlu0 %2125
        %2127 = vrot.lane.b32.xlu0 %v1629, 97
        %v2128 = vpop.permute.xlu0 %2127
        %2129 = vrot.lane.b32.xlu0 %v1637, 97
        %v2130 = vpop.permute.xlu0 %2129
        %2131 = vrot.lane.b32.xlu0 %v1622, 97
        %v2132 = vpop.permute.xlu0 %2131
        %2133 = vrot.lane.b32.xlu0 %v1630, 97
        %v2134 = vpop.permute.xlu0 %2133
        %2135 = vrot.lane.b32.xlu0 %v1638, 97
        %v2136 = vpop.permute.xlu0 %2135
        %2137 = vrot.lane.b32.xlu0 %v1623, 97
        %v2138 = vpop.permute.xlu0 %2137
        %2139 = vrot.lane.b32.xlu0 %v1631, 97
        %v2140 = vpop.permute.xlu0 %2139
        %2141 = vrot.lane.b32.xlu0 %v1639, 97
        %v2142 = vpop.permute.xlu0 %2141
        %2143 = vrot.lane.b32.xlu0 %v1624, 97
        %v2144 = vpop.permute.xlu0 %2143
        %2145 = vrot.lane.b32.xlu0 %v1632, 97
        %v2146 = vpop.permute.xlu0 %2145
        %2147 = vrot.lane.b32.xlu0 %v1640, 97
        %v2148 = vpop.permute.xlu0 %2147
        %2149 = vrot.lane.b32.xlu0 %v1625, 97
        %v2150 = vpop.permute.xlu0 %2149
        %2151 = vrot.lane.b32.xlu0 %v1633, 97
        %v2152 = vpop.permute.xlu0 %2151
        %2153 = vrot.lane.b32.xlu0 %v1641, 97
        %v2154 = vpop.permute.xlu0 %2153
        %2155 = vrot.lane.b32.xlu0 %v1626, 97
        %v2156 = vpop.permute.xlu0 %2155
        %2157 = vrot.lane.b32.xlu0 %v1634, 97
        %v2158 = vpop.permute.xlu0 %2157
        %2159 = vrot.lane.b32.xlu0 %v1642, 97
        %v2160 = vpop.permute.xlu0 %2159
        %2161 = vrot.lane.b32.xlu0 %v1627, 97
        %v2162 = vpop.permute.xlu0 %2161
        %2163 = vrot.lane.b32.xlu0 %v1635, 97
        %v2164 = vpop.permute.xlu0 %2163
        %2165 = vrot.lane.b32.xlu0 %v1643, 97
        %v2166 = vpop.permute.xlu0 %2165
        %2167 = vrot.lane.b32.xlu0 %v1628, 97
        %v2168 = vpop.permute.xlu0 %2167
        %2169 = vrot.lane.b32.xlu0 %v1636, 97
        %v2170 = vpop.permute.xlu0 %2169
        %2171 = vrot.lane.b32.xlu0 %v1644, 97
        %v2172 = vpop.permute.xlu0 %2171
        %v2173 = vsel %vm991, %v2162, %v2168
        %v2174 = vsel %vm991, %v2164, %v2170
        %v2175 = vsel %vm991, %v2166, %v2172
        %v2176 = vsel %vm991, %v2156, %v2162
        %v2177 = vsel %vm991, %v2158, %v2164
        %v2178 = vsel %vm991, %v2160, %v2166
        %v2179 = vsel %vm991, %v2150, %v2156
        %v2180 = vsel %vm991, %v2152, %v2158
        %v2181 = vsel %vm991, %v2154, %v2160
        %v2182 = vsel %vm991, %v2144, %v2150
        %v2183 = vsel %vm991, %v2146, %v2152
        %v2184 = vsel %vm991, %v2148, %v2154
        %v2185 = vsel %vm991, %v2138, %v2144
        %v2186 = vsel %vm991, %v2140, %v2146
        %v2187 = vsel %vm991, %v2142, %v2148
        %v2188 = vsel %vm991, %v2132, %v2138
        %v2189 = vsel %vm991, %v2134, %v2140
        %v2190 = vsel %vm991, %v2136, %v2142
        %v2191 = vsel %vm991, %v2126, %v2132
        %v2192 = vsel %vm991, %v2128, %v2134
        %v2193 = vsel %vm991, %v2130, %v2136
        %v2194 = vsel %vm991, %v2168, %v2126
        %v2195 = vsel %vm991, %v2170, %v2128
        %v2196 = vsel %vm991, %v2172, %v2130
        %v2197 = vmul.f32 %v2191, %v1000
        %v2198 = vmul.f32 %v2188, %v1001
        %v2199 = vmul.f32 %v2185, %v1002
        %v2200 = vmul.f32 %v2182, %v1003
        %v2201 = vmul.f32 %v2179, %v1004
        %v2202 = vmul.f32 %v2176, %v1005
        %v2203 = vmul.f32 %v2173, %v1006
        %v2204 = vmul.f32 %v2194, %v1007
        %v2205 = vmul.f32 %v2192, %v1000
        %v2206 = vmul.f32 %v2189, %v1001
        %v2207 = vmul.f32 %v2186, %v1002
        %v2208 = vmul.f32 %v2183, %v1003
        %v2209 = vmul.f32 %v2180, %v1004
        %v2210 = vmul.f32 %v2177, %v1005
        %v2211 = vmul.f32 %v2174, %v1006
        %v2212 = vmul.f32 %v2195, %v1007
        %v2213 = vmul.f32 %v2193, %v1000
        %v2214 = vmul.f32 %v2190, %v1001
        %v2215 = vmul.f32 %v2187, %v1002
        %v2216 = vmul.f32 %v2184, %v1003
        %v2217 = vmul.f32 %v2181, %v1004
        %v2218 = vmul.f32 %v2178, %v1005
        %v2219 = vmul.f32 %v2175, %v1006
        %v2220 = vmul.f32 %v2196, %v1007
        %2221 = vrot.lane.b32.xlu0 %v1621, 96
        %v2222 = vpop.permute.xlu0 %2221
        %2223 = vrot.lane.b32.xlu0 %v1629, 96
        %v2224 = vpop.permute.xlu0 %2223
        %2225 = vrot.lane.b32.xlu0 %v1637, 96
        %v2226 = vpop.permute.xlu0 %2225
        %2227 = vrot.lane.b32.xlu0 %v1622, 96
        %v2228 = vpop.permute.xlu0 %2227
        %2229 = vrot.lane.b32.xlu0 %v1630, 96
        %v2230 = vpop.permute.xlu0 %2229
        %2231 = vrot.lane.b32.xlu0 %v1638, 96
        %v2232 = vpop.permute.xlu0 %2231
        %2233 = vrot.lane.b32.xlu0 %v1623, 96
        %v2234 = vpop.permute.xlu0 %2233
        %2235 = vrot.lane.b32.xlu0 %v1631, 96
        %v2236 = vpop.permute.xlu0 %2235
        %2237 = vrot.lane.b32.xlu0 %v1639, 96
        %v2238 = vpop.permute.xlu0 %2237
        %2239 = vrot.lane.b32.xlu0 %v1624, 96
        %v2240 = vpop.permute.xlu0 %2239
        %2241 = vrot.lane.b32.xlu0 %v1632, 96
        %v2242 = vpop.permute.xlu0 %2241
        %2243 = vrot.lane.b32.xlu0 %v1640, 96
        %v2244 = vpop.permute.xlu0 %2243
        %2245 = vrot.lane.b32.xlu0 %v1625, 96
        %v2246 = vpop.permute.xlu0 %2245
        %2247 = vrot.lane.b32.xlu0 %v1633, 96
        %v2248 = vpop.permute.xlu0 %2247
        %2249 = vrot.lane.b32.xlu0 %v1641, 96
        %v2250 = vpop.permute.xlu0 %2249
        %2251 = vrot.lane.b32.xlu0 %v1626, 96
        %v2252 = vpop.permute.xlu0 %2251
        %2253 = vrot.lane.b32.xlu0 %v1634, 96
        %v2254 = vpop.permute.xlu0 %2253
        %2255 = vrot.lane.b32.xlu0 %v1642, 96
        %v2256 = vpop.permute.xlu0 %2255
        %2257 = vrot.lane.b32.xlu0 %v1627, 96
        %v2258 = vpop.permute.xlu0 %2257
        %2259 = vrot.lane.b32.xlu0 %v1635, 96
        %v2260 = vpop.permute.xlu0 %2259
        %2261 = vrot.lane.b32.xlu0 %v1643, 96
        %v2262 = vpop.permute.xlu0 %2261
        %2263 = vrot.lane.b32.xlu0 %v1628, 96
        %v2264 = vpop.permute.xlu0 %2263
        %2265 = vrot.lane.b32.xlu0 %v1636, 96
        %v2266 = vpop.permute.xlu0 %2265
        %2267 = vrot.lane.b32.xlu0 %v1644, 96
        %v2268 = vpop.permute.xlu0 %2267
        %v2269 = vsel %vm1032, %v2258, %v2264
        %v2270 = vsel %vm1032, %v2260, %v2266
        %v2271 = vsel %vm1032, %v2262, %v2268
        %v2272 = vsel %vm1032, %v2252, %v2258
        %v2273 = vsel %vm1032, %v2254, %v2260
        %v2274 = vsel %vm1032, %v2256, %v2262
        %v2275 = vsel %vm1032, %v2246, %v2252
        %v2276 = vsel %vm1032, %v2248, %v2254
        %v2277 = vsel %vm1032, %v2250, %v2256
        %v2278 = vsel %vm1032, %v2240, %v2246
        %v2279 = vsel %vm1032, %v2242, %v2248
        %v2280 = vsel %vm1032, %v2244, %v2250
        %v2281 = vsel %vm1032, %v2234, %v2240
        %v2282 = vsel %vm1032, %v2236, %v2242
        %v2283 = vsel %vm1032, %v2238, %v2244
        %v2284 = vsel %vm1032, %v2228, %v2234
        %v2285 = vsel %vm1032, %v2230, %v2236
        %v2286 = vsel %vm1032, %v2232, %v2238
        %v2287 = vsel %vm1032, %v2222, %v2228
        %v2288 = vsel %vm1032, %v2224, %v2230
        %v2289 = vsel %vm1032, %v2226, %v2232
        %v2290 = vsel %vm1032, %v2264, %v2222
        %v2291 = vsel %vm1032, %v2266, %v2224
        %v2292 = vsel %vm1032, %v2268, %v2226
        %v2293 = vmul.f32 %v2287, %v1041
        %v2294 = vmul.f32 %v2284, %v1042
        %v2295 = vmul.f32 %v2281, %v1043
        %v2296 = vmul.f32 %v2278, %v1044
        %v2297 = vmul.f32 %v2275, %v1045
        %v2298 = vmul.f32 %v2272, %v1046
        %v2299 = vmul.f32 %v2269, %v1047
        %v2300 = vmul.f32 %v2290, %v1048
        %v2301 = vmul.f32 %v2288, %v1041
        %v2302 = vmul.f32 %v2285, %v1042
        %v2303 = vmul.f32 %v2282, %v1043
        %v2304 = vmul.f32 %v2279, %v1044
        %v2305 = vmul.f32 %v2276, %v1045
        %v2306 = vmul.f32 %v2273, %v1046
        %v2307 = vmul.f32 %v2270, %v1047
        %v2308 = vmul.f32 %v2291, %v1048
        %v2309 = vmul.f32 %v2289, %v1041
        %v2310 = vmul.f32 %v2286, %v1042
        %v2311 = vmul.f32 %v2283, %v1043
        %v2312 = vmul.f32 %v2280, %v1044
        %v2313 = vmul.f32 %v2277, %v1045
        %v2314 = vmul.f32 %v2274, %v1046
        %v2315 = vmul.f32 %v2271, %v1047
        %v2316 = vmul.f32 %v2292, %v1048
        %2317 = vrot.lane.b32.xlu0 %v1621, 95
        %v2318 = vpop.permute.xlu0 %2317
        %2319 = vrot.lane.b32.xlu0 %v1629, 95
        %v2320 = vpop.permute.xlu0 %2319
        %2321 = vrot.lane.b32.xlu0 %v1637, 95
        %v2322 = vpop.permute.xlu0 %2321
        %2323 = vrot.lane.b32.xlu0 %v1622, 95
        %v2324 = vpop.permute.xlu0 %2323
        %2325 = vrot.lane.b32.xlu0 %v1630, 95
        %v2326 = vpop.permute.xlu0 %2325
        %2327 = vrot.lane.b32.xlu0 %v1638, 95
        %v2328 = vpop.permute.xlu0 %2327
        %2329 = vrot.lane.b32.xlu0 %v1623, 95
        %v2330 = vpop.permute.xlu0 %2329
        %2331 = vrot.lane.b32.xlu0 %v1631, 95
        %v2332 = vpop.permute.xlu0 %2331
        %2333 = vrot.lane.b32.xlu0 %v1639, 95
        %v2334 = vpop.permute.xlu0 %2333
        %2335 = vrot.lane.b32.xlu0 %v1624, 95
        %v2336 = vpop.permute.xlu0 %2335
        %2337 = vrot.lane.b32.xlu0 %v1632, 95
        %v2338 = vpop.permute.xlu0 %2337
        %2339 = vrot.lane.b32.xlu0 %v1640, 95
        %v2340 = vpop.permute.xlu0 %2339
        %2341 = vrot.lane.b32.xlu0 %v1625, 95
        %v2342 = vpop.permute.xlu0 %2341
        %2343 = vrot.lane.b32.xlu0 %v1633, 95
        %v2344 = vpop.permute.xlu0 %2343
        %2345 = vrot.lane.b32.xlu0 %v1641, 95
        %v2346 = vpop.permute.xlu0 %2345
        %2347 = vrot.lane.b32.xlu0 %v1626, 95
        %v2348 = vpop.permute.xlu0 %2347
        %2349 = vrot.lane.b32.xlu0 %v1634, 95
        %v2350 = vpop.permute.xlu0 %2349
        %2351 = vrot.lane.b32.xlu0 %v1642, 95
        %v2352 = vpop.permute.xlu0 %2351
        %2353 = vrot.lane.b32.xlu0 %v1627, 95
        %v2354 = vpop.permute.xlu0 %2353
        %2355 = vrot.lane.b32.xlu0 %v1635, 95
        %v2356 = vpop.permute.xlu0 %2355
        %2357 = vrot.lane.b32.xlu0 %v1643, 95
        %v2358 = vpop.permute.xlu0 %2357
        %2359 = vrot.lane.b32.xlu0 %v1628, 95
        %v2360 = vpop.permute.xlu0 %2359
        %2361 = vrot.lane.b32.xlu0 %v1636, 95
        %v2362 = vpop.permute.xlu0 %2361
        %2363 = vrot.lane.b32.xlu0 %v1644, 95
        %v2364 = vpop.permute.xlu0 %2363
        %v2365 = vsel %vm1073, %v2354, %v2360
        %v2366 = vsel %vm1073, %v2356, %v2362
        %v2367 = vsel %vm1073, %v2358, %v2364
        %v2368 = vsel %vm1073, %v2348, %v2354
        %v2369 = vsel %vm1073, %v2350, %v2356
        %v2370 = vsel %vm1073, %v2352, %v2358
        %v2371 = vsel %vm1073, %v2342, %v2348
        %v2372 = vsel %vm1073, %v2344, %v2350
        %v2373 = vsel %vm1073, %v2346, %v2352
        %v2374 = vsel %vm1073, %v2336, %v2342
        %v2375 = vsel %vm1073, %v2338, %v2344
        %v2376 = vsel %vm1073, %v2340, %v2346
        %v2377 = vsel %vm1073, %v2330, %v2336
        %v2378 = vsel %vm1073, %v2332, %v2338
        %v2379 = vsel %vm1073, %v2334, %v2340
        %v2380 = vsel %vm1073, %v2324, %v2330
        %v2381 = vsel %vm1073, %v2326, %v2332
        %v2382 = vsel %vm1073, %v2328, %v2334
        %v2383 = vsel %vm1073, %v2318, %v2324
        %v2384 = vsel %vm1073, %v2320, %v2326
        %v2385 = vsel %vm1073, %v2322, %v2328
        %v2386 = vsel %vm1073, %v2360, %v2318
        %v2387 = vsel %vm1073, %v2362, %v2320
        %v2388 = vsel %vm1073, %v2364, %v2322
        %v2389 = vmul.f32 %v2383, %v1082
        %v2390 = vmul.f32 %v2380, %v1083
        %v2391 = vmul.f32 %v2377, %v1084
        %v2392 = vmul.f32 %v2374, %v1085
        %v2393 = vmul.f32 %v2371, %v1086
        %v2394 = vmul.f32 %v2368, %v1087
        %v2395 = vmul.f32 %v2365, %v1088
        %v2396 = vmul.f32 %v2386, %v1089
        %v2397 = vmul.f32 %v2384, %v1082
        %v2398 = vmul.f32 %v2381, %v1083
        %v2399 = vmul.f32 %v2378, %v1084
        %v2400 = vmul.f32 %v2375, %v1085
        %v2401 = vmul.f32 %v2372, %v1086
        %v2402 = vmul.f32 %v2369, %v1087
        %v2403 = vmul.f32 %v2366, %v1088
        %v2404 = vmul.f32 %v2387, %v1089
        %v2405 = vmul.f32 %v2385, %v1082
        %v2406 = vmul.f32 %v2382, %v1083
        %v2407 = vmul.f32 %v2379, %v1084
        %v2408 = vmul.f32 %v2376, %v1085
        %v2409 = vmul.f32 %v2373, %v1086
        %v2410 = vmul.f32 %v2370, %v1087
        %v2411 = vmul.f32 %v2367, %v1088
        %v2412 = vmul.f32 %v2388, %v1089
        %v2413 = vpack.c.bf16 %v1725, %v1717
        %v2414 = vpack.c.bf16 %v1726, %v1718
        %v2415 = vpack.c.bf16 %v1727, %v1719
        %v2416 = vpack.c.bf16 %v1728, %v1720
        %v2417 = vpack.c.bf16 %v1729, %v1721
        %v2418 = vpack.c.bf16 %v1730, %v1722
        %v2419 = vpack.c.bf16 %v1731, %v1723
        %v2420 = vpack.c.bf16 %v1732, %v1724
        %v2421 = vpack.c.bf16 %v1813, %v1733
        %v2422 = vpack.c.bf16 %v1814, %v1734
        %v2423 = vpack.c.bf16 %v1815, %v1735
        %v2424 = vpack.c.bf16 %v1816, %v1736
        %v2425 = vpack.c.bf16 %v1817, %v1737
        %v2426 = vpack.c.bf16 %v1818, %v1738
        %v2427 = vpack.c.bf16 %v1819, %v1739
        %v2428 = vpack.c.bf16 %v1820, %v1740
        %v2429 = vpack.c.bf16 %v1829, %v1821
        %v2430 = vpack.c.bf16 %v1830, %v1822
        %v2431 = vpack.c.bf16 %v1831, %v1823
        %v2432 = vpack.c.bf16 %v1832, %v1824
        %v2433 = vpack.c.bf16 %v1833, %v1825
        %v2434 = vpack.c.bf16 %v1834, %v1826
        %v2435 = vpack.c.bf16 %v1835, %v1827
        %v2436 = vpack.c.bf16 %v1836, %v1828
        %v2437 = vpack.c.bf16 %v1917, %v1909
        %v2438 = vpack.c.bf16 %v1918, %v1910
        %v2439 = vpack.c.bf16 %v1919, %v1911
        %v2440 = vpack.c.bf16 %v1920, %v1912
        %v2441 = vpack.c.bf16 %v1921, %v1913
        %v2442 = vpack.c.bf16 %v1922, %v1914
        %v2443 = vpack.c.bf16 %v1923, %v1915
        %v2444 = vpack.c.bf16 %v1924, %v1916
        %v2445 = vpack.c.bf16 %v2005, %v1925
        %v2446 = vpack.c.bf16 %v2006, %v1926
        %v2447 = vpack.c.bf16 %v2007, %v1927
        %v2448 = vpack.c.bf16 %v2008, %v1928
        %v2449 = vpack.c.bf16 %v2009, %v1929
        %v2450 = vpack.c.bf16 %v2010, %v1930
        %v2451 = vpack.c.bf16 %v2011, %v1931
        %v2452 = vpack.c.bf16 %v2012, %v1932
        %v2453 = vpack.c.bf16 %v2021, %v2013
        %v2454 = vpack.c.bf16 %v2022, %v2014
        %v2455 = vpack.c.bf16 %v2023, %v2015
        %v2456 = vpack.c.bf16 %v2024, %v2016
        %v2457 = vpack.c.bf16 %v2025, %v2017
        %v2458 = vpack.c.bf16 %v2026, %v2018
        %v2459 = vpack.c.bf16 %v2027, %v2019
        %v2460 = vpack.c.bf16 %v2028, %v2020
        %v2461 = vpack.c.bf16 %v1629, %v1621
        %v2462 = vpack.c.bf16 %v1630, %v1622
        %v2463 = vpack.c.bf16 %v1631, %v1623
        %v2464 = vpack.c.bf16 %v1632, %v1624
        %v2465 = vpack.c.bf16 %v1633, %v1625
        %v2466 = vpack.c.bf16 %v1634, %v1626
        %v2467 = vpack.c.bf16 %v1635, %v1627
        %v2468 = vpack.c.bf16 %v1636, %v1628
        %v2469 = vpack.c.bf16 %v2101, %v1637
        %v2470 = vpack.c.bf16 %v2102, %v1638
        %v2471 = vpack.c.bf16 %v2103, %v1639
        %v2472 = vpack.c.bf16 %v2104, %v1640
        %v2473 = vpack.c.bf16 %v2105, %v1641
        %v2474 = vpack.c.bf16 %v2106, %v1642
        %v2475 = vpack.c.bf16 %v2107, %v1643
        %v2476 = vpack.c.bf16 %v2108, %v1644
        %v2477 = vpack.c.bf16 %v2117, %v2109
        %v2478 = vpack.c.bf16 %v2118, %v2110
        %v2479 = vpack.c.bf16 %v2119, %v2111
        %v2480 = vpack.c.bf16 %v2120, %v2112
        %v2481 = vpack.c.bf16 %v2121, %v2113
        %v2482 = vpack.c.bf16 %v2122, %v2114
        %v2483 = vpack.c.bf16 %v2123, %v2115
        %v2484 = vpack.c.bf16 %v2124, %v2116
        %v2485 = vpack.c.bf16 %v2205, %v2197
        %v2486 = vpack.c.bf16 %v2206, %v2198
        %v2487 = vpack.c.bf16 %v2207, %v2199
        %v2488 = vpack.c.bf16 %v2208, %v2200
        %v2489 = vpack.c.bf16 %v2209, %v2201
        %v2490 = vpack.c.bf16 %v2210, %v2202
        %v2491 = vpack.c.bf16 %v2211, %v2203
        %v2492 = vpack.c.bf16 %v2212, %v2204
        %v2493 = vpack.c.bf16 %v2293, %v2213
        %v2494 = vpack.c.bf16 %v2294, %v2214
        %v2495 = vpack.c.bf16 %v2295, %v2215
        %v2496 = vpack.c.bf16 %v2296, %v2216
        %v2497 = vpack.c.bf16 %v2297, %v2217
        %v2498 = vpack.c.bf16 %v2298, %v2218
        %v2499 = vpack.c.bf16 %v2299, %v2219
        %v2500 = vpack.c.bf16 %v2300, %v2220
        %v2501 = vpack.c.bf16 %v2309, %v2301
        %v2502 = vpack.c.bf16 %v2310, %v2302
        %v2503 = vpack.c.bf16 %v2311, %v2303
        %v2504 = vpack.c.bf16 %v2312, %v2304
        %v2505 = vpack.c.bf16 %v2313, %v2305
        %v2506 = vpack.c.bf16 %v2314, %v2306
        %v2507 = vpack.c.bf16 %v2315, %v2307
        %v2508 = vpack.c.bf16 %v2316, %v2308
        %v2509 = vpack.c.bf16 %v2397, %v2389
        %v2510 = vpack.c.bf16 %v2398, %v2390
        %v2511 = vpack.c.bf16 %v2399, %v2391
        %v2512 = vpack.c.bf16 %v2400, %v2392
        %v2513 = vpack.c.bf16 %v2401, %v2393
        %v2514 = vpack.c.bf16 %v2402, %v2394
        %v2515 = vpack.c.bf16 %v2403, %v2395
        %v2516 = vpack.c.bf16 %v2404, %v2396
        %v2517 = vpack.c.bf16 %v2405, %v2405
        %v2518 = vpack.c.bf16 %v2406, %v2406
        %v2519 = vpack.c.bf16 %v2407, %v2407
        %v2520 = vpack.c.bf16 %v2408, %v2408
        %v2521 = vpack.c.bf16 %v2409, %v2409
        %v2522 = vpack.c.bf16 %v2410, %v2410
        %v2523 = vpack.c.bf16 %v2411, %v2411
        %v2524 = vpack.c.bf16 %v2412, %v2412
        %v2525 = vld [vmem:[%s13] sm:$0xff]
        %v2526 = vld [vmem:[%s13 + $0x8] sm:$0xff]
        %v2527 = vld [vmem:[%s13 + $0x10] sm:$0xff]
        %v2528 = vld [vmem:[%s13 + $0x18] sm:$0xff]
        %v2529 = vld [vmem:[%s13 + $0x20] sm:$0xff]
        %v2530 = vld [vmem:[%s13 + $0x28] sm:$0xff]
        %v2537 = vunpack.c.l.b16 %v2525
        %v2538 = vunpack.c.h.b16 %v2525
        %v2539 = vunpack.c.l.b16 %v2526
        %v2540 = vunpack.c.h.b16 %v2526
        %v2541 = vunpack.c.l.b16 %v2527
        %v2542 = vunpack.c.h.b16 %v2527
        %v2543 = vunpack.c.l.b16 %v2528
        %v2544 = vunpack.c.h.b16 %v2528
        %v2545 = vunpack.c.l.b16 %v2529
        %v2546 = vunpack.c.h.b16 %v2529
        %v2547 = vunpack.c.l.b16 %v2530
        %v2548 = vunpack.c.h.b16 %v2530
        %v2549 = vpack.c.b16 %v2539, %v2537
        %v2550 = vpack.c.b16 %v2540, %v2538
        %v2551 = vpack.c.b16 %v2543, %v2541
        %v2552 = vpack.c.b16 %v2544, %v2542
        %v2553 = vpack.c.b16 %v2547, %v2545
        %v2554 = vpack.c.b16 %v2548, %v2546
        %vm2558 = vcmask 719872
        %v2560 = vsel %vm2558, %v2550, 0
        %v2563 = vsel %vm2558, %v2552, 0
        %v2566 = vsel %vm2558, %v2554, 0
        %v2569 = vsel %vm1156, %v2517, 0
        %v2572 = vsel %vm1156, %v2518, 0
        %v2575 = vsel %vm1156, %v2519, 0
        %v2578 = vsel %vm1156, %v2520, 0
        %v2581 = vsel %vm1156, %v2521, 0
        %v2584 = vsel %vm1156, %v2522, 0
        %v2587 = vsel %vm1156, %v2523, 0
        %v2590 = vsel %vm1156, %v2524, 0
        %2592 = vmatpush.bf16.msra.mxu0 %v2469
        %2593 = vmatpush.bf16.msra.mxu0 %v2461
        %2594 = vmatpush.bf16.msra.mxu0 %v2453
        %2595 = vmatpush.bf16.msra.mxu0 %v2445
        %2596 = vmatpush.bf16.msra.mxu0 %v2437
        %2597 = vmatpush.bf16.msra.mxu0 %v2429
        %2598 = vmatpush.bf16.msra.mxu0 %v2421
        %2599 = vmatpush.bf16.msra.mxu0 %v2413
        %2600 = vmatmul.bf16.gmra.mxu0 %v2549
        %v2601 = vpop.f32.mrf.mxu0
        %v2602 = vadd.f32 0.0, %v2601
        %v2603 = vpop.f32.mrf.mxu0
        %v2604 = vadd.f32 0.0, %v2603
        %2605 = vmatmul.bf16.gmra.mxu0 %v2551
        %v2606 = vpop.f32.mrf.mxu0
        %v2607 = vadd.f32 0.0, %v2606
        %v2608 = vpop.f32.mrf.mxu0
        %v2609 = vadd.f32 0.0, %v2608
        %2610 = vmatmul.bf16.gmra.mxu0 %v2553
        %v2611 = vpop.f32.mrf.mxu0
        %v2612 = vadd.f32 0.0, %v2611
        %v2613 = vpop.f32.mrf.mxu0
        %v2614 = vadd.f32 0.0, %v2613
        %2615 = vdwg.mxu0
        %2616 = vmatpush.bf16.msra.mxu0 0
        %2617 = vmatpush.bf16.msra.mxu0 0
        %2618 = vmatpush.bf16.msra.mxu0 %v2569
        %2619 = vmatpush.bf16.msra.mxu0 %v2509
        %2620 = vmatpush.bf16.msra.mxu0 %v2501
        %2621 = vmatpush.bf16.msra.mxu0 %v2493
        %2622 = vmatpush.bf16.msra.mxu0 %v2485
        %2623 = vmatpush.bf16.msra.mxu0 %v2477
        %2624 = vmatmul.bf16.gmra.mxu0 %v2560
        %v2625 = vpop.f32.mrf.mxu0
        %v2626 = vadd.f32 %v2602, %v2625
        %v2627 = vpop.f32.mrf.mxu0
        %v2628 = vadd.f32 %v2604, %v2627
        %2629 = vmatmul.bf16.gmra.mxu0 %v2563
        %v2630 = vpop.f32.mrf.mxu0
        %v2631 = vadd.f32 %v2607, %v2630
        %v2632 = vpop.f32.mrf.mxu0
        %v2633 = vadd.f32 %v2609, %v2632
        %2634 = vmatmul.bf16.gmra.mxu0 %v2566
        %v2635 = vpop.f32.mrf.mxu0
        %v2636 = vadd.f32 %v2612, %v2635
        %v2637 = vpop.f32.mrf.mxu0
        %v2638 = vadd.f32 %v2614, %v2637
        %2639 = vdwg.mxu0
        %2640 = vmatpush.bf16.msra.mxu0 %v2470
        %2641 = vmatpush.bf16.msra.mxu0 %v2462
        %2642 = vmatpush.bf16.msra.mxu0 %v2454
        %2643 = vmatpush.bf16.msra.mxu0 %v2446
        %2644 = vmatpush.bf16.msra.mxu0 %v2438
        %2645 = vmatpush.bf16.msra.mxu0 %v2430
        %2646 = vmatpush.bf16.msra.mxu0 %v2422
        %2647 = vmatpush.bf16.msra.mxu0 %v2414
        %2648 = vmatmul.bf16.gmra.mxu0 %v2549
        %v2649 = vpop.f32.mrf.mxu0
        %v2650 = vadd.f32 0.0, %v2649
        %v2651 = vpop.f32.mrf.mxu0
        %v2652 = vadd.f32 0.0, %v2651
        %2653 = vmatmul.bf16.gmra.mxu0 %v2551
        %v2654 = vpop.f32.mrf.mxu0
        %v2655 = vadd.f32 0.0, %v2654
        %v2656 = vpop.f32.mrf.mxu0
        %v2657 = vadd.f32 0.0, %v2656
        %2658 = vmatmul.bf16.gmra.mxu0 %v2553
        %v2659 = vpop.f32.mrf.mxu0
        %v2660 = vadd.f32 0.0, %v2659
        %v2661 = vpop.f32.mrf.mxu0
        %v2662 = vadd.f32 0.0, %v2661
        %2663 = vdwg.mxu0
        %2664 = vmatpush.bf16.msra.mxu0 0
        %2665 = vmatpush.bf16.msra.mxu0 0
        %2666 = vmatpush.bf16.msra.mxu0 %v2572
        %2667 = vmatpush.bf16.msra.mxu0 %v2510
        %2668 = vmatpush.bf16.msra.mxu0 %v2502
        %2669 = vmatpush.bf16.msra.mxu0 %v2494
        %2670 = vmatpush.bf16.msra.mxu0 %v2486
        %2671 = vmatpush.bf16.msra.mxu0 %v2478
        %2672 = vmatmul.bf16.gmra.mxu0 %v2560
        %v2673 = vpop.f32.mrf.mxu0
        %v2674 = vadd.f32 %v2650, %v2673
        %v2675 = vpop.f32.mrf.mxu0
        %v2676 = vadd.f32 %v2652, %v2675
        %2677 = vmatmul.bf16.gmra.mxu0 %v2563
        %v2678 = vpop.f32.mrf.mxu0
        %v2679 = vadd.f32 %v2655, %v2678
        %v2680 = vpop.f32.mrf.mxu0
        %v2681 = vadd.f32 %v2657, %v2680
        %2682 = vmatmul.bf16.gmra.mxu0 %v2566
        %v2683 = vpop.f32.mrf.mxu0
        %v2684 = vadd.f32 %v2660, %v2683
        %v2685 = vpop.f32.mrf.mxu0
        %v2686 = vadd.f32 %v2662, %v2685
        %2687 = vdwg.mxu0
        %2688 = vmatpush.bf16.msra.mxu0 %v2471
        %2689 = vmatpush.bf16.msra.mxu0 %v2463
        %2690 = vmatpush.bf16.msra.mxu0 %v2455
        %2691 = vmatpush.bf16.msra.mxu0 %v2447
        %2692 = vmatpush.bf16.msra.mxu0 %v2439
        %2693 = vmatpush.bf16.msra.mxu0 %v2431
        %2694 = vmatpush.bf16.msra.mxu0 %v2423
        %2695 = vmatpush.bf16.msra.mxu0 %v2415
        %2696 = vmatmul.bf16.gmra.mxu0 %v2549
        %v2697 = vpop.f32.mrf.mxu0
        %v2698 = vadd.f32 0.0, %v2697
        %v2699 = vpop.f32.mrf.mxu0
        %v2700 = vadd.f32 0.0, %v2699
        %2701 = vmatmul.bf16.gmra.mxu0 %v2551
        %v2702 = vpop.f32.mrf.mxu0
        %v2703 = vadd.f32 0.0, %v2702
        %v2704 = vpop.f32.mrf.mxu0
        %v2705 = vadd.f32 0.0, %v2704
        %2706 = vmatmul.bf16.gmra.mxu0 %v2553
        %v2707 = vpop.f32.mrf.mxu0
        %v2708 = vadd.f32 0.0, %v2707
        %v2709 = vpop.f32.mrf.mxu0
        %v2710 = vadd.f32 0.0, %v2709
        %2711 = vdwg.mxu0
        %2712 = vmatpush.bf16.msra.mxu0 0
        %2713 = vmatpush.bf16.msra.mxu0 0
        %2714 = vmatpush.bf16.msra.mxu0 %v2575
        %2715 = vmatpush.bf16.msra.mxu0 %v2511
        %2716 = vmatpush.bf16.msra.mxu0 %v2503
        %2717 = vmatpush.bf16.msra.mxu0 %v2495
        %2718 = vmatpush.bf16.msra.mxu0 %v2487
        %2719 = vmatpush.bf16.msra.mxu0 %v2479
        %2720 = vmatmul.bf16.gmra.mxu0 %v2560
        %v2721 = vpop.f32.mrf.mxu0
        %v2722 = vadd.f32 %v2698, %v2721
        %v2723 = vpop.f32.mrf.mxu0
        %v2724 = vadd.f32 %v2700, %v2723
        %2725 = vmatmul.bf16.gmra.mxu0 %v2563
        %v2726 = vpop.f32.mrf.mxu0
        %v2727 = vadd.f32 %v2703, %v2726
        %v2728 = vpop.f32.mrf.mxu0
        %v2729 = vadd.f32 %v2705, %v2728
        %2730 = vmatmul.bf16.gmra.mxu0 %v2566
        %v2731 = vpop.f32.mrf.mxu0
        %v2732 = vadd.f32 %v2708, %v2731
        %v2733 = vpop.f32.mrf.mxu0
        %v2734 = vadd.f32 %v2710, %v2733
        %2735 = vdwg.mxu0
        %2736 = vmatpush.bf16.msra.mxu0 %v2472
        %2737 = vmatpush.bf16.msra.mxu0 %v2464
        %2738 = vmatpush.bf16.msra.mxu0 %v2456
        %2739 = vmatpush.bf16.msra.mxu0 %v2448
        %2740 = vmatpush.bf16.msra.mxu0 %v2440
        %2741 = vmatpush.bf16.msra.mxu0 %v2432
        %2742 = vmatpush.bf16.msra.mxu0 %v2424
        %2743 = vmatpush.bf16.msra.mxu0 %v2416
        %2744 = vmatmul.bf16.gmra.mxu0 %v2549
        %v2745 = vpop.f32.mrf.mxu0
        %v2746 = vadd.f32 0.0, %v2745
        %v2747 = vpop.f32.mrf.mxu0
        %v2748 = vadd.f32 0.0, %v2747
        %2749 = vmatmul.bf16.gmra.mxu0 %v2551
        %v2750 = vpop.f32.mrf.mxu0
        %v2751 = vadd.f32 0.0, %v2750
        %v2752 = vpop.f32.mrf.mxu0
        %v2753 = vadd.f32 0.0, %v2752
        %2754 = vmatmul.bf16.gmra.mxu0 %v2553
        %v2755 = vpop.f32.mrf.mxu0
        %v2756 = vadd.f32 0.0, %v2755
        %v2757 = vpop.f32.mrf.mxu0
        %v2758 = vadd.f32 0.0, %v2757
        %2759 = vdwg.mxu0
        %2760 = vmatpush.bf16.msra.mxu0 0
        %2761 = vmatpush.bf16.msra.mxu0 0
        %2762 = vmatpush.bf16.msra.mxu0 %v2578
        %2763 = vmatpush.bf16.msra.mxu0 %v2512
        %2764 = vmatpush.bf16.msra.mxu0 %v2504
        %2765 = vmatpush.bf16.msra.mxu0 %v2496
        %2766 = vmatpush.bf16.msra.mxu0 %v2488
        %2767 = vmatpush.bf16.msra.mxu0 %v2480
        %2768 = vmatmul.bf16.gmra.mxu0 %v2560
        %v2769 = vpop.f32.mrf.mxu0
        %v2770 = vadd.f32 %v2746, %v2769
        %v2771 = vpop.f32.mrf.mxu0
        %v2772 = vadd.f32 %v2748, %v2771
        %2773 = vmatmul.bf16.gmra.mxu0 %v2563
        %v2774 = vpop.f32.mrf.mxu0
        %v2775 = vadd.f32 %v2751, %v2774
        %v2776 = vpop.f32.mrf.mxu0
        %v2777 = vadd.f32 %v2753, %v2776
        %2778 = vmatmul.bf16.gmra.mxu0 %v2566
        %v2779 = vpop.f32.mrf.mxu0
        %v2780 = vadd.f32 %v2756, %v2779
        %v2781 = vpop.f32.mrf.mxu0
        %v2782 = vadd.f32 %v2758, %v2781
        %2783 = vdwg.mxu0
        %2784 = vmatpush.bf16.msra.mxu0 %v2473
        %2785 = vmatpush.bf16.msra.mxu0 %v2465
        %2786 = vmatpush.bf16.msra.mxu0 %v2457
        %2787 = vmatpush.bf16.msra.mxu0 %v2449
        %2788 = vmatpush.bf16.msra.mxu0 %v2441
        %2789 = vmatpush.bf16.msra.mxu0 %v2433
        %2790 = vmatpush.bf16.msra.mxu0 %v2425
        %2791 = vmatpush.bf16.msra.mxu0 %v2417
        %2792 = vmatmul.bf16.gmra.mxu0 %v2549
        %v2793 = vpop.f32.mrf.mxu0
        %v2794 = vadd.f32 0.0, %v2793
        %v2795 = vpop.f32.mrf.mxu0
        %v2796 = vadd.f32 0.0, %v2795
        %2797 = vmatmul.bf16.gmra.mxu0 %v2551
        %v2798 = vpop.f32.mrf.mxu0
        %v2799 = vadd.f32 0.0, %v2798
        %v2800 = vpop.f32.mrf.mxu0
        %v2801 = vadd.f32 0.0, %v2800
        %2802 = vmatmul.bf16.gmra.mxu0 %v2553
        %v2803 = vpop.f32.mrf.mxu0
        %v2804 = vadd.f32 0.0, %v2803
        %v2805 = vpop.f32.mrf.mxu0
        %v2806 = vadd.f32 0.0, %v2805
        %2807 = vdwg.mxu0
        %2808 = vmatpush.bf16.msra.mxu0 0
        %2809 = vmatpush.bf16.msra.mxu0 0
        %2810 = vmatpush.bf16.msra.mxu0 %v2581
        %2811 = vmatpush.bf16.msra.mxu0 %v2513
        %2812 = vmatpush.bf16.msra.mxu0 %v2505
        %2813 = vmatpush.bf16.msra.mxu0 %v2497
        %2814 = vmatpush.bf16.msra.mxu0 %v2489
        %2815 = vmatpush.bf16.msra.mxu0 %v2481
        %2816 = vmatmul.bf16.gmra.mxu0 %v2560
        %v2817 = vpop.f32.mrf.mxu0
        %v2818 = vadd.f32 %v2794, %v2817
        %v2819 = vpop.f32.mrf.mxu0
        %v2820 = vadd.f32 %v2796, %v2819
        %2821 = vmatmul.bf16.gmra.mxu0 %v2563
        %v2822 = vpop.f32.mrf.mxu0
        %v2823 = vadd.f32 %v2799, %v2822
        %v2824 = vpop.f32.mrf.mxu0
        %v2825 = vadd.f32 %v2801, %v2824
        %2826 = vmatmul.bf16.gmra.mxu0 %v2566
        %v2827 = vpop.f32.mrf.mxu0
        %v2828 = vadd.f32 %v2804, %v2827
        %v2829 = vpop.f32.mrf.mxu0
        %v2830 = vadd.f32 %v2806, %v2829
        %2831 = vdwg.mxu0
        %2832 = vmatpush.bf16.msra.mxu0 %v2474
        %2833 = vmatpush.bf16.msra.mxu0 %v2466
        %2834 = vmatpush.bf16.msra.mxu0 %v2458
        %2835 = vmatpush.bf16.msra.mxu0 %v2450
        %2836 = vmatpush.bf16.msra.mxu0 %v2442
        %2837 = vmatpush.bf16.msra.mxu0 %v2434
        %2838 = vmatpush.bf16.msra.mxu0 %v2426
        %2839 = vmatpush.bf16.msra.mxu0 %v2418
        %2840 = vmatmul.bf16.gmra.mxu0 %v2549
        %v2841 = vpop.f32.mrf.mxu0
        %v2842 = vadd.f32 0.0, %v2841
        %v2843 = vpop.f32.mrf.mxu0
        %v2844 = vadd.f32 0.0, %v2843
        %2845 = vmatmul.bf16.gmra.mxu0 %v2551
        %v2846 = vpop.f32.mrf.mxu0
        %v2847 = vadd.f32 0.0, %v2846
        %v2848 = vpop.f32.mrf.mxu0
        %v2849 = vadd.f32 0.0, %v2848
        %2850 = vmatmul.bf16.gmra.mxu0 %v2553
        %v2851 = vpop.f32.mrf.mxu0
        %v2852 = vadd.f32 0.0, %v2851
        %v2853 = vpop.f32.mrf.mxu0
        %v2854 = vadd.f32 0.0, %v2853
        %2855 = vdwg.mxu0
        %2856 = vmatpush.bf16.msra.mxu0 0
        %2857 = vmatpush.bf16.msra.mxu0 0
        %2858 = vmatpush.bf16.msra.mxu0 %v2584
        %2859 = vmatpush.bf16.msra.mxu0 %v2514
        %2860 = vmatpush.bf16.msra.mxu0 %v2506
        %2861 = vmatpush.bf16.msra.mxu0 %v2498
        %2862 = vmatpush.bf16.msra.mxu0 %v2490
        %2863 = vmatpush.bf16.msra.mxu0 %v2482
        %2864 = vmatmul.bf16.gmra.mxu0 %v2560
        %v2865 = vpop.f32.mrf.mxu0
        %v2866 = vadd.f32 %v2842, %v2865
        %v2867 = vpop.f32.mrf.mxu0
        %v2868 = vadd.f32 %v2844, %v2867
        %2869 = vmatmul.bf16.gmra.mxu0 %v2563
        %v2870 = vpop.f32.mrf.mxu0
        %v2871 = vadd.f32 %v2847, %v2870
        %v2872 = vpop.f32.mrf.mxu0
        %v2873 = vadd.f32 %v2849, %v2872
        %2874 = vmatmul.bf16.gmra.mxu0 %v2566
        %v2875 = vpop.f32.mrf.mxu0
        %v2876 = vadd.f32 %v2852, %v2875
        %v2877 = vpop.f32.mrf.mxu0
        %v2878 = vadd.f32 %v2854, %v2877
        %2879 = vdwg.mxu0
        %2880 = vmatpush.bf16.msra.mxu0 %v2475
        %2881 = vmatpush.bf16.msra.mxu0 %v2467
        %2882 = vmatpush.bf16.msra.mxu0 %v2459
        %2883 = vmatpush.bf16.msra.mxu0 %v2451
        %2884 = vmatpush.bf16.msra.mxu0 %v2443
        %2885 = vmatpush.bf16.msra.mxu0 %v2435
        %2886 = vmatpush.bf16.msra.mxu0 %v2427
        %2887 = vmatpush.bf16.msra.mxu0 %v2419
        %2888 = vmatmul.bf16.gmra.mxu0 %v2549
        %v2889 = vpop.f32.mrf.mxu0
        %v2890 = vadd.f32 0.0, %v2889
        %v2891 = vpop.f32.mrf.mxu0
        %v2892 = vadd.f32 0.0, %v2891
        %2893 = vmatmul.bf16.gmra.mxu0 %v2551
        %v2894 = vpop.f32.mrf.mxu0
        %v2895 = vadd.f32 0.0, %v2894
        %v2896 = vpop.f32.mrf.mxu0
        %v2897 = vadd.f32 0.0, %v2896
        %2898 = vmatmul.bf16.gmra.mxu0 %v2553
        %v2899 = vpop.f32.mrf.mxu0
        %v2900 = vadd.f32 0.0, %v2899
        %v2901 = vpop.f32.mrf.mxu0
        %v2902 = vadd.f32 0.0, %v2901
        %2903 = vdwg.mxu0
        %2904 = vmatpush.bf16.msra.mxu0 0
        %2905 = vmatpush.bf16.msra.mxu0 0
        %2906 = vmatpush.bf16.msra.mxu0 %v2587
        %2907 = vmatpush.bf16.msra.mxu0 %v2515
        %2908 = vmatpush.bf16.msra.mxu0 %v2507
        %2909 = vmatpush.bf16.msra.mxu0 %v2499
        %2910 = vmatpush.bf16.msra.mxu0 %v2491
        %2911 = vmatpush.bf16.msra.mxu0 %v2483
        %2912 = vmatmul.bf16.gmra.mxu0 %v2560
        %v2913 = vpop.f32.mrf.mxu0
        %v2914 = vadd.f32 %v2890, %v2913
        %v2915 = vpop.f32.mrf.mxu0
        %v2916 = vadd.f32 %v2892, %v2915
        %2917 = vmatmul.bf16.gmra.mxu0 %v2563
        %v2918 = vpop.f32.mrf.mxu0
        %v2919 = vadd.f32 %v2895, %v2918
        %v2920 = vpop.f32.mrf.mxu0
        %v2921 = vadd.f32 %v2897, %v2920
        %2922 = vmatmul.bf16.gmra.mxu0 %v2566
        %v2923 = vpop.f32.mrf.mxu0
        %v2924 = vadd.f32 %v2900, %v2923
        %v2925 = vpop.f32.mrf.mxu0
        %v2926 = vadd.f32 %v2902, %v2925
        %2927 = vdwg.mxu0
        %2928 = vmatpush.bf16.msra.mxu0 %v2476
        %2929 = vmatpush.bf16.msra.mxu0 %v2468
        %2930 = vmatpush.bf16.msra.mxu0 %v2460
        %2931 = vmatpush.bf16.msra.mxu0 %v2452
        %2932 = vmatpush.bf16.msra.mxu0 %v2444
        %2933 = vmatpush.bf16.msra.mxu0 %v2436
        %2934 = vmatpush.bf16.msra.mxu0 %v2428
        %2935 = vmatpush.bf16.msra.mxu0 %v2420
        %2936 = vmatmul.bf16.gmra.mxu0 %v2549
        %v2937 = vpop.f32.mrf.mxu0
        %v2938 = vadd.f32 0.0, %v2937
        %v2939 = vpop.f32.mrf.mxu0
        %v2940 = vadd.f32 0.0, %v2939
        %2941 = vmatmul.bf16.gmra.mxu0 %v2551
        %v2942 = vpop.f32.mrf.mxu0
        %v2943 = vadd.f32 0.0, %v2942
        %v2944 = vpop.f32.mrf.mxu0
        %v2945 = vadd.f32 0.0, %v2944
        %2946 = vmatmul.bf16.gmra.mxu0 %v2553
        %v2947 = vpop.f32.mrf.mxu0
        %v2948 = vadd.f32 0.0, %v2947
        %v2949 = vpop.f32.mrf.mxu0
        %v2950 = vadd.f32 0.0, %v2949
        %2951 = vdwg.mxu0
        %2952 = vmatpush.bf16.msra.mxu0 0
        %2953 = vmatpush.bf16.msra.mxu0 0
        %2954 = vmatpush.bf16.msra.mxu0 %v2590
        %2955 = vmatpush.bf16.msra.mxu0 %v2516
        %2956 = vmatpush.bf16.msra.mxu0 %v2508
        %2957 = vmatpush.bf16.msra.mxu0 %v2500
        %2958 = vmatpush.bf16.msra.mxu0 %v2492
        %2959 = vmatpush.bf16.msra.mxu0 %v2484
        %2960 = vmatmul.bf16.gmra.mxu0 %v2560
        %v2961 = vpop.f32.mrf.mxu0
        %v2962 = vadd.f32 %v2938, %v2961
        %v2963 = vpop.f32.mrf.mxu0
        %v2964 = vadd.f32 %v2940, %v2963
        %2965 = vmatmul.bf16.gmra.mxu0 %v2563
        %v2966 = vpop.f32.mrf.mxu0
        %v2967 = vadd.f32 %v2943, %v2966
        %v2968 = vpop.f32.mrf.mxu0
        %v2969 = vadd.f32 %v2945, %v2968
        %2970 = vmatmul.bf16.gmra.mxu0 %v2566
        %v2971 = vpop.f32.mrf.mxu0
        %v2972 = vadd.f32 %v2948, %v2971
        %v2973 = vpop.f32.mrf.mxu0
        %v2974 = vadd.f32 %v2950, %v2973
        %2975 = vdwg.mxu0
        %v2976 = vld [vmem:[%s10] sm:$0xff]
        %v2977 = vld [vmem:[%s10 + $0x8] sm:$0xff]
        %v2978 = vld [vmem:[%s10 + $0x10] sm:$0xff]
        %v2979 = vld [vmem:[%s10 + $0x18] sm:$0xff]
        %v2980 = vld [vmem:[%s10 + $0x20] sm:$0xff]
        %v2981 = vld [vmem:[%s10 + $0x28] sm:$0xff]
        %v2982 = vld [vmem:[%s11] sm:$0xff]
        %v2983 = vld [vmem:[%s11 + $0x8] sm:$0xff]
        %v2984 = vld [vmem:[%s11 + $0x10] sm:$0xff]
        %v2985 = vld [vmem:[%s11 + $0x18] sm:$0xff]
        %v2986 = vld [vmem:[%s11 + $0x20] sm:$0xff]
        %v2987 = vld [vmem:[%s11 + $0x28] sm:$0xff]
        %v2988 = vmax.f32 %v2626, 0.0
        %v2989 = vmax.f32 %v2674, 0.0
        %v2990 = vmax.f32 %v2722, 0.0
        %v2991 = vmax.f32 %v2770, 0.0
        %v2992 = vmax.f32 %v2818, 0.0
        %v2993 = vmax.f32 %v2866, 0.0
        %v2994 = vmax.f32 %v2914, 0.0
        %v2995 = vmax.f32 %v2962, 0.0
        %v2996 = vmax.f32 %v2628, 0.0
        %v2997 = vmax.f32 %v2676, 0.0
        %v2998 = vmax.f32 %v2724, 0.0
        %v2999 = vmax.f32 %v2772, 0.0
        %v3000 = vmax.f32 %v2820, 0.0
        %v3001 = vmax.f32 %v2868, 0.0
        %v3002 = vmax.f32 %v2916, 0.0
        %v3003 = vmax.f32 %v2964, 0.0
        %v3004 = vmax.f32 %v2631, 0.0
        %v3005 = vmax.f32 %v2679, 0.0
        %v3006 = vmax.f32 %v2727, 0.0
        %v3007 = vmax.f32 %v2775, 0.0
        %v3008 = vmax.f32 %v2823, 0.0
        %v3009 = vmax.f32 %v2871, 0.0
        %v3010 = vmax.f32 %v2919, 0.0
        %v3011 = vmax.f32 %v2967, 0.0
        %v3012 = vmax.f32 %v2633, 0.0
        %v3013 = vmax.f32 %v2681, 0.0
        %v3014 = vmax.f32 %v2729, 0.0
        %v3015 = vmax.f32 %v2777, 0.0
        %v3016 = vmax.f32 %v2825, 0.0
        %v3017 = vmax.f32 %v2873, 0.0
        %v3018 = vmax.f32 %v2921, 0.0
        %v3019 = vmax.f32 %v2969, 0.0
        %v3020 = vmax.f32 %v2636, 0.0
        %v3021 = vmax.f32 %v2684, 0.0
        %v3022 = vmax.f32 %v2732, 0.0
        %v3023 = vmax.f32 %v2780, 0.0
        %v3024 = vmax.f32 %v2828, 0.0
        %v3025 = vmax.f32 %v2876, 0.0
        %v3026 = vmax.f32 %v2924, 0.0
        %v3027 = vmax.f32 %v2972, 0.0
        %v3028 = vmax.f32 %v2638, 0.0
        %v3029 = vmax.f32 %v2686, 0.0
        %v3030 = vmax.f32 %v2734, 0.0
        %v3031 = vmax.f32 %v2782, 0.0
        %v3032 = vmax.f32 %v2830, 0.0
        %v3033 = vmax.f32 %v2878, 0.0
        %v3034 = vmax.f32 %v2926, 0.0
        %v3035 = vmax.f32 %v2974, 0.0
        %v3036 = vmul.f32 %v2988, %v2988
        %v3037 = vmul.f32 %v2996, %v2996
        %v3038 = vmul.f32 %v3004, %v3004
        %v3039 = vmul.f32 %v3012, %v3012
        %v3040 = vmul.f32 %v3020, %v3020
        %v3041 = vmul.f32 %v3028, %v3028
        %v3042 = vadd.f32 %v2988, %v2989
        %v3043 = vadd.f32 %v2996, %v2997
        %v3044 = vadd.f32 %v3004, %v3005
        %v3045 = vadd.f32 %v3012, %v3013
        %v3046 = vadd.f32 %v3020, %v3021
        %v3047 = vadd.f32 %v3028, %v3029
        %v3048 = vmul.f32 %v2989, %v2989
        %v3049 = vmul.f32 %v2997, %v2997
        %v3050 = vmul.f32 %v3005, %v3005
        %v3051 = vmul.f32 %v3013, %v3013
        %v3052 = vmul.f32 %v3021, %v3021
        %v3053 = vmul.f32 %v3029, %v3029
        %v3054 = vadd.f32 %v3036, %v3048
        %v3055 = vadd.f32 %v3037, %v3049
        %v3056 = vadd.f32 %v3038, %v3050
        %v3057 = vadd.f32 %v3039, %v3051
        %v3058 = vadd.f32 %v3040, %v3052
        %v3059 = vadd.f32 %v3041, %v3053
        %v3060 = vadd.f32 %v3042, %v2990
        %v3061 = vadd.f32 %v3043, %v2998
        %v3062 = vadd.f32 %v3044, %v3006
        %v3063 = vadd.f32 %v3045, %v3014
        %v3064 = vadd.f32 %v3046, %v3022
        %v3065 = vadd.f32 %v3047, %v3030
        %v3066 = vmul.f32 %v2990, %v2990
        %v3067 = vmul.f32 %v2998, %v2998
        %v3068 = vmul.f32 %v3006, %v3006
        %v3069 = vmul.f32 %v3014, %v3014
        %v3070 = vmul.f32 %v3022, %v3022
        %v3071 = vmul.f32 %v3030, %v3030
        %v3072 = vadd.f32 %v3054, %v3066
        %v3073 = vadd.f32 %v3055, %v3067
        %v3074 = vadd.f32 %v3056, %v3068
        %v3075 = vadd.f32 %v3057, %v3069
        %v3076 = vadd.f32 %v3058, %v3070
        %v3077 = vadd.f32 %v3059, %v3071
        %v3078 = vadd.f32 %v3060, %v2991
        %v3079 = vadd.f32 %v3061, %v2999
        %v3080 = vadd.f32 %v3062, %v3007
        %v3081 = vadd.f32 %v3063, %v3015
        %v3082 = vadd.f32 %v3064, %v3023
        %v3083 = vadd.f32 %v3065, %v3031
        %v3084 = vmul.f32 %v2991, %v2991
        %v3085 = vmul.f32 %v2999, %v2999
        %v3086 = vmul.f32 %v3007, %v3007
        %v3087 = vmul.f32 %v3015, %v3015
        %v3088 = vmul.f32 %v3023, %v3023
        %v3089 = vmul.f32 %v3031, %v3031
        %v3090 = vadd.f32 %v3072, %v3084
        %v3091 = vadd.f32 %v3073, %v3085
        %v3092 = vadd.f32 %v3074, %v3086
        %v3093 = vadd.f32 %v3075, %v3087
        %v3094 = vadd.f32 %v3076, %v3088
        %v3095 = vadd.f32 %v3077, %v3089
        %v3096 = vadd.f32 %v3078, %v2992
        %v3097 = vadd.f32 %v3079, %v3000
        %v3098 = vadd.f32 %v3080, %v3008
        %v3099 = vadd.f32 %v3081, %v3016
        %v3100 = vadd.f32 %v3082, %v3024
        %v3101 = vadd.f32 %v3083, %v3032
        %v3102 = vmul.f32 %v2992, %v2992
        %v3103 = vmul.f32 %v3000, %v3000
        %v3104 = vmul.f32 %v3008, %v3008
        %v3105 = vmul.f32 %v3016, %v3016
        %v3106 = vmul.f32 %v3024, %v3024
        %v3107 = vmul.f32 %v3032, %v3032
        %v3108 = vadd.f32 %v3090, %v3102
        %v3109 = vadd.f32 %v3091, %v3103
        %v3110 = vadd.f32 %v3092, %v3104
        %v3111 = vadd.f32 %v3093, %v3105
        %v3112 = vadd.f32 %v3094, %v3106
        %v3113 = vadd.f32 %v3095, %v3107
        %v3114 = vadd.f32 %v3096, %v2993
        %v3115 = vadd.f32 %v3097, %v3001
        %v3116 = vadd.f32 %v3098, %v3009
        %v3117 = vadd.f32 %v3099, %v3017
        %v3118 = vadd.f32 %v3100, %v3025
        %v3119 = vadd.f32 %v3101, %v3033
        %v3120 = vmul.f32 %v2993, %v2993
        %v3121 = vmul.f32 %v3001, %v3001
        %v3122 = vmul.f32 %v3009, %v3009
        %v3123 = vmul.f32 %v3017, %v3017
        %v3124 = vmul.f32 %v3025, %v3025
        %v3125 = vmul.f32 %v3033, %v3033
        %v3126 = vadd.f32 %v3108, %v3120
        %v3127 = vadd.f32 %v3109, %v3121
        %v3128 = vadd.f32 %v3110, %v3122
        %v3129 = vadd.f32 %v3111, %v3123
        %v3130 = vadd.f32 %v3112, %v3124
        %v3131 = vadd.f32 %v3113, %v3125
        %v3132 = vadd.f32 %v3114, %v2994
        %v3133 = vadd.f32 %v3115, %v3002
        %v3134 = vadd.f32 %v3116, %v3010
        %v3135 = vadd.f32 %v3117, %v3018
        %v3136 = vadd.f32 %v3118, %v3026
        %v3137 = vadd.f32 %v3119, %v3034
        %v3138 = vmul.f32 %v2994, %v2994
        %v3139 = vmul.f32 %v3002, %v3002
        %v3140 = vmul.f32 %v3010, %v3010
        %v3141 = vmul.f32 %v3018, %v3018
        %v3142 = vmul.f32 %v3026, %v3026
        %v3143 = vmul.f32 %v3034, %v3034
        %v3144 = vadd.f32 %v3126, %v3138
        %v3145 = vadd.f32 %v3127, %v3139
        %v3146 = vadd.f32 %v3128, %v3140
        %v3147 = vadd.f32 %v3129, %v3141
        %v3148 = vadd.f32 %v3130, %v3142
        %v3149 = vadd.f32 %v3131, %v3143
        %v3150 = vadd.f32 %v3132, %v2995
        %v3151 = vadd.f32 %v3133, %v3003
        %v3152 = vadd.f32 %v3134, %v3011
        %v3153 = vadd.f32 %v3135, %v3019
        %v3154 = vadd.f32 %v3136, %v3027
        %v3155 = vadd.f32 %v3137, %v3035
        %v3156 = vmul.f32 %v2995, %v2995
        %v3157 = vmul.f32 %v3003, %v3003
        %v3158 = vmul.f32 %v3011, %v3011
        %v3159 = vmul.f32 %v3019, %v3019
        %v3160 = vmul.f32 %v3027, %v3027
        %v3161 = vmul.f32 %v3035, %v3035
        %v3162 = vadd.f32 %v3144, %v3156
        %v3163 = vadd.f32 %v3145, %v3157
        %v3164 = vadd.f32 %v3146, %v3158
        %v3165 = vadd.f32 %v3147, %v3159
        %v3166 = vadd.f32 %v3148, %v3160
        %v3167 = vadd.f32 %v3149, %v3161
        %vm3168 = vcmask 392192
        %v3170 = vsel %vm3168, %v754, 0
        %v3173 = vsel %vm3168, %v755, 0
        %v3176 = vsel %vm3168, %v756, 0
        %v3179 = vsel %vm3168, %v757, 0
        %v3182 = vsel %vm3168, %v758, 0
        %v3185 = vsel %vm3168, %v759, 0
        %3187 = vmatpush.msra.mxu0 0.0
        %3188 = vmatpush.msra.mxu0 0.0
        %3189 = vmatpush.msra.mxu0 0.0
        %3190 = vmatpush.msra.mxu0 0.0
        %3191 = vmatpush.msra.mxu0 0.0
        %3192 = vmatpush.msra.mxu0 0.0
        %3193 = vmatpush.msra.mxu0 0.0
        %3194 = vmatpush.msra.mxu0 0.0
        %3195 = vmatpush.msra.mxu0 0.0
        %3196 = vmatpush.msra.mxu0 0.0
        %3197 = vmatpush.msra.mxu0 %v3155
        %3198 = vmatpush.msra.mxu0 %v3154
        %3199 = vmatpush.msra.mxu0 %v3153
        %3200 = vmatpush.msra.mxu0 %v3152
        %3201 = vmatpush.msra.mxu0 %v3151
        %3202 = vmatpush.msra.mxu0 %v3150
        %3203 = vmatmul.f32.gmra.mxu0 %v3170
        %v3204 = vpop.f32.mrf.mxu0
        %v3205 = vadd.f32 0.0, %v3204
        %3206 = vmatmul.f32.gmra.mxu0 %v3173
        %v3207 = vpop.f32.mrf.mxu0
        %v3208 = vadd.f32 0.0, %v3207
        %3209 = vmatmul.f32.gmra.mxu0 %v3176
        %v3210 = vpop.f32.mrf.mxu0
        %v3211 = vadd.f32 0.0, %v3210
        %3212 = vmatmul.f32.gmra.mxu0 %v3179
        %v3213 = vpop.f32.mrf.mxu0
        %v3214 = vadd.f32 0.0, %v3213
        %3215 = vmatmul.f32.gmra.mxu0 %v3182
        %v3216 = vpop.f32.mrf.mxu0
        %v3217 = vadd.f32 0.0, %v3216
        %3218 = vmatmul.f32.gmra.mxu0 %v3185
        %v3219 = vpop.f32.mrf.mxu0
        %v3220 = vadd.f32 0.0, %v3219
        %3221 = vdwg.mxu0
        %3222 = vadd.xlane.f32.xlu0 %v3205
        %v3223 = vpop.xlane.xlu0 %3222
        %3224 = vadd.xlane.f32.xlu0 %v3208
        %v3225 = vpop.xlane.xlu0 %3224
        %3226 = vadd.xlane.f32.xlu0 %v3211
        %v3227 = vpop.xlane.xlu0 %3226
        %3228 = vadd.xlane.f32.xlu0 %v3214
        %v3229 = vpop.xlane.xlu0 %3228
        %3230 = vadd.xlane.f32.xlu0 %v3217
        %v3231 = vpop.xlane.xlu0 %3230
        %3232 = vadd.xlane.f32.xlu0 %v3220
        %v3233 = vpop.xlane.xlu0 %3232
        %3234 = vmatpush.msra.mxu0 0.0
        %3235 = vmatpush.msra.mxu0 0.0
        %3236 = vmatpush.msra.mxu0 0.0
        %3237 = vmatpush.msra.mxu0 0.0
        %3238 = vmatpush.msra.mxu0 0.0
        %3239 = vmatpush.msra.mxu0 0.0
        %3240 = vmatpush.msra.mxu0 0.0
        %3241 = vmatpush.msra.mxu0 0.0
        %3242 = vmatpush.msra.mxu0 0.0
        %3243 = vmatpush.msra.mxu0 0.0
        %3244 = vmatpush.msra.mxu0 %v3167
        %3245 = vmatpush.msra.mxu0 %v3166
        %3246 = vmatpush.msra.mxu0 %v3165
        %3247 = vmatpush.msra.mxu0 %v3164
        %3248 = vmatpush.msra.mxu0 %v3163
        %3249 = vmatpush.msra.mxu0 %v3162
        %3250 = vmatmul.f32.gmra.mxu0 %v3170
        %v3251 = vpop.f32.mrf.mxu0
        %v3252 = vadd.f32 0.0, %v3251
        %3253 = vmatmul.f32.gmra.mxu0 %v3173
        %v3254 = vpop.f32.mrf.mxu0
        %v3255 = vadd.f32 0.0, %v3254
        %3256 = vmatmul.f32.gmra.mxu0 %v3176
        %v3257 = vpop.f32.mrf.mxu0
        %v3258 = vadd.f32 0.0, %v3257
        %3259 = vmatmul.f32.gmra.mxu0 %v3179
        %v3260 = vpop.f32.mrf.mxu0
        %v3261 = vadd.f32 0.0, %v3260
        %3262 = vmatmul.f32.gmra.mxu0 %v3182
        %v3263 = vpop.f32.mrf.mxu0
        %v3264 = vadd.f32 0.0, %v3263
        %3265 = vmatmul.f32.gmra.mxu0 %v3185
        %v3266 = vpop.f32.mrf.mxu0
        %v3267 = vadd.f32 0.0, %v3266
        %3268 = vdwg.mxu0
        %3269 = vadd.xlane.f32.xlu0 %v3252
        %v3270 = vpop.xlane.xlu0 %3269
        %3271 = vadd.xlane.f32.xlu0 %v3255
        %v3272 = vpop.xlane.xlu0 %3271
        %3273 = vadd.xlane.f32.xlu0 %v3258
        %v3274 = vpop.xlane.xlu0 %3273
        %3275 = vadd.xlane.f32.xlu0 %v3261
        %v3276 = vpop.xlane.xlu0 %3275
        %3277 = vadd.xlane.f32.xlu0 %v3264
        %v3278 = vpop.xlane.xlu0 %3277
        %3279 = vadd.xlane.f32.xlu0 %v3267
        %v3280 = vpop.xlane.xlu0 %3279
        %v3281 = vmul.f32 %v3223, 0.00016276042
        %v3282 = vmul.f32 %v3225, 0.00016276042
        %v3283 = vmul.f32 %v3227, 0.00016276042
        %v3284 = vmul.f32 %v3229, 0.00016276042
        %v3285 = vmul.f32 %v3231, 0.00016276042
        %v3286 = vmul.f32 %v3233, 0.00016276042
        %v3287 = vmul.f32 %v3270, 0.00016276042
        %v3288 = vmul.f32 %v3272, 0.00016276042
        %v3289 = vmul.f32 %v3274, 0.00016276042
        %v3290 = vmul.f32 %v3276, 0.00016276042
        %v3291 = vmul.f32 %v3278, 0.00016276042
        %v3292 = vmul.f32 %v3280, 0.00016276042
        %v3293 = vmul.f32 %v3281, %v3281
        %v3294 = vmul.f32 %v3282, %v3282
        %v3295 = vmul.f32 %v3283, %v3283
        %v3296 = vmul.f32 %v3284, %v3284
        %v3297 = vmul.f32 %v3285, %v3285
        %v3298 = vmul.f32 %v3286, %v3286
        %v3299 = vsub.f32 %v3287, %v3293
        %v3300 = vsub.f32 %v3288, %v3294
        %v3301 = vsub.f32 %v3289, %v3295
        %v3302 = vsub.f32 %v3290, %v3296
        %v3303 = vsub.f32 %v3291, %v3297
        %v3304 = vsub.f32 %v3292, %v3298
        %v3305 = vadd.f32 %v3299, 1e-05
        %v3306 = vadd.f32 %v3300, 1e-05
        %v3307 = vadd.f32 %v3301, 1e-05
        %v3308 = vadd.f32 %v3302, 1e-05
        %v3309 = vadd.f32 %v3303, 1e-05
        %v3310 = vadd.f32 %v3304, 1e-05
        %v3311 = vrsqrt.pop %v3305
        %v3312 = vmul.f32 %v3311, %v3305
        %v3313 = vmul.f32 %v3312, %v3311
        %v3314 = vmul.f32 0.5, %v3313
        %v3315 = vsub.f32 1.5, %v3314
        %v3316 = vmul.f32 %v3311, %v3315
        %vm3317 = vweird.f32 %v3305
        %vm3318 = vweird.f32 %v3311
        %vm3319 = vmor %vm3317, %vm3318
        %v3320 = vsel %vm3319, %v3311, %v3316
        %v3321 = vrsqrt.pop %v3306
        %v3322 = vmul.f32 %v3321, %v3306
        %v3323 = vmul.f32 %v3322, %v3321
        %v3324 = vmul.f32 0.5, %v3323
        %v3325 = vsub.f32 1.5, %v3324
        %v3326 = vmul.f32 %v3321, %v3325
        %vm3327 = vweird.f32 %v3306
        %vm3328 = vweird.f32 %v3321
        %vm3329 = vmor %vm3327, %vm3328
        %v3330 = vsel %vm3329, %v3321, %v3326
        %v3331 = vrsqrt.pop %v3307
        %v3332 = vmul.f32 %v3331, %v3307
        %v3333 = vmul.f32 %v3332, %v3331
        %v3334 = vmul.f32 0.5, %v3333
        %v3335 = vsub.f32 1.5, %v3334
        %v3336 = vmul.f32 %v3331, %v3335
        %vm3337 = vweird.f32 %v3307
        %vm3338 = vweird.f32 %v3331
        %vm3339 = vmor %vm3337, %vm3338
        %v3340 = vsel %vm3339, %v3331, %v3336
        %v3341 = vrsqrt.pop %v3308
        %v3342 = vmul.f32 %v3341, %v3308
        %v3343 = vmul.f32 %v3342, %v3341
        %v3344 = vmul.f32 0.5, %v3343
        %v3345 = vsub.f32 1.5, %v3344
        %v3346 = vmul.f32 %v3341, %v3345
        %vm3347 = vweird.f32 %v3308
        %vm3348 = vweird.f32 %v3341
        %vm3349 = vmor %vm3347, %vm3348
        %v3350 = vsel %vm3349, %v3341, %v3346
        %v3351 = vrsqrt.pop %v3309
        %v3352 = vmul.f32 %v3351, %v3309
        %v3353 = vmul.f32 %v3352, %v3351
        %v3354 = vmul.f32 0.5, %v3353
        %v3355 = vsub.f32 1.5, %v3354
        %v3356 = vmul.f32 %v3351, %v3355
        %vm3357 = vweird.f32 %v3309
        %vm3358 = vweird.f32 %v3351
        %vm3359 = vmor %vm3357, %vm3358
        %v3360 = vsel %vm3359, %v3351, %v3356
        %v3361 = vrsqrt.pop %v3310
        %v3362 = vmul.f32 %v3361, %v3310
        %v3363 = vmul.f32 %v3362, %v3361
        %v3364 = vmul.f32 0.5, %v3363
        %v3365 = vsub.f32 1.5, %v3364
        %v3366 = vmul.f32 %v3361, %v3365
        %vm3367 = vweird.f32 %v3310
        %vm3368 = vweird.f32 %v3361
        %vm3369 = vmor %vm3367, %vm3368
        %v3370 = vsel %vm3369, %v3361, %v3366
        %v3371 = vmul.f32 %v3320, %v2976
        %v3372 = vmul.f32 %v3330, %v2977
        %v3373 = vmul.f32 %v3340, %v2978
        %v3374 = vmul.f32 %v3350, %v2979
        %v3375 = vmul.f32 %v3360, %v2980
        %v3376 = vmul.f32 %v3370, %v2981
        %v3377 = vsub.f32 %v2988, %v3281
        %v3378 = vsub.f32 %v2989, %v3281
        %v3379 = vsub.f32 %v2990, %v3281
        %v3380 = vsub.f32 %v2991, %v3281
        %v3381 = vsub.f32 %v2992, %v3281
        %v3382 = vsub.f32 %v2993, %v3281
        %v3383 = vsub.f32 %v2994, %v3281
        %v3384 = vsub.f32 %v2995, %v3281
        %v3385 = vsub.f32 %v2996, %v3282
        %v3386 = vsub.f32 %v2997, %v3282
        %v3387 = vsub.f32 %v2998, %v3282
        %v3388 = vsub.f32 %v2999, %v3282
        %v3389 = vsub.f32 %v3000, %v3282
        %v3390 = vsub.f32 %v3001, %v3282
        %v3391 = vsub.f32 %v3002, %v3282
        %v3392 = vsub.f32 %v3003, %v3282
        %v3393 = vsub.f32 %v3004, %v3283
        %v3394 = vsub.f32 %v3005, %v3283
        %v3395 = vsub.f32 %v3006, %v3283
        %v3396 = vsub.f32 %v3007, %v3283
        %v3397 = vsub.f32 %v3008, %v3283
        %v3398 = vsub.f32 %v3009, %v3283
        %v3399 = vsub.f32 %v3010, %v3283
        %v3400 = vsub.f32 %v3011, %v3283
        %v3401 = vsub.f32 %v3012, %v3284
        %v3402 = vsub.f32 %v3013, %v3284
        %v3403 = vsub.f32 %v3014, %v3284
        %v3404 = vsub.f32 %v3015, %v3284
        %v3405 = vsub.f32 %v3016, %v3284
        %v3406 = vsub.f32 %v3017, %v3284
        %v3407 = vsub.f32 %v3018, %v3284
        %v3408 = vsub.f32 %v3019, %v3284
        %v3409 = vsub.f32 %v3020, %v3285
        %v3410 = vsub.f32 %v3021, %v3285
        %v3411 = vsub.f32 %v3022, %v3285
        %v3412 = vsub.f32 %v3023, %v3285
        %v3413 = vsub.f32 %v3024, %v3285
        %v3414 = vsub.f32 %v3025, %v3285
        %v3415 = vsub.f32 %v3026, %v3285
        %v3416 = vsub.f32 %v3027, %v3285
        %v3417 = vsub.f32 %v3028, %v3286
        %v3418 = vsub.f32 %v3029, %v3286
        %v3419 = vsub.f32 %v3030, %v3286
        %v3420 = vsub.f32 %v3031, %v3286
        %v3421 = vsub.f32 %v3032, %v3286
        %v3422 = vsub.f32 %v3033, %v3286
        %v3423 = vsub.f32 %v3034, %v3286
        %v3424 = vsub.f32 %v3035, %v3286
        %3426 = vset.pattern.permute.xlu0 0
        %3427 = vperm.xlu0 %3426, %v3371
        %v3428 = vpop.permute.xlu0 %3427
        %3431 = vset.pattern.permute.xlu0 0
        %3432 = vperm.xlu0 %3431, %v3372
        %v3433 = vpop.permute.xlu0 %3432
        %3436 = vset.pattern.permute.xlu0 0
        %3437 = vperm.xlu0 %3436, %v3373
        %v3438 = vpop.permute.xlu0 %3437
        %3441 = vset.pattern.permute.xlu0 0
        %3442 = vperm.xlu0 %3441, %v3374
        %v3443 = vpop.permute.xlu0 %3442
        %3446 = vset.pattern.permute.xlu0 0
        %3447 = vperm.xlu0 %3446, %v3375
        %v3448 = vpop.permute.xlu0 %3447
        %3451 = vset.pattern.permute.xlu0 0
        %3452 = vperm.xlu0 %3451, %v3376
        %v3453 = vpop.permute.xlu0 %3452
        %v3455 = vmul.f32 %v3377, %v3428
        %v3456 = vmul.f32 %v3378, %v3428
        %v3457 = vmul.f32 %v3379, %v3428
        %v3458 = vmul.f32 %v3380, %v3428
        %v3459 = vmul.f32 %v3381, %v3428
        %v3460 = vmul.f32 %v3382, %v3428
        %v3461 = vmul.f32 %v3383, %v3428
        %v3462 = vmul.f32 %v3384, %v3428
        %v3463 = vmul.f32 %v3385, %v3433
        %v3464 = vmul.f32 %v3386, %v3433
        %v3465 = vmul.f32 %v3387, %v3433
        %v3466 = vmul.f32 %v3388, %v3433
        %v3467 = vmul.f32 %v3389, %v3433
        %v3468 = vmul.f32 %v3390, %v3433
        %v3469 = vmul.f32 %v3391, %v3433
        %v3470 = vmul.f32 %v3392, %v3433
        %v3471 = vmul.f32 %v3393, %v3438
        %v3472 = vmul.f32 %v3394, %v3438
        %v3473 = vmul.f32 %v3395, %v3438
        %v3474 = vmul.f32 %v3396, %v3438
        %v3475 = vmul.f32 %v3397, %v3438
        %v3476 = vmul.f32 %v3398, %v3438
        %v3477 = vmul.f32 %v3399, %v3438
        %v3478 = vmul.f32 %v3400, %v3438
        %v3479 = vmul.f32 %v3401, %v3443
        %v3480 = vmul.f32 %v3402, %v3443
        %v3481 = vmul.f32 %v3403, %v3443
        %v3482 = vmul.f32 %v3404, %v3443
        %v3483 = vmul.f32 %v3405, %v3443
        %v3484 = vmul.f32 %v3406, %v3443
        %v3485 = vmul.f32 %v3407, %v3443
        %v3486 = vmul.f32 %v3408, %v3443
        %v3487 = vmul.f32 %v3409, %v3448
        %v3488 = vmul.f32 %v3410, %v3448
        %v3489 = vmul.f32 %v3411, %v3448
        %v3490 = vmul.f32 %v3412, %v3448
        %v3491 = vmul.f32 %v3413, %v3448
        %v3492 = vmul.f32 %v3414, %v3448
        %v3493 = vmul.f32 %v3415, %v3448
        %v3494 = vmul.f32 %v3416, %v3448
        %v3495 = vmul.f32 %v3417, %v3453
        %v3496 = vmul.f32 %v3418, %v3453
        %v3497 = vmul.f32 %v3419, %v3453
        %v3498 = vmul.f32 %v3420, %v3453
        %v3499 = vmul.f32 %v3421, %v3453
        %v3500 = vmul.f32 %v3422, %v3453
        %v3501 = vmul.f32 %v3423, %v3453
        %v3502 = vmul.f32 %v3424, %v3453
        %3504 = vset.pattern.permute.xlu0 0
        %3505 = vperm.xlu0 %3504, %v2982
        %v3506 = vpop.permute.xlu0 %3505
        %3509 = vset.pattern.permute.xlu0 0
        %3510 = vperm.xlu0 %3509, %v2983
        %v3511 = vpop.permute.xlu0 %3510
        %3514 = vset.pattern.permute.xlu0 0
        %3515 = vperm.xlu0 %3514, %v2984
        %v3516 = vpop.permute.xlu0 %3515
        %3519 = vset.pattern.permute.xlu0 0
        %3520 = vperm.xlu0 %3519, %v2985
        %v3521 = vpop.permute.xlu0 %3520
        %3524 = vset.pattern.permute.xlu0 0
        %3525 = vperm.xlu0 %3524, %v2986
        %v3526 = vpop.permute.xlu0 %3525
        %3529 = vset.pattern.permute.xlu0 0
        %3530 = vperm.xlu0 %3529, %v2987
        %v3531 = vpop.permute.xlu0 %3530
        %v3533 = vadd.f32 %v3455, %v3506
        %v3534 = vadd.f32 %v3456, %v3506
        %v3535 = vadd.f32 %v3457, %v3506
        %v3536 = vadd.f32 %v3458, %v3506
        %v3537 = vadd.f32 %v3459, %v3506
        %v3538 = vadd.f32 %v3460, %v3506
        %v3539 = vadd.f32 %v3461, %v3506
        %v3540 = vadd.f32 %v3462, %v3506
        %v3541 = vadd.f32 %v3463, %v3511
        %v3542 = vadd.f32 %v3464, %v3511
        %v3543 = vadd.f32 %v3465, %v3511
        %v3544 = vadd.f32 %v3466, %v3511
        %v3545 = vadd.f32 %v3467, %v3511
        %v3546 = vadd.f32 %v3468, %v3511
        %v3547 = vadd.f32 %v3469, %v3511
        %v3548 = vadd.f32 %v3470, %v3511
        %v3549 = vadd.f32 %v3471, %v3516
        %v3550 = vadd.f32 %v3472, %v3516
        %v3551 = vadd.f32 %v3473, %v3516
        %v3552 = vadd.f32 %v3474, %v3516
        %v3553 = vadd.f32 %v3475, %v3516
        %v3554 = vadd.f32 %v3476, %v3516
        %v3555 = vadd.f32 %v3477, %v3516
        %v3556 = vadd.f32 %v3478, %v3516
        %v3557 = vadd.f32 %v3479, %v3521
        %v3558 = vadd.f32 %v3480, %v3521
        %v3559 = vadd.f32 %v3481, %v3521
        %v3560 = vadd.f32 %v3482, %v3521
        %v3561 = vadd.f32 %v3483, %v3521
        %v3562 = vadd.f32 %v3484, %v3521
        %v3563 = vadd.f32 %v3485, %v3521
        %v3564 = vadd.f32 %v3486, %v3521
        %v3565 = vadd.f32 %v3487, %v3526
        %v3566 = vadd.f32 %v3488, %v3526
        %v3567 = vadd.f32 %v3489, %v3526
        %v3568 = vadd.f32 %v3490, %v3526
        %v3569 = vadd.f32 %v3491, %v3526
        %v3570 = vadd.f32 %v3492, %v3526
        %v3571 = vadd.f32 %v3493, %v3526
        %v3572 = vadd.f32 %v3494, %v3526
        %v3573 = vadd.f32 %v3495, %v3531
        %v3574 = vadd.f32 %v3496, %v3531
        %v3575 = vadd.f32 %v3497, %v3531
        %v3576 = vadd.f32 %v3498, %v3531
        %v3577 = vadd.f32 %v3499, %v3531
        %v3578 = vadd.f32 %v3500, %v3531
        %v3579 = vadd.f32 %v3501, %v3531
        %v3580 = vadd.f32 %v3502, %v3531
        %v3581 = vld [vmem:[%s14] sm:$0xf]
        %v3582 = vld [vmem:[%s14 + $0x4] sm:$0xf]
        %v3583 = vpack.c.bf16 %v3541, %v3533
        %v3584 = vpack.c.bf16 %v3542, %v3534
        %v3585 = vpack.c.bf16 %v3543, %v3535
        %v3586 = vpack.c.bf16 %v3544, %v3536
        %v3587 = vpack.c.bf16 %v3545, %v3537
        %v3588 = vpack.c.bf16 %v3546, %v3538
        %v3589 = vpack.c.bf16 %v3547, %v3539
        %v3590 = vpack.c.bf16 %v3548, %v3540
        %v3591 = vpack.c.bf16 %v3557, %v3549
        %v3592 = vpack.c.bf16 %v3558, %v3550
        %v3593 = vpack.c.bf16 %v3559, %v3551
        %v3594 = vpack.c.bf16 %v3560, %v3552
        %v3595 = vpack.c.bf16 %v3561, %v3553
        %v3596 = vpack.c.bf16 %v3562, %v3554
        %v3597 = vpack.c.bf16 %v3563, %v3555
        %v3598 = vpack.c.bf16 %v3564, %v3556
        %v3599 = vpack.c.bf16 %v3573, %v3565
        %v3600 = vpack.c.bf16 %v3574, %v3566
        %v3601 = vpack.c.bf16 %v3575, %v3567
        %v3602 = vpack.c.bf16 %v3576, %v3568
        %v3603 = vpack.c.bf16 %v3577, %v3569
        %v3604 = vpack.c.bf16 %v3578, %v3570
        %v3605 = vpack.c.bf16 %v3579, %v3571
        %v3606 = vpack.c.bf16 %v3580, %v3572
        %v3609 = vunpack.c.l.b16 %v3581
        %v3610 = vunpack.c.l.b16 %v3582
        %v3611 = vpack.c.b16 %v3610, %v3609
        %v3613 = vsel %vm3168, %v3611, 0
        %3615 = vmatpush.bf16.msra.mxu0 0
        %3616 = vmatpush.bf16.msra.mxu0 0
        %3617 = vmatpush.bf16.msra.mxu0 0
        %3618 = vmatpush.bf16.msra.mxu0 0
        %3619 = vmatpush.bf16.msra.mxu0 0
        %3620 = vmatpush.bf16.msra.mxu0 %v3599
        %3621 = vmatpush.bf16.msra.mxu0 %v3591
        %3622 = vmatpush.bf16.msra.mxu0 %v3583
        %3623 = vmatmul.bf16.gmra.mxu0 %v3613
        %v3624 = vpop.f32.mrf.mxu0
        %v3625 = vadd.f32 0.0, %v3624
        %v3626 = vpop.f32.mrf.mxu0
        %v3627 = vadd.f32 0.0, %v3626
        %3628 = vdwg.mxu0
        %3629 = vmatpush.bf16.msra.mxu0 0
        %3630 = vmatpush.bf16.msra.mxu0 0
        %3631 = vmatpush.bf16.msra.mxu0 0
        %3632 = vmatpush.bf16.msra.mxu0 0
        %3633 = vmatpush.bf16.msra.mxu0 0
        %3634 = vmatpush.bf16.msra.mxu0 %v3600
        %3635 = vmatpush.bf16.msra.mxu0 %v3592
        %3636 = vmatpush.bf16.msra.mxu0 %v3584
        %3637 = vmatmul.bf16.gmra.mxu0 %v3613
        %v3638 = vpop.f32.mrf.mxu0
        %v3639 = vadd.f32 0.0, %v3638
        %v3640 = vpop.f32.mrf.mxu0
        %v3641 = vadd.f32 0.0, %v3640
        %3642 = vdwg.mxu0
        %3643 = vmatpush.bf16.msra.mxu0 0
        %3644 = vmatpush.bf16.msra.mxu0 0
        %3645 = vmatpush.bf16.msra.mxu0 0
        %3646 = vmatpush.bf16.msra.mxu0 0
        %3647 = vmatpush.bf16.msra.mxu0 0
        %3648 = vmatpush.bf16.msra.mxu0 %v3601
        %3649 = vmatpush.bf16.msra.mxu0 %v3593
        %3650 = vmatpush.bf16.msra.mxu0 %v3585
        %3651 = vmatmul.bf16.gmra.mxu0 %v3613
        %v3652 = vpop.f32.mrf.mxu0
        %v3653 = vadd.f32 0.0, %v3652
        %v3654 = vpop.f32.mrf.mxu0
        %v3655 = vadd.f32 0.0, %v3654
        %3656 = vdwg.mxu0
        %3657 = vmatpush.bf16.msra.mxu0 0
        %3658 = vmatpush.bf16.msra.mxu0 0
        %3659 = vmatpush.bf16.msra.mxu0 0
        %3660 = vmatpush.bf16.msra.mxu0 0
        %3661 = vmatpush.bf16.msra.mxu0 0
        %3662 = vmatpush.bf16.msra.mxu0 %v3602
        %3663 = vmatpush.bf16.msra.mxu0 %v3594
        %3664 = vmatpush.bf16.msra.mxu0 %v3586
        %3665 = vmatmul.bf16.gmra.mxu0 %v3613
        %v3666 = vpop.f32.mrf.mxu0
        %v3667 = vadd.f32 0.0, %v3666
        %v3668 = vpop.f32.mrf.mxu0
        %v3669 = vadd.f32 0.0, %v3668
        %3670 = vdwg.mxu0
        %3671 = vmatpush.bf16.msra.mxu0 0
        %3672 = vmatpush.bf16.msra.mxu0 0
        %3673 = vmatpush.bf16.msra.mxu0 0
        %3674 = vmatpush.bf16.msra.mxu0 0
        %3675 = vmatpush.bf16.msra.mxu0 0
        %3676 = vmatpush.bf16.msra.mxu0 %v3603
        %3677 = vmatpush.bf16.msra.mxu0 %v3595
        %3678 = vmatpush.bf16.msra.mxu0 %v3587
        %3679 = vmatmul.bf16.gmra.mxu0 %v3613
        %v3680 = vpop.f32.mrf.mxu0
        %v3681 = vadd.f32 0.0, %v3680
        %v3682 = vpop.f32.mrf.mxu0
        %v3683 = vadd.f32 0.0, %v3682
        %3684 = vdwg.mxu0
        %3685 = vmatpush.bf16.msra.mxu0 0
        %3686 = vmatpush.bf16.msra.mxu0 0
        %3687 = vmatpush.bf16.msra.mxu0 0
        %3688 = vmatpush.bf16.msra.mxu0 0
        %3689 = vmatpush.bf16.msra.mxu0 0
        %3690 = vmatpush.bf16.msra.mxu0 %v3604
        %3691 = vmatpush.bf16.msra.mxu0 %v3596
        %3692 = vmatpush.bf16.msra.mxu0 %v3588
        %3693 = vmatmul.bf16.gmra.mxu0 %v3613
        %v3694 = vpop.f32.mrf.mxu0
        %v3695 = vadd.f32 0.0, %v3694
        %v3696 = vpop.f32.mrf.mxu0
        %v3697 = vadd.f32 0.0, %v3696
        %3698 = vdwg.mxu0
        %3699 = vmatpush.bf16.msra.mxu0 0
        %3700 = vmatpush.bf16.msra.mxu0 0
        %3701 = vmatpush.bf16.msra.mxu0 0
        %3702 = vmatpush.bf16.msra.mxu0 0
        %3703 = vmatpush.bf16.msra.mxu0 0
        %3704 = vmatpush.bf16.msra.mxu0 %v3605
        %3705 = vmatpush.bf16.msra.mxu0 %v3597
        %3706 = vmatpush.bf16.msra.mxu0 %v3589
        %3707 = vmatmul.bf16.gmra.mxu0 %v3613
        %v3708 = vpop.f32.mrf.mxu0
        %v3709 = vadd.f32 0.0, %v3708
        %v3710 = vpop.f32.mrf.mxu0
        %v3711 = vadd.f32 0.0, %v3710
        %3712 = vdwg.mxu0
        %3713 = vmatpush.bf16.msra.mxu0 0
        %3714 = vmatpush.bf16.msra.mxu0 0
        %3715 = vmatpush.bf16.msra.mxu0 0
        %3716 = vmatpush.bf16.msra.mxu0 0
        %3717 = vmatpush.bf16.msra.mxu0 0
        %3718 = vmatpush.bf16.msra.mxu0 %v3606
        %3719 = vmatpush.bf16.msra.mxu0 %v3598
        %3720 = vmatpush.bf16.msra.mxu0 %v3590
        %3721 = vmatmul.bf16.gmra.mxu0 %v3613
        %v3722 = vpop.f32.mrf.mxu0
        %v3723 = vadd.f32 0.0, %v3722
        %v3724 = vpop.f32.mrf.mxu0
        %v3725 = vadd.f32 0.0, %v3724
        %3726 = vdwg.mxu0
        %3727 = vrot.lane.b32.xlu0 %v3625, 127
        %v3728 = vpop.permute.xlu0 %3727
        %3729 = vrot.lane.b32.xlu0 %v3627, 127
        %v3730 = vpop.permute.xlu0 %3729
        %3731 = vrot.lane.b32.xlu0 %v3639, 127
        %v3732 = vpop.permute.xlu0 %3731
        %3733 = vrot.lane.b32.xlu0 %v3641, 127
        %v3734 = vpop.permute.xlu0 %3733
        %3735 = vrot.lane.b32.xlu0 %v3653, 127
        %v3736 = vpop.permute.xlu0 %3735
        %3737 = vrot.lane.b32.xlu0 %v3655, 127
        %v3738 = vpop.permute.xlu0 %3737
        %3739 = vrot.lane.b32.xlu0 %v3667, 127
        %v3740 = vpop.permute.xlu0 %3739
        %3741 = vrot.lane.b32.xlu0 %v3669, 127
        %v3742 = vpop.permute.xlu0 %3741
        %3743 = vrot.lane.b32.xlu0 %v3681, 127
        %v3744 = vpop.permute.xlu0 %3743
        %3745 = vrot.lane.b32.xlu0 %v3683, 127
        %v3746 = vpop.permute.xlu0 %3745
        %3747 = vrot.lane.b32.xlu0 %v3695, 127
        %v3748 = vpop.permute.xlu0 %3747
        %3749 = vrot.lane.b32.xlu0 %v3697, 127
        %v3750 = vpop.permute.xlu0 %3749
        %3751 = vrot.lane.b32.xlu0 %v3709, 127
        %v3752 = vpop.permute.xlu0 %3751
        %3753 = vrot.lane.b32.xlu0 %v3711, 127
        %v3754 = vpop.permute.xlu0 %3753
        %3755 = vrot.lane.b32.xlu0 %v3723, 127
        %v3756 = vpop.permute.xlu0 %3755
        %3757 = vrot.lane.b32.xlu0 %v3725, 127
        %v3758 = vpop.permute.xlu0 %3757
        %v3759 = vsel %vm950, %v3752, %v3756
        %v3760 = vsel %vm950, %v3754, %v3758
        %v3761 = vsel %vm950, %v3748, %v3752
        %v3762 = vsel %vm950, %v3750, %v3754
        %v3763 = vsel %vm950, %v3744, %v3748
        %v3764 = vsel %vm950, %v3746, %v3750
        %v3765 = vsel %vm950, %v3740, %v3744
        %v3766 = vsel %vm950, %v3742, %v3746
        %v3767 = vsel %vm950, %v3736, %v3740
        %v3768 = vsel %vm950, %v3738, %v3742
        %v3769 = vsel %vm950, %v3732, %v3736
        %v3770 = vsel %vm950, %v3734, %v3738
        %v3771 = vsel %vm950, %v3728, %v3732
        %v3772 = vsel %vm950, %v3730, %v3734
        %v3773 = vsel %vm950, %v3756, %v3728
        %v3774 = vsel %vm950, %v3758, %v3730
        %v3775 = vmax.f32 %v3625, %v3771
        %v3776 = vmax.f32 %v3639, %v3769
        %v3777 = vmax.f32 %v3653, %v3767
        %v3778 = vmax.f32 %v3667, %v3765
        %v3779 = vmax.f32 %v3681, %v3763
        %v3780 = vmax.f32 %v3695, %v3761
        %v3781 = vmax.f32 %v3709, %v3759
        %v3782 = vmax.f32 %v3723, %v3773
        %v3783 = vmax.f32 %v3627, %v3772
        %v3784 = vmax.f32 %v3641, %v3770
        %v3785 = vmax.f32 %v3655, %v3768
        %v3786 = vmax.f32 %v3669, %v3766
        %v3787 = vmax.f32 %v3683, %v3764
        %v3788 = vmax.f32 %v3697, %v3762
        %v3789 = vmax.f32 %v3711, %v3760
        %v3790 = vmax.f32 %v3725, %v3774
        %3791 = vrot.lane.b32.xlu0 %v3775, 96
        %v3792 = vpop.permute.xlu0 %3791
        %3793 = vrot.lane.b32.xlu0 %v3783, 96
        %v3794 = vpop.permute.xlu0 %3793
        %3795 = vrot.lane.b32.xlu0 %v3776, 96
        %v3796 = vpop.permute.xlu0 %3795
        %3797 = vrot.lane.b32.xlu0 %v3784, 96
        %v3798 = vpop.permute.xlu0 %3797
        %3799 = vrot.lane.b32.xlu0 %v3777, 96
        %v3800 = vpop.permute.xlu0 %3799
        %3801 = vrot.lane.b32.xlu0 %v3785, 96
        %v3802 = vpop.permute.xlu0 %3801
        %3803 = vrot.lane.b32.xlu0 %v3778, 96
        %v3804 = vpop.permute.xlu0 %3803
        %3805 = vrot.lane.b32.xlu0 %v3786, 96
        %v3806 = vpop.permute.xlu0 %3805
        %3807 = vrot.lane.b32.xlu0 %v3779, 96
        %v3808 = vpop.permute.xlu0 %3807
        %3809 = vrot.lane.b32.xlu0 %v3787, 96
        %v3810 = vpop.permute.xlu0 %3809
        %3811 = vrot.lane.b32.xlu0 %v3780, 96
        %v3812 = vpop.permute.xlu0 %3811
        %3813 = vrot.lane.b32.xlu0 %v3788, 96
        %v3814 = vpop.permute.xlu0 %3813
        %3815 = vrot.lane.b32.xlu0 %v3781, 96
        %v3816 = vpop.permute.xlu0 %3815
        %3817 = vrot.lane.b32.xlu0 %v3789, 96
        %v3818 = vpop.permute.xlu0 %3817
        %3819 = vrot.lane.b32.xlu0 %v3782, 96
        %v3820 = vpop.permute.xlu0 %3819
        %3821 = vrot.lane.b32.xlu0 %v3790, 96
        %v3822 = vpop.permute.xlu0 %3821
        %v3823 = vsel %vm1032, %v3816, %v3820
        %v3824 = vsel %vm1032, %v3818, %v3822
        %v3825 = vsel %vm1032, %v3812, %v3816
        %v3826 = vsel %vm1032, %v3814, %v3818
        %v3827 = vsel %vm1032, %v3808, %v3812
        %v3828 = vsel %vm1032, %v3810, %v3814
        %v3829 = vsel %vm1032, %v3804, %v3808
        %v3830 = vsel %vm1032, %v3806, %v3810
        %v3831 = vsel %vm1032, %v3800, %v3804
        %v3832 = vsel %vm1032, %v3802, %v3806
        %v3833 = vsel %vm1032, %v3796, %v3800
        %v3834 = vsel %vm1032, %v3798, %v3802
        %v3835 = vsel %vm1032, %v3792, %v3796
        %v3836 = vsel %vm1032, %v3794, %v3798
        %v3837 = vsel %vm1032, %v3820, %v3792
        %v3838 = vsel %vm1032, %v3822, %v3794
        %v3839 = vmax.f32 %v3775, %v3835
        %v3840 = vmax.f32 %v3776, %v3833
        %v3841 = vmax.f32 %v3777, %v3831
        %v3842 = vmax.f32 %v3778, %v3829
        %v3843 = vmax.f32 %v3779, %v3827
        %v3844 = vmax.f32 %v3780, %v3825
        %v3845 = vmax.f32 %v3781, %v3823
        %v3846 = vmax.f32 %v3782, %v3837
        %v3847 = vmax.f32 %v3783, %v3836
        %v3848 = vmax.f32 %v3784, %v3834
        %v3849 = vmax.f32 %v3785, %v3832
        %v3850 = vmax.f32 %v3786, %v3830
        %v3851 = vmax.f32 %v3787, %v3828
        %v3852 = vmax.f32 %v3788, %v3826
        %v3853 = vmax.f32 %v3789, %v3824
        %v3854 = vmax.f32 %v3790, %v3838
        %v3855 = vpack.c.bf16 %v3847, %v3839
        %v3856 = vpack.c.bf16 %v3848, %v3840
        %v3857 = vpack.c.bf16 %v3849, %v3841
        %v3858 = vpack.c.bf16 %v3850, %v3842
        %v3859 = vpack.c.bf16 %v3851, %v3843
        %v3860 = vpack.c.bf16 %v3852, %v3844
        %v3861 = vpack.c.bf16 %v3853, %v3845
        %v3862 = vpack.c.bf16 %v3854, %v3846
        %v3863 = vld [vmem:[#allocation2] sm:$0xff]
        %v3864 = vld [vmem:[#allocation2 + $0x8] sm:$0xff]
        %v3865 = vld [vmem:[#allocation2 + $0x10] sm:$0xff]
        %v3866 = vld [vmem:[#allocation2 + $0x18] sm:$0xff]
        %v3867 = vld [vmem:[#allocation2 + $0x20] sm:$0xff]
        %v3868 = vld [vmem:[#allocation2 + $0x28] sm:$0xff]
        %v3869 = vld [vmem:[#allocation2 + $0x30] sm:$0xff]
        %v3870 = vld [vmem:[#allocation2 + $0x38] sm:$0xff]
        %v3871 = vld [vmem:[#allocation2 + $0x40] sm:$0xff]
        %v3872 = vld [vmem:[#allocation2 + $0x48] sm:$0xff]
        %v3873 = vld [vmem:[#allocation2 + $0x50] sm:$0xff]
        %v3874 = vld [vmem:[#allocation2 + $0x58] sm:$0xff]
        %v3875 = vld [vmem:[#allocation2 + $0x60] sm:$0xff]
        %v3876 = vld [vmem:[#allocation2 + $0x68] sm:$0xff]
        %v3877 = vld [vmem:[#allocation2 + $0x70] sm:$0xff]
        %v3878 = vld [vmem:[#allocation2 + $0x78] sm:$0xff]
        %v3879 = vld [vmem:[#allocation2 + $0x80] sm:$0xff]
        %v3880 = vld [vmem:[#allocation2 + $0x88] sm:$0xff]
        %v3881 = vld [vmem:[#allocation2 + $0x90] sm:$0xff]
        %v3882 = vld [vmem:[#allocation2 + $0x98] sm:$0xff]
        %v3883 = vld [vmem:[#allocation2 + $0xa0] sm:$0xff]
        %v3884 = vld [vmem:[#allocation2 + $0xa8] sm:$0xff]
        %v3885 = vld [vmem:[#allocation2 + $0xb0] sm:$0xff]
        %v3886 = vld [vmem:[#allocation2 + $0xb8] sm:$0xff]
        %v3887 = vld [vmem:[#allocation2 + $0xc0] sm:$0xff]
        %v3888 = vld [vmem:[#allocation2 + $0xc8] sm:$0xff]
        %v3889 = vld [vmem:[#allocation2 + $0xd0] sm:$0xff]
        %v3890 = vld [vmem:[#allocation2 + $0xd8] sm:$0xff]
        %v3891 = vld [vmem:[#allocation2 + $0xe0] sm:$0xff]
        %v3892 = vld [vmem:[#allocation2 + $0xe8] sm:$0xff]
        %v3893 = vld [vmem:[#allocation2 + $0xf0] sm:$0xff]
        %v3894 = vld [vmem:[#allocation2 + $0xf8] sm:$0xff]
        %v3895 = vld [vmem:[#allocation2 + $0x100] sm:$0xff]
        %v3896 = vld [vmem:[#allocation2 + $0x108] sm:$0xff]
        %v3897 = vld [vmem:[#allocation2 + $0x110] sm:$0xff]
        %v3898 = vld [vmem:[#allocation2 + $0x118] sm:$0xff]
        %v3899 = vld [vmem:[#allocation2 + $0x120] sm:$0xff]
        %v3900 = vld [vmem:[#allocation2 + $0x128] sm:$0xff]
        %v3901 = vld [vmem:[#allocation2 + $0x130] sm:$0xff]
        %v3902 = vld [vmem:[#allocation2 + $0x138] sm:$0xff]
        %v3903 = vld [vmem:[#allocation2 + $0x140] sm:$0xff]
        %v3904 = vld [vmem:[#allocation2 + $0x148] sm:$0xff]
        %v3905 = vld [vmem:[#allocation2 + $0x150] sm:$0xff]
        %v3906 = vld [vmem:[#allocation2 + $0x158] sm:$0xff]
        %v3907 = vld [vmem:[#allocation2 + $0x160] sm:$0xff]
        %v3908 = vld [vmem:[#allocation2 + $0x168] sm:$0xff]
        %v3909 = vld [vmem:[#allocation2 + $0x170] sm:$0xff]
        %v3910 = vld [vmem:[#allocation2 + $0x178] sm:$0xff]
        %v3911 = vld [vmem:[#allocation2 + $0x180] sm:$0xff]
        %v3912 = vld [vmem:[#allocation2 + $0x188] sm:$0xff]
        %v3913 = vld [vmem:[#allocation2 + $0x190] sm:$0xff]
        %v3914 = vld [vmem:[#allocation2 + $0x198] sm:$0xff]
        %v3915 = vld [vmem:[#allocation2 + $0x1a0] sm:$0xff]
        %v3916 = vld [vmem:[#allocation2 + $0x1a8] sm:$0xff]
        %v3917 = vld [vmem:[#allocation2 + $0x1b0] sm:$0xff]
        %v3918 = vld [vmem:[#allocation2 + $0x1b8] sm:$0xff]
        %v3919 = vld [vmem:[#allocation2 + $0x1c0] sm:$0xff]
        %v3920 = vld [vmem:[#allocation2 + $0x1c8] sm:$0xff]
        %v3921 = vld [vmem:[#allocation2 + $0x1d0] sm:$0xff]
        %v3922 = vld [vmem:[#allocation2 + $0x1d8] sm:$0xff]
        %v3923 = vld [vmem:[#allocation2 + $0x1e0] sm:$0xff]
        %v3924 = vld [vmem:[#allocation2 + $0x1e8] sm:$0xff]
        %v3925 = vld [vmem:[#allocation2 + $0x1f0] sm:$0xff]
        %v3926 = vld [vmem:[#allocation2 + $0x1f8] sm:$0xff]
        %v3927 = vld [vmem:[#allocation2 + $0x200] sm:$0xff]
        %v3928 = vld [vmem:[#allocation2 + $0x208] sm:$0xff]
        %v3929 = vld [vmem:[#allocation2 + $0x210] sm:$0xff]
        %v3930 = vld [vmem:[#allocation2 + $0x218] sm:$0xff]
        %v3931 = vld [vmem:[#allocation2 + $0x220] sm:$0xff]
        %v3932 = vld [vmem:[#allocation2 + $0x228] sm:$0xff]
        %v3933 = vld [vmem:[#allocation2 + $0x230] sm:$0xff]
        %v3934 = vld [vmem:[#allocation2 + $0x238] sm:$0xff]
        %v3935 = vld [vmem:[#allocation2 + $0x240] sm:$0xff]
        %v3936 = vld [vmem:[#allocation2 + $0x248] sm:$0xff]
        %v3937 = vld [vmem:[#allocation2 + $0x250] sm:$0xff]
        %v3938 = vld [vmem:[#allocation2 + $0x258] sm:$0xff]
        %v3939 = vld [vmem:[#allocation2 + $0x260] sm:$0xff]
        %v3940 = vld [vmem:[#allocation2 + $0x268] sm:$0xff]
        %v3941 = vld [vmem:[#allocation2 + $0x270] sm:$0xff]
        %v3942 = vld [vmem:[#allocation2 + $0x278] sm:$0xff]
        %v3943 = vld [vmem:[#allocation2 + $0x280] sm:$0xff]
        %v3944 = vld [vmem:[#allocation2 + $0x288] sm:$0xff]
        %v3945 = vld [vmem:[#allocation2 + $0x290] sm:$0xff]
        %v3946 = vld [vmem:[#allocation2 + $0x298] sm:$0xff]
        %v3947 = vld [vmem:[#allocation2 + $0x2a0] sm:$0xff]
        %v3948 = vld [vmem:[#allocation2 + $0x2a8] sm:$0xff]
        %v3949 = vld [vmem:[#allocation2 + $0x2b0] sm:$0xff]
        %v3950 = vld [vmem:[#allocation2 + $0x2b8] sm:$0xff]
        %v3951 = vld [vmem:[#allocation2 + $0x2c0] sm:$0xff]
        %v3952 = vld [vmem:[#allocation2 + $0x2c8] sm:$0xff]
        %v3953 = vld [vmem:[#allocation2 + $0x2d0] sm:$0xff]
        %v3954 = vld [vmem:[#allocation2 + $0x2d8] sm:$0xff]
        %v3955 = vld [vmem:[#allocation2 + $0x2e0] sm:$0xff]
        %v3956 = vld [vmem:[#allocation2 + $0x2e8] sm:$0xff]
        %v3957 = vld [vmem:[#allocation2 + $0x2f0] sm:$0xff]
        %v3958 = vld [vmem:[#allocation2 + $0x2f8] sm:$0xff]
        %v3959 = vld [vmem:[#allocation2 + $0x300] sm:$0xff]
        %v3960 = vld [vmem:[#allocation2 + $0x308] sm:$0xff]
        %v3961 = vld [vmem:[#allocation2 + $0x310] sm:$0xff]
        %v3962 = vld [vmem:[#allocation2 + $0x318] sm:$0xff]
        %v3963 = vld [vmem:[#allocation2 + $0x320] sm:$0xff]
        %v3964 = vld [vmem:[#allocation2 + $0x328] sm:$0xff]
        %v3965 = vld [vmem:[#allocation2 + $0x330] sm:$0xff]
        %v3966 = vld [vmem:[#allocation2 + $0x338] sm:$0xff]
        %v3967 = vld [vmem:[#allocation2 + $0x340] sm:$0xff]
        %v3968 = vld [vmem:[#allocation2 + $0x348] sm:$0xff]
        %v3969 = vld [vmem:[#allocation2 + $0x350] sm:$0xff]
        %v3970 = vld [vmem:[#allocation2 + $0x358] sm:$0xff]
        %v3971 = vld [vmem:[#allocation2 + $0x360] sm:$0xff]
        %v3972 = vld [vmem:[#allocation2 + $0x368] sm:$0xff]
        %v3973 = vld [vmem:[#allocation2 + $0x370] sm:$0xff]
        %v3974 = vld [vmem:[#allocation2 + $0x378] sm:$0xff]
        %v3975 = vld [vmem:[#allocation2 + $0x380] sm:$0xff]
        %v3976 = vld [vmem:[#allocation2 + $0x388] sm:$0xff]
        %v3977 = vld [vmem:[#allocation2 + $0x390] sm:$0xff]
        %v3978 = vld [vmem:[#allocation2 + $0x398] sm:$0xff]
        %v3979 = vld [vmem:[#allocation2 + $0x3a0] sm:$0xff]
        %v3980 = vld [vmem:[#allocation2 + $0x3a8] sm:$0xff]
        %v3981 = vld [vmem:[#allocation2 + $0x3b0] sm:$0xff]
        %v3982 = vld [vmem:[#allocation2 + $0x3b8] sm:$0xff]
        %v3983 = vld [vmem:[#allocation2 + $0x3c0] sm:$0xff]
        %v3984 = vld [vmem:[#allocation2 + $0x3c8] sm:$0xff]
        %v3985 = vld [vmem:[#allocation2 + $0x3d0] sm:$0xff]
        %v3986 = vld [vmem:[#allocation2 + $0x3d8] sm:$0xff]
        %v3987 = vld [vmem:[#allocation2 + $0x3e0] sm:$0xff]
        %v3988 = vld [vmem:[#allocation2 + $0x3e8] sm:$0xff]
        %v3989 = vld [vmem:[#allocation2 + $0x3f0] sm:$0xff]
        %v3990 = vld [vmem:[#allocation2 + $0x3f8] sm:$0xff]
        %v4119 = vunpack.c.l.b16 %v3863
        %v4120 = vunpack.c.h.b16 %v3863
        %v4121 = vunpack.c.l.b16 %v3864
        %v4122 = vunpack.c.h.b16 %v3864
        %v4123 = vunpack.c.l.b16 %v3865
        %v4124 = vunpack.c.h.b16 %v3865
        %v4125 = vunpack.c.l.b16 %v3866
        %v4126 = vunpack.c.h.b16 %v3866
        %v4127 = vunpack.c.l.b16 %v3867
        %v4128 = vunpack.c.h.b16 %v3867
        %v4129 = vunpack.c.l.b16 %v3868
        %v4130 = vunpack.c.h.b16 %v3868
        %v4131 = vunpack.c.l.b16 %v3869
        %v4132 = vunpack.c.h.b16 %v3869
        %v4133 = vunpack.c.l.b16 %v3870
        %v4134 = vunpack.c.h.b16 %v3870
        %v4135 = vunpack.c.l.b16 %v3871
        %v4136 = vunpack.c.h.b16 %v3871
        %v4137 = vunpack.c.l.b16 %v3872
        %v4138 = vunpack.c.h.b16 %v3872
        %v4139 = vunpack.c.l.b16 %v3873
        %v4140 = vunpack.c.h.b16 %v3873
        %v4141 = vunpack.c.l.b16 %v3874
        %v4142 = vunpack.c.h.b16 %v3874
        %v4143 = vunpack.c.l.b16 %v3875
        %v4144 = vunpack.c.h.b16 %v3875
        %v4145 = vunpack.c.l.b16 %v3876
        %v4146 = vunpack.c.h.b16 %v3876
        %v4147 = vunpack.c.l.b16 %v3877
        %v4148 = vunpack.c.h.b16 %v3877
        %v4149 = vunpack.c.l.b16 %v3878
        %v4150 = vunpack.c.h.b16 %v3878
        %v4151 = vunpack.c.l.b16 %v3879
        %v4152 = vunpack.c.h.b16 %v3879
        %v4153 = vunpack.c.l.b16 %v3880
        %v4154 = vunpack.c.h.b16 %v3880
        %v4155 = vunpack.c.l.b16 %v3881
        %v4156 = vunpack.c.h.b16 %v3881
        %v4157 = vunpack.c.l.b16 %v3882
        %v4158 = vunpack.c.h.b16 %v3882
        %v4159 = vunpack.c.l.b16 %v3883
        %v4160 = vunpack.c.h.b16 %v3883
        %v4161 = vunpack.c.l.b16 %v3884
        %v4162 = vunpack.c.h.b16 %v3884
        %v4163 = vunpack.c.l.b16 %v3885
        %v4164 = vunpack.c.h.b16 %v3885
        %v4165 = vunpack.c.l.b16 %v3886
        %v4166 = vunpack.c.h.b16 %v3886
        %v4167 = vunpack.c.l.b16 %v3887
        %v4168 = vunpack.c.h.b16 %v3887
        %v4169 = vunpack.c.l.b16 %v3888
        %v4170 = vunpack.c.h.b16 %v3888
        %v4171 = vunpack.c.l.b16 %v3889
        %v4172 = vunpack.c.h.b16 %v3889
        %v4173 = vunpack.c.l.b16 %v3890
        %v4174 = vunpack.c.h.b16 %v3890
        %v4175 = vunpack.c.l.b16 %v3891
        %v4176 = vunpack.c.h.b16 %v3891
        %v4177 = vunpack.c.l.b16 %v3892
        %v4178 = vunpack.c.h.b16 %v3892
        %v4179 = vunpack.c.l.b16 %v3893
        %v4180 = vunpack.c.h.b16 %v3893
        %v4181 = vunpack.c.l.b16 %v3894
        %v4182 = vunpack.c.h.b16 %v3894
        %v4183 = vunpack.c.l.b16 %v3895
        %v4184 = vunpack.c.h.b16 %v3895
        %v4185 = vunpack.c.l.b16 %v3896
        %v4186 = vunpack.c.h.b16 %v3896
        %v4187 = vunpack.c.l.b16 %v3897
        %v4188 = vunpack.c.h.b16 %v3897
        %v4189 = vunpack.c.l.b16 %v3898
        %v4190 = vunpack.c.h.b16 %v3898
        %v4191 = vunpack.c.l.b16 %v3899
        %v4192 = vunpack.c.h.b16 %v3899
        %v4193 = vunpack.c.l.b16 %v3900
        %v4194 = vunpack.c.h.b16 %v3900
        %v4195 = vunpack.c.l.b16 %v3901
        %v4196 = vunpack.c.h.b16 %v3901
        %v4197 = vunpack.c.l.b16 %v3902
        %v4198 = vunpack.c.h.b16 %v3902
        %v4199 = vunpack.c.l.b16 %v3903
        %v4200 = vunpack.c.h.b16 %v3903
        %v4201 = vunpack.c.l.b16 %v3904
        %v4202 = vunpack.c.h.b16 %v3904
        %v4203 = vunpack.c.l.b16 %v3905
        %v4204 = vunpack.c.h.b16 %v3905
        %v4205 = vunpack.c.l.b16 %v3906
        %v4206 = vunpack.c.h.b16 %v3906
        %v4207 = vunpack.c.l.b16 %v3907
        %v4208 = vunpack.c.h.b16 %v3907
        %v4209 = vunpack.c.l.b16 %v3908
        %v4210 = vunpack.c.h.b16 %v3908
        %v4211 = vunpack.c.l.b16 %v3909
        %v4212 = vunpack.c.h.b16 %v3909
        %v4213 = vunpack.c.l.b16 %v3910
        %v4214 = vunpack.c.h.b16 %v3910
        %v4215 = vunpack.c.l.b16 %v3911
        %v4216 = vunpack.c.h.b16 %v3911
        %v4217 = vunpack.c.l.b16 %v3912
        %v4218 = vunpack.c.h.b16 %v3912
        %v4219 = vunpack.c.l.b16 %v3913
        %v4220 = vunpack.c.h.b16 %v3913
        %v4221 = vunpack.c.l.b16 %v3914
        %v4222 = vunpack.c.h.b16 %v3914
        %v4223 = vunpack.c.l.b16 %v3915
        %v4224 = vunpack.c.h.b16 %v3915
        %v4225 = vunpack.c.l.b16 %v3916
        %v4226 = vunpack.c.h.b16 %v3916
        %v4227 = vunpack.c.l.b16 %v3917
        %v4228 = vunpack.c.h.b16 %v3917
        %v4229 = vunpack.c.l.b16 %v3918
        %v4230 = vunpack.c.h.b16 %v3918
        %v4231 = vunpack.c.l.b16 %v3919
        %v4232 = vunpack.c.h.b16 %v3919
        %v4233 = vunpack.c.l.b16 %v3920
        %v4234 = vunpack.c.h.b16 %v3920
        %v4235 = vunpack.c.l.b16 %v3921
        %v4236 = vunpack.c.h.b16 %v3921
        %v4237 = vunpack.c.l.b16 %v3922
        %v4238 = vunpack.c.h.b16 %v3922
        %v4239 = vunpack.c.l.b16 %v3923
        %v4240 = vunpack.c.h.b16 %v3923
        %v4241 = vunpack.c.l.b16 %v3924
        %v4242 = vunpack.c.h.b16 %v3924
        %v4243 = vunpack.c.l.b16 %v3925
        %v4244 = vunpack.c.h.b16 %v3925
        %v4245 = vunpack.c.l.b16 %v3926
        %v4246 = vunpack.c.h.b16 %v3926
        %v4247 = vunpack.c.l.b16 %v3927
        %v4248 = vunpack.c.h.b16 %v3927
        %v4249 = vunpack.c.l.b16 %v3928
        %v4250 = vunpack.c.h.b16 %v3928
        %v4251 = vunpack.c.l.b16 %v3929
        %v4252 = vunpack.c.h.b16 %v3929
        %v4253 = vunpack.c.l.b16 %v3930
        %v4254 = vunpack.c.h.b16 %v3930
        %v4255 = vunpack.c.l.b16 %v3931
        %v4256 = vunpack.c.h.b16 %v3931
        %v4257 = vunpack.c.l.b16 %v3932
        %v4258 = vunpack.c.h.b16 %v3932
        %v4259 = vunpack.c.l.b16 %v3933
        %v4260 = vunpack.c.h.b16 %v3933
        %v4261 = vunpack.c.l.b16 %v3934
        %v4262 = vunpack.c.h.b16 %v3934
        %v4263 = vunpack.c.l.b16 %v3935
        %v4264 = vunpack.c.h.b16 %v3935
        %v4265 = vunpack.c.l.b16 %v3936
        %v4266 = vunpack.c.h.b16 %v3936
        %v4267 = vunpack.c.l.b16 %v3937
        %v4268 = vunpack.c.h.b16 %v3937
        %v4269 = vunpack.c.l.b16 %v3938
        %v4270 = vunpack.c.h.b16 %v3938
        %v4271 = vunpack.c.l.b16 %v3939
        %v4272 = vunpack.c.h.b16 %v3939
        %v4273 = vunpack.c.l.b16 %v3940
        %v4274 = vunpack.c.h.b16 %v3940
        %v4275 = vunpack.c.l.b16 %v3941
        %v4276 = vunpack.c.h.b16 %v3941
        %v4277 = vunpack.c.l.b16 %v3942
        %v4278 = vunpack.c.h.b16 %v3942
        %v4279 = vunpack.c.l.b16 %v3943
        %v4280 = vunpack.c.h.b16 %v3943
        %v4281 = vunpack.c.l.b16 %v3944
        %v4282 = vunpack.c.h.b16 %v3944
        %v4283 = vunpack.c.l.b16 %v3945
        %v4284 = vunpack.c.h.b16 %v3945
        %v4285 = vunpack.c.l.b16 %v3946
        %v4286 = vunpack.c.h.b16 %v3946
        %v4287 = vunpack.c.l.b16 %v3947
        %v4288 = vunpack.c.h.b16 %v3947
        %v4289 = vunpack.c.l.b16 %v3948
        %v4290 = vunpack.c.h.b16 %v3948
        %v4291 = vunpack.c.l.b16 %v3949
        %v4292 = vunpack.c.h.b16 %v3949
        %v4293 = vunpack.c.l.b16 %v3950
        %v4294 = vunpack.c.h.b16 %v3950
        %v4295 = vunpack.c.l.b16 %v3951
        %v4296 = vunpack.c.h.b16 %v3951
        %v4297 = vunpack.c.l.b16 %v3952
        %v4298 = vunpack.c.h.b16 %v3952
        %v4299 = vunpack.c.l.b16 %v3953
        %v4300 = vunpack.c.h.b16 %v3953
        %v4301 = vunpack.c.l.b16 %v3954
        %v4302 = vunpack.c.h.b16 %v3954
        %v4303 = vunpack.c.l.b16 %v3955
        %v4304 = vunpack.c.h.b16 %v3955
        %v4305 = vunpack.c.l.b16 %v3956
        %v4306 = vunpack.c.h.b16 %v3956
        %v4307 = vunpack.c.l.b16 %v3957
        %v4308 = vunpack.c.h.b16 %v3957
        %v4309 = vunpack.c.l.b16 %v3958
        %v4310 = vunpack.c.h.b16 %v3958
        %v4311 = vunpack.c.l.b16 %v3959
        %v4312 = vunpack.c.h.b16 %v3959
        %v4313 = vunpack.c.l.b16 %v3960
        %v4314 = vunpack.c.h.b16 %v3960
        %v4315 = vunpack.c.l.b16 %v3961
        %v4316 = vunpack.c.h.b16 %v3961
        %v4317 = vunpack.c.l.b16 %v3962
        %v4318 = vunpack.c.h.b16 %v3962
        %v4319 = vunpack.c.l.b16 %v3963
        %v4320 = vunpack.c.h.b16 %v3963
        %v4321 = vunpack.c.l.b16 %v3964
        %v4322 = vunpack.c.h.b16 %v3964
        %v4323 = vunpack.c.l.b16 %v3965
        %v4324 = vunpack.c.h.b16 %v3965
        %v4325 = vunpack.c.l.b16 %v3966
        %v4326 = vunpack.c.h.b16 %v3966
        %v4327 = vunpack.c.l.b16 %v3967
        %v4328 = vunpack.c.h.b16 %v3967
        %v4329 = vunpack.c.l.b16 %v3968
        %v4330 = vunpack.c.h.b16 %v3968
        %v4331 = vunpack.c.l.b16 %v3969
        %v4332 = vunpack.c.h.b16 %v3969
        %v4333 = vunpack.c.l.b16 %v3970
        %v4334 = vunpack.c.h.b16 %v3970
        %v4335 = vunpack.c.l.b16 %v3971
        %v4336 = vunpack.c.h.b16 %v3971
        %v4337 = vunpack.c.l.b16 %v3972
        %v4338 = vunpack.c.h.b16 %v3972
        %v4339 = vunpack.c.l.b16 %v3973
        %v4340 = vunpack.c.h.b16 %v3973
        %v4341 = vunpack.c.l.b16 %v3974
        %v4342 = vunpack.c.h.b16 %v3974
        %v4343 = vunpack.c.l.b16 %v3975
        %v4344 = vunpack.c.h.b16 %v3975
        %v4345 = vunpack.c.l.b16 %v3976
        %v4346 = vunpack.c.h.b16 %v3976
        %v4347 = vunpack.c.l.b16 %v3977
        %v4348 = vunpack.c.h.b16 %v3977
        %v4349 = vunpack.c.l.b16 %v3978
        %v4350 = vunpack.c.h.b16 %v3978
        %v4351 = vunpack.c.l.b16 %v3979
        %v4352 = vunpack.c.h.b16 %v3979
        %v4353 = vunpack.c.l.b16 %v3980
        %v4354 = vunpack.c.h.b16 %v3980
        %v4355 = vunpack.c.l.b16 %v3981
        %v4356 = vunpack.c.h.b16 %v3981
        %v4357 = vunpack.c.l.b16 %v3982
        %v4358 = vunpack.c.h.b16 %v3982
        %v4359 = vunpack.c.l.b16 %v3983
        %v4360 = vunpack.c.h.b16 %v3983
        %v4361 = vunpack.c.l.b16 %v3984
        %v4362 = vunpack.c.h.b16 %v3984
        %v4363 = vunpack.c.l.b16 %v3985
        %v4364 = vunpack.c.h.b16 %v3985
        %v4365 = vunpack.c.l.b16 %v3986
        %v4366 = vunpack.c.h.b16 %v3986
        %v4367 = vunpack.c.l.b16 %v3987
        %v4368 = vunpack.c.h.b16 %v3987
        %v4369 = vunpack.c.l.b16 %v3988
        %v4370 = vunpack.c.h.b16 %v3988
        %v4371 = vunpack.c.l.b16 %v3989
        %v4372 = vunpack.c.h.b16 %v3989
        %v4373 = vunpack.c.l.b16 %v3990
        %v4374 = vunpack.c.h.b16 %v3990
        %v4375 = vpack.c.b16 %v4121, %v4119
        %v4376 = vpack.c.b16 %v4122, %v4120
        %v4377 = vpack.c.b16 %v4125, %v4123
        %v4378 = vpack.c.b16 %v4126, %v4124
        %v4379 = vpack.c.b16 %v4129, %v4127
        %v4380 = vpack.c.b16 %v4130, %v4128
        %v4381 = vpack.c.b16 %v4133, %v4131
        %v4382 = vpack.c.b16 %v4134, %v4132
        %v4383 = vpack.c.b16 %v4137, %v4135
        %v4384 = vpack.c.b16 %v4138, %v4136
        %v4385 = vpack.c.b16 %v4141, %v4139
        %v4386 = vpack.c.b16 %v4142, %v4140
        %v4387 = vpack.c.b16 %v4145, %v4143
        %v4388 = vpack.c.b16 %v4146, %v4144
        %v4389 = vpack.c.b16 %v4149, %v4147
        %v4390 = vpack.c.b16 %v4150, %v4148
        %v4391 = vpack.c.b16 %v4153, %v4151
        %v4392 = vpack.c.b16 %v4154, %v4152
        %v4393 = vpack.c.b16 %v4157, %v4155
        %v4394 = vpack.c.b16 %v4158, %v4156
        %v4395 = vpack.c.b16 %v4161, %v4159
        %v4396 = vpack.c.b16 %v4162, %v4160
        %v4397 = vpack.c.b16 %v4165, %v4163
        %v4398 = vpack.c.b16 %v4166, %v4164
        %v4399 = vpack.c.b16 %v4169, %v4167
        %v4400 = vpack.c.b16 %v4170, %v4168
        %v4401 = vpack.c.b16 %v4173, %v4171
        %v4402 = vpack.c.b16 %v4174, %v4172
        %v4403 = vpack.c.b16 %v4177, %v4175
        %v4404 = vpack.c.b16 %v4178, %v4176
        %v4405 = vpack.c.b16 %v4181, %v4179
        %v4406 = vpack.c.b16 %v4182, %v4180
        %v4407 = vpack.c.b16 %v4185, %v4183
        %v4408 = vpack.c.b16 %v4186, %v4184
        %v4409 = vpack.c.b16 %v4189, %v4187
        %v4410 = vpack.c.b16 %v4190, %v4188
        %v4411 = vpack.c.b16 %v4193, %v4191
        %v4412 = vpack.c.b16 %v4194, %v4192
        %v4413 = vpack.c.b16 %v4197, %v4195
        %v4414 = vpack.c.b16 %v4198, %v4196
        %v4415 = vpack.c.b16 %v4201, %v4199
        %v4416 = vpack.c.b16 %v4202, %v4200
        %v4417 = vpack.c.b16 %v4205, %v4203
        %v4418 = vpack.c.b16 %v4206, %v4204
        %v4419 = vpack.c.b16 %v4209, %v4207
        %v4420 = vpack.c.b16 %v4210, %v4208
        %v4421 = vpack.c.b16 %v4213, %v4211
        %v4422 = vpack.c.b16 %v4214, %v4212
        %v4423 = vpack.c.b16 %v4217, %v4215
        %v4424 = vpack.c.b16 %v4218, %v4216
        %v4425 = vpack.c.b16 %v4221, %v4219
        %v4426 = vpack.c.b16 %v4222, %v4220
        %v4427 = vpack.c.b16 %v4225, %v4223
        %v4428 = vpack.c.b16 %v4226, %v4224
        %v4429 = vpack.c.b16 %v4229, %v4227
        %v4430 = vpack.c.b16 %v4230, %v4228
        %v4431 = vpack.c.b16 %v4233, %v4231
        %v4432 = vpack.c.b16 %v4234, %v4232
        %v4433 = vpack.c.b16 %v4237, %v4235
        %v4434 = vpack.c.b16 %v4238, %v4236
        %v4435 = vpack.c.b16 %v4241, %v4239
        %v4436 = vpack.c.b16 %v4242, %v4240
        %v4437 = vpack.c.b16 %v4245, %v4243
        %v4438 = vpack.c.b16 %v4246, %v4244
        %v4439 = vpack.c.b16 %v4249, %v4247
        %v4440 = vpack.c.b16 %v4250, %v4248
        %v4441 = vpack.c.b16 %v4253, %v4251
        %v4442 = vpack.c.b16 %v4254, %v4252
        %v4443 = vpack.c.b16 %v4257, %v4255
        %v4444 = vpack.c.b16 %v4258, %v4256
        %v4445 = vpack.c.b16 %v4261, %v4259
        %v4446 = vpack.c.b16 %v4262, %v4260
        %v4447 = vpack.c.b16 %v4265, %v4263
        %v4448 = vpack.c.b16 %v4266, %v4264
        %v4449 = vpack.c.b16 %v4269, %v4267
        %v4450 = vpack.c.b16 %v4270, %v4268
        %v4451 = vpack.c.b16 %v4273, %v4271
        %v4452 = vpack.c.b16 %v4274, %v4272
        %v4453 = vpack.c.b16 %v4277, %v4275
        %v4454 = vpack.c.b16 %v4278, %v4276
        %v4455 = vpack.c.b16 %v4281, %v4279
        %v4456 = vpack.c.b16 %v4282, %v4280
        %v4457 = vpack.c.b16 %v4285, %v4283
        %v4458 = vpack.c.b16 %v4286, %v4284
        %v4459 = vpack.c.b16 %v4289, %v4287
        %v4460 = vpack.c.b16 %v4290, %v4288
        %v4461 = vpack.c.b16 %v4293, %v4291
        %v4462 = vpack.c.b16 %v4294, %v4292
        %v4463 = vpack.c.b16 %v4297, %v4295
        %v4464 = vpack.c.b16 %v4298, %v4296
        %v4465 = vpack.c.b16 %v4301, %v4299
        %v4466 = vpack.c.b16 %v4302, %v4300
        %v4467 = vpack.c.b16 %v4305, %v4303
        %v4468 = vpack.c.b16 %v4306, %v4304
        %v4469 = vpack.c.b16 %v4309, %v4307
        %v4470 = vpack.c.b16 %v4310, %v4308
        %v4471 = vpack.c.b16 %v4313, %v4311
        %v4472 = vpack.c.b16 %v4314, %v4312
        %v4473 = vpack.c.b16 %v4317, %v4315
        %v4474 = vpack.c.b16 %v4318, %v4316
        %v4475 = vpack.c.b16 %v4321, %v4319
        %v4476 = vpack.c.b16 %v4322, %v4320
        %v4477 = vpack.c.b16 %v4325, %v4323
        %v4478 = vpack.c.b16 %v4326, %v4324
        %v4479 = vpack.c.b16 %v4329, %v4327
        %v4480 = vpack.c.b16 %v4330, %v4328
        %v4481 = vpack.c.b16 %v4333, %v4331
        %v4482 = vpack.c.b16 %v4334, %v4332
        %v4483 = vpack.c.b16 %v4337, %v4335
        %v4484 = vpack.c.b16 %v4338, %v4336
        %v4485 = vpack.c.b16 %v4341, %v4339
        %v4486 = vpack.c.b16 %v4342, %v4340
        %v4487 = vpack.c.b16 %v4345, %v4343
        %v4488 = vpack.c.b16 %v4346, %v4344
        %v4489 = vpack.c.b16 %v4349, %v4347
        %v4490 = vpack.c.b16 %v4350, %v4348
        %v4491 = vpack.c.b16 %v4353, %v4351
        %v4492 = vpack.c.b16 %v4354, %v4352
        %v4493 = vpack.c.b16 %v4357, %v4355
        %v4494 = vpack.c.b16 %v4358, %v4356
        %v4495 = vpack.c.b16 %v4361, %v4359
        %v4496 = vpack.c.b16 %v4362, %v4360
        %v4497 = vpack.c.b16 %v4365, %v4363
        %v4498 = vpack.c.b16 %v4366, %v4364
        %v4499 = vpack.c.b16 %v4369, %v4367
        %v4500 = vpack.c.b16 %v4370, %v4368
        %v4501 = vpack.c.b16 %v4373, %v4371
        %v4502 = vpack.c.b16 %v4374, %v4372
        %4631 = vmatpush.bf16.msra.mxu0 %v4389
        %4632 = vmatpush.bf16.msra.mxu0 %v4387
        %4633 = vmatpush.bf16.msra.mxu0 %v4385
        %4634 = vmatpush.bf16.msra.mxu0 %v4383
        %4635 = vmatpush.bf16.msra.mxu0 %v4381
        %4636 = vmatpush.bf16.msra.mxu0 %v4379
        %4637 = vmatpush.bf16.msra.mxu0 %v4377
        %4638 = vmatpush.bf16.msra.mxu0 %v4375
        %4639 = vmatmul.bf16.gmra.mxu0 %v3855
        %v4640 = vpop.f32.mrf.mxu0
        %v4641 = vadd.f32 0.0, %v4640
        %v4642 = vpop.f32.mrf.mxu0
        %v4643 = vadd.f32 0.0, %v4642
        %4644 = vdwg.mxu0
        %4645 = vmatpush.bf16.msra.mxu0 %v4405
        %4646 = vmatpush.bf16.msra.mxu0 %v4403
        %4647 = vmatpush.bf16.msra.mxu0 %v4401
        %4648 = vmatpush.bf16.msra.mxu0 %v4399
        %4649 = vmatpush.bf16.msra.mxu0 %v4397
        %4650 = vmatpush.bf16.msra.mxu0 %v4395
        %4651 = vmatpush.bf16.msra.mxu0 %v4393
        %4652 = vmatpush.bf16.msra.mxu0 %v4391
        %4653 = vmatmul.bf16.gmra.mxu0 %v3856
        %v4654 = vpop.f32.mrf.mxu0
        %v4655 = vadd.f32 %v4641, %v4654
        %v4656 = vpop.f32.mrf.mxu0
        %v4657 = vadd.f32 %v4643, %v4656
        %4658 = vdwg.mxu0
        %4659 = vmatpush.bf16.msra.mxu0 %v4421
        %4660 = vmatpush.bf16.msra.mxu0 %v4419
        %4661 = vmatpush.bf16.msra.mxu0 %v4417
        %4662 = vmatpush.bf16.msra.mxu0 %v4415
        %4663 = vmatpush.bf16.msra.mxu0 %v4413
        %4664 = vmatpush.bf16.msra.mxu0 %v4411
        %4665 = vmatpush.bf16.msra.mxu0 %v4409
        %4666 = vmatpush.bf16.msra.mxu0 %v4407
        %4667 = vmatmul.bf16.gmra.mxu0 %v3857
        %v4668 = vpop.f32.mrf.mxu0
        %v4669 = vadd.f32 %v4655, %v4668
        %v4670 = vpop.f32.mrf.mxu0
        %v4671 = vadd.f32 %v4657, %v4670
        %4672 = vdwg.mxu0
        %4673 = vmatpush.bf16.msra.mxu0 %v4437
        %4674 = vmatpush.bf16.msra.mxu0 %v4435
        %4675 = vmatpush.bf16.msra.mxu0 %v4433
        %4676 = vmatpush.bf16.msra.mxu0 %v4431
        %4677 = vmatpush.bf16.msra.mxu0 %v4429
        %4678 = vmatpush.bf16.msra.mxu0 %v4427
        %4679 = vmatpush.bf16.msra.mxu0 %v4425
        %4680 = vmatpush.bf16.msra.mxu0 %v4423
        %4681 = vmatmul.bf16.gmra.mxu0 %v3858
        %v4682 = vpop.f32.mrf.mxu0
        %v4683 = vadd.f32 %v4669, %v4682
        %v4684 = vpop.f32.mrf.mxu0
        %v4685 = vadd.f32 %v4671, %v4684
        %4686 = vdwg.mxu0
        %4687 = vmatpush.bf16.msra.mxu0 %v4453
        %4688 = vmatpush.bf16.msra.mxu0 %v4451
        %4689 = vmatpush.bf16.msra.mxu0 %v4449
        %4690 = vmatpush.bf16.msra.mxu0 %v4447
        %4691 = vmatpush.bf16.msra.mxu0 %v4445
        %4692 = vmatpush.bf16.msra.mxu0 %v4443
        %4693 = vmatpush.bf16.msra.mxu0 %v4441
        %4694 = vmatpush.bf16.msra.mxu0 %v4439
        %4695 = vmatmul.bf16.gmra.mxu0 %v3859
        %v4696 = vpop.f32.mrf.mxu0
        %v4697 = vadd.f32 %v4683, %v4696
        %v4698 = vpop.f32.mrf.mxu0
        %v4699 = vadd.f32 %v4685, %v4698
        %4700 = vdwg.mxu0
        %4701 = vmatpush.bf16.msra.mxu0 %v4469
        %4702 = vmatpush.bf16.msra.mxu0 %v4467
        %4703 = vmatpush.bf16.msra.mxu0 %v4465
        %4704 = vmatpush.bf16.msra.mxu0 %v4463
        %4705 = vmatpush.bf16.msra.mxu0 %v4461
        %4706 = vmatpush.bf16.msra.mxu0 %v4459
        %4707 = vmatpush.bf16.msra.mxu0 %v4457
        %4708 = vmatpush.bf16.msra.mxu0 %v4455
        %4709 = vmatmul.bf16.gmra.mxu0 %v3860
        %v4710 = vpop.f32.mrf.mxu0
        %v4711 = vadd.f32 %v4697, %v4710
        %v4712 = vpop.f32.mrf.mxu0
        %v4713 = vadd.f32 %v4699, %v4712
        %4714 = vdwg.mxu0
        %4715 = vmatpush.bf16.msra.mxu0 %v4485
        %4716 = vmatpush.bf16.msra.mxu0 %v4483
        %4717 = vmatpush.bf16.msra.mxu0 %v4481
        %4718 = vmatpush.bf16.msra.mxu0 %v4479
        %4719 = vmatpush.bf16.msra.mxu0 %v4477
        %4720 = vmatpush.bf16.msra.mxu0 %v4475
        %4721 = vmatpush.bf16.msra.mxu0 %v4473
        %4722 = vmatpush.bf16.msra.mxu0 %v4471
        %4723 = vmatmul.bf16.gmra.mxu0 %v3861
        %v4724 = vpop.f32.mrf.mxu0
        %v4725 = vadd.f32 %v4711, %v4724
        %v4726 = vpop.f32.mrf.mxu0
        %v4727 = vadd.f32 %v4713, %v4726
        %4728 = vdwg.mxu0
        %4729 = vmatpush.bf16.msra.mxu0 %v4501
        %4730 = vmatpush.bf16.msra.mxu0 %v4499
        %4731 = vmatpush.bf16.msra.mxu0 %v4497
        %4732 = vmatpush.bf16.msra.mxu0 %v4495
        %4733 = vmatpush.bf16.msra.mxu0 %v4493
        %4734 = vmatpush.bf16.msra.mxu0 %v4491
        %4735 = vmatpush.bf16.msra.mxu0 %v4489
        %4736 = vmatpush.bf16.msra.mxu0 %v4487
        %4737 = vmatmul.bf16.gmra.mxu0 %v3862
        %v4738 = vpop.f32.mrf.mxu0
        %v4739 = vadd.f32 %v4725, %v4738
        %v4740 = vpop.f32.mrf.mxu0
        %v4741 = vadd.f32 %v4727, %v4740
        %4742 = vdwg.mxu0
        %4743 = vmatpush.bf16.msra.mxu0 %v4390
        %4744 = vmatpush.bf16.msra.mxu0 %v4388
        %4745 = vmatpush.bf16.msra.mxu0 %v4386
        %4746 = vmatpush.bf16.msra.mxu0 %v4384
        %4747 = vmatpush.bf16.msra.mxu0 %v4382
        %4748 = vmatpush.bf16.msra.mxu0 %v4380
        %4749 = vmatpush.bf16.msra.mxu0 %v4378
        %4750 = vmatpush.bf16.msra.mxu0 %v4376
        %4751 = vmatmul.bf16.gmra.mxu0 %v3855
        %v4752 = vpop.f32.mrf.mxu0
        %v4753 = vadd.f32 0.0, %v4752
        %v4754 = vpop.f32.mrf.mxu0
        %v4755 = vadd.f32 0.0, %v4754
        %4756 = vdwg.mxu0
        %4757 = vmatpush.bf16.msra.mxu0 %v4406
        %4758 = vmatpush.bf16.msra.mxu0 %v4404
        %4759 = vmatpush.bf16.msra.mxu0 %v4402
        %4760 = vmatpush.bf16.msra.mxu0 %v4400
        %4761 = vmatpush.bf16.msra.mxu0 %v4398
        %4762 = vmatpush.bf16.msra.mxu0 %v4396
        %4763 = vmatpush.bf16.msra.mxu0 %v4394
        %4764 = vmatpush.bf16.msra.mxu0 %v4392
        %4765 = vmatmul.bf16.gmra.mxu0 %v3856
        %v4766 = vpop.f32.mrf.mxu0
        %v4767 = vadd.f32 %v4753, %v4766
        %v4768 = vpop.f32.mrf.mxu0
        %v4769 = vadd.f32 %v4755, %v4768
        %4770 = vdwg.mxu0
        %4771 = vmatpush.bf16.msra.mxu0 %v4422
        %4772 = vmatpush.bf16.msra.mxu0 %v4420
        %4773 = vmatpush.bf16.msra.mxu0 %v4418
        %4774 = vmatpush.bf16.msra.mxu0 %v4416
        %4775 = vmatpush.bf16.msra.mxu0 %v4414
        %4776 = vmatpush.bf16.msra.mxu0 %v4412
        %4777 = vmatpush.bf16.msra.mxu0 %v4410
        %4778 = vmatpush.bf16.msra.mxu0 %v4408
        %4779 = vmatmul.bf16.gmra.mxu0 %v3857
        %v4780 = vpop.f32.mrf.mxu0
        %v4781 = vadd.f32 %v4767, %v4780
        %v4782 = vpop.f32.mrf.mxu0
        %v4783 = vadd.f32 %v4769, %v4782
        %4784 = vdwg.mxu0
        %4785 = vmatpush.bf16.msra.mxu0 %v4438
        %4786 = vmatpush.bf16.msra.mxu0 %v4436
        %4787 = vmatpush.bf16.msra.mxu0 %v4434
        %4788 = vmatpush.bf16.msra.mxu0 %v4432
        %4789 = vmatpush.bf16.msra.mxu0 %v4430
        %4790 = vmatpush.bf16.msra.mxu0 %v4428
        %4791 = vmatpush.bf16.msra.mxu0 %v4426
        %4792 = vmatpush.bf16.msra.mxu0 %v4424
        %4793 = vmatmul.bf16.gmra.mxu0 %v3858
        %v4794 = vpop.f32.mrf.mxu0
        %v4795 = vadd.f32 %v4781, %v4794
        %v4796 = vpop.f32.mrf.mxu0
        %v4797 = vadd.f32 %v4783, %v4796
        %4798 = vdwg.mxu0
        %4799 = vmatpush.bf16.msra.mxu0 %v4454
        %4800 = vmatpush.bf16.msra.mxu0 %v4452
        %4801 = vmatpush.bf16.msra.mxu0 %v4450
        %4802 = vmatpush.bf16.msra.mxu0 %v4448
        %4803 = vmatpush.bf16.msra.mxu0 %v4446
        %4804 = vmatpush.bf16.msra.mxu0 %v4444
        %4805 = vmatpush.bf16.msra.mxu0 %v4442
        %4806 = vmatpush.bf16.msra.mxu0 %v4440
        %4807 = vmatmul.bf16.gmra.mxu0 %v3859
        %v4808 = vpop.f32.mrf.mxu0
        %v4809 = vadd.f32 %v4795, %v4808
        %v4810 = vpop.f32.mrf.mxu0
        %v4811 = vadd.f32 %v4797, %v4810
        %4812 = vdwg.mxu0
        %4813 = vmatpush.bf16.msra.mxu0 %v4470
        %4814 = vmatpush.bf16.msra.mxu0 %v4468
        %4815 = vmatpush.bf16.msra.mxu0 %v4466
        %4816 = vmatpush.bf16.msra.mxu0 %v4464
        %4817 = vmatpush.bf16.msra.mxu0 %v4462
        %4818 = vmatpush.bf16.msra.mxu0 %v4460
        %4819 = vmatpush.bf16.msra.mxu0 %v4458
        %4820 = vmatpush.bf16.msra.mxu0 %v4456
        %4821 = vmatmul.bf16.gmra.mxu0 %v3860
        %v4822 = vpop.f32.mrf.mxu0
        %v4823 = vadd.f32 %v4809, %v4822
        %v4824 = vpop.f32.mrf.mxu0
        %v4825 = vadd.f32 %v4811, %v4824
        %4826 = vdwg.mxu0
        %4827 = vmatpush.bf16.msra.mxu0 %v4486
        %4828 = vmatpush.bf16.msra.mxu0 %v4484
        %4829 = vmatpush.bf16.msra.mxu0 %v4482
        %4830 = vmatpush.bf16.msra.mxu0 %v4480
        %4831 = vmatpush.bf16.msra.mxu0 %v4478
        %4832 = vmatpush.bf16.msra.mxu0 %v4476
        %4833 = vmatpush.bf16.msra.mxu0 %v4474
        %4834 = vmatpush.bf16.msra.mxu0 %v4472
        %4835 = vmatmul.bf16.gmra.mxu0 %v3861
        %v4836 = vpop.f32.mrf.mxu0
        %v4837 = vadd.f32 %v4823, %v4836
        %v4838 = vpop.f32.mrf.mxu0
        %v4839 = vadd.f32 %v4825, %v4838
        %4840 = vdwg.mxu0
        %4841 = vmatpush.bf16.msra.mxu0 %v4502
        %4842 = vmatpush.bf16.msra.mxu0 %v4500
        %4843 = vmatpush.bf16.msra.mxu0 %v4498
        %4844 = vmatpush.bf16.msra.mxu0 %v4496
        %4845 = vmatpush.bf16.msra.mxu0 %v4494
        %4846 = vmatpush.bf16.msra.mxu0 %v4492
        %4847 = vmatpush.bf16.msra.mxu0 %v4490
        %4848 = vmatpush.bf16.msra.mxu0 %v4488
        %4849 = vmatmul.bf16.gmra.mxu0 %v3862
        %v4850 = vpop.f32.mrf.mxu0
        %v4851 = vadd.f32 %v4837, %v4850
        %v4852 = vpop.f32.mrf.mxu0
        %v4853 = vadd.f32 %v4839, %v4852
        %4854 = vdwg.mxu0
        %4855 = vrot.lane.b32.xlu0 %v4739, 17
        %v4856 = vpop.permute.xlu0 %4855
        %4857 = vrot.lane.b32.xlu0 %v4741, 17
        %v4858 = vpop.permute.xlu0 %4857
        %4859 = vrot.lane.b32.xlu0 %v4851, 17
        %v4860 = vpop.permute.xlu0 %4859
        %4861 = vrot.lane.b32.xlu0 %v4853, 17
        %v4862 = vpop.permute.xlu0 %4861
        %vm4863 = vcmp.lt.s32.totalorder %v785, 17
        %v4864 = vsel %vm4863, %v4856, %v4860
        %v4865 = vsel %vm4863, %v4858, %v4862
        %v4866 = vsel %vm4863, %v4860, %v4856
        %v4867 = vsel %vm4863, %v4862, %v4858
        %v4868 = vperm.slane %v745, 0
        %v4869 = vperm.slane %v746, 0
        %v4870 = vmul.f32 %v4866, %v4868
        %v4871 = vmul.f32 %v4864, %v4869
        %v4872 = vmul.f32 %v4867, %v4868
        %v4873 = vmul.f32 %v4865, %v4869
        %4874 = vrot.lane.b32.xlu0 %v4739, 16
        %v4875 = vpop.permute.xlu0 %4874
        %4876 = vrot.lane.b32.xlu0 %v4741, 16
        %v4877 = vpop.permute.xlu0 %4876
        %4878 = vrot.lane.b32.xlu0 %v4851, 16
        %v4879 = vpop.permute.xlu0 %4878
        %4880 = vrot.lane.b32.xlu0 %v4853, 16
        %v4881 = vpop.permute.xlu0 %4880
        %vm4882 = vcmp.lt.s32.totalorder %v785, 16
        %v4883 = vsel %vm4882, %v4875, %v4879
        %v4884 = vsel %vm4882, %v4877, %v4881
        %v4885 = vsel %vm4882, %v4879, %v4875
        %v4886 = vsel %vm4882, %v4881, %v4877
        %v4887 = vperm.slane %v745, 1
        %v4888 = vperm.slane %v746, 1
        %v4889 = vmul.f32 %v4885, %v4887
        %v4890 = vmul.f32 %v4883, %v4888
        %v4891 = vmul.f32 %v4886, %v4887
        %v4892 = vmul.f32 %v4884, %v4888
        %4893 = vrot.lane.b32.xlu0 %v4739, 15
        %v4894 = vpop.permute.xlu0 %4893
        %4895 = vrot.lane.b32.xlu0 %v4741, 15
        %v4896 = vpop.permute.xlu0 %4895
        %4897 = vrot.lane.b32.xlu0 %v4851, 15
        %v4898 = vpop.permute.xlu0 %4897
        %4899 = vrot.lane.b32.xlu0 %v4853, 15
        %v4900 = vpop.permute.xlu0 %4899
        %vm4901 = vcmp.lt.s32.totalorder %v785, 15
        %v4902 = vsel %vm4901, %v4894, %v4898
        %v4903 = vsel %vm4901, %v4896, %v4900
        %v4904 = vsel %vm4901, %v4898, %v4894
        %v4905 = vsel %vm4901, %v4900, %v4896
        %v4906 = vperm.slane %v745, 2
        %v4907 = vperm.slane %v746, 2
        %v4908 = vmul.f32 %v4904, %v4906
        %v4909 = vmul.f32 %v4902, %v4907
        %v4910 = vmul.f32 %v4905, %v4906
        %v4911 = vmul.f32 %v4903, %v4907
        %4912 = vrot.lane.b32.xlu0 %v4739, 1
        %v4913 = vpop.permute.xlu0 %4912
        %4914 = vrot.lane.b32.xlu0 %v4741, 1
        %v4915 = vpop.permute.xlu0 %4914
        %4916 = vrot.lane.b32.xlu0 %v4851, 1
        %v4917 = vpop.permute.xlu0 %4916
        %4918 = vrot.lane.b32.xlu0 %v4853, 1
        %v4919 = vpop.permute.xlu0 %4918
        %v4920 = vsel %vm909, %v4913, %v4917
        %v4921 = vsel %vm909, %v4915, %v4919
        %v4922 = vsel %vm909, %v4917, %v4913
        %v4923 = vsel %vm909, %v4919, %v4915
        %v4924 = vperm.slane %v745, 3
        %v4925 = vperm.slane %v746, 3
        %v4926 = vmul.f32 %v4922, %v4924
        %v4927 = vmul.f32 %v4920, %v4925
        %v4928 = vmul.f32 %v4923, %v4924
        %v4929 = vmul.f32 %v4921, %v4925
        %4930 = vrot.lane.b32.xlu0 %v4739, 127
        %v4931 = vpop.permute.xlu0 %4930
        %4932 = vrot.lane.b32.xlu0 %v4741, 127
        %v4933 = vpop.permute.xlu0 %4932
        %4934 = vrot.lane.b32.xlu0 %v4851, 127
        %v4935 = vpop.permute.xlu0 %4934
        %4936 = vrot.lane.b32.xlu0 %v4853, 127
        %v4937 = vpop.permute.xlu0 %4936
        %v4938 = vsel %vm950, %v4931, %v4935
        %v4939 = vsel %vm950, %v4933, %v4937
        %v4940 = vsel %vm950, %v4935, %v4931
        %v4941 = vsel %vm950, %v4937, %v4933
        %v4942 = vperm.slane %v745, 5
        %v4943 = vperm.slane %v746, 5
        %v4944 = vmul.f32 %v4938, %v4942
        %v4945 = vmul.f32 %v4940, %v4943
        %v4946 = vmul.f32 %v4939, %v4942
        %v4947 = vmul.f32 %v4941, %v4943
        %4948 = vrot.lane.b32.xlu0 %v4739, 113
        %v4949 = vpop.permute.xlu0 %4948
        %4950 = vrot.lane.b32.xlu0 %v4741, 113
        %v4951 = vpop.permute.xlu0 %4950
        %4952 = vrot.lane.b32.xlu0 %v4851, 113
        %v4953 = vpop.permute.xlu0 %4952
        %4954 = vrot.lane.b32.xlu0 %v4853, 113
        %v4955 = vpop.permute.xlu0 %4954
        %vm4956 = vcmp.lt.s32.totalorder %v785, 113
        %v4957 = vsel %vm4956, %v4949, %v4953
        %v4958 = vsel %vm4956, %v4951, %v4955
        %v4959 = vsel %vm4956, %v4953, %v4949
        %v4960 = vsel %vm4956, %v4955, %v4951
        %v4961 = vperm.slane %v745, 6
        %v4962 = vperm.slane %v746, 6
        %v4963 = vmul.f32 %v4957, %v4961
        %v4964 = vmul.f32 %v4959, %v4962
        %v4965 = vmul.f32 %v4958, %v4961
        %v4966 = vmul.f32 %v4960, %v4962
        %4967 = vrot.lane.b32.xlu0 %v4739, 112
        %v4968 = vpop.permute.xlu0 %4967
        %4969 = vrot.lane.b32.xlu0 %v4741, 112
        %v4970 = vpop.permute.xlu0 %4969
        %4971 = vrot.lane.b32.xlu0 %v4851, 112
        %v4972 = vpop.permute.xlu0 %4971
        %4973 = vrot.lane.b32.xlu0 %v4853, 112
        %v4974 = vpop.permute.xlu0 %4973
        %vm4975 = vcmp.lt.s32.totalorder %v785, 112
        %v4976 = vsel %vm4975, %v4968, %v4972
        %v4977 = vsel %vm4975, %v4970, %v4974
        %v4978 = vsel %vm4975, %v4972, %v4968
        %v4979 = vsel %vm4975, %v4974, %v4970
        %v4980 = vperm.slane %v745, 7
        %v4981 = vperm.slane %v746, 7
        %v4982 = vmul.f32 %v4976, %v4980
        %v4983 = vmul.f32 %v4978, %v4981
        %v4984 = vmul.f32 %v4977, %v4980
        %v4985 = vmul.f32 %v4979, %v4981
        %4986 = vrot.lane.b32.xlu0 %v4739, 111
        %v4987 = vpop.permute.xlu0 %4986
        %4988 = vrot.lane.b32.xlu0 %v4741, 111
        %v4989 = vpop.permute.xlu0 %4988
        %4990 = vrot.lane.b32.xlu0 %v4851, 111
        %v4991 = vpop.permute.xlu0 %4990
        %4992 = vrot.lane.b32.xlu0 %v4853, 111
        %v4993 = vpop.permute.xlu0 %4992
        %vm4994 = vcmp.lt.s32.totalorder %v785, 111
        %v4995 = vsel %vm4994, %v4987, %v4991
        %v4996 = vsel %vm4994, %v4989, %v4993
        %v4997 = vsel %vm4994, %v4991, %v4987
        %v4998 = vsel %vm4994, %v4993, %v4989
        %v4999 = vperm.slane %v747, 0
        %v5000 = vperm.slane %v748, 0
        %v5001 = vmul.f32 %v4995, %v4999
        %v5002 = vmul.f32 %v4997, %v5000
        %v5003 = vmul.f32 %v4996, %v4999
        %v5004 = vmul.f32 %v4998, %v5000
        %v5005 = vpack.c.bf16 %v4872, %v4870
        %v5006 = vpack.c.bf16 %v4873, %v4871
        %v5007 = vpack.c.bf16 %v4891, %v4889
        %v5008 = vpack.c.bf16 %v4892, %v4890
        %v5009 = vpack.c.bf16 %v4910, %v4908
        %v5010 = vpack.c.bf16 %v4911, %v4909
        %v5011 = vpack.c.bf16 %v4928, %v4926
        %v5012 = vpack.c.bf16 %v4929, %v4927
        %v5013 = vpack.c.bf16 %v4741, %v4739
        %v5014 = vpack.c.bf16 %v4853, %v4851
        %v5015 = vpack.c.bf16 %v4946, %v4944
        %v5016 = vpack.c.bf16 %v4947, %v4945
        %v5017 = vpack.c.bf16 %v4965, %v4963
        %v5018 = vpack.c.bf16 %v4966, %v4964
        %v5019 = vpack.c.bf16 %v4984, %v4982
        %v5020 = vpack.c.bf16 %v4985, %v4983
        %v5021 = vpack.c.bf16 %v5003, %v5001
        %v5022 = vpack.c.bf16 %v5004, %v5002
        %v5023 = vld [vmem:[%s15] sm:$0xff]
        %v5024 = vld [vmem:[%s15 + $0x8] sm:$0xff]
        %v5025 = vld [vmem:[%s15 + $0x10] sm:$0xff]
        %v5029 = vunpack.c.l.b16 %v5023
        %v5030 = vunpack.c.h.b16 %v5023
        %v5031 = vunpack.c.l.b16 %v5024
        %v5032 = vunpack.c.h.b16 %v5024
        %v5033 = vunpack.c.l.b16 %v5025
        %v5034 = vunpack.c.h.b16 %v5025
        %v5035 = vpack.c.b16 %v5031, %v5029
        %v5036 = vpack.c.b16 %v5032, %v5030
        %v5037 = vpack.c.b16 %v5033, %v5033
        %v5038 = vpack.c.b16 %v5034, %v5034
        %vm5041 = vcmask 130048
        %v5043 = vsel %vm5041, %v5036, 0
        %v5046 = vsel %vm5041, %v5038, 0
        %5048 = vmatpush.bf16.msra.mxu0 %v5019
        %5049 = vmatpush.bf16.msra.mxu0 %v5017
        %5050 = vmatpush.bf16.msra.mxu0 %v5015
        %5051 = vmatpush.bf16.msra.mxu0 %v5013
        %5052 = vmatpush.bf16.msra.mxu0 %v5011
        %5053 = vmatpush.bf16.msra.mxu0 %v5009
        %5054 = vmatpush.bf16.msra.mxu0 %v5007
        %5055 = vmatpush.bf16.msra.mxu0 %v5005
        %5056 = vmatmul.bf16.gmra.mxu0 %v5035
        %v5057 = vpop.f32.mrf.mxu0
        %v5058 = vadd.f32 0.0, %v5057
        %v5059 = vpop.f32.mrf.mxu0
        %v5060 = vadd.f32 0.0, %v5059
        %5061 = vmatmul.bf16.gmra.mxu0 %v5037
        %v5062 = vpop.f32.mrf.mxu0
        %v5063 = vadd.f32 0.0, %v5062
        %v5064 = vpop.f32.mrf.mxu0
        %5065 = vdwg.mxu0
        %5066 = vmatpush.bf16.msra.mxu0 0
        %5067 = vmatpush.bf16.msra.mxu0 0
        %5068 = vmatpush.bf16.msra.mxu0 0
        %5069 = vmatpush.bf16.msra.mxu0 0
        %5070 = vmatpush.bf16.msra.mxu0 0
        %5071 = vmatpush.bf16.msra.mxu0 0
        %5072 = vmatpush.bf16.msra.mxu0 0
        %5073 = vmatpush.bf16.msra.mxu0 %v5021
        %5074 = vmatmul.bf16.gmra.mxu0 %v5043
        %v5075 = vpop.f32.mrf.mxu0
        %v5076 = vadd.f32 %v5058, %v5075
        %v5077 = vpop.f32.mrf.mxu0
        %v5078 = vadd.f32 %v5060, %v5077
        %5079 = vmatmul.bf16.gmra.mxu0 %v5046
        %v5080 = vpop.f32.mrf.mxu0
        %v5081 = vadd.f32 %v5063, %v5080
        %v5082 = vpop.f32.mrf.mxu0
        %5083 = vdwg.mxu0
        %5084 = vmatpush.bf16.msra.mxu0 %v5020
        %5085 = vmatpush.bf16.msra.mxu0 %v5018
        %5086 = vmatpush.bf16.msra.mxu0 %v5016
        %5087 = vmatpush.bf16.msra.mxu0 %v5014
        %5088 = vmatpush.bf16.msra.mxu0 %v5012
        %5089 = vmatpush.bf16.msra.mxu0 %v5010
        %5090 = vmatpush.bf16.msra.mxu0 %v5008
        %5091 = vmatpush.bf16.msra.mxu0 %v5006
        %5092 = vmatmul.bf16.gmra.mxu0 %v5035
        %v5093 = vpop.f32.mrf.mxu0
        %v5094 = vadd.f32 0.0, %v5093
        %v5095 = vpop.f32.mrf.mxu0
        %v5096 = vadd.f32 0.0, %v5095
        %5097 = vmatmul.bf16.gmra.mxu0 %v5037
        %v5098 = vpop.f32.mrf.mxu0
        %v5099 = vadd.f32 0.0, %v5098
        %v5100 = vpop.f32.mrf.mxu0
        %5101 = vdwg.mxu0
        %5102 = vmatpush.bf16.msra.mxu0 0
        %5103 = vmatpush.bf16.msra.mxu0 0
        %5104 = vmatpush.bf16.msra.mxu0 0
        %5105 = vmatpush.bf16.msra.mxu0 0
        %5106 = vmatpush.bf16.msra.mxu0 0
        %5107 = vmatpush.bf16.msra.mxu0 0
        %5108 = vmatpush.bf16.msra.mxu0 0
        %5109 = vmatpush.bf16.msra.mxu0 %v5022
        %5110 = vmatmul.bf16.gmra.mxu0 %v5043
        %v5111 = vpop.f32.mrf.mxu0
        %v5112 = vadd.f32 %v5094, %v5111
        %v5113 = vpop.f32.mrf.mxu0
        %v5114 = vadd.f32 %v5096, %v5113
        %5115 = vmatmul.bf16.gmra.mxu0 %v5046
        %v5116 = vpop.f32.mrf.mxu0
        %v5117 = vadd.f32 %v5099, %v5116
        %v5118 = vpop.f32.mrf.mxu0
        %5119 = vdwg.mxu0
        %s5120 = scalar_lea.vmem %s8, 24
        %v5121 = vld [vmem:[%s5120] sm:$0xff]
        %v5122 = vld [vmem:[%s5120 + $0x8] sm:$0xff]
        %v5123 = vld [vmem:[%s5120 + $0x10] sm:$0xff]
        %s5124 = scalar_lea.vmem %s9, 24
        %v5125 = vld [vmem:[%s5124] sm:$0xff]
        %v5126 = vld [vmem:[%s5124 + $0x8] sm:$0xff]
        %v5127 = vld [vmem:[%s5124 + $0x10] sm:$0xff]
        %v5128 = vmax.f32 %v5076, 0.0
        %v5129 = vmax.f32 %v5112, 0.0
        %v5130 = vmax.f32 %v5078, 0.0
        %v5131 = vmax.f32 %v5114, 0.0
        %v5132 = vmax.f32 %v5081, 0.0
        %v5133 = vmax.f32 %v5117, 0.0
        %v5134 = vmul.f32 %v5128, %v5128
        %v5135 = vmul.f32 %v5130, %v5130
        %v5136 = vmul.f32 %v5132, %v5132
        %v5137 = vadd.f32 %v5128, %v5129
        %v5138 = vadd.f32 %v5130, %v5131
        %v5139 = vadd.f32 %v5132, %v5133
        %v5140 = vmul.f32 %v5129, %v5129
        %v5141 = vmul.f32 %v5131, %v5131
        %v5142 = vmul.f32 %v5133, %v5133
        %v5143 = vadd.f32 %v5134, %v5140
        %v5144 = vadd.f32 %v5135, %v5141
        %v5145 = vadd.f32 %v5136, %v5142
        %5146 = vmatpush.msra.mxu0 0.0
        %5147 = vmatpush.msra.mxu0 0.0
        %5148 = vmatpush.msra.mxu0 0.0
        %5149 = vmatpush.msra.mxu0 0.0
        %5150 = vmatpush.msra.mxu0 0.0
        %5151 = vmatpush.msra.mxu0 0.0
        %5152 = vmatpush.msra.mxu0 0.0
        %5153 = vmatpush.msra.mxu0 0.0
        %5154 = vmatpush.msra.mxu0 0.0
        %5155 = vmatpush.msra.mxu0 0.0
        %5156 = vmatpush.msra.mxu0 0.0
        %5157 = vmatpush.msra.mxu0 0.0
        %5158 = vmatpush.msra.mxu0 0.0
        %5159 = vmatpush.msra.mxu0 %v5139
        %5160 = vmatpush.msra.mxu0 %v5138
        %5161 = vmatpush.msra.mxu0 %v5137
        %5162 = vmatmul.f32.gmra.mxu0 %v1423
        %v5163 = vpop.f32.mrf.mxu0
        %v5164 = vadd.f32 0.0, %v5163
        %5165 = vmatmul.f32.gmra.mxu0 %v1426
        %v5166 = vpop.f32.mrf.mxu0
        %v5167 = vadd.f32 0.0, %v5166
        %5168 = vmatmul.f32.gmra.mxu0 %v1429
        %v5169 = vpop.f32.mrf.mxu0
        %v5170 = vadd.f32 0.0, %v5169
        %5171 = vdwg.mxu0
        %5172 = vadd.xlane.f32.xlu0 %v5164
        %v5173 = vpop.xlane.xlu0 %5172
        %5174 = vadd.xlane.f32.xlu0 %v5167
        %v5175 = vpop.xlane.xlu0 %5174
        %5176 = vadd.xlane.f32.xlu0 %v5170
        %v5177 = vpop.xlane.xlu0 %5176
        %5178 = vmatpush.msra.mxu0 0.0
        %5179 = vmatpush.msra.mxu0 0.0
        %5180 = vmatpush.msra.mxu0 0.0
        %5181 = vmatpush.msra.mxu0 0.0
        %5182 = vmatpush.msra.mxu0 0.0
        %5183 = vmatpush.msra.mxu0 0.0
        %5184 = vmatpush.msra.mxu0 0.0
        %5185 = vmatpush.msra.mxu0 0.0
        %5186 = vmatpush.msra.mxu0 0.0
        %5187 = vmatpush.msra.mxu0 0.0
        %5188 = vmatpush.msra.mxu0 0.0
        %5189 = vmatpush.msra.mxu0 0.0
        %5190 = vmatpush.msra.mxu0 0.0
        %5191 = vmatpush.msra.mxu0 %v5145
        %5192 = vmatpush.msra.mxu0 %v5144
        %5193 = vmatpush.msra.mxu0 %v5143
        %5194 = vmatmul.f32.gmra.mxu0 %v1423
        %v5195 = vpop.f32.mrf.mxu0
        %v5196 = vadd.f32 0.0, %v5195
        %5197 = vmatmul.f32.gmra.mxu0 %v1426
        %v5198 = vpop.f32.mrf.mxu0
        %v5199 = vadd.f32 0.0, %v5198
        %5200 = vmatmul.f32.gmra.mxu0 %v1429
        %v5201 = vpop.f32.mrf.mxu0
        %v5202 = vadd.f32 0.0, %v5201
        %5203 = vdwg.mxu0
        %5204 = vadd.xlane.f32.xlu0 %v5196
        %v5205 = vpop.xlane.xlu0 %5204
        %5206 = vadd.xlane.f32.xlu0 %v5199
        %v5207 = vpop.xlane.xlu0 %5206
        %5208 = vadd.xlane.f32.xlu0 %v5202
        %v5209 = vpop.xlane.xlu0 %5208
        %v5210 = vmul.f32 %v5173, 0.0006510417
        %v5211 = vmul.f32 %v5175, 0.0006510417
        %v5212 = vmul.f32 %v5177, 0.0006510417
        %v5213 = vmul.f32 %v5205, 0.0006510417
        %v5214 = vmul.f32 %v5207, 0.0006510417
        %v5215 = vmul.f32 %v5209, 0.0006510417
        %v5216 = vmul.f32 %v5210, %v5210
        %v5217 = vmul.f32 %v5211, %v5211
        %v5218 = vmul.f32 %v5212, %v5212
        %v5219 = vsub.f32 %v5213, %v5216
        %v5220 = vsub.f32 %v5214, %v5217
        %v5221 = vsub.f32 %v5215, %v5218
        %v5222 = vadd.f32 %v5219, 1e-05
        %v5223 = vadd.f32 %v5220, 1e-05
        %v5224 = vadd.f32 %v5221, 1e-05
        %v5225 = vrsqrt.pop %v5222
        %v5226 = vmul.f32 %v5225, %v5222
        %v5227 = vmul.f32 %v5226, %v5225
        %v5228 = vmul.f32 0.5, %v5227
        %v5229 = vsub.f32 1.5, %v5228
        %v5230 = vmul.f32 %v5225, %v5229
        %vm5231 = vweird.f32 %v5222
        %vm5232 = vweird.f32 %v5225
        %vm5233 = vmor %vm5231, %vm5232
        %v5234 = vsel %vm5233, %v5225, %v5230
        %v5235 = vrsqrt.pop %v5223
        %v5236 = vmul.f32 %v5235, %v5223
        %v5237 = vmul.f32 %v5236, %v5235
        %v5238 = vmul.f32 0.5, %v5237
        %v5239 = vsub.f32 1.5, %v5238
        %v5240 = vmul.f32 %v5235, %v5239
        %vm5241 = vweird.f32 %v5223
        %vm5242 = vweird.f32 %v5235
        %vm5243 = vmor %vm5241, %vm5242
        %v5244 = vsel %vm5243, %v5235, %v5240
        %v5245 = vrsqrt.pop %v5224
        %v5246 = vmul.f32 %v5245, %v5224
        %v5247 = vmul.f32 %v5246, %v5245
        %v5248 = vmul.f32 0.5, %v5247
        %v5249 = vsub.f32 1.5, %v5248
        %v5250 = vmul.f32 %v5245, %v5249
        %vm5251 = vweird.f32 %v5224
        %vm5252 = vweird.f32 %v5245
        %vm5253 = vmor %vm5251, %vm5252
        %v5254 = vsel %vm5253, %v5245, %v5250
        %v5255 = vmul.f32 %v5234, %v5121
        %v5256 = vmul.f32 %v5244, %v5122
        %v5257 = vmul.f32 %v5254, %v5123
        %v5258 = vsub.f32 %v5128, %v5210
        %v5259 = vsub.f32 %v5129, %v5210
        %v5260 = vsub.f32 %v5130, %v5211
        %v5261 = vsub.f32 %v5131, %v5211
        %v5262 = vsub.f32 %v5132, %v5212
        %v5263 = vsub.f32 %v5133, %v5212
        %5265 = vset.pattern.permute.xlu0 0
        %5266 = vperm.xlu0 %5265, %v5255
        %v5267 = vpop.permute.xlu0 %5266
        %5270 = vset.pattern.permute.xlu0 0
        %5271 = vperm.xlu0 %5270, %v5256
        %v5272 = vpop.permute.xlu0 %5271
        %5275 = vset.pattern.permute.xlu0 0
        %5276 = vperm.xlu0 %5275, %v5257
        %v5277 = vpop.permute.xlu0 %5276
        %v5279 = vmul.f32 %v5258, %v5267
        %v5280 = vmul.f32 %v5259, %v5267
        %v5281 = vmul.f32 %v5260, %v5272
        %v5282 = vmul.f32 %v5261, %v5272
        %v5283 = vmul.f32 %v5262, %v5277
        %v5284 = vmul.f32 %v5263, %v5277
        %5286 = vset.pattern.permute.xlu0 0
        %5287 = vperm.xlu0 %5286, %v5125
        %v5288 = vpop.permute.xlu0 %5287
        %5291 = vset.pattern.permute.xlu0 0
        %5292 = vperm.xlu0 %5291, %v5126
        %v5293 = vpop.permute.xlu0 %5292
        %5296 = vset.pattern.permute.xlu0 0
        %5297 = vperm.xlu0 %5296, %v5127
        %v5298 = vpop.permute.xlu0 %5297
        %v5300 = vadd.f32 %v5279, %v5288
        %v5301 = vadd.f32 %v5280, %v5288
        %v5302 = vadd.f32 %v5281, %v5293
        %v5303 = vadd.f32 %v5282, %v5293
        %v5304 = vadd.f32 %v5283, %v5298
        %v5305 = vadd.f32 %v5284, %v5298
        %5306 = vrot.lane.b32.xlu0 %v5300, 17
        %v5307 = vpop.permute.xlu0 %5306
        %5308 = vrot.lane.b32.xlu0 %v5302, 17
        %v5309 = vpop.permute.xlu0 %5308
        %5310 = vrot.lane.b32.xlu0 %v5304, 17
        %v5311 = vpop.permute.xlu0 %5310
        %5312 = vrot.lane.b32.xlu0 %v5301, 17
        %v5313 = vpop.permute.xlu0 %5312
        %5314 = vrot.lane.b32.xlu0 %v5303, 17
        %v5315 = vpop.permute.xlu0 %5314
        %5316 = vrot.lane.b32.xlu0 %v5305, 17
        %v5317 = vpop.permute.xlu0 %5316
        %v5318 = vsel %vm4863, %v5307, %v5313
        %v5319 = vsel %vm4863, %v5309, %v5315
        %v5320 = vsel %vm4863, %v5311, %v5317
        %v5321 = vsel %vm4863, %v5313, %v5307
        %v5322 = vsel %vm4863, %v5315, %v5309
        %v5323 = vsel %vm4863, %v5317, %v5311
        %v5324 = vmul.f32 %v5321, %v4868
        %v5325 = vmul.f32 %v5318, %v4869
        %v5326 = vmul.f32 %v5322, %v4868
        %v5327 = vmul.f32 %v5319, %v4869
        %v5328 = vmul.f32 %v5323, %v4868
        %v5329 = vmul.f32 %v5320, %v4869
        %5330 = vrot.lane.b32.xlu0 %v5300, 16
        %v5331 = vpop.permute.xlu0 %5330
        %5332 = vrot.lane.b32.xlu0 %v5302, 16
        %v5333 = vpop.permute.xlu0 %5332
        %5334 = vrot.lane.b32.xlu0 %v5304, 16
        %v5335 = vpop.permute.xlu0 %5334
        %5336 = vrot.lane.b32.xlu0 %v5301, 16
        %v5337 = vpop.permute.xlu0 %5336
        %5338 = vrot.lane.b32.xlu0 %v5303, 16
        %v5339 = vpop.permute.xlu0 %5338
        %5340 = vrot.lane.b32.xlu0 %v5305, 16
        %v5341 = vpop.permute.xlu0 %5340
        %v5342 = vsel %vm4882, %v5331, %v5337
        %v5343 = vsel %vm4882, %v5333, %v5339
        %v5344 = vsel %vm4882, %v5335, %v5341
        %v5345 = vsel %vm4882, %v5337, %v5331
        %v5346 = vsel %vm4882, %v5339, %v5333
        %v5347 = vsel %vm4882, %v5341, %v5335
        %v5348 = vmul.f32 %v5345, %v4887
        %v5349 = vmul.f32 %v5342, %v4888
        %v5350 = vmul.f32 %v5346, %v4887
        %v5351 = vmul.f32 %v5343, %v4888
        %v5352 = vmul.f32 %v5347, %v4887
        %v5353 = vmul.f32 %v5344, %v4888
        %5354 = vrot.lane.b32.xlu0 %v5300, 15
        %v5355 = vpop.permute.xlu0 %5354
        %5356 = vrot.lane.b32.xlu0 %v5302, 15
        %v5357 = vpop.permute.xlu0 %5356
        %5358 = vrot.lane.b32.xlu0 %v5304, 15
        %v5359 = vpop.permute.xlu0 %5358
        %5360 = vrot.lane.b32.xlu0 %v5301, 15
        %v5361 = vpop.permute.xlu0 %5360
        %5362 = vrot.lane.b32.xlu0 %v5303, 15
        %v5363 = vpop.permute.xlu0 %5362
        %5364 = vrot.lane.b32.xlu0 %v5305, 15
        %v5365 = vpop.permute.xlu0 %5364
        %v5366 = vsel %vm4901, %v5355, %v5361
        %v5367 = vsel %vm4901, %v5357, %v5363
        %v5368 = vsel %vm4901, %v5359, %v5365
        %v5369 = vsel %vm4901, %v5361, %v5355
        %v5370 = vsel %vm4901, %v5363, %v5357
        %v5371 = vsel %vm4901, %v5365, %v5359
        %v5372 = vmul.f32 %v5369, %v4906
        %v5373 = vmul.f32 %v5366, %v4907
        %v5374 = vmul.f32 %v5370, %v4906
        %v5375 = vmul.f32 %v5367, %v4907
        %v5376 = vmul.f32 %v5371, %v4906
        %v5377 = vmul.f32 %v5368, %v4907
        %5378 = vrot.lane.b32.xlu0 %v5300, 1
        %v5379 = vpop.permute.xlu0 %5378
        %5380 = vrot.lane.b32.xlu0 %v5302, 1
        %v5381 = vpop.permute.xlu0 %5380
        %5382 = vrot.lane.b32.xlu0 %v5304, 1
        %v5383 = vpop.permute.xlu0 %5382
        %5384 = vrot.lane.b32.xlu0 %v5301, 1
        %v5385 = vpop.permute.xlu0 %5384
        %5386 = vrot.lane.b32.xlu0 %v5303, 1
        %v5387 = vpop.permute.xlu0 %5386
        %5388 = vrot.lane.b32.xlu0 %v5305, 1
        %v5389 = vpop.permute.xlu0 %5388
        %v5390 = vsel %vm909, %v5379, %v5385
        %v5391 = vsel %vm909, %v5381, %v5387
        %v5392 = vsel %vm909, %v5383, %v5389
        %v5393 = vsel %vm909, %v5385, %v5379
        %v5394 = vsel %vm909, %v5387, %v5381
        %v5395 = vsel %vm909, %v5389, %v5383
        %v5396 = vmul.f32 %v5393, %v4924
        %v5397 = vmul.f32 %v5390, %v4925
        %v5398 = vmul.f32 %v5394, %v4924
        %v5399 = vmul.f32 %v5391, %v4925
        %v5400 = vmul.f32 %v5395, %v4924
        %v5401 = vmul.f32 %v5392, %v4925
        %5402 = vrot.lane.b32.xlu0 %v5300, 127
        %v5403 = vpop.permute.xlu0 %5402
        %5404 = vrot.lane.b32.xlu0 %v5302, 127
        %v5405 = vpop.permute.xlu0 %5404
        %5406 = vrot.lane.b32.xlu0 %v5304, 127
        %v5407 = vpop.permute.xlu0 %5406
        %5408 = vrot.lane.b32.xlu0 %v5301, 127
        %v5409 = vpop.permute.xlu0 %5408
        %5410 = vrot.lane.b32.xlu0 %v5303, 127
        %v5411 = vpop.permute.xlu0 %5410
        %5412 = vrot.lane.b32.xlu0 %v5305, 127
        %v5413 = vpop.permute.xlu0 %5412
        %v5414 = vsel %vm950, %v5403, %v5409
        %v5415 = vsel %vm950, %v5405, %v5411
        %v5416 = vsel %vm950, %v5407, %v5413
        %v5417 = vsel %vm950, %v5409, %v5403
        %v5418 = vsel %vm950, %v5411, %v5405
        %v5419 = vsel %vm950, %v5413, %v5407
        %v5420 = vmul.f32 %v5414, %v4942
        %v5421 = vmul.f32 %v5417, %v4943
        %v5422 = vmul.f32 %v5415, %v4942
        %v5423 = vmul.f32 %v5418, %v4943
        %v5424 = vmul.f32 %v5416, %v4942
        %v5425 = vmul.f32 %v5419, %v4943
        %5426 = vrot.lane.b32.xlu0 %v5300, 113
        %v5427 = vpop.permute.xlu0 %5426
        %5428 = vrot.lane.b32.xlu0 %v5302, 113
        %v5429 = vpop.permute.xlu0 %5428
        %5430 = vrot.lane.b32.xlu0 %v5304, 113
        %v5431 = vpop.permute.xlu0 %5430
        %5432 = vrot.lane.b32.xlu0 %v5301, 113
        %v5433 = vpop.permute.xlu0 %5432
        %5434 = vrot.lane.b32.xlu0 %v5303, 113
        %v5435 = vpop.permute.xlu0 %5434
        %5436 = vrot.lane.b32.xlu0 %v5305, 113
        %v5437 = vpop.permute.xlu0 %5436
        %v5438 = vsel %vm4956, %v5427, %v5433
        %v5439 = vsel %vm4956, %v5429, %v5435
        %v5440 = vsel %vm4956, %v5431, %v5437
        %v5441 = vsel %vm4956, %v5433, %v5427
        %v5442 = vsel %vm4956, %v5435, %v5429
        %v5443 = vsel %vm4956, %v5437, %v5431
        %v5444 = vmul.f32 %v5438, %v4961
        %v5445 = vmul.f32 %v5441, %v4962
        %v5446 = vmul.f32 %v5439, %v4961
        %v5447 = vmul.f32 %v5442, %v4962
        %v5448 = vmul.f32 %v5440, %v4961
        %v5449 = vmul.f32 %v5443, %v4962
        %5450 = vrot.lane.b32.xlu0 %v5300, 112
        %v5451 = vpop.permute.xlu0 %5450
        %5452 = vrot.lane.b32.xlu0 %v5302, 112
        %v5453 = vpop.permute.xlu0 %5452
        %5454 = vrot.lane.b32.xlu0 %v5304, 112
        %v5455 = vpop.permute.xlu0 %5454
        %5456 = vrot.lane.b32.xlu0 %v5301, 112
        %v5457 = vpop.permute.xlu0 %5456
        %5458 = vrot.lane.b32.xlu0 %v5303, 112
        %v5459 = vpop.permute.xlu0 %5458
        %5460 = vrot.lane.b32.xlu0 %v5305, 112
        %v5461 = vpop.permute.xlu0 %5460
        %v5462 = vsel %vm4975, %v5451, %v5457
        %v5463 = vsel %vm4975, %v5453, %v5459
        %v5464 = vsel %vm4975, %v5455, %v5461
        %v5465 = vsel %vm4975, %v5457, %v5451
        %v5466 = vsel %vm4975, %v5459, %v5453
        %v5467 = vsel %vm4975, %v5461, %v5455
        %v5468 = vmul.f32 %v5462, %v4980
        %v5469 = vmul.f32 %v5465, %v4981
        %v5470 = vmul.f32 %v5463, %v4980
        %v5471 = vmul.f32 %v5466, %v4981
        %v5472 = vmul.f32 %v5464, %v4980
        %v5473 = vmul.f32 %v5467, %v4981
        %5474 = vrot.lane.b32.xlu0 %v5300, 111
        %v5475 = vpop.permute.xlu0 %5474
        %5476 = vrot.lane.b32.xlu0 %v5302, 111
        %v5477 = vpop.permute.xlu0 %5476
        %5478 = vrot.lane.b32.xlu0 %v5304, 111
        %v5479 = vpop.permute.xlu0 %5478
        %5480 = vrot.lane.b32.xlu0 %v5301, 111
        %v5481 = vpop.permute.xlu0 %5480
        %5482 = vrot.lane.b32.xlu0 %v5303, 111
        %v5483 = vpop.permute.xlu0 %5482
        %5484 = vrot.lane.b32.xlu0 %v5305, 111
        %v5485 = vpop.permute.xlu0 %5484
        %v5486 = vsel %vm4994, %v5475, %v5481
        %v5487 = vsel %vm4994, %v5477, %v5483
        %v5488 = vsel %vm4994, %v5479, %v5485
        %v5489 = vsel %vm4994, %v5481, %v5475
        %v5490 = vsel %vm4994, %v5483, %v5477
        %v5491 = vsel %vm4994, %v5485, %v5479
        %v5492 = vmul.f32 %v5486, %v4999
        %v5493 = vmul.f32 %v5489, %v5000
        %v5494 = vmul.f32 %v5487, %v4999
        %v5495 = vmul.f32 %v5490, %v5000
        %v5496 = vmul.f32 %v5488, %v4999
        %v5497 = vmul.f32 %v5491, %v5000
        %v5498 = vpack.c.bf16 %v5326, %v5324
        %v5499 = vpack.c.bf16 %v5327, %v5325
        %v5500 = vpack.c.bf16 %v5348, %v5328
        %v5501 = vpack.c.bf16 %v5349, %v5329
        %v5502 = vpack.c.bf16 %v5352, %v5350
        %v5503 = vpack.c.bf16 %v5353, %v5351
        %v5504 = vpack.c.bf16 %v5374, %v5372
        %v5505 = vpack.c.bf16 %v5375, %v5373
        %v5506 = vpack.c.bf16 %v5396, %v5376
        %v5507 = vpack.c.bf16 %v5397, %v5377
        %v5508 = vpack.c.bf16 %v5400, %v5398
        %v5509 = vpack.c.bf16 %v5401, %v5399
        %v5510 = vpack.c.bf16 %v5302, %v5300
        %v5511 = vpack.c.bf16 %v5303, %v5301
        %v5512 = vpack.c.bf16 %v5420, %v5304
        %v5513 = vpack.c.bf16 %v5421, %v5305
        %v5514 = vpack.c.bf16 %v5424, %v5422
        %v5515 = vpack.c.bf16 %v5425, %v5423
        %v5516 = vpack.c.bf16 %v5446, %v5444
        %v5517 = vpack.c.bf16 %v5447, %v5445
        %v5518 = vpack.c.bf16 %v5468, %v5448
        %v5519 = vpack.c.bf16 %v5469, %v5449
        %v5520 = vpack.c.bf16 %v5472, %v5470
        %v5521 = vpack.c.bf16 %v5473, %v5471
        %v5522 = vpack.c.bf16 %v5494, %v5492
        %v5523 = vpack.c.bf16 %v5495, %v5493
        %v5524 = vpack.c.bf16 %v5496, %v5496
        %v5525 = vpack.c.bf16 %v5497, %v5497
        %v5526 = vld [vmem:[%s16] sm:$0xff]
        %v5527 = vld [vmem:[%s16 + $0x8] sm:$0xff]
        %v5528 = vld [vmem:[%s16 + $0x10] sm:$0xff]
        %v5532 = vunpack.c.l.b16 %v5526
        %v5533 = vunpack.c.h.b16 %v5526
        %v5534 = vunpack.c.l.b16 %v5527
        %v5535 = vunpack.c.h.b16 %v5527
        %v5536 = vunpack.c.l.b16 %v5528
        %v5537 = vunpack.c.h.b16 %v5528
        %v5538 = vpack.c.b16 %v5534, %v5532
        %v5539 = vpack.c.b16 %v5535, %v5533
        %v5540 = vpack.c.b16 %v5536, %v5536
        %v5541 = vpack.c.b16 %v5537, %v5537
        %v5545 = vsel %vm2558, %v5539, 0
        %v5548 = vsel %vm2558, %v5541, 0
        %v5551 = vsel %vm1156, %v5524, 0
        %v5554 = vsel %vm1156, %v5525, 0
        %5556 = vmatpush.bf16.msra.mxu0 %v5512
        %5557 = vmatpush.bf16.msra.mxu0 %v5510
        %5558 = vmatpush.bf16.msra.mxu0 %v5508
        %5559 = vmatpush.bf16.msra.mxu0 %v5506
        %5560 = vmatpush.bf16.msra.mxu0 %v5504
        %5561 = vmatpush.bf16.msra.mxu0 %v5502
        %5562 = vmatpush.bf16.msra.mxu0 %v5500
        %5563 = vmatpush.bf16.msra.mxu0 %v5498
        %5564 = vmatmul.bf16.gmra.mxu0 %v5538
        %v5565 = vpop.f32.mrf.mxu0
        %v5566 = vadd.f32 0.0, %v5565
        %v5567 = vpop.f32.mrf.mxu0
        %v5568 = vadd.f32 0.0, %v5567
        %5569 = vmatmul.bf16.gmra.mxu0 %v5540
        %v5570 = vpop.f32.mrf.mxu0
        %v5571 = vadd.f32 0.0, %v5570
        %v5572 = vpop.f32.mrf.mxu0
        %5573 = vdwg.mxu0
        %5574 = vmatpush.bf16.msra.mxu0 0
        %5575 = vmatpush.bf16.msra.mxu0 0
        %5576 = vmatpush.bf16.msra.mxu0 %v5551
        %5577 = vmatpush.bf16.msra.mxu0 %v5522
        %5578 = vmatpush.bf16.msra.mxu0 %v5520
        %5579 = vmatpush.bf16.msra.mxu0 %v5518
        %5580 = vmatpush.bf16.msra.mxu0 %v5516
        %5581 = vmatpush.bf16.msra.mxu0 %v5514
        %5582 = vmatmul.bf16.gmra.mxu0 %v5545
        %v5583 = vpop.f32.mrf.mxu0
        %v5584 = vadd.f32 %v5566, %v5583
        %v5585 = vpop.f32.mrf.mxu0
        %v5586 = vadd.f32 %v5568, %v5585
        %5587 = vmatmul.bf16.gmra.mxu0 %v5548
        %v5588 = vpop.f32.mrf.mxu0
        %v5589 = vadd.f32 %v5571, %v5588
        %v5590 = vpop.f32.mrf.mxu0
        %5591 = vdwg.mxu0
        %5592 = vmatpush.bf16.msra.mxu0 %v5513
        %5593 = vmatpush.bf16.msra.mxu0 %v5511
        %5594 = vmatpush.bf16.msra.mxu0 %v5509
        %5595 = vmatpush.bf16.msra.mxu0 %v5507
        %5596 = vmatpush.bf16.msra.mxu0 %v5505
        %5597 = vmatpush.bf16.msra.mxu0 %v5503
        %5598 = vmatpush.bf16.msra.mxu0 %v5501
        %5599 = vmatpush.bf16.msra.mxu0 %v5499
        %5600 = vmatmul.bf16.gmra.mxu0 %v5538
        %v5601 = vpop.f32.mrf.mxu0
        %v5602 = vadd.f32 0.0, %v5601
        %v5603 = vpop.f32.mrf.mxu0
        %v5604 = vadd.f32 0.0, %v5603
        %5605 = vmatmul.bf16.gmra.mxu0 %v5540
        %v5606 = vpop.f32.mrf.mxu0
        %v5607 = vadd.f32 0.0, %v5606
        %v5608 = vpop.f32.mrf.mxu0
        %5609 = vdwg.mxu0
        %5610 = vmatpush.bf16.msra.mxu0 0
        %5611 = vmatpush.bf16.msra.mxu0 0
        %5612 = vmatpush.bf16.msra.mxu0 %v5554
        %5613 = vmatpush.bf16.msra.mxu0 %v5523
        %5614 = vmatpush.bf16.msra.mxu0 %v5521
        %5615 = vmatpush.bf16.msra.mxu0 %v5519
        %5616 = vmatpush.bf16.msra.mxu0 %v5517
        %5617 = vmatpush.bf16.msra.mxu0 %v5515
        %5618 = vmatmul.bf16.gmra.mxu0 %v5545
        %v5619 = vpop.f32.mrf.mxu0
        %v5620 = vadd.f32 %v5602, %v5619
        %v5621 = vpop.f32.mrf.mxu0
        %v5622 = vadd.f32 %v5604, %v5621
        %5623 = vmatmul.bf16.gmra.mxu0 %v5548
        %v5624 = vpop.f32.mrf.mxu0
        %v5625 = vadd.f32 %v5607, %v5624
        %v5626 = vpop.f32.mrf.mxu0
        %5627 = vdwg.mxu0
        %s5628 = scalar_lea.vmem %s8, 48
        %v5629 = vld [vmem:[%s5628] sm:$0xff]
        %v5630 = vld [vmem:[%s5628 + $0x8] sm:$0xff]
        %v5631 = vld [vmem:[%s5628 + $0x10] sm:$0xff]
        %s5632 = scalar_lea.vmem %s9, 48
        %v5633 = vld [vmem:[%s5632] sm:$0xff]
        %v5634 = vld [vmem:[%s5632 + $0x8] sm:$0xff]
        %v5635 = vld [vmem:[%s5632 + $0x10] sm:$0xff]
        %v5636 = vmax.f32 %v5584, 0.0
        %v5637 = vmax.f32 %v5620, 0.0
        %v5638 = vmax.f32 %v5586, 0.0
        %v5639 = vmax.f32 %v5622, 0.0
        %v5640 = vmax.f32 %v5589, 0.0
        %v5641 = vmax.f32 %v5625, 0.0
        %v5642 = vmul.f32 %v5636, %v5636
        %v5643 = vmul.f32 %v5638, %v5638
        %v5644 = vmul.f32 %v5640, %v5640
        %v5645 = vadd.f32 %v5636, %v5637
        %v5646 = vadd.f32 %v5638, %v5639
        %v5647 = vadd.f32 %v5640, %v5641
        %v5648 = vmul.f32 %v5637, %v5637
        %v5649 = vmul.f32 %v5639, %v5639
        %v5650 = vmul.f32 %v5641, %v5641
        %v5651 = vadd.f32 %v5642, %v5648
        %v5652 = vadd.f32 %v5643, %v5649
        %v5653 = vadd.f32 %v5644, %v5650
        %5654 = vmatpush.msra.mxu0 0.0
        %5655 = vmatpush.msra.mxu0 0.0
        %5656 = vmatpush.msra.mxu0 0.0
        %5657 = vmatpush.msra.mxu0 0.0
        %5658 = vmatpush.msra.mxu0 0.0
        %5659 = vmatpush.msra.mxu0 0.0
        %5660 = vmatpush.msra.mxu0 0.0
        %5661 = vmatpush.msra.mxu0 0.0
        %5662 = vmatpush.msra.mxu0 0.0
        %5663 = vmatpush.msra.mxu0 0.0
        %5664 = vmatpush.msra.mxu0 0.0
        %5665 = vmatpush.msra.mxu0 0.0
        %5666 = vmatpush.msra.mxu0 0.0
        %5667 = vmatpush.msra.mxu0 %v5647
        %5668 = vmatpush.msra.mxu0 %v5646
        %5669 = vmatpush.msra.mxu0 %v5645
        %5670 = vmatmul.f32.gmra.mxu0 %v1423
        %v5671 = vpop.f32.mrf.mxu0
        %v5672 = vadd.f32 0.0, %v5671
        %5673 = vmatmul.f32.gmra.mxu0 %v1426
        %v5674 = vpop.f32.mrf.mxu0
        %v5675 = vadd.f32 0.0, %v5674
        %5676 = vmatmul.f32.gmra.mxu0 %v1429
        %v5677 = vpop.f32.mrf.mxu0
        %v5678 = vadd.f32 0.0, %v5677
        %5679 = vdwg.mxu0
        %5680 = vadd.xlane.f32.xlu0 %v5672
        %v5681 = vpop.xlane.xlu0 %5680
        %5682 = vadd.xlane.f32.xlu0 %v5675
        %v5683 = vpop.xlane.xlu0 %5682
        %5684 = vadd.xlane.f32.xlu0 %v5678
        %v5685 = vpop.xlane.xlu0 %5684
        %5686 = vmatpush.msra.mxu0 0.0
        %5687 = vmatpush.msra.mxu0 0.0
        %5688 = vmatpush.msra.mxu0 0.0
        %5689 = vmatpush.msra.mxu0 0.0
        %5690 = vmatpush.msra.mxu0 0.0
        %5691 = vmatpush.msra.mxu0 0.0
        %5692 = vmatpush.msra.mxu0 0.0
        %5693 = vmatpush.msra.mxu0 0.0
        %5694 = vmatpush.msra.mxu0 0.0
        %5695 = vmatpush.msra.mxu0 0.0
        %5696 = vmatpush.msra.mxu0 0.0
        %5697 = vmatpush.msra.mxu0 0.0
        %5698 = vmatpush.msra.mxu0 0.0
        %5699 = vmatpush.msra.mxu0 %v5653
        %5700 = vmatpush.msra.mxu0 %v5652
        %5701 = vmatpush.msra.mxu0 %v5651
        %5702 = vmatmul.f32.gmra.mxu0 %v1423
        %v5703 = vpop.f32.mrf.mxu0
        %v5704 = vadd.f32 0.0, %v5703
        %5705 = vmatmul.f32.gmra.mxu0 %v1426
        %v5706 = vpop.f32.mrf.mxu0
        %v5707 = vadd.f32 0.0, %v5706
        %5708 = vmatmul.f32.gmra.mxu0 %v1429
        %v5709 = vpop.f32.mrf.mxu0
        %v5710 = vadd.f32 0.0, %v5709
        %5711 = vdwg.mxu0
        %5712 = vadd.xlane.f32.xlu0 %v5704
        %v5713 = vpop.xlane.xlu0 %5712
        %5714 = vadd.xlane.f32.xlu0 %v5707
        %v5715 = vpop.xlane.xlu0 %5714
        %5716 = vadd.xlane.f32.xlu0 %v5710
        %v5717 = vpop.xlane.xlu0 %5716
        %v5718 = vmul.f32 %v5681, 0.0006510417
        %v5719 = vmul.f32 %v5683, 0.0006510417
        %v5720 = vmul.f32 %v5685, 0.0006510417
        %v5721 = vmul.f32 %v5713, 0.0006510417
        %v5722 = vmul.f32 %v5715, 0.0006510417
        %v5723 = vmul.f32 %v5717, 0.0006510417
        %v5724 = vmul.f32 %v5718, %v5718
        %v5725 = vmul.f32 %v5719, %v5719
        %v5726 = vmul.f32 %v5720, %v5720
        %v5727 = vsub.f32 %v5721, %v5724
        %v5728 = vsub.f32 %v5722, %v5725
        %v5729 = vsub.f32 %v5723, %v5726
        %v5730 = vadd.f32 %v5727, 1e-05
        %v5731 = vadd.f32 %v5728, 1e-05
        %v5732 = vadd.f32 %v5729, 1e-05
        %v5733 = vrsqrt.pop %v5730
        %v5734 = vmul.f32 %v5733, %v5730
        %v5735 = vmul.f32 %v5734, %v5733
        %v5736 = vmul.f32 0.5, %v5735
        %v5737 = vsub.f32 1.5, %v5736
        %v5738 = vmul.f32 %v5733, %v5737
        %vm5739 = vweird.f32 %v5730
        %vm5740 = vweird.f32 %v5733
        %vm5741 = vmor %vm5739, %vm5740
        %v5742 = vsel %vm5741, %v5733, %v5738
        %v5743 = vrsqrt.pop %v5731
        %v5744 = vmul.f32 %v5743, %v5731
        %v5745 = vmul.f32 %v5744, %v5743
        %v5746 = vmul.f32 0.5, %v5745
        %v5747 = vsub.f32 1.5, %v5746
        %v5748 = vmul.f32 %v5743, %v5747
        %vm5749 = vweird.f32 %v5731
        %vm5750 = vweird.f32 %v5743
        %vm5751 = vmor %vm5749, %vm5750
        %v5752 = vsel %vm5751, %v5743, %v5748
        %v5753 = vrsqrt.pop %v5732
        %v5754 = vmul.f32 %v5753, %v5732
        %v5755 = vmul.f32 %v5754, %v5753
        %v5756 = vmul.f32 0.5, %v5755
        %v5757 = vsub.f32 1.5, %v5756
        %v5758 = vmul.f32 %v5753, %v5757
        %vm5759 = vweird.f32 %v5732
        %vm5760 = vweird.f32 %v5753
        %vm5761 = vmor %vm5759, %vm5760
        %v5762 = vsel %vm5761, %v5753, %v5758
        %v5763 = vmul.f32 %v5742, %v5629
        %v5764 = vmul.f32 %v5752, %v5630
        %v5765 = vmul.f32 %v5762, %v5631
        %v5766 = vsub.f32 %v5636, %v5718
        %v5767 = vsub.f32 %v5637, %v5718
        %v5768 = vsub.f32 %v5638, %v5719
        %v5769 = vsub.f32 %v5639, %v5719
        %v5770 = vsub.f32 %v5640, %v5720
        %v5771 = vsub.f32 %v5641, %v5720
        %5773 = vset.pattern.permute.xlu0 0
        %5774 = vperm.xlu0 %5773, %v5763
        %v5775 = vpop.permute.xlu0 %5774
        %5778 = vset.pattern.permute.xlu0 0
        %5779 = vperm.xlu0 %5778, %v5764
        %v5780 = vpop.permute.xlu0 %5779
        %5783 = vset.pattern.permute.xlu0 0
        %5784 = vperm.xlu0 %5783, %v5765
        %v5785 = vpop.permute.xlu0 %5784
        %v5787 = vmul.f32 %v5766, %v5775
        %v5788 = vmul.f32 %v5767, %v5775
        %v5789 = vmul.f32 %v5768, %v5780
        %v5790 = vmul.f32 %v5769, %v5780
        %v5791 = vmul.f32 %v5770, %v5785
        %v5792 = vmul.f32 %v5771, %v5785
        %5794 = vset.pattern.permute.xlu0 0
        %5795 = vperm.xlu0 %5794, %v5633
        %v5796 = vpop.permute.xlu0 %5795
        %5799 = vset.pattern.permute.xlu0 0
        %5800 = vperm.xlu0 %5799, %v5634
        %v5801 = vpop.permute.xlu0 %5800
        %5804 = vset.pattern.permute.xlu0 0
        %5805 = vperm.xlu0 %5804, %v5635
        %v5806 = vpop.permute.xlu0 %5805
        %v5808 = vadd.f32 %v5787, %v5796
        %v5809 = vadd.f32 %v5788, %v5796
        %v5810 = vadd.f32 %v5789, %v5801
        %v5811 = vadd.f32 %v5790, %v5801
        %v5812 = vadd.f32 %v5791, %v5806
        %v5813 = vadd.f32 %v5792, %v5806
        %5814 = vrot.lane.b32.xlu0 %v5808, 17
        %v5815 = vpop.permute.xlu0 %5814
        %5816 = vrot.lane.b32.xlu0 %v5810, 17
        %v5817 = vpop.permute.xlu0 %5816
        %5818 = vrot.lane.b32.xlu0 %v5812, 17
        %v5819 = vpop.permute.xlu0 %5818
        %5820 = vrot.lane.b32.xlu0 %v5809, 17
        %v5821 = vpop.permute.xlu0 %5820
        %5822 = vrot.lane.b32.xlu0 %v5811, 17
        %v5823 = vpop.permute.xlu0 %5822
        %5824 = vrot.lane.b32.xlu0 %v5813, 17
        %v5825 = vpop.permute.xlu0 %5824
        %v5826 = vsel %vm4863, %v5815, %v5821
        %v5827 = vsel %vm4863, %v5817, %v5823
        %v5828 = vsel %vm4863, %v5819, %v5825
        %v5829 = vsel %vm4863, %v5821, %v5815
        %v5830 = vsel %vm4863, %v5823, %v5817
        %v5831 = vsel %vm4863, %v5825, %v5819
        %v5832 = vmul.f32 %v5829, %v4868
        %v5833 = vmul.f32 %v5826, %v4869
        %v5834 = vmul.f32 %v5830, %v4868
        %v5835 = vmul.f32 %v5827, %v4869
        %v5836 = vmul.f32 %v5831, %v4868
        %v5837 = vmul.f32 %v5828, %v4869
        %5838 = vrot.lane.b32.xlu0 %v5808, 16
        %v5839 = vpop.permute.xlu0 %5838
        %5840 = vrot.lane.b32.xlu0 %v5810, 16
        %v5841 = vpop.permute.xlu0 %5840
        %5842 = vrot.lane.b32.xlu0 %v5812, 16
        %v5843 = vpop.permute.xlu0 %5842
        %5844 = vrot.lane.b32.xlu0 %v5809, 16
        %v5845 = vpop.permute.xlu0 %5844
        %5846 = vrot.lane.b32.xlu0 %v5811, 16
        %v5847 = vpop.permute.xlu0 %5846
        %5848 = vrot.lane.b32.xlu0 %v5813, 16
        %v5849 = vpop.permute.xlu0 %5848
        %v5850 = vsel %vm4882, %v5839, %v5845
        %v5851 = vsel %vm4882, %v5841, %v5847
        %v5852 = vsel %vm4882, %v5843, %v5849
        %v5853 = vsel %vm4882, %v5845, %v5839
        %v5854 = vsel %vm4882, %v5847, %v5841
        %v5855 = vsel %vm4882, %v5849, %v5843
        %v5856 = vmul.f32 %v5853, %v4887
        %v5857 = vmul.f32 %v5850, %v4888
        %v5858 = vmul.f32 %v5854, %v4887
        %v5859 = vmul.f32 %v5851, %v4888
        %v5860 = vmul.f32 %v5855, %v4887
        %v5861 = vmul.f32 %v5852, %v4888
        %5862 = vrot.lane.b32.xlu0 %v5808, 15
        %v5863 = vpop.permute.xlu0 %5862
        %5864 = vrot.lane.b32.xlu0 %v5810, 15
        %v5865 = vpop.permute.xlu0 %5864
        %5866 = vrot.lane.b32.xlu0 %v5812, 15
        %v5867 = vpop.permute.xlu0 %5866
        %5868 = vrot.lane.b32.xlu0 %v5809, 15
        %v5869 = vpop.permute.xlu0 %5868
        %5870 = vrot.lane.b32.xlu0 %v5811, 15
        %v5871 = vpop.permute.xlu0 %5870
        %5872 = vrot.lane.b32.xlu0 %v5813, 15
        %v5873 = vpop.permute.xlu0 %5872
        %v5874 = vsel %vm4901, %v5863, %v5869
        %v5875 = vsel %vm4901, %v5865, %v5871
        %v5876 = vsel %vm4901, %v5867, %v5873
        %v5877 = vsel %vm4901, %v5869, %v5863
        %v5878 = vsel %vm4901, %v5871, %v5865
        %v5879 = vsel %vm4901, %v5873, %v5867
        %v5880 = vmul.f32 %v5877, %v4906
        %v5881 = vmul.f32 %v5874, %v4907
        %v5882 = vmul.f32 %v5878, %v4906
        %v5883 = vmul.f32 %v5875, %v4907
        %v5884 = vmul.f32 %v5879, %v4906
        %v5885 = vmul.f32 %v5876, %v4907
        %5886 = vrot.lane.b32.xlu0 %v5808, 1
        %v5887 = vpop.permute.xlu0 %5886
        %5888 = vrot.lane.b32.xlu0 %v5810, 1
        %v5889 = vpop.permute.xlu0 %5888
        %5890 = vrot.lane.b32.xlu0 %v5812, 1
        %v5891 = vpop.permute.xlu0 %5890
        %5892 = vrot.lane.b32.xlu0 %v5809, 1
        %v5893 = vpop.permute.xlu0 %5892
        %5894 = vrot.lane.b32.xlu0 %v5811, 1
        %v5895 = vpop.permute.xlu0 %5894
        %5896 = vrot.lane.b32.xlu0 %v5813, 1
        %v5897 = vpop.permute.xlu0 %5896
        %v5898 = vsel %vm909, %v5887, %v5893
        %v5899 = vsel %vm909, %v5889, %v5895
        %v5900 = vsel %vm909, %v5891, %v5897
        %v5901 = vsel %vm909, %v5893, %v5887
        %v5902 = vsel %vm909, %v5895, %v5889
        %v5903 = vsel %vm909, %v5897, %v5891
        %v5904 = vmul.f32 %v5901, %v4924
        %v5905 = vmul.f32 %v5898, %v4925
        %v5906 = vmul.f32 %v5902, %v4924
        %v5907 = vmul.f32 %v5899, %v4925
        %v5908 = vmul.f32 %v5903, %v4924
        %v5909 = vmul.f32 %v5900, %v4925
        %5910 = vrot.lane.b32.xlu0 %v5808, 127
        %v5911 = vpop.permute.xlu0 %5910
        %5912 = vrot.lane.b32.xlu0 %v5810, 127
        %v5913 = vpop.permute.xlu0 %5912
        %5914 = vrot.lane.b32.xlu0 %v5812, 127
        %v5915 = vpop.permute.xlu0 %5914
        %5916 = vrot.lane.b32.xlu0 %v5809, 127
        %v5917 = vpop.permute.xlu0 %5916
        %5918 = vrot.lane.b32.xlu0 %v5811, 127
        %v5919 = vpop.permute.xlu0 %5918
        %5920 = vrot.lane.b32.xlu0 %v5813, 127
        %v5921 = vpop.permute.xlu0 %5920
        %v5922 = vsel %vm950, %v5911, %v5917
        %v5923 = vsel %vm950, %v5913, %v5919
        %v5924 = vsel %vm950, %v5915, %v5921
        %v5925 = vsel %vm950, %v5917, %v5911
        %v5926 = vsel %vm950, %v5919, %v5913
        %v5927 = vsel %vm950, %v5921, %v5915
        %v5928 = vmul.f32 %v5922, %v4942
        %v5929 = vmul.f32 %v5925, %v4943
        %v5930 = vmul.f32 %v5923, %v4942
        %v5931 = vmul.f32 %v5926, %v4943
        %v5932 = vmul.f32 %v5924, %v4942
        %v5933 = vmul.f32 %v5927, %v4943
        %5934 = vrot.lane.b32.xlu0 %v5808, 113
        %v5935 = vpop.permute.xlu0 %5934
        %5936 = vrot.lane.b32.xlu0 %v5810, 113
        %v5937 = vpop.permute.xlu0 %5936
        %5938 = vrot.lane.b32.xlu0 %v5812, 113
        %v5939 = vpop.permute.xlu0 %5938
        %5940 = vrot.lane.b32.xlu0 %v5809, 113
        %v5941 = vpop.permute.xlu0 %5940
        %5942 = vrot.lane.b32.xlu0 %v5811, 113
        %v5943 = vpop.permute.xlu0 %5942
        %5944 = vrot.lane.b32.xlu0 %v5813, 113
        %v5945 = vpop.permute.xlu0 %5944
        %v5946 = vsel %vm4956, %v5935, %v5941
        %v5947 = vsel %vm4956, %v5937, %v5943
        %v5948 = vsel %vm4956, %v5939, %v5945
        %v5949 = vsel %vm4956, %v5941, %v5935
        %v5950 = vsel %vm4956, %v5943, %v5937
        %v5951 = vsel %vm4956, %v5945, %v5939
        %v5952 = vmul.f32 %v5946, %v4961
        %v5953 = vmul.f32 %v5949, %v4962
        %v5954 = vmul.f32 %v5947, %v4961
        %v5955 = vmul.f32 %v5950, %v4962
        %v5956 = vmul.f32 %v5948, %v4961
        %v5957 = vmul.f32 %v5951, %v4962
        %5958 = vrot.lane.b32.xlu0 %v5808, 112
        %v5959 = vpop.permute.xlu0 %5958
        %5960 = vrot.lane.b32.xlu0 %v5810, 112
        %v5961 = vpop.permute.xlu0 %5960
        %5962 = vrot.lane.b32.xlu0 %v5812, 112
        %v5963 = vpop.permute.xlu0 %5962
        %5964 = vrot.lane.b32.xlu0 %v5809, 112
        %v5965 = vpop.permute.xlu0 %5964
        %5966 = vrot.lane.b32.xlu0 %v5811, 112
        %v5967 = vpop.permute.xlu0 %5966
        %5968 = vrot.lane.b32.xlu0 %v5813, 112
        %v5969 = vpop.permute.xlu0 %5968
        %v5970 = vsel %vm4975, %v5959, %v5965
        %v5971 = vsel %vm4975, %v5961, %v5967
        %v5972 = vsel %vm4975, %v5963, %v5969
        %v5973 = vsel %vm4975, %v5965, %v5959
        %v5974 = vsel %vm4975, %v5967, %v5961
        %v5975 = vsel %vm4975, %v5969, %v5963
        %v5976 = vmul.f32 %v5970, %v4980
        %v5977 = vmul.f32 %v5973, %v4981
        %v5978 = vmul.f32 %v5971, %v4980
        %v5979 = vmul.f32 %v5974, %v4981
        %v5980 = vmul.f32 %v5972, %v4980
        %v5981 = vmul.f32 %v5975, %v4981
        %5982 = vrot.lane.b32.xlu0 %v5808, 111
        %v5983 = vpop.permute.xlu0 %5982
        %5984 = vrot.lane.b32.xlu0 %v5810, 111
        %v5985 = vpop.permute.xlu0 %5984
        %5986 = vrot.lane.b32.xlu0 %v5812, 111
        %v5987 = vpop.permute.xlu0 %5986
        %5988 = vrot.lane.b32.xlu0 %v5809, 111
        %v5989 = vpop.permute.xlu0 %5988
        %5990 = vrot.lane.b32.xlu0 %v5811, 111
        %v5991 = vpop.permute.xlu0 %5990
        %5992 = vrot.lane.b32.xlu0 %v5813, 111
        %v5993 = vpop.permute.xlu0 %5992
        %v5994 = vsel %vm4994, %v5983, %v5989
        %v5995 = vsel %vm4994, %v5985, %v5991
        %v5996 = vsel %vm4994, %v5987, %v5993
        %v5997 = vsel %vm4994, %v5989, %v5983
        %v5998 = vsel %vm4994, %v5991, %v5985
        %v5999 = vsel %vm4994, %v5993, %v5987
        %v6000 = vmul.f32 %v5994, %v4999
        %v6001 = vmul.f32 %v5997, %v5000
        %v6002 = vmul.f32 %v5995, %v4999
        %v6003 = vmul.f32 %v5998, %v5000
        %v6004 = vmul.f32 %v5996, %v4999
        %v6005 = vmul.f32 %v5999, %v5000
        %v6006 = vpack.c.bf16 %v5834, %v5832
        %v6007 = vpack.c.bf16 %v5835, %v5833
        %v6008 = vpack.c.bf16 %v5856, %v5836
        %v6009 = vpack.c.bf16 %v5857, %v5837
        %v6010 = vpack.c.bf16 %v5860, %v5858
        %v6011 = vpack.c.bf16 %v5861, %v5859
        %v6012 = vpack.c.bf16 %v5882, %v5880
        %v6013 = vpack.c.bf16 %v5883, %v5881
        %v6014 = vpack.c.bf16 %v5904, %v5884
        %v6015 = vpack.c.bf16 %v5905, %v5885
        %v6016 = vpack.c.bf16 %v5908, %v5906
        %v6017 = vpack.c.bf16 %v5909, %v5907
        %v6018 = vpack.c.bf16 %v5810, %v5808
        %v6019 = vpack.c.bf16 %v5811, %v5809
        %v6020 = vpack.c.bf16 %v5928, %v5812
        %v6021 = vpack.c.bf16 %v5929, %v5813
        %v6022 = vpack.c.bf16 %v5932, %v5930
        %v6023 = vpack.c.bf16 %v5933, %v5931
        %v6024 = vpack.c.bf16 %v5954, %v5952
        %v6025 = vpack.c.bf16 %v5955, %v5953
        %v6026 = vpack.c.bf16 %v5976, %v5956
        %v6027 = vpack.c.bf16 %v5977, %v5957
        %v6028 = vpack.c.bf16 %v5980, %v5978
        %v6029 = vpack.c.bf16 %v5981, %v5979
        %v6030 = vpack.c.bf16 %v6002, %v6000
        %v6031 = vpack.c.bf16 %v6003, %v6001
        %v6032 = vpack.c.bf16 %v6004, %v6004
        %v6033 = vpack.c.bf16 %v6005, %v6005
        %v6034 = vld [vmem:[%s17] sm:$0xff]
        %v6035 = vld [vmem:[%s17 + $0x8] sm:$0xff]
        %v6036 = vld [vmem:[%s17 + $0x10] sm:$0xff]
        %v6037 = vld [vmem:[%s17 + $0x18] sm:$0xff]
        %v6038 = vld [vmem:[%s17 + $0x20] sm:$0xff]
        %v6039 = vld [vmem:[%s17 + $0x28] sm:$0xff]
        %v6046 = vunpack.c.l.b16 %v6034
        %v6047 = vunpack.c.h.b16 %v6034
        %v6048 = vunpack.c.l.b16 %v6035
        %v6049 = vunpack.c.h.b16 %v6035
        %v6050 = vunpack.c.l.b16 %v6036
        %v6051 = vunpack.c.h.b16 %v6036
        %v6052 = vunpack.c.l.b16 %v6037
        %v6053 = vunpack.c.h.b16 %v6037
        %v6054 = vunpack.c.l.b16 %v6038
        %v6055 = vunpack.c.h.b16 %v6038
        %v6056 = vunpack.c.l.b16 %v6039
        %v6057 = vunpack.c.h.b16 %v6039
        %v6058 = vpack.c.b16 %v6048, %v6046
        %v6059 = vpack.c.b16 %v6049, %v6047
        %v6060 = vpack.c.b16 %v6052, %v6050
        %v6061 = vpack.c.b16 %v6053, %v6051
        %v6062 = vpack.c.b16 %v6056, %v6054
        %v6063 = vpack.c.b16 %v6057, %v6055
        %v6068 = vsel %vm2558, %v6059, 0
        %v6071 = vsel %vm2558, %v6061, 0
        %v6074 = vsel %vm2558, %v6063, 0
        %v6077 = vsel %vm1156, %v6032, 0
        %v6080 = vsel %vm1156, %v6033, 0
        %6082 = vmatpush.bf16.msra.mxu0 %v6020
        %6083 = vmatpush.bf16.msra.mxu0 %v6018
        %6084 = vmatpush.bf16.msra.mxu0 %v6016
        %6085 = vmatpush.bf16.msra.mxu0 %v6014
        %6086 = vmatpush.bf16.msra.mxu0 %v6012
        %6087 = vmatpush.bf16.msra.mxu0 %v6010
        %6088 = vmatpush.bf16.msra.mxu0 %v6008
        %6089 = vmatpush.bf16.msra.mxu0 %v6006
        %6090 = vmatmul.bf16.gmra.mxu0 %v6058
        %v6091 = vpop.f32.mrf.mxu0
        %v6092 = vadd.f32 0.0, %v6091
        %v6093 = vpop.f32.mrf.mxu0
        %v6094 = vadd.f32 0.0, %v6093
        %6095 = vmatmul.bf16.gmra.mxu0 %v6060
        %v6096 = vpop.f32.mrf.mxu0
        %v6097 = vadd.f32 0.0, %v6096
        %v6098 = vpop.f32.mrf.mxu0
        %v6099 = vadd.f32 0.0, %v6098
        %6100 = vmatmul.bf16.gmra.mxu0 %v6062
        %v6101 = vpop.f32.mrf.mxu0
        %v6102 = vadd.f32 0.0, %v6101
        %v6103 = vpop.f32.mrf.mxu0
        %v6104 = vadd.f32 0.0, %v6103
        %6105 = vdwg.mxu0
        %6106 = vmatpush.bf16.msra.mxu0 0
        %6107 = vmatpush.bf16.msra.mxu0 0
        %6108 = vmatpush.bf16.msra.mxu0 %v6077
        %6109 = vmatpush.bf16.msra.mxu0 %v6030
        %6110 = vmatpush.bf16.msra.mxu0 %v6028
        %6111 = vmatpush.bf16.msra.mxu0 %v6026
        %6112 = vmatpush.bf16.msra.mxu0 %v6024
        %6113 = vmatpush.bf16.msra.mxu0 %v6022
        %6114 = vmatmul.bf16.gmra.mxu0 %v6068
        %v6115 = vpop.f32.mrf.mxu0
        %v6116 = vadd.f32 %v6092, %v6115
        %v6117 = vpop.f32.mrf.mxu0
        %v6118 = vadd.f32 %v6094, %v6117
        %6119 = vmatmul.bf16.gmra.mxu0 %v6071
        %v6120 = vpop.f32.mrf.mxu0
        %v6121 = vadd.f32 %v6097, %v6120
        %v6122 = vpop.f32.mrf.mxu0
        %v6123 = vadd.f32 %v6099, %v6122
        %6124 = vmatmul.bf16.gmra.mxu0 %v6074
        %v6125 = vpop.f32.mrf.mxu0
        %v6126 = vadd.f32 %v6102, %v6125
        %v6127 = vpop.f32.mrf.mxu0
        %v6128 = vadd.f32 %v6104, %v6127
        %6129 = vdwg.mxu0
        %6130 = vmatpush.bf16.msra.mxu0 %v6021
        %6131 = vmatpush.bf16.msra.mxu0 %v6019
        %6132 = vmatpush.bf16.msra.mxu0 %v6017
        %6133 = vmatpush.bf16.msra.mxu0 %v6015
        %6134 = vmatpush.bf16.msra.mxu0 %v6013
        %6135 = vmatpush.bf16.msra.mxu0 %v6011
        %6136 = vmatpush.bf16.msra.mxu0 %v6009
        %6137 = vmatpush.bf16.msra.mxu0 %v6007
        %6138 = vmatmul.bf16.gmra.mxu0 %v6058
        %v6139 = vpop.f32.mrf.mxu0
        %v6140 = vadd.f32 0.0, %v6139
        %v6141 = vpop.f32.mrf.mxu0
        %v6142 = vadd.f32 0.0, %v6141
        %6143 = vmatmul.bf16.gmra.mxu0 %v6060
        %v6144 = vpop.f32.mrf.mxu0
        %v6145 = vadd.f32 0.0, %v6144
        %v6146 = vpop.f32.mrf.mxu0
        %v6147 = vadd.f32 0.0, %v6146
        %6148 = vmatmul.bf16.gmra.mxu0 %v6062
        %v6149 = vpop.f32.mrf.mxu0
        %v6150 = vadd.f32 0.0, %v6149
        %v6151 = vpop.f32.mrf.mxu0
        %v6152 = vadd.f32 0.0, %v6151
        %6153 = vdwg.mxu0
        %6154 = vmatpush.bf16.msra.mxu0 0
        %6155 = vmatpush.bf16.msra.mxu0 0
        %6156 = vmatpush.bf16.msra.mxu0 %v6080
        %6157 = vmatpush.bf16.msra.mxu0 %v6031
        %6158 = vmatpush.bf16.msra.mxu0 %v6029
        %6159 = vmatpush.bf16.msra.mxu0 %v6027
        %6160 = vmatpush.bf16.msra.mxu0 %v6025
        %6161 = vmatpush.bf16.msra.mxu0 %v6023
        %6162 = vmatmul.bf16.gmra.mxu0 %v6068
        %v6163 = vpop.f32.mrf.mxu0
        %v6164 = vadd.f32 %v6140, %v6163
        %v6165 = vpop.f32.mrf.mxu0
        %v6166 = vadd.f32 %v6142, %v6165
        %6167 = vmatmul.bf16.gmra.mxu0 %v6071
        %v6168 = vpop.f32.mrf.mxu0
        %v6169 = vadd.f32 %v6145, %v6168
        %v6170 = vpop.f32.mrf.mxu0
        %v6171 = vadd.f32 %v6147, %v6170
        %6172 = vmatmul.bf16.gmra.mxu0 %v6074
        %v6173 = vpop.f32.mrf.mxu0
        %v6174 = vadd.f32 %v6150, %v6173
        %v6175 = vpop.f32.mrf.mxu0
        %v6176 = vadd.f32 %v6152, %v6175
        %6177 = vdwg.mxu0
        %s6178 = scalar_lea.vmem %s10, 48
        %v6179 = vld [vmem:[%s6178] sm:$0xff]
        %v6180 = vld [vmem:[%s6178 + $0x8] sm:$0xff]
        %v6181 = vld [vmem:[%s6178 + $0x10] sm:$0xff]
        %v6182 = vld [vmem:[%s6178 + $0x18] sm:$0xff]
        %v6183 = vld [vmem:[%s6178 + $0x20] sm:$0xff]
        %v6184 = vld [vmem:[%s6178 + $0x28] sm:$0xff]
        %s6185 = scalar_lea.vmem %s11, 48
        %v6186 = vld [vmem:[%s6185] sm:$0xff]
        %v6187 = vld [vmem:[%s6185 + $0x8] sm:$0xff]
        %v6188 = vld [vmem:[%s6185 + $0x10] sm:$0xff]
        %v6189 = vld [vmem:[%s6185 + $0x18] sm:$0xff]
        %v6190 = vld [vmem:[%s6185 + $0x20] sm:$0xff]
        %v6191 = vld [vmem:[%s6185 + $0x28] sm:$0xff]
        %v6192 = vmax.f32 %v6116, 0.0
        %v6193 = vmax.f32 %v6164, 0.0
        %v6194 = vmax.f32 %v6118, 0.0
        %v6195 = vmax.f32 %v6166, 0.0
        %v6196 = vmax.f32 %v6121, 0.0
        %v6197 = vmax.f32 %v6169, 0.0
        %v6198 = vmax.f32 %v6123, 0.0
        %v6199 = vmax.f32 %v6171, 0.0
        %v6200 = vmax.f32 %v6126, 0.0
        %v6201 = vmax.f32 %v6174, 0.0
        %v6202 = vmax.f32 %v6128, 0.0
        %v6203 = vmax.f32 %v6176, 0.0
        %v6204 = vmul.f32 %v6192, %v6192
        %v6205 = vmul.f32 %v6194, %v6194
        %v6206 = vmul.f32 %v6196, %v6196
        %v6207 = vmul.f32 %v6198, %v6198
        %v6208 = vmul.f32 %v6200, %v6200
        %v6209 = vmul.f32 %v6202, %v6202
        %v6210 = vadd.f32 %v6192, %v6193
        %v6211 = vadd.f32 %v6194, %v6195
        %v6212 = vadd.f32 %v6196, %v6197
        %v6213 = vadd.f32 %v6198, %v6199
        %v6214 = vadd.f32 %v6200, %v6201
        %v6215 = vadd.f32 %v6202, %v6203
        %v6216 = vmul.f32 %v6193, %v6193
        %v6217 = vmul.f32 %v6195, %v6195
        %v6218 = vmul.f32 %v6197, %v6197
        %v6219 = vmul.f32 %v6199, %v6199
        %v6220 = vmul.f32 %v6201, %v6201
        %v6221 = vmul.f32 %v6203, %v6203
        %v6222 = vadd.f32 %v6204, %v6216
        %v6223 = vadd.f32 %v6205, %v6217
        %v6224 = vadd.f32 %v6206, %v6218
        %v6225 = vadd.f32 %v6207, %v6219
        %v6226 = vadd.f32 %v6208, %v6220
        %v6227 = vadd.f32 %v6209, %v6221
        %6228 = vmatpush.msra.mxu0 0.0
        %6229 = vmatpush.msra.mxu0 0.0
        %6230 = vmatpush.msra.mxu0 0.0
        %6231 = vmatpush.msra.mxu0 0.0
        %6232 = vmatpush.msra.mxu0 0.0
        %6233 = vmatpush.msra.mxu0 0.0
        %6234 = vmatpush.msra.mxu0 0.0
        %6235 = vmatpush.msra.mxu0 0.0
        %6236 = vmatpush.msra.mxu0 0.0
        %6237 = vmatpush.msra.mxu0 0.0
        %6238 = vmatpush.msra.mxu0 %v6215
        %6239 = vmatpush.msra.mxu0 %v6214
        %6240 = vmatpush.msra.mxu0 %v6213
        %6241 = vmatpush.msra.mxu0 %v6212
        %6242 = vmatpush.msra.mxu0 %v6211
        %6243 = vmatpush.msra.mxu0 %v6210
        %6244 = vmatmul.f32.gmra.mxu0 %v3170
        %v6245 = vpop.f32.mrf.mxu0
        %v6246 = vadd.f32 0.0, %v6245
        %6247 = vmatmul.f32.gmra.mxu0 %v3173
        %v6248 = vpop.f32.mrf.mxu0
        %v6249 = vadd.f32 0.0, %v6248
        %6250 = vmatmul.f32.gmra.mxu0 %v3176
        %v6251 = vpop.f32.mrf.mxu0
        %v6252 = vadd.f32 0.0, %v6251
        %6253 = vmatmul.f32.gmra.mxu0 %v3179
        %v6254 = vpop.f32.mrf.mxu0
        %v6255 = vadd.f32 0.0, %v6254
        %6256 = vmatmul.f32.gmra.mxu0 %v3182
        %v6257 = vpop.f32.mrf.mxu0
        %v6258 = vadd.f32 0.0, %v6257
        %6259 = vmatmul.f32.gmra.mxu0 %v3185
        %v6260 = vpop.f32.mrf.mxu0
        %v6261 = vadd.f32 0.0, %v6260
        %6262 = vdwg.mxu0
        %6263 = vadd.xlane.f32.xlu0 %v6246
        %v6264 = vpop.xlane.xlu0 %6263
        %6265 = vadd.xlane.f32.xlu0 %v6249
        %v6266 = vpop.xlane.xlu0 %6265
        %6267 = vadd.xlane.f32.xlu0 %v6252
        %v6268 = vpop.xlane.xlu0 %6267
        %6269 = vadd.xlane.f32.xlu0 %v6255
        %v6270 = vpop.xlane.xlu0 %6269
        %6271 = vadd.xlane.f32.xlu0 %v6258
        %v6272 = vpop.xlane.xlu0 %6271
        %6273 = vadd.xlane.f32.xlu0 %v6261
        %v6274 = vpop.xlane.xlu0 %6273
        %6275 = vmatpush.msra.mxu0 0.0
        %6276 = vmatpush.msra.mxu0 0.0
        %6277 = vmatpush.msra.mxu0 0.0
        %6278 = vmatpush.msra.mxu0 0.0
        %6279 = vmatpush.msra.mxu0 0.0
        %6280 = vmatpush.msra.mxu0 0.0
        %6281 = vmatpush.msra.mxu0 0.0
        %6282 = vmatpush.msra.mxu0 0.0
        %6283 = vmatpush.msra.mxu0 0.0
        %6284 = vmatpush.msra.mxu0 0.0
        %6285 = vmatpush.msra.mxu0 %v6227
        %6286 = vmatpush.msra.mxu0 %v6226
        %6287 = vmatpush.msra.mxu0 %v6225
        %6288 = vmatpush.msra.mxu0 %v6224
        %6289 = vmatpush.msra.mxu0 %v6223
        %6290 = vmatpush.msra.mxu0 %v6222
        %6291 = vmatmul.f32.gmra.mxu0 %v3170
        %v6292 = vpop.f32.mrf.mxu0
        %v6293 = vadd.f32 0.0, %v6292
        %6294 = vmatmul.f32.gmra.mxu0 %v3173
        %v6295 = vpop.f32.mrf.mxu0
        %v6296 = vadd.f32 0.0, %v6295
        %6297 = vmatmul.f32.gmra.mxu0 %v3176
        %v6298 = vpop.f32.mrf.mxu0
        %v6299 = vadd.f32 0.0, %v6298
        %6300 = vmatmul.f32.gmra.mxu0 %v3179
        %v6301 = vpop.f32.mrf.mxu0
        %v6302 = vadd.f32 0.0, %v6301
        %6303 = vmatmul.f32.gmra.mxu0 %v3182
        %v6304 = vpop.f32.mrf.mxu0
        %v6305 = vadd.f32 0.0, %v6304
        %6306 = vmatmul.f32.gmra.mxu0 %v3185
        %v6307 = vpop.f32.mrf.mxu0
        %v6308 = vadd.f32 0.0, %v6307
        %6309 = vdwg.mxu0
        %6310 = vadd.xlane.f32.xlu0 %v6293
        %v6311 = vpop.xlane.xlu0 %6310
        %6312 = vadd.xlane.f32.xlu0 %v6296
        %v6313 = vpop.xlane.xlu0 %6312
        %6314 = vadd.xlane.f32.xlu0 %v6299
        %v6315 = vpop.xlane.xlu0 %6314
        %6316 = vadd.xlane.f32.xlu0 %v6302
        %v6317 = vpop.xlane.xlu0 %6316
        %6318 = vadd.xlane.f32.xlu0 %v6305
        %v6319 = vpop.xlane.xlu0 %6318
        %6320 = vadd.xlane.f32.xlu0 %v6308
        %v6321 = vpop.xlane.xlu0 %6320
        %v6322 = vmul.f32 %v6264, 0.0006510417
        %v6323 = vmul.f32 %v6266, 0.0006510417
        %v6324 = vmul.f32 %v6268, 0.0006510417
        %v6325 = vmul.f32 %v6270, 0.0006510417
        %v6326 = vmul.f32 %v6272, 0.0006510417
        %v6327 = vmul.f32 %v6274, 0.0006510417
        %v6328 = vmul.f32 %v6311, 0.0006510417
        %v6329 = vmul.f32 %v6313, 0.0006510417
        %v6330 = vmul.f32 %v6315, 0.0006510417
        %v6331 = vmul.f32 %v6317, 0.0006510417
        %v6332 = vmul.f32 %v6319, 0.0006510417
        %v6333 = vmul.f32 %v6321, 0.0006510417
        %v6334 = vmul.f32 %v6322, %v6322
        %v6335 = vmul.f32 %v6323, %v6323
        %v6336 = vmul.f32 %v6324, %v6324
        %v6337 = vmul.f32 %v6325, %v6325
        %v6338 = vmul.f32 %v6326, %v6326
        %v6339 = vmul.f32 %v6327, %v6327
        %v6340 = vsub.f32 %v6328, %v6334
        %v6341 = vsub.f32 %v6329, %v6335
        %v6342 = vsub.f32 %v6330, %v6336
        %v6343 = vsub.f32 %v6331, %v6337
        %v6344 = vsub.f32 %v6332, %v6338
        %v6345 = vsub.f32 %v6333, %v6339
        %v6346 = vadd.f32 %v6340, 1e-05
        %v6347 = vadd.f32 %v6341, 1e-05
        %v6348 = vadd.f32 %v6342, 1e-05
        %v6349 = vadd.f32 %v6343, 1e-05
        %v6350 = vadd.f32 %v6344, 1e-05
        %v6351 = vadd.f32 %v6345, 1e-05
        %v6352 = vrsqrt.pop %v6346
        %v6353 = vmul.f32 %v6352, %v6346
        %v6354 = vmul.f32 %v6353, %v6352
        %v6355 = vmul.f32 0.5, %v6354
        %v6356 = vsub.f32 1.5, %v6355
        %v6357 = vmul.f32 %v6352, %v6356
        %vm6358 = vweird.f32 %v6346
        %vm6359 = vweird.f32 %v6352
        %vm6360 = vmor %vm6358, %vm6359
        %v6361 = vsel %vm6360, %v6352, %v6357
        %v6362 = vrsqrt.pop %v6347
        %v6363 = vmul.f32 %v6362, %v6347
        %v6364 = vmul.f32 %v6363, %v6362
        %v6365 = vmul.f32 0.5, %v6364
        %v6366 = vsub.f32 1.5, %v6365
        %v6367 = vmul.f32 %v6362, %v6366
        %vm6368 = vweird.f32 %v6347
        %vm6369 = vweird.f32 %v6362
        %vm6370 = vmor %vm6368, %vm6369
        %v6371 = vsel %vm6370, %v6362, %v6367
        %v6372 = vrsqrt.pop %v6348
        %v6373 = vmul.f32 %v6372, %v6348
        %v6374 = vmul.f32 %v6373, %v6372
        %v6375 = vmul.f32 0.5, %v6374
        %v6376 = vsub.f32 1.5, %v6375
        %v6377 = vmul.f32 %v6372, %v6376
        %vm6378 = vweird.f32 %v6348
        %vm6379 = vweird.f32 %v6372
        %vm6380 = vmor %vm6378, %vm6379
        %v6381 = vsel %vm6380, %v6372, %v6377
        %v6382 = vrsqrt.pop %v6349
        %v6383 = vmul.f32 %v6382, %v6349
        %v6384 = vmul.f32 %v6383, %v6382
        %v6385 = vmul.f32 0.5, %v6384
        %v6386 = vsub.f32 1.5, %v6385
        %v6387 = vmul.f32 %v6382, %v6386
        %vm6388 = vweird.f32 %v6349
        %vm6389 = vweird.f32 %v6382
        %vm6390 = vmor %vm6388, %vm6389
        %v6391 = vsel %vm6390, %v6382, %v6387
        %v6392 = vrsqrt.pop %v6350
        %v6393 = vmul.f32 %v6392, %v6350
        %v6394 = vmul.f32 %v6393, %v6392
        %v6395 = vmul.f32 0.5, %v6394
        %v6396 = vsub.f32 1.5, %v6395
        %v6397 = vmul.f32 %v6392, %v6396
        %vm6398 = vweird.f32 %v6350
        %vm6399 = vweird.f32 %v6392
        %vm6400 = vmor %vm6398, %vm6399
        %v6401 = vsel %vm6400, %v6392, %v6397
        %v6402 = vrsqrt.pop %v6351
        %v6403 = vmul.f32 %v6402, %v6351
        %v6404 = vmul.f32 %v6403, %v6402
        %v6405 = vmul.f32 0.5, %v6404
        %v6406 = vsub.f32 1.5, %v6405
        %v6407 = vmul.f32 %v6402, %v6406
        %vm6408 = vweird.f32 %v6351
        %vm6409 = vweird.f32 %v6402
        %vm6410 = vmor %vm6408, %vm6409
        %v6411 = vsel %vm6410, %v6402, %v6407
        %v6412 = vmul.f32 %v6361, %v6179
        %v6413 = vmul.f32 %v6371, %v6180
        %v6414 = vmul.f32 %v6381, %v6181
        %v6415 = vmul.f32 %v6391, %v6182
        %v6416 = vmul.f32 %v6401, %v6183
        %v6417 = vmul.f32 %v6411, %v6184
        %v6418 = vsub.f32 %v6192, %v6322
        %v6419 = vsub.f32 %v6193, %v6322
        %v6420 = vsub.f32 %v6194, %v6323
        %v6421 = vsub.f32 %v6195, %v6323
        %v6422 = vsub.f32 %v6196, %v6324
        %v6423 = vsub.f32 %v6197, %v6324
        %v6424 = vsub.f32 %v6198, %v6325
        %v6425 = vsub.f32 %v6199, %v6325
        %v6426 = vsub.f32 %v6200, %v6326
        %v6427 = vsub.f32 %v6201, %v6326
        %v6428 = vsub.f32 %v6202, %v6327
        %v6429 = vsub.f32 %v6203, %v6327
        %6431 = vset.pattern.permute.xlu0 0
        %6432 = vperm.xlu0 %6431, %v6412
        %v6433 = vpop.permute.xlu0 %6432
        %6436 = vset.pattern.permute.xlu0 0
        %6437 = vperm.xlu0 %6436, %v6413
        %v6438 = vpop.permute.xlu0 %6437
        %6441 = vset.pattern.permute.xlu0 0
        %6442 = vperm.xlu0 %6441, %v6414
        %v6443 = vpop.permute.xlu0 %6442
        %6446 = vset.pattern.permute.xlu0 0
        %6447 = vperm.xlu0 %6446, %v6415
        %v6448 = vpop.permute.xlu0 %6447
        %6451 = vset.pattern.permute.xlu0 0
        %6452 = vperm.xlu0 %6451, %v6416
        %v6453 = vpop.permute.xlu0 %6452
        %6456 = vset.pattern.permute.xlu0 0
        %6457 = vperm.xlu0 %6456, %v6417
        %v6458 = vpop.permute.xlu0 %6457
        %v6460 = vmul.f32 %v6418, %v6433
        %v6461 = vmul.f32 %v6419, %v6433
        %v6462 = vmul.f32 %v6420, %v6438
        %v6463 = vmul.f32 %v6421, %v6438
        %v6464 = vmul.f32 %v6422, %v6443
        %v6465 = vmul.f32 %v6423, %v6443
        %v6466 = vmul.f32 %v6424, %v6448
        %v6467 = vmul.f32 %v6425, %v6448
        %v6468 = vmul.f32 %v6426, %v6453
        %v6469 = vmul.f32 %v6427, %v6453
        %v6470 = vmul.f32 %v6428, %v6458
        %v6471 = vmul.f32 %v6429, %v6458
        %6473 = vset.pattern.permute.xlu0 0
        %6474 = vperm.xlu0 %6473, %v6186
        %v6475 = vpop.permute.xlu0 %6474
        %6478 = vset.pattern.permute.xlu0 0
        %6479 = vperm.xlu0 %6478, %v6187
        %v6480 = vpop.permute.xlu0 %6479
        %6483 = vset.pattern.permute.xlu0 0
        %6484 = vperm.xlu0 %6483, %v6188
        %v6485 = vpop.permute.xlu0 %6484
        %6488 = vset.pattern.permute.xlu0 0
        %6489 = vperm.xlu0 %6488, %v6189
        %v6490 = vpop.permute.xlu0 %6489
        %6493 = vset.pattern.permute.xlu0 0
        %6494 = vperm.xlu0 %6493, %v6190
        %v6495 = vpop.permute.xlu0 %6494
        %6498 = vset.pattern.permute.xlu0 0
        %6499 = vperm.xlu0 %6498, %v6191
        %v6500 = vpop.permute.xlu0 %6499
        %v6502 = vadd.f32 %v6460, %v6475
        %v6503 = vadd.f32 %v6461, %v6475
        %v6504 = vadd.f32 %v6462, %v6480
        %v6505 = vadd.f32 %v6463, %v6480
        %v6506 = vadd.f32 %v6464, %v6485
        %v6507 = vadd.f32 %v6465, %v6485
        %v6508 = vadd.f32 %v6466, %v6490
        %v6509 = vadd.f32 %v6467, %v6490
        %v6510 = vadd.f32 %v6468, %v6495
        %v6511 = vadd.f32 %v6469, %v6495
        %v6512 = vadd.f32 %v6470, %v6500
        %v6513 = vadd.f32 %v6471, %v6500
        %v6514 = vld [vmem:[%s18] sm:$0xf]
        %v6515 = vld [vmem:[%s18 + $0x4] sm:$0xf]
        %v6516 = vpack.c.bf16 %v6504, %v6502
        %v6517 = vpack.c.bf16 %v6505, %v6503
        %v6518 = vpack.c.bf16 %v6508, %v6506
        %v6519 = vpack.c.bf16 %v6509, %v6507
        %v6520 = vpack.c.bf16 %v6512, %v6510
        %v6521 = vpack.c.bf16 %v6513, %v6511
        %v6524 = vunpack.c.l.b16 %v6514
        %v6525 = vunpack.c.l.b16 %v6515
        %v6526 = vpack.c.b16 %v6525, %v6524
        %v6528 = vsel %vm3168, %v6526, 0
        %6530 = vmatpush.bf16.msra.mxu0 0
        %6531 = vmatpush.bf16.msra.mxu0 0
        %6532 = vmatpush.bf16.msra.mxu0 0
        %6533 = vmatpush.bf16.msra.mxu0 0
        %6534 = vmatpush.bf16.msra.mxu0 0
        %6535 = vmatpush.bf16.msra.mxu0 %v6520
        %6536 = vmatpush.bf16.msra.mxu0 %v6518
        %6537 = vmatpush.bf16.msra.mxu0 %v6516
        %6538 = vmatmul.bf16.gmra.mxu0 %v6528
        %v6539 = vpop.f32.mrf.mxu0
        %v6540 = vadd.f32 0.0, %v6539
        %v6541 = vpop.f32.mrf.mxu0
        %v6542 = vadd.f32 0.0, %v6541
        %6543 = vdwg.mxu0
        %6544 = vmatpush.bf16.msra.mxu0 0
        %6545 = vmatpush.bf16.msra.mxu0 0
        %6546 = vmatpush.bf16.msra.mxu0 0
        %6547 = vmatpush.bf16.msra.mxu0 0
        %6548 = vmatpush.bf16.msra.mxu0 0
        %6549 = vmatpush.bf16.msra.mxu0 %v6521
        %6550 = vmatpush.bf16.msra.mxu0 %v6519
        %6551 = vmatpush.bf16.msra.mxu0 %v6517
        %6552 = vmatmul.bf16.gmra.mxu0 %v6528
        %v6553 = vpop.f32.mrf.mxu0
        %v6554 = vadd.f32 0.0, %v6553
        %v6555 = vpop.f32.mrf.mxu0
        %v6556 = vadd.f32 0.0, %v6555
        %6557 = vdwg.mxu0
        %6558 = vrot.lane.b32.xlu0 %v6540, 127
        %v6559 = vpop.permute.xlu0 %6558
        %6560 = vrot.lane.b32.xlu0 %v6542, 127
        %v6561 = vpop.permute.xlu0 %6560
        %6562 = vrot.lane.b32.xlu0 %v6554, 127
        %v6563 = vpop.permute.xlu0 %6562
        %6564 = vrot.lane.b32.xlu0 %v6556, 127
        %v6565 = vpop.permute.xlu0 %6564
        %v6566 = vsel %vm950, %v6559, %v6563
        %v6567 = vsel %vm950, %v6561, %v6565
        %v6568 = vsel %vm950, %v6563, %v6559
        %v6569 = vsel %vm950, %v6565, %v6561
        %v6570 = vmax.f32 %v6540, %v6566
        %v6571 = vmax.f32 %v6554, %v6568
        %v6572 = vmax.f32 %v6542, %v6567
        %v6573 = vmax.f32 %v6556, %v6569
        %6574 = vrot.lane.b32.xlu0 %v6570, 112
        %v6575 = vpop.permute.xlu0 %6574
        %6576 = vrot.lane.b32.xlu0 %v6572, 112
        %v6577 = vpop.permute.xlu0 %6576
        %6578 = vrot.lane.b32.xlu0 %v6571, 112
        %v6579 = vpop.permute.xlu0 %6578
        %6580 = vrot.lane.b32.xlu0 %v6573, 112
        %v6581 = vpop.permute.xlu0 %6580
        %v6582 = vsel %vm4975, %v6575, %v6579
        %v6583 = vsel %vm4975, %v6577, %v6581
        %v6584 = vsel %vm4975, %v6579, %v6575
        %v6585 = vsel %vm4975, %v6581, %v6577
        %v6586 = vmax.f32 %v6570, %v6582
        %v6587 = vmax.f32 %v6571, %v6584
        %v6588 = vmax.f32 %v6572, %v6583
        %v6589 = vmax.f32 %v6573, %v6585
        %v6590 = vpack.c.bf16 %v6588, %v6586
        %v6591 = vpack.c.bf16 %v6589, %v6587
        %v6592 = vld [vmem:[%s5] sm:$0xf]
        %v6593 = vld [vmem:[%s5 + $0x4] sm:$0xf]
        %v6594 = vld [vmem:[%s5 + $0x8] sm:$0xf]
        %v6595 = vld [vmem:[%s5 + $0xc] sm:$0xf]
        %v6596 = vld [vmem:[%s5 + $0x10] sm:$0xf]
        %v6597 = vld [vmem:[%s5 + $0x14] sm:$0xf]
        %v6598 = vld [vmem:[%s5 + $0x18] sm:$0xf]
        %v6599 = vld [vmem:[%s5 + $0x1c] sm:$0xf]
        %v6600 = vld [vmem:[%s5 + $0x20] sm:$0xf]
        %v6601 = vld [vmem:[%s5 + $0x24] sm:$0xf]
        %v6602 = vld [vmem:[%s5 + $0x28] sm:$0xf]
        %v6603 = vld [vmem:[%s5 + $0x2c] sm:$0xf]
        %v6604 = vld [vmem:[%s5 + $0x30] sm:$0xf]
        %v6605 = vld [vmem:[%s5 + $0x34] sm:$0xf]
        %v6606 = vld [vmem:[%s5 + $0x38] sm:$0xf]
        %v6607 = vld [vmem:[%s5 + $0x3c] sm:$0xf]
        %v6608 = vld [vmem:[%s5 + $0x40] sm:$0xf]
        %v6609 = vld [vmem:[%s5 + $0x44] sm:$0xf]
        %v6610 = vld [vmem:[%s5 + $0x48] sm:$0xf]
        %v6611 = vld [vmem:[%s5 + $0x4c] sm:$0xf]
        %v6612 = vld [vmem:[%s5 + $0x50] sm:$0xf]
        %v6613 = vld [vmem:[%s5 + $0x54] sm:$0xf]
        %v6614 = vld [vmem:[%s5 + $0x58] sm:$0xf]
        %v6615 = vld [vmem:[%s5 + $0x5c] sm:$0xf]
        %v6616 = vld [vmem:[%s5 + $0x60] sm:$0xf]
        %v6617 = vld [vmem:[%s5 + $0x64] sm:$0xf]
        %v6618 = vld [vmem:[%s5 + $0x68] sm:$0xf]
        %v6619 = vld [vmem:[%s5 + $0x6c] sm:$0xf]
        %v6620 = vld [vmem:[%s5 + $0x70] sm:$0xf]
        %v6621 = vld [vmem:[%s5 + $0x74] sm:$0xf]
        %v6622 = vld [vmem:[%s5 + $0x78] sm:$0xf]
        %v6623 = vld [vmem:[%s5 + $0x7c] sm:$0xf]
        %v6656 = vunpack.c.l.b16 %v6592
        %v6657 = vunpack.c.l.b16 %v6593
        %v6658 = vunpack.c.l.b16 %v6594
        %v6659 = vunpack.c.l.b16 %v6595
        %v6660 = vunpack.c.l.b16 %v6596
        %v6661 = vunpack.c.l.b16 %v6597
        %v6662 = vunpack.c.l.b16 %v6598
        %v6663 = vunpack.c.l.b16 %v6599
        %v6664 = vunpack.c.l.b16 %v6600
        %v6665 = vunpack.c.l.b16 %v6601
        %v6666 = vunpack.c.l.b16 %v6602
        %v6667 = vunpack.c.l.b16 %v6603
        %v6668 = vunpack.c.l.b16 %v6604
        %v6669 = vunpack.c.l.b16 %v6605
        %v6670 = vunpack.c.l.b16 %v6606
        %v6671 = vunpack.c.l.b16 %v6607
        %v6672 = vunpack.c.l.b16 %v6608
        %v6673 = vunpack.c.l.b16 %v6609
        %v6674 = vunpack.c.l.b16 %v6610
        %v6675 = vunpack.c.l.b16 %v6611
        %v6676 = vunpack.c.l.b16 %v6612
        %v6677 = vunpack.c.l.b16 %v6613
        %v6678 = vunpack.c.l.b16 %v6614
        %v6679 = vunpack.c.l.b16 %v6615
        %v6680 = vunpack.c.l.b16 %v6616
        %v6681 = vunpack.c.l.b16 %v6617
        %v6682 = vunpack.c.l.b16 %v6618
        %v6683 = vunpack.c.l.b16 %v6619
        %v6684 = vunpack.c.l.b16 %v6620
        %v6685 = vunpack.c.l.b16 %v6621
        %v6686 = vunpack.c.l.b16 %v6622
        %v6687 = vunpack.c.l.b16 %v6623
        %v6688 = vpack.c.b16 %v6657, %v6656
        %v6689 = vpack.c.b16 %v6659, %v6658
        %v6690 = vpack.c.b16 %v6661, %v6660
        %v6691 = vpack.c.b16 %v6663, %v6662
        %v6692 = vpack.c.b16 %v6665, %v6664
        %v6693 = vpack.c.b16 %v6667, %v6666
        %v6694 = vpack.c.b16 %v6669, %v6668
        %v6695 = vpack.c.b16 %v6671, %v6670
        %v6696 = vpack.c.b16 %v6673, %v6672
        %v6697 = vpack.c.b16 %v6675, %v6674
        %v6698 = vpack.c.b16 %v6677, %v6676
        %v6699 = vpack.c.b16 %v6679, %v6678
        %v6700 = vpack.c.b16 %v6681, %v6680
        %v6701 = vpack.c.b16 %v6683, %v6682
        %v6702 = vpack.c.b16 %v6685, %v6684
        %v6703 = vpack.c.b16 %v6687, %v6686
        %6720 = vmatpush.bf16.msra.mxu0 %v6695
        %6721 = vmatpush.bf16.msra.mxu0 %v6694
        %6722 = vmatpush.bf16.msra.mxu0 %v6693
        %6723 = vmatpush.bf16.msra.mxu0 %v6692
        %6724 = vmatpush.bf16.msra.mxu0 %v6691
        %6725 = vmatpush.bf16.msra.mxu0 %v6690
        %6726 = vmatpush.bf16.msra.mxu0 %v6689
        %6727 = vmatpush.bf16.msra.mxu0 %v6688
        %6728 = vmatmul.bf16.gmra.mxu0 %v6590
        %v6729 = vpop.f32.mrf.mxu0
        %v6730 = vadd.f32 0.0, %v6729
        %v6731 = vpop.f32.mrf.mxu0
        %v6732 = vadd.f32 0.0, %v6731
        %6733 = vdwg.mxu0
        %6734 = vmatpush.bf16.msra.mxu0 %v6703
        %6735 = vmatpush.bf16.msra.mxu0 %v6702
        %6736 = vmatpush.bf16.msra.mxu0 %v6701
        %6737 = vmatpush.bf16.msra.mxu0 %v6700
        %6738 = vmatpush.bf16.msra.mxu0 %v6699
        %6739 = vmatpush.bf16.msra.mxu0 %v6698
        %6740 = vmatpush.bf16.msra.mxu0 %v6697
        %6741 = vmatpush.bf16.msra.mxu0 %v6696
        %6742 = vmatmul.bf16.gmra.mxu0 %v6591
        %v6743 = vpop.f32.mrf.mxu0
        %v6744 = vadd.f32 %v6730, %v6743
        %v6745 = vpop.f32.mrf.mxu0
        %v6746 = vadd.f32 %v6732, %v6745
        %6747 = vdwg.mxu0
        %6748 = vrot.lane.b32.xlu0 %v6744, 9
        %v6749 = vpop.permute.xlu0 %6748
        %6750 = vrot.lane.b32.xlu0 %v6746, 9
        %v6751 = vpop.permute.xlu0 %6750
        %v6752 = vperm.slane %v749, 0
        %v6753 = vmul.f32 %v6749, %v6752
        %v6754 = vmul.f32 %v6751, %v6752
        %6755 = vrot.lane.b32.xlu0 %v6744, 8
        %v6756 = vpop.permute.xlu0 %6755
        %6757 = vrot.lane.b32.xlu0 %v6746, 8
        %v6758 = vpop.permute.xlu0 %6757
        %v6759 = vperm.slane %v749, 1
        %v6760 = vmul.f32 %v6756, %v6759
        %v6761 = vmul.f32 %v6758, %v6759
        %6762 = vrot.lane.b32.xlu0 %v6744, 7
        %v6763 = vpop.permute.xlu0 %6762
        %6764 = vrot.lane.b32.xlu0 %v6746, 7
        %v6765 = vpop.permute.xlu0 %6764
        %v6766 = vperm.slane %v749, 2
        %v6767 = vmul.f32 %v6763, %v6766
        %v6768 = vmul.f32 %v6765, %v6766
        %6769 = vrot.lane.b32.xlu0 %v6744, 1
        %v6770 = vpop.permute.xlu0 %6769
        %6771 = vrot.lane.b32.xlu0 %v6746, 1
        %v6772 = vpop.permute.xlu0 %6771
        %v6773 = vperm.slane %v749, 3
        %v6774 = vmul.f32 %v6770, %v6773
        %v6775 = vmul.f32 %v6772, %v6773
        %6776 = vrot.lane.b32.xlu0 %v6744, 127
        %v6777 = vpop.permute.xlu0 %6776
        %6778 = vrot.lane.b32.xlu0 %v6746, 127
        %v6779 = vpop.permute.xlu0 %6778
        %v6780 = vperm.slane %v749, 5
        %v6781 = vmul.f32 %v6777, %v6780
        %v6782 = vmul.f32 %v6779, %v6780
        %6783 = vrot.lane.b32.xlu0 %v6744, 121
        %v6784 = vpop.permute.xlu0 %6783
        %6785 = vrot.lane.b32.xlu0 %v6746, 121
        %v6786 = vpop.permute.xlu0 %6785
        %v6787 = vperm.slane %v749, 6
        %v6788 = vmul.f32 %v6784, %v6787
        %v6789 = vmul.f32 %v6786, %v6787
        %6790 = vrot.lane.b32.xlu0 %v6744, 120
        %v6791 = vpop.permute.xlu0 %6790
        %6792 = vrot.lane.b32.xlu0 %v6746, 120
        %v6793 = vpop.permute.xlu0 %6792
        %v6794 = vperm.slane %v749, 7
        %v6795 = vmul.f32 %v6791, %v6794
        %v6796 = vmul.f32 %v6793, %v6794
        %6797 = vrot.lane.b32.xlu0 %v6744, 119
        %v6798 = vpop.permute.xlu0 %6797
        %6799 = vrot.lane.b32.xlu0 %v6746, 119
        %v6800 = vpop.permute.xlu0 %6799
        %v6801 = vperm.slane %v750, 0
        %v6802 = vmul.f32 %v6798, %v6801
        %v6803 = vmul.f32 %v6800, %v6801
        %v6804 = vpack.c.bf16 %v6754, %v6753
        %v6805 = vpack.c.bf16 %v6761, %v6760
        %v6806 = vpack.c.bf16 %v6768, %v6767
        %v6807 = vpack.c.bf16 %v6775, %v6774
        %v6808 = vpack.c.bf16 %v6746, %v6744
        %v6809 = vpack.c.bf16 %v6782, %v6781
        %v6810 = vpack.c.bf16 %v6789, %v6788
        %v6811 = vpack.c.bf16 %v6796, %v6795
        %v6812 = vpack.c.bf16 %v6803, %v6802
        %v6813 = vld [vmem:[%s19] sm:$0xff]
        %v6814 = vld [vmem:[%s19 + $0x8] sm:$0xff]
        %v6815 = vld [vmem:[%s19 + $0x10] sm:$0xff]
        %v6819 = vunpack.c.l.b16 %v6813
        %v6820 = vunpack.c.h.b16 %v6813
        %v6821 = vunpack.c.l.b16 %v6814
        %v6822 = vunpack.c.h.b16 %v6814
        %v6823 = vunpack.c.l.b16 %v6815
        %v6824 = vunpack.c.h.b16 %v6815
        %v6825 = vpack.c.b16 %v6821, %v6819
        %v6826 = vpack.c.b16 %v6822, %v6820
        %v6827 = vpack.c.b16 %v6823, %v6823
        %v6828 = vpack.c.b16 %v6824, %v6824
        %v6832 = vsel %vm5041, %v6826, 0
        %v6835 = vsel %vm5041, %v6828, 0
        %6837 = vmatpush.bf16.msra.mxu0 %v6811
        %6838 = vmatpush.bf16.msra.mxu0 %v6810
        %6839 = vmatpush.bf16.msra.mxu0 %v6809
        %6840 = vmatpush.bf16.msra.mxu0 %v6808
        %6841 = vmatpush.bf16.msra.mxu0 %v6807
        %6842 = vmatpush.bf16.msra.mxu0 %v6806
        %6843 = vmatpush.bf16.msra.mxu0 %v6805
        %6844 = vmatpush.bf16.msra.mxu0 %v6804
        %6845 = vmatmul.bf16.gmra.mxu0 %v6825
        %v6846 = vpop.f32.mrf.mxu0
        %v6847 = vadd.f32 0.0, %v6846
        %v6848 = vpop.f32.mrf.mxu0
        %v6849 = vadd.f32 0.0, %v6848
        %6850 = vmatmul.bf16.gmra.mxu0 %v6827
        %v6851 = vpop.f32.mrf.mxu0
        %v6852 = vadd.f32 0.0, %v6851
        %v6853 = vpop.f32.mrf.mxu0
        %6854 = vdwg.mxu0
        %6855 = vmatpush.bf16.msra.mxu0 0
        %6856 = vmatpush.bf16.msra.mxu0 0
        %6857 = vmatpush.bf16.msra.mxu0 0
        %6858 = vmatpush.bf16.msra.mxu0 0
        %6859 = vmatpush.bf16.msra.mxu0 0
        %6860 = vmatpush.bf16.msra.mxu0 0
        %6861 = vmatpush.bf16.msra.mxu0 0
        %6862 = vmatpush.bf16.msra.mxu0 %v6812
        %6863 = vmatmul.bf16.gmra.mxu0 %v6832
        %v6864 = vpop.f32.mrf.mxu0
        %v6865 = vadd.f32 %v6847, %v6864
        %v6866 = vpop.f32.mrf.mxu0
        %v6867 = vadd.f32 %v6849, %v6866
        %6868 = vmatmul.bf16.gmra.mxu0 %v6835
        %v6869 = vpop.f32.mrf.mxu0
        %v6870 = vadd.f32 %v6852, %v6869
        %v6871 = vpop.f32.mrf.mxu0
        %6872 = vdwg.mxu0
        %s6873 = scalar_lea.vmem %s8, 72
        %v6874 = vld [vmem:[%s6873] sm:$0xff]
        %v6875 = vld [vmem:[%s6873 + $0x8] sm:$0xff]
        %v6876 = vld [vmem:[%s6873 + $0x10] sm:$0xff]
        %s6877 = scalar_lea.vmem %s9, 72
        %v6878 = vld [vmem:[%s6877] sm:$0xff]
        %v6879 = vld [vmem:[%s6877 + $0x8] sm:$0xff]
        %v6880 = vld [vmem:[%s6877 + $0x10] sm:$0xff]
        %v6881 = vmax.f32 %v6865, 0.0
        %v6882 = vmax.f32 %v6867, 0.0
        %v6883 = vmax.f32 %v6870, 0.0
        %v6884 = vmul.f32 %v6881, %v6881
        %v6885 = vmul.f32 %v6882, %v6882
        %v6886 = vmul.f32 %v6883, %v6883
        %6887 = vmatpush.msra.mxu0 0.0
        %6888 = vmatpush.msra.mxu0 0.0
        %6889 = vmatpush.msra.mxu0 0.0
        %6890 = vmatpush.msra.mxu0 0.0
        %6891 = vmatpush.msra.mxu0 0.0
        %6892 = vmatpush.msra.mxu0 0.0
        %6893 = vmatpush.msra.mxu0 0.0
        %6894 = vmatpush.msra.mxu0 0.0
        %6895 = vmatpush.msra.mxu0 0.0
        %6896 = vmatpush.msra.mxu0 0.0
        %6897 = vmatpush.msra.mxu0 0.0
        %6898 = vmatpush.msra.mxu0 0.0
        %6899 = vmatpush.msra.mxu0 0.0
        %6900 = vmatpush.msra.mxu0 %v6883
        %6901 = vmatpush.msra.mxu0 %v6882
        %6902 = vmatpush.msra.mxu0 %v6881
        %6903 = vmatmul.f32.gmra.mxu0 %v1423
        %v6904 = vpop.f32.mrf.mxu0
        %v6905 = vadd.f32 0.0, %v6904
        %6906 = vmatmul.f32.gmra.mxu0 %v1426
        %v6907 = vpop.f32.mrf.mxu0
        %v6908 = vadd.f32 0.0, %v6907
        %6909 = vmatmul.f32.gmra.mxu0 %v1429
        %v6910 = vpop.f32.mrf.mxu0
        %v6911 = vadd.f32 0.0, %v6910
        %6912 = vdwg.mxu0
        %6913 = vadd.xlane.f32.xlu0 %v6905
        %v6914 = vpop.xlane.xlu0 %6913
        %6915 = vadd.xlane.f32.xlu0 %v6908
        %v6916 = vpop.xlane.xlu0 %6915
        %6917 = vadd.xlane.f32.xlu0 %v6911
        %v6918 = vpop.xlane.xlu0 %6917
        %6919 = vmatpush.msra.mxu0 0.0
        %6920 = vmatpush.msra.mxu0 0.0
        %6921 = vmatpush.msra.mxu0 0.0
        %6922 = vmatpush.msra.mxu0 0.0
        %6923 = vmatpush.msra.mxu0 0.0
        %6924 = vmatpush.msra.mxu0 0.0
        %6925 = vmatpush.msra.mxu0 0.0
        %6926 = vmatpush.msra.mxu0 0.0
        %6927 = vmatpush.msra.mxu0 0.0
        %6928 = vmatpush.msra.mxu0 0.0
        %6929 = vmatpush.msra.mxu0 0.0
        %6930 = vmatpush.msra.mxu0 0.0
        %6931 = vmatpush.msra.mxu0 0.0
        %6932 = vmatpush.msra.mxu0 %v6886
        %6933 = vmatpush.msra.mxu0 %v6885
        %6934 = vmatpush.msra.mxu0 %v6884
        %6935 = vmatmul.f32.gmra.mxu0 %v1423
        %v6936 = vpop.f32.mrf.mxu0
        %v6937 = vadd.f32 0.0, %v6936
        %6938 = vmatmul.f32.gmra.mxu0 %v1426
        %v6939 = vpop.f32.mrf.mxu0
        %v6940 = vadd.f32 0.0, %v6939
        %6941 = vmatmul.f32.gmra.mxu0 %v1429
        %v6942 = vpop.f32.mrf.mxu0
        %v6943 = vadd.f32 0.0, %v6942
        %6944 = vdwg.mxu0
        %6945 = vadd.xlane.f32.xlu0 %v6937
        %v6946 = vpop.xlane.xlu0 %6945
        %6947 = vadd.xlane.f32.xlu0 %v6940
        %v6948 = vpop.xlane.xlu0 %6947
        %6949 = vadd.xlane.f32.xlu0 %v6943
        %v6950 = vpop.xlane.xlu0 %6949
        %v6951 = vmul.f32 %v6914, 0.0026041667
        %v6952 = vmul.f32 %v6916, 0.0026041667
        %v6953 = vmul.f32 %v6918, 0.0026041667
        %v6954 = vmul.f32 %v6946, 0.0026041667
        %v6955 = vmul.f32 %v6948, 0.0026041667
        %v6956 = vmul.f32 %v6950, 0.0026041667
        %v6957 = vmul.f32 %v6951, %v6951
        %v6958 = vmul.f32 %v6952, %v6952
        %v6959 = vmul.f32 %v6953, %v6953
        %v6960 = vsub.f32 %v6954, %v6957
        %v6961 = vsub.f32 %v6955, %v6958
        %v6962 = vsub.f32 %v6956, %v6959
        %v6963 = vadd.f32 %v6960, 1e-05
        %v6964 = vadd.f32 %v6961, 1e-05
        %v6965 = vadd.f32 %v6962, 1e-05
        %v6966 = vrsqrt.pop %v6963
        %v6967 = vmul.f32 %v6966, %v6963
        %v6968 = vmul.f32 %v6967, %v6966
        %v6969 = vmul.f32 0.5, %v6968
        %v6970 = vsub.f32 1.5, %v6969
        %v6971 = vmul.f32 %v6966, %v6970
        %vm6972 = vweird.f32 %v6963
        %vm6973 = vweird.f32 %v6966
        %vm6974 = vmor %vm6972, %vm6973
        %v6975 = vsel %vm6974, %v6966, %v6971
        %v6976 = vrsqrt.pop %v6964
        %v6977 = vmul.f32 %v6976, %v6964
        %v6978 = vmul.f32 %v6977, %v6976
        %v6979 = vmul.f32 0.5, %v6978
        %v6980 = vsub.f32 1.5, %v6979
        %v6981 = vmul.f32 %v6976, %v6980
        %vm6982 = vweird.f32 %v6964
        %vm6983 = vweird.f32 %v6976
        %vm6984 = vmor %vm6982, %vm6983
        %v6985 = vsel %vm6984, %v6976, %v6981
        %v6986 = vrsqrt.pop %v6965
        %v6987 = vmul.f32 %v6986, %v6965
        %v6988 = vmul.f32 %v6987, %v6986
        %v6989 = vmul.f32 0.5, %v6988
        %v6990 = vsub.f32 1.5, %v6989
        %v6991 = vmul.f32 %v6986, %v6990
        %vm6992 = vweird.f32 %v6965
        %vm6993 = vweird.f32 %v6986
        %vm6994 = vmor %vm6992, %vm6993
        %v6995 = vsel %vm6994, %v6986, %v6991
        %v6996 = vmul.f32 %v6975, %v6874
        %v6997 = vmul.f32 %v6985, %v6875
        %v6998 = vmul.f32 %v6995, %v6876
        %v6999 = vsub.f32 %v6881, %v6951
        %v7000 = vsub.f32 %v6882, %v6952
        %v7001 = vsub.f32 %v6883, %v6953
        %7003 = vset.pattern.permute.xlu0 0
        %7004 = vperm.xlu0 %7003, %v6996
        %v7005 = vpop.permute.xlu0 %7004
        %7008 = vset.pattern.permute.xlu0 0
        %7009 = vperm.xlu0 %7008, %v6997
        %v7010 = vpop.permute.xlu0 %7009
        %7013 = vset.pattern.permute.xlu0 0
        %7014 = vperm.xlu0 %7013, %v6998
        %v7015 = vpop.permute.xlu0 %7014
        %v7017 = vmul.f32 %v6999, %v7005
        %v7018 = vmul.f32 %v7000, %v7010
        %v7019 = vmul.f32 %v7001, %v7015
        %7021 = vset.pattern.permute.xlu0 0
        %7022 = vperm.xlu0 %7021, %v6878
        %v7023 = vpop.permute.xlu0 %7022
        %7026 = vset.pattern.permute.xlu0 0
        %7027 = vperm.xlu0 %7026, %v6879
        %v7028 = vpop.permute.xlu0 %7027
        %7031 = vset.pattern.permute.xlu0 0
        %7032 = vperm.xlu0 %7031, %v6880
        %v7033 = vpop.permute.xlu0 %7032
        %v7035 = vadd.f32 %v7017, %v7023
        %v7036 = vadd.f32 %v7018, %v7028
        %v7037 = vadd.f32 %v7019, %v7033
        %v7038 = vperm.slane %v750, 1
        %v7039 = vmul.f32 %v7035, %v7038
        %v7040 = vmul.f32 %v7036, %v7038
        %v7041 = vmul.f32 %v7037, %v7038
        %7042 = vrot.lane.b32.xlu0 %v7039, 9
        %v7043 = vpop.permute.xlu0 %7042
        %7044 = vrot.lane.b32.xlu0 %v7040, 9
        %v7045 = vpop.permute.xlu0 %7044
        %7046 = vrot.lane.b32.xlu0 %v7041, 9
        %v7047 = vpop.permute.xlu0 %7046
        %v7048 = vmul.f32 %v7043, %v6752
        %v7049 = vmul.f32 %v7045, %v6752
        %v7050 = vmul.f32 %v7047, %v6752
        %7051 = vrot.lane.b32.xlu0 %v7039, 8
        %v7052 = vpop.permute.xlu0 %7051
        %7053 = vrot.lane.b32.xlu0 %v7040, 8
        %v7054 = vpop.permute.xlu0 %7053
        %7055 = vrot.lane.b32.xlu0 %v7041, 8
        %v7056 = vpop.permute.xlu0 %7055
        %v7057 = vmul.f32 %v7052, %v6759
        %v7058 = vmul.f32 %v7054, %v6759
        %v7059 = vmul.f32 %v7056, %v6759
        %7060 = vrot.lane.b32.xlu0 %v7039, 7
        %v7061 = vpop.permute.xlu0 %7060
        %7062 = vrot.lane.b32.xlu0 %v7040, 7
        %v7063 = vpop.permute.xlu0 %7062
        %7064 = vrot.lane.b32.xlu0 %v7041, 7
        %v7065 = vpop.permute.xlu0 %7064
        %v7066 = vmul.f32 %v7061, %v6766
        %v7067 = vmul.f32 %v7063, %v6766
        %v7068 = vmul.f32 %v7065, %v6766
        %7069 = vrot.lane.b32.xlu0 %v7039, 1
        %v7070 = vpop.permute.xlu0 %7069
        %7071 = vrot.lane.b32.xlu0 %v7040, 1
        %v7072 = vpop.permute.xlu0 %7071
        %7073 = vrot.lane.b32.xlu0 %v7041, 1
        %v7074 = vpop.permute.xlu0 %7073
        %v7075 = vmul.f32 %v7070, %v6773
        %v7076 = vmul.f32 %v7072, %v6773
        %v7077 = vmul.f32 %v7074, %v6773
        %7078 = vrot.lane.b32.xlu0 %v7039, 127
        %v7079 = vpop.permute.xlu0 %7078
        %7080 = vrot.lane.b32.xlu0 %v7040, 127
        %v7081 = vpop.permute.xlu0 %7080
        %7082 = vrot.lane.b32.xlu0 %v7041, 127
        %v7083 = vpop.permute.xlu0 %7082
        %v7084 = vmul.f32 %v7079, %v6780
        %v7085 = vmul.f32 %v7081, %v6780
        %v7086 = vmul.f32 %v7083, %v6780
        %7087 = vrot.lane.b32.xlu0 %v7039, 121
        %v7088 = vpop.permute.xlu0 %7087
        %7089 = vrot.lane.b32.xlu0 %v7040, 121
        %v7090 = vpop.permute.xlu0 %7089
        %7091 = vrot.lane.b32.xlu0 %v7041, 121
        %v7092 = vpop.permute.xlu0 %7091
        %v7093 = vmul.f32 %v7088, %v6787
        %v7094 = vmul.f32 %v7090, %v6787
        %v7095 = vmul.f32 %v7092, %v6787
        %7096 = vrot.lane.b32.xlu0 %v7039, 120
        %v7097 = vpop.permute.xlu0 %7096
        %7098 = vrot.lane.b32.xlu0 %v7040, 120
        %v7099 = vpop.permute.xlu0 %7098
        %7100 = vrot.lane.b32.xlu0 %v7041, 120
        %v7101 = vpop.permute.xlu0 %7100
        %v7102 = vmul.f32 %v7097, %v6794
        %v7103 = vmul.f32 %v7099, %v6794
        %v7104 = vmul.f32 %v7101, %v6794
        %7105 = vrot.lane.b32.xlu0 %v7039, 119
        %v7106 = vpop.permute.xlu0 %7105
        %7107 = vrot.lane.b32.xlu0 %v7040, 119
        %v7108 = vpop.permute.xlu0 %7107
        %7109 = vrot.lane.b32.xlu0 %v7041, 119
        %v7110 = vpop.permute.xlu0 %7109
        %v7111 = vmul.f32 %v7106, %v6801
        %v7112 = vmul.f32 %v7108, %v6801
        %v7113 = vmul.f32 %v7110, %v6801
        %v7114 = vpack.c.bf16 %v7049, %v7048
        %v7115 = vpack.c.bf16 %v7057, %v7050
        %v7116 = vpack.c.bf16 %v7059, %v7058
        %v7117 = vpack.c.bf16 %v7067, %v7066
        %v7118 = vpack.c.bf16 %v7075, %v7068
        %v7119 = vpack.c.bf16 %v7077, %v7076
        %v7120 = vpack.c.bf16 %v7040, %v7039
        %v7121 = vpack.c.bf16 %v7084, %v7041
        %v7122 = vpack.c.bf16 %v7086, %v7085
        %v7123 = vpack.c.bf16 %v7094, %v7093
        %v7124 = vpack.c.bf16 %v7102, %v7095
        %v7125 = vpack.c.bf16 %v7104, %v7103
        %v7126 = vpack.c.bf16 %v7112, %v7111
        %v7127 = vpack.c.bf16 %v7113, %v7113
        %v7128 = vld [vmem:[%s20] sm:$0xff]
        %v7129 = vld [vmem:[%s20 + $0x8] sm:$0xff]
        %v7130 = vld [vmem:[%s20 + $0x10] sm:$0xff]
        %v7134 = vunpack.c.l.b16 %v7128
        %v7135 = vunpack.c.h.b16 %v7128
        %v7136 = vunpack.c.l.b16 %v7129
        %v7137 = vunpack.c.h.b16 %v7129
        %v7138 = vunpack.c.l.b16 %v7130
        %v7139 = vunpack.c.h.b16 %v7130
        %v7140 = vpack.c.b16 %v7136, %v7134
        %v7141 = vpack.c.b16 %v7137, %v7135
        %v7142 = vpack.c.b16 %v7138, %v7138
        %v7143 = vpack.c.b16 %v7139, %v7139
        %v7147 = vsel %vm2558, %v7141, 0
        %v7150 = vsel %vm2558, %v7143, 0
        %v7153 = vsel %vm1156, %v7127, 0
        %7155 = vmatpush.bf16.msra.mxu0 %v7121
        %7156 = vmatpush.bf16.msra.mxu0 %v7120
        %7157 = vmatpush.bf16.msra.mxu0 %v7119
        %7158 = vmatpush.bf16.msra.mxu0 %v7118
        %7159 = vmatpush.bf16.msra.mxu0 %v7117
        %7160 = vmatpush.bf16.msra.mxu0 %v7116
        %7161 = vmatpush.bf16.msra.mxu0 %v7115
        %7162 = vmatpush.bf16.msra.mxu0 %v7114
        %7163 = vmatmul.bf16.gmra.mxu0 %v7140
        %v7164 = vpop.f32.mrf.mxu0
        %v7165 = vadd.f32 0.0, %v7164
        %v7166 = vpop.f32.mrf.mxu0
        %v7167 = vadd.f32 0.0, %v7166
        %7168 = vmatmul.bf16.gmra.mxu0 %v7142
        %v7169 = vpop.f32.mrf.mxu0
        %v7170 = vadd.f32 0.0, %v7169
        %v7171 = vpop.f32.mrf.mxu0
        %7172 = vdwg.mxu0
        %7173 = vmatpush.bf16.msra.mxu0 0
        %7174 = vmatpush.bf16.msra.mxu0 0
        %7175 = vmatpush.bf16.msra.mxu0 %v7153
        %7176 = vmatpush.bf16.msra.mxu0 %v7126
        %7177 = vmatpush.bf16.msra.mxu0 %v7125
        %7178 = vmatpush.bf16.msra.mxu0 %v7124
        %7179 = vmatpush.bf16.msra.mxu0 %v7123
        %7180 = vmatpush.bf16.msra.mxu0 %v7122
        %7181 = vmatmul.bf16.gmra.mxu0 %v7147
        %v7182 = vpop.f32.mrf.mxu0
        %v7183 = vadd.f32 %v7165, %v7182
        %v7184 = vpop.f32.mrf.mxu0
        %v7185 = vadd.f32 %v7167, %v7184
        %7186 = vmatmul.bf16.gmra.mxu0 %v7150
        %v7187 = vpop.f32.mrf.mxu0
        %v7188 = vadd.f32 %v7170, %v7187
        %v7189 = vpop.f32.mrf.mxu0
        %7190 = vdwg.mxu0
        %s7191 = scalar_lea.vmem %s8, 96
        %v7192 = vld [vmem:[%s7191] sm:$0xff]
        %v7193 = vld [vmem:[%s7191 + $0x8] sm:$0xff]
        %v7194 = vld [vmem:[%s7191 + $0x10] sm:$0xff]
        %s7195 = scalar_lea.vmem %s9, 96
        %v7196 = vld [vmem:[%s7195] sm:$0xff]
        %v7197 = vld [vmem:[%s7195 + $0x8] sm:$0xff]
        %v7198 = vld [vmem:[%s7195 + $0x10] sm:$0xff]
        %v7199 = vmax.f32 %v7183, 0.0
        %v7200 = vmax.f32 %v7185, 0.0
        %v7201 = vmax.f32 %v7188, 0.0
        %v7202 = vmul.f32 %v7199, %v7199
        %v7203 = vmul.f32 %v7200, %v7200
        %v7204 = vmul.f32 %v7201, %v7201
        %7205 = vmatpush.msra.mxu0 0.0
        %7206 = vmatpush.msra.mxu0 0.0
        %7207 = vmatpush.msra.mxu0 0.0
        %7208 = vmatpush.msra.mxu0 0.0
        %7209 = vmatpush.msra.mxu0 0.0
        %7210 = vmatpush.msra.mxu0 0.0
        %7211 = vmatpush.msra.mxu0 0.0
        %7212 = vmatpush.msra.mxu0 0.0
        %7213 = vmatpush.msra.mxu0 0.0
        %7214 = vmatpush.msra.mxu0 0.0
        %7215 = vmatpush.msra.mxu0 0.0
        %7216 = vmatpush.msra.mxu0 0.0
        %7217 = vmatpush.msra.mxu0 0.0
        %7218 = vmatpush.msra.mxu0 %v7201
        %7219 = vmatpush.msra.mxu0 %v7200
        %7220 = vmatpush.msra.mxu0 %v7199
        %7221 = vmatmul.f32.gmra.mxu0 %v1423
        %v7222 = vpop.f32.mrf.mxu0
        %v7223 = vadd.f32 0.0, %v7222
        %7224 = vmatmul.f32.gmra.mxu0 %v1426
        %v7225 = vpop.f32.mrf.mxu0
        %v7226 = vadd.f32 0.0, %v7225
        %7227 = vmatmul.f32.gmra.mxu0 %v1429
        %v7228 = vpop.f32.mrf.mxu0
        %v7229 = vadd.f32 0.0, %v7228
        %7230 = vdwg.mxu0
        %7231 = vadd.xlane.f32.xlu0 %v7223
        %v7232 = vpop.xlane.xlu0 %7231
        %7233 = vadd.xlane.f32.xlu0 %v7226
        %v7234 = vpop.xlane.xlu0 %7233
        %7235 = vadd.xlane.f32.xlu0 %v7229
        %v7236 = vpop.xlane.xlu0 %7235
        %7237 = vmatpush.msra.mxu0 0.0
        %7238 = vmatpush.msra.mxu0 0.0
        %7239 = vmatpush.msra.mxu0 0.0
        %7240 = vmatpush.msra.mxu0 0.0
        %7241 = vmatpush.msra.mxu0 0.0
        %7242 = vmatpush.msra.mxu0 0.0
        %7243 = vmatpush.msra.mxu0 0.0
        %7244 = vmatpush.msra.mxu0 0.0
        %7245 = vmatpush.msra.mxu0 0.0
        %7246 = vmatpush.msra.mxu0 0.0
        %7247 = vmatpush.msra.mxu0 0.0
        %7248 = vmatpush.msra.mxu0 0.0
        %7249 = vmatpush.msra.mxu0 0.0
        %7250 = vmatpush.msra.mxu0 %v7204
        %7251 = vmatpush.msra.mxu0 %v7203
        %7252 = vmatpush.msra.mxu0 %v7202
        %7253 = vmatmul.f32.gmra.mxu0 %v1423
        %v7254 = vpop.f32.mrf.mxu0
        %v7255 = vadd.f32 0.0, %v7254
        %7256 = vmatmul.f32.gmra.mxu0 %v1426
        %v7257 = vpop.f32.mrf.mxu0
        %v7258 = vadd.f32 0.0, %v7257
        %7259 = vmatmul.f32.gmra.mxu0 %v1429
        %v7260 = vpop.f32.mrf.mxu0
        %v7261 = vadd.f32 0.0, %v7260
        %7262 = vdwg.mxu0
        %7263 = vadd.xlane.f32.xlu0 %v7255
        %v7264 = vpop.xlane.xlu0 %7263
        %7265 = vadd.xlane.f32.xlu0 %v7258
        %v7266 = vpop.xlane.xlu0 %7265
        %7267 = vadd.xlane.f32.xlu0 %v7261
        %v7268 = vpop.xlane.xlu0 %7267
        %v7269 = vmul.f32 %v7232, 0.0026041667
        %v7270 = vmul.f32 %v7234, 0.0026041667
        %v7271 = vmul.f32 %v7236, 0.0026041667
        %v7272 = vmul.f32 %v7264, 0.0026041667
        %v7273 = vmul.f32 %v7266, 0.0026041667
        %v7274 = vmul.f32 %v7268, 0.0026041667
        %v7275 = vmul.f32 %v7269, %v7269
        %v7276 = vmul.f32 %v7270, %v7270
        %v7277 = vmul.f32 %v7271, %v7271
        %v7278 = vsub.f32 %v7272, %v7275
        %v7279 = vsub.f32 %v7273, %v7276
        %v7280 = vsub.f32 %v7274, %v7277
        %v7281 = vadd.f32 %v7278, 1e-05
        %v7282 = vadd.f32 %v7279, 1e-05
        %v7283 = vadd.f32 %v7280, 1e-05
        %v7284 = vrsqrt.pop %v7281
        %v7285 = vmul.f32 %v7284, %v7281
        %v7286 = vmul.f32 %v7285, %v7284
        %v7287 = vmul.f32 0.5, %v7286
        %v7288 = vsub.f32 1.5, %v7287
        %v7289 = vmul.f32 %v7284, %v7288
        %vm7290 = vweird.f32 %v7281
        %vm7291 = vweird.f32 %v7284
        %vm7292 = vmor %vm7290, %vm7291
        %v7293 = vsel %vm7292, %v7284, %v7289
        %v7294 = vrsqrt.pop %v7282
        %v7295 = vmul.f32 %v7294, %v7282
        %v7296 = vmul.f32 %v7295, %v7294
        %v7297 = vmul.f32 0.5, %v7296
        %v7298 = vsub.f32 1.5, %v7297
        %v7299 = vmul.f32 %v7294, %v7298
        %vm7300 = vweird.f32 %v7282
        %vm7301 = vweird.f32 %v7294
        %vm7302 = vmor %vm7300, %vm7301
        %v7303 = vsel %vm7302, %v7294, %v7299
        %v7304 = vrsqrt.pop %v7283
        %v7305 = vmul.f32 %v7304, %v7283
        %v7306 = vmul.f32 %v7305, %v7304
        %v7307 = vmul.f32 0.5, %v7306
        %v7308 = vsub.f32 1.5, %v7307
        %v7309 = vmul.f32 %v7304, %v7308
        %vm7310 = vweird.f32 %v7283
        %vm7311 = vweird.f32 %v7304
        %vm7312 = vmor %vm7310, %vm7311
        %v7313 = vsel %vm7312, %v7304, %v7309
        %v7314 = vmul.f32 %v7293, %v7192
        %v7315 = vmul.f32 %v7303, %v7193
        %v7316 = vmul.f32 %v7313, %v7194
        %v7317 = vsub.f32 %v7199, %v7269
        %v7318 = vsub.f32 %v7200, %v7270
        %v7319 = vsub.f32 %v7201, %v7271
        %7321 = vset.pattern.permute.xlu0 0
        %7322 = vperm.xlu0 %7321, %v7314
        %v7323 = vpop.permute.xlu0 %7322
        %7326 = vset.pattern.permute.xlu0 0
        %7327 = vperm.xlu0 %7326, %v7315
        %v7328 = vpop.permute.xlu0 %7327
        %7331 = vset.pattern.permute.xlu0 0
        %7332 = vperm.xlu0 %7331, %v7316
        %v7333 = vpop.permute.xlu0 %7332
        %v7335 = vmul.f32 %v7317, %v7323
        %v7336 = vmul.f32 %v7318, %v7328
        %v7337 = vmul.f32 %v7319, %v7333
        %7339 = vset.pattern.permute.xlu0 0
        %7340 = vperm.xlu0 %7339, %v7196
        %v7341 = vpop.permute.xlu0 %7340
        %7344 = vset.pattern.permute.xlu0 0
        %7345 = vperm.xlu0 %7344, %v7197
        %v7346 = vpop.permute.xlu0 %7345
        %7349 = vset.pattern.permute.xlu0 0
        %7350 = vperm.xlu0 %7349, %v7198
        %v7351 = vpop.permute.xlu0 %7350
        %v7353 = vadd.f32 %v7335, %v7341
        %v7354 = vadd.f32 %v7336, %v7346
        %v7355 = vadd.f32 %v7337, %v7351
        %v7356 = vmul.f32 %v7353, %v7038
        %v7357 = vmul.f32 %v7354, %v7038
        %v7358 = vmul.f32 %v7355, %v7038
        %7359 = vrot.lane.b32.xlu0 %v7356, 9
        %v7360 = vpop.permute.xlu0 %7359
        %7361 = vrot.lane.b32.xlu0 %v7357, 9
        %v7362 = vpop.permute.xlu0 %7361
        %7363 = vrot.lane.b32.xlu0 %v7358, 9
        %v7364 = vpop.permute.xlu0 %7363
        %v7365 = vmul.f32 %v7360, %v6752
        %v7366 = vmul.f32 %v7362, %v6752
        %v7367 = vmul.f32 %v7364, %v6752
        %7368 = vrot.lane.b32.xlu0 %v7356, 8
        %v7369 = vpop.permute.xlu0 %7368
        %7370 = vrot.lane.b32.xlu0 %v7357, 8
        %v7371 = vpop.permute.xlu0 %7370
        %7372 = vrot.lane.b32.xlu0 %v7358, 8
        %v7373 = vpop.permute.xlu0 %7372
        %v7374 = vmul.f32 %v7369, %v6759
        %v7375 = vmul.f32 %v7371, %v6759
        %v7376 = vmul.f32 %v7373, %v6759
        %7377 = vrot.lane.b32.xlu0 %v7356, 7
        %v7378 = vpop.permute.xlu0 %7377
        %7379 = vrot.lane.b32.xlu0 %v7357, 7
        %v7380 = vpop.permute.xlu0 %7379
        %7381 = vrot.lane.b32.xlu0 %v7358, 7
        %v7382 = vpop.permute.xlu0 %7381
        %v7383 = vmul.f32 %v7378, %v6766
        %v7384 = vmul.f32 %v7380, %v6766
        %v7385 = vmul.f32 %v7382, %v6766
        %7386 = vrot.lane.b32.xlu0 %v7356, 1
        %v7387 = vpop.permute.xlu0 %7386
        %7388 = vrot.lane.b32.xlu0 %v7357, 1
        %v7389 = vpop.permute.xlu0 %7388
        %7390 = vrot.lane.b32.xlu0 %v7358, 1
        %v7391 = vpop.permute.xlu0 %7390
        %v7392 = vmul.f32 %v7387, %v6773
        %v7393 = vmul.f32 %v7389, %v6773
        %v7394 = vmul.f32 %v7391, %v6773
        %7395 = vrot.lane.b32.xlu0 %v7356, 127
        %v7396 = vpop.permute.xlu0 %7395
        %7397 = vrot.lane.b32.xlu0 %v7357, 127
        %v7398 = vpop.permute.xlu0 %7397
        %7399 = vrot.lane.b32.xlu0 %v7358, 127
        %v7400 = vpop.permute.xlu0 %7399
        %v7401 = vmul.f32 %v7396, %v6780
        %v7402 = vmul.f32 %v7398, %v6780
        %v7403 = vmul.f32 %v7400, %v6780
        %7404 = vrot.lane.b32.xlu0 %v7356, 121
        %v7405 = vpop.permute.xlu0 %7404
        %7406 = vrot.lane.b32.xlu0 %v7357, 121
        %v7407 = vpop.permute.xlu0 %7406
        %7408 = vrot.lane.b32.xlu0 %v7358, 121
        %v7409 = vpop.permute.xlu0 %7408
        %v7410 = vmul.f32 %v7405, %v6787
        %v7411 = vmul.f32 %v7407, %v6787
        %v7412 = vmul.f32 %v7409, %v6787
        %7413 = vrot.lane.b32.xlu0 %v7356, 120
        %v7414 = vpop.permute.xlu0 %7413
        %7415 = vrot.lane.b32.xlu0 %v7357, 120
        %v7416 = vpop.permute.xlu0 %7415
        %7417 = vrot.lane.b32.xlu0 %v7358, 120
        %v7418 = vpop.permute.xlu0 %7417
        %v7419 = vmul.f32 %v7414, %v6794
        %v7420 = vmul.f32 %v7416, %v6794
        %v7421 = vmul.f32 %v7418, %v6794
        %7422 = vrot.lane.b32.xlu0 %v7356, 119
        %v7423 = vpop.permute.xlu0 %7422
        %7424 = vrot.lane.b32.xlu0 %v7357, 119
        %v7425 = vpop.permute.xlu0 %7424
        %7426 = vrot.lane.b32.xlu0 %v7358, 119
        %v7427 = vpop.permute.xlu0 %7426
        %v7428 = vmul.f32 %v7423, %v6801
        %v7429 = vmul.f32 %v7425, %v6801
        %v7430 = vmul.f32 %v7427, %v6801
        %v7431 = vpack.c.bf16 %v7366, %v7365
        %v7432 = vpack.c.bf16 %v7374, %v7367
        %v7433 = vpack.c.bf16 %v7376, %v7375
        %v7434 = vpack.c.bf16 %v7384, %v7383
        %v7435 = vpack.c.bf16 %v7392, %v7385
        %v7436 = vpack.c.bf16 %v7394, %v7393
        %v7437 = vpack.c.bf16 %v7357, %v7356
        %v7438 = vpack.c.bf16 %v7401, %v7358
        %v7439 = vpack.c.bf16 %v7403, %v7402
        %v7440 = vpack.c.bf16 %v7411, %v7410
        %v7441 = vpack.c.bf16 %v7419, %v7412
        %v7442 = vpack.c.bf16 %v7421, %v7420
        %v7443 = vpack.c.bf16 %v7429, %v7428
        %v7444 = vpack.c.bf16 %v7430, %v7430
        %v7445 = vld [vmem:[%s21] sm:$0xff]
        %v7446 = vld [vmem:[%s21 + $0x8] sm:$0xff]
        %v7447 = vld [vmem:[%s21 + $0x10] sm:$0xff]
        %v7448 = vld [vmem:[%s21 + $0x18] sm:$0xff]
        %v7449 = vld [vmem:[%s21 + $0x20] sm:$0xff]
        %v7450 = vld [vmem:[%s21 + $0x28] sm:$0xff]
        %v7457 = vunpack.c.l.b16 %v7445
        %v7458 = vunpack.c.h.b16 %v7445
        %v7459 = vunpack.c.l.b16 %v7446
        %v7460 = vunpack.c.h.b16 %v7446
        %v7461 = vunpack.c.l.b16 %v7447
        %v7462 = vunpack.c.h.b16 %v7447
        %v7463 = vunpack.c.l.b16 %v7448
        %v7464 = vunpack.c.h.b16 %v7448
        %v7465 = vunpack.c.l.b16 %v7449
        %v7466 = vunpack.c.h.b16 %v7449
        %v7467 = vunpack.c.l.b16 %v7450
        %v7468 = vunpack.c.h.b16 %v7450
        %v7469 = vpack.c.b16 %v7459, %v7457
        %v7470 = vpack.c.b16 %v7460, %v7458
        %v7471 = vpack.c.b16 %v7463, %v7461
        %v7472 = vpack.c.b16 %v7464, %v7462
        %v7473 = vpack.c.b16 %v7467, %v7465
        %v7474 = vpack.c.b16 %v7468, %v7466
        %v7479 = vsel %vm2558, %v7470, 0
        %v7482 = vsel %vm2558, %v7472, 0
        %v7485 = vsel %vm2558, %v7474, 0
        %v7488 = vsel %vm1156, %v7444, 0
        %7490 = vmatpush.bf16.msra.mxu0 %v7438
        %7491 = vmatpush.bf16.msra.mxu0 %v7437
        %7492 = vmatpush.bf16.msra.mxu0 %v7436
        %7493 = vmatpush.bf16.msra.mxu0 %v7435
        %7494 = vmatpush.bf16.msra.mxu0 %v7434
        %7495 = vmatpush.bf16.msra.mxu0 %v7433
        %7496 = vmatpush.bf16.msra.mxu0 %v7432
        %7497 = vmatpush.bf16.msra.mxu0 %v7431
        %7498 = vmatmul.bf16.gmra.mxu0 %v7469
        %v7499 = vpop.f32.mrf.mxu0
        %v7500 = vadd.f32 0.0, %v7499
        %v7501 = vpop.f32.mrf.mxu0
        %v7502 = vadd.f32 0.0, %v7501
        %7503 = vmatmul.bf16.gmra.mxu0 %v7471
        %v7504 = vpop.f32.mrf.mxu0
        %v7505 = vadd.f32 0.0, %v7504
        %v7506 = vpop.f32.mrf.mxu0
        %v7507 = vadd.f32 0.0, %v7506
        %7508 = vmatmul.bf16.gmra.mxu0 %v7473
        %v7509 = vpop.f32.mrf.mxu0
        %v7510 = vadd.f32 0.0, %v7509
        %v7511 = vpop.f32.mrf.mxu0
        %v7512 = vadd.f32 0.0, %v7511
        %7513 = vdwg.mxu0
        %7514 = vmatpush.bf16.msra.mxu0 0
        %7515 = vmatpush.bf16.msra.mxu0 0
        %7516 = vmatpush.bf16.msra.mxu0 %v7488
        %7517 = vmatpush.bf16.msra.mxu0 %v7443
        %7518 = vmatpush.bf16.msra.mxu0 %v7442
        %7519 = vmatpush.bf16.msra.mxu0 %v7441
        %7520 = vmatpush.bf16.msra.mxu0 %v7440
        %7521 = vmatpush.bf16.msra.mxu0 %v7439
        %7522 = vmatmul.bf16.gmra.mxu0 %v7479
        %v7523 = vpop.f32.mrf.mxu0
        %v7524 = vadd.f32 %v7500, %v7523
        %v7525 = vpop.f32.mrf.mxu0
        %v7526 = vadd.f32 %v7502, %v7525
        %7527 = vmatmul.bf16.gmra.mxu0 %v7482
        %v7528 = vpop.f32.mrf.mxu0
        %v7529 = vadd.f32 %v7505, %v7528
        %v7530 = vpop.f32.mrf.mxu0
        %v7531 = vadd.f32 %v7507, %v7530
        %7532 = vmatmul.bf16.gmra.mxu0 %v7485
        %v7533 = vpop.f32.mrf.mxu0
        %v7534 = vadd.f32 %v7510, %v7533
        %v7535 = vpop.f32.mrf.mxu0
        %v7536 = vadd.f32 %v7512, %v7535
        %7537 = vdwg.mxu0
        %s7538 = scalar_lea.vmem %s10, 96
        %v7539 = vld [vmem:[%s7538] sm:$0xff]
        %v7540 = vld [vmem:[%s7538 + $0x8] sm:$0xff]
        %v7541 = vld [vmem:[%s7538 + $0x10] sm:$0xff]
        %v7542 = vld [vmem:[%s7538 + $0x18] sm:$0xff]
        %v7543 = vld [vmem:[%s7538 + $0x20] sm:$0xff]
        %v7544 = vld [vmem:[%s7538 + $0x28] sm:$0xff]
        %s7545 = scalar_lea.vmem %s11, 96
        %v7546 = vld [vmem:[%s7545] sm:$0xff]
        %v7547 = vld [vmem:[%s7545 + $0x8] sm:$0xff]
        %v7548 = vld [vmem:[%s7545 + $0x10] sm:$0xff]
        %v7549 = vld [vmem:[%s7545 + $0x18] sm:$0xff]
        %v7550 = vld [vmem:[%s7545 + $0x20] sm:$0xff]
        %v7551 = vld [vmem:[%s7545 + $0x28] sm:$0xff]
        %v7552 = vmax.f32 %v7524, 0.0
        %v7553 = vmax.f32 %v7526, 0.0
        %v7554 = vmax.f32 %v7529, 0.0
        %v7555 = vmax.f32 %v7531, 0.0
        %v7556 = vmax.f32 %v7534, 0.0
        %v7557 = vmax.f32 %v7536, 0.0
        %v7558 = vmul.f32 %v7552, %v7552
        %v7559 = vmul.f32 %v7553, %v7553
        %v7560 = vmul.f32 %v7554, %v7554
        %v7561 = vmul.f32 %v7555, %v7555
        %v7562 = vmul.f32 %v7556, %v7556
        %v7563 = vmul.f32 %v7557, %v7557
        %7564 = vmatpush.msra.mxu0 0.0
        %7565 = vmatpush.msra.mxu0 0.0
        %7566 = vmatpush.msra.mxu0 0.0
        %7567 = vmatpush.msra.mxu0 0.0
        %7568 = vmatpush.msra.mxu0 0.0
        %7569 = vmatpush.msra.mxu0 0.0
        %7570 = vmatpush.msra.mxu0 0.0
        %7571 = vmatpush.msra.mxu0 0.0
        %7572 = vmatpush.msra.mxu0 0.0
        %7573 = vmatpush.msra.mxu0 0.0
        %7574 = vmatpush.msra.mxu0 %v7557
        %7575 = vmatpush.msra.mxu0 %v7556
        %7576 = vmatpush.msra.mxu0 %v7555
        %7577 = vmatpush.msra.mxu0 %v7554
        %7578 = vmatpush.msra.mxu0 %v7553
        %7579 = vmatpush.msra.mxu0 %v7552
        %7580 = vmatmul.f32.gmra.mxu0 %v3170
        %v7581 = vpop.f32.mrf.mxu0
        %v7582 = vadd.f32 0.0, %v7581
        %7583 = vmatmul.f32.gmra.mxu0 %v3173
        %v7584 = vpop.f32.mrf.mxu0
        %v7585 = vadd.f32 0.0, %v7584
        %7586 = vmatmul.f32.gmra.mxu0 %v3176
        %v7587 = vpop.f32.mrf.mxu0
        %v7588 = vadd.f32 0.0, %v7587
        %7589 = vmatmul.f32.gmra.mxu0 %v3179
        %v7590 = vpop.f32.mrf.mxu0
        %v7591 = vadd.f32 0.0, %v7590
        %7592 = vmatmul.f32.gmra.mxu0 %v3182
        %v7593 = vpop.f32.mrf.mxu0
        %v7594 = vadd.f32 0.0, %v7593
        %7595 = vmatmul.f32.gmra.mxu0 %v3185
        %v7596 = vpop.f32.mrf.mxu0
        %v7597 = vadd.f32 0.0, %v7596
        %7598 = vdwg.mxu0
        %7599 = vadd.xlane.f32.xlu0 %v7582
        %v7600 = vpop.xlane.xlu0 %7599
        %7601 = vadd.xlane.f32.xlu0 %v7585
        %v7602 = vpop.xlane.xlu0 %7601
        %7603 = vadd.xlane.f32.xlu0 %v7588
        %v7604 = vpop.xlane.xlu0 %7603
        %7605 = vadd.xlane.f32.xlu0 %v7591
        %v7606 = vpop.xlane.xlu0 %7605
        %7607 = vadd.xlane.f32.xlu0 %v7594
        %v7608 = vpop.xlane.xlu0 %7607
        %7609 = vadd.xlane.f32.xlu0 %v7597
        %v7610 = vpop.xlane.xlu0 %7609
        %7611 = vmatpush.msra.mxu0 0.0
        %7612 = vmatpush.msra.mxu0 0.0
        %7613 = vmatpush.msra.mxu0 0.0
        %7614 = vmatpush.msra.mxu0 0.0
        %7615 = vmatpush.msra.mxu0 0.0
        %7616 = vmatpush.msra.mxu0 0.0
        %7617 = vmatpush.msra.mxu0 0.0
        %7618 = vmatpush.msra.mxu0 0.0
        %7619 = vmatpush.msra.mxu0 0.0
        %7620 = vmatpush.msra.mxu0 0.0
        %7621 = vmatpush.msra.mxu0 %v7563
        %7622 = vmatpush.msra.mxu0 %v7562
        %7623 = vmatpush.msra.mxu0 %v7561
        %7624 = vmatpush.msra.mxu0 %v7560
        %7625 = vmatpush.msra.mxu0 %v7559
        %7626 = vmatpush.msra.mxu0 %v7558
        %7627 = vmatmul.f32.gmra.mxu0 %v3170
        %v7628 = vpop.f32.mrf.mxu0
        %v7629 = vadd.f32 0.0, %v7628
        %7630 = vmatmul.f32.gmra.mxu0 %v3173
        %v7631 = vpop.f32.mrf.mxu0
        %v7632 = vadd.f32 0.0, %v7631
        %7633 = vmatmul.f32.gmra.mxu0 %v3176
        %v7634 = vpop.f32.mrf.mxu0
        %v7635 = vadd.f32 0.0, %v7634
        %7636 = vmatmul.f32.gmra.mxu0 %v3179
        %v7637 = vpop.f32.mrf.mxu0
        %v7638 = vadd.f32 0.0, %v7637
        %7639 = vmatmul.f32.gmra.mxu0 %v3182
        %v7640 = vpop.f32.mrf.mxu0
        %v7641 = vadd.f32 0.0, %v7640
        %7642 = vmatmul.f32.gmra.mxu0 %v3185
        %v7643 = vpop.f32.mrf.mxu0
        %v7644 = vadd.f32 0.0, %v7643
        %7645 = vdwg.mxu0
        %7646 = vadd.xlane.f32.xlu0 %v7629
        %v7647 = vpop.xlane.xlu0 %7646
        %7648 = vadd.xlane.f32.xlu0 %v7632
        %v7649 = vpop.xlane.xlu0 %7648
        %7650 = vadd.xlane.f32.xlu0 %v7635
        %v7651 = vpop.xlane.xlu0 %7650
        %7652 = vadd.xlane.f32.xlu0 %v7638
        %v7653 = vpop.xlane.xlu0 %7652
        %7654 = vadd.xlane.f32.xlu0 %v7641
        %v7655 = vpop.xlane.xlu0 %7654
        %7656 = vadd.xlane.f32.xlu0 %v7644
        %v7657 = vpop.xlane.xlu0 %7656
        %v7658 = vmul.f32 %v7600, 0.0026041667
        %v7659 = vmul.f32 %v7602, 0.0026041667
        %v7660 = vmul.f32 %v7604, 0.0026041667
        %v7661 = vmul.f32 %v7606, 0.0026041667
        %v7662 = vmul.f32 %v7608, 0.0026041667
        %v7663 = vmul.f32 %v7610, 0.0026041667
        %v7664 = vmul.f32 %v7647, 0.0026041667
        %v7665 = vmul.f32 %v7649, 0.0026041667
        %v7666 = vmul.f32 %v7651, 0.0026041667
        %v7667 = vmul.f32 %v7653, 0.0026041667
        %v7668 = vmul.f32 %v7655, 0.0026041667
        %v7669 = vmul.f32 %v7657, 0.0026041667
        %v7670 = vmul.f32 %v7658, %v7658
        %v7671 = vmul.f32 %v7659, %v7659
        %v7672 = vmul.f32 %v7660, %v7660
        %v7673 = vmul.f32 %v7661, %v7661
        %v7674 = vmul.f32 %v7662, %v7662
        %v7675 = vmul.f32 %v7663, %v7663
        %v7676 = vsub.f32 %v7664, %v7670
        %v7677 = vsub.f32 %v7665, %v7671
        %v7678 = vsub.f32 %v7666, %v7672
        %v7679 = vsub.f32 %v7667, %v7673
        %v7680 = vsub.f32 %v7668, %v7674
        %v7681 = vsub.f32 %v7669, %v7675
        %v7682 = vadd.f32 %v7676, 1e-05
        %v7683 = vadd.f32 %v7677, 1e-05
        %v7684 = vadd.f32 %v7678, 1e-05
        %v7685 = vadd.f32 %v7679, 1e-05
        %v7686 = vadd.f32 %v7680, 1e-05
        %v7687 = vadd.f32 %v7681, 1e-05
        %v7688 = vrsqrt.pop %v7682
        %v7689 = vmul.f32 %v7688, %v7682
        %v7690 = vmul.f32 %v7689, %v7688
        %v7691 = vmul.f32 0.5, %v7690
        %v7692 = vsub.f32 1.5, %v7691
        %v7693 = vmul.f32 %v7688, %v7692
        %vm7694 = vweird.f32 %v7682
        %vm7695 = vweird.f32 %v7688
        %vm7696 = vmor %vm7694, %vm7695
        %v7697 = vsel %vm7696, %v7688, %v7693
        %v7698 = vrsqrt.pop %v7683
        %v7699 = vmul.f32 %v7698, %v7683
        %v7700 = vmul.f32 %v7699, %v7698
        %v7701 = vmul.f32 0.5, %v7700
        %v7702 = vsub.f32 1.5, %v7701
        %v7703 = vmul.f32 %v7698, %v7702
        %vm7704 = vweird.f32 %v7683
        %vm7705 = vweird.f32 %v7698
        %vm7706 = vmor %vm7704, %vm7705
        %v7707 = vsel %vm7706, %v7698, %v7703
        %v7708 = vrsqrt.pop %v7684
        %v7709 = vmul.f32 %v7708, %v7684
        %v7710 = vmul.f32 %v7709, %v7708
        %v7711 = vmul.f32 0.5, %v7710
        %v7712 = vsub.f32 1.5, %v7711
        %v7713 = vmul.f32 %v7708, %v7712
        %vm7714 = vweird.f32 %v7684
        %vm7715 = vweird.f32 %v7708
        %vm7716 = vmor %vm7714, %vm7715
        %v7717 = vsel %vm7716, %v7708, %v7713
        %v7718 = vrsqrt.pop %v7685
        %v7719 = vmul.f32 %v7718, %v7685
        %v7720 = vmul.f32 %v7719, %v7718
        %v7721 = vmul.f32 0.5, %v7720
        %v7722 = vsub.f32 1.5, %v7721
        %v7723 = vmul.f32 %v7718, %v7722
        %vm7724 = vweird.f32 %v7685
        %vm7725 = vweird.f32 %v7718
        %vm7726 = vmor %vm7724, %vm7725
        %v7727 = vsel %vm7726, %v7718, %v7723
        %v7728 = vrsqrt.pop %v7686
        %v7729 = vmul.f32 %v7728, %v7686
        %v7730 = vmul.f32 %v7729, %v7728
        %v7731 = vmul.f32 0.5, %v7730
        %v7732 = vsub.f32 1.5, %v7731
        %v7733 = vmul.f32 %v7728, %v7732
        %vm7734 = vweird.f32 %v7686
        %vm7735 = vweird.f32 %v7728
        %vm7736 = vmor %vm7734, %vm7735
        %v7737 = vsel %vm7736, %v7728, %v7733
        %v7738 = vrsqrt.pop %v7687
        %v7739 = vmul.f32 %v7738, %v7687
        %v7740 = vmul.f32 %v7739, %v7738
        %v7741 = vmul.f32 0.5, %v7740
        %v7742 = vsub.f32 1.5, %v7741
        %v7743 = vmul.f32 %v7738, %v7742
        %vm7744 = vweird.f32 %v7687
        %vm7745 = vweird.f32 %v7738
        %vm7746 = vmor %vm7744, %vm7745
        %v7747 = vsel %vm7746, %v7738, %v7743
        %v7748 = vmul.f32 %v7697, %v7539
        %v7749 = vmul.f32 %v7707, %v7540
        %v7750 = vmul.f32 %v7717, %v7541
        %v7751 = vmul.f32 %v7727, %v7542
        %v7752 = vmul.f32 %v7737, %v7543
        %v7753 = vmul.f32 %v7747, %v7544
        %v7754 = vsub.f32 %v7552, %v7658
        %v7755 = vsub.f32 %v7553, %v7659
        %v7756 = vsub.f32 %v7554, %v7660
        %v7757 = vsub.f32 %v7555, %v7661
        %v7758 = vsub.f32 %v7556, %v7662
        %v7759 = vsub.f32 %v7557, %v7663
        %7761 = vset.pattern.permute.xlu0 0
        %7762 = vperm.xlu0 %7761, %v7748
        %v7763 = vpop.permute.xlu0 %7762
        %7766 = vset.pattern.permute.xlu0 0
        %7767 = vperm.xlu0 %7766, %v7749
        %v7768 = vpop.permute.xlu0 %7767
        %7771 = vset.pattern.permute.xlu0 0
        %7772 = vperm.xlu0 %7771, %v7750
        %v7773 = vpop.permute.xlu0 %7772
        %7776 = vset.pattern.permute.xlu0 0
        %7777 = vperm.xlu0 %7776, %v7751
        %v7778 = vpop.permute.xlu0 %7777
        %7781 = vset.pattern.permute.xlu0 0
        %7782 = vperm.xlu0 %7781, %v7752
        %v7783 = vpop.permute.xlu0 %7782
        %7786 = vset.pattern.permute.xlu0 0
        %7787 = vperm.xlu0 %7786, %v7753
        %v7788 = vpop.permute.xlu0 %7787
        %v7790 = vmul.f32 %v7754, %v7763
        %v7791 = vmul.f32 %v7755, %v7768
        %v7792 = vmul.f32 %v7756, %v7773
        %v7793 = vmul.f32 %v7757, %v7778
        %v7794 = vmul.f32 %v7758, %v7783
        %v7795 = vmul.f32 %v7759, %v7788
        %7797 = vset.pattern.permute.xlu0 0
        %7798 = vperm.xlu0 %7797, %v7546
        %v7799 = vpop.permute.xlu0 %7798
        %7802 = vset.pattern.permute.xlu0 0
        %7803 = vperm.xlu0 %7802, %v7547
        %v7804 = vpop.permute.xlu0 %7803
        %7807 = vset.pattern.permute.xlu0 0
        %7808 = vperm.xlu0 %7807, %v7548
        %v7809 = vpop.permute.xlu0 %7808
        %7812 = vset.pattern.permute.xlu0 0
        %7813 = vperm.xlu0 %7812, %v7549
        %v7814 = vpop.permute.xlu0 %7813
        %7817 = vset.pattern.permute.xlu0 0
        %7818 = vperm.xlu0 %7817, %v7550
        %v7819 = vpop.permute.xlu0 %7818
        %7822 = vset.pattern.permute.xlu0 0
        %7823 = vperm.xlu0 %7822, %v7551
        %v7824 = vpop.permute.xlu0 %7823
        %v7826 = vadd.f32 %v7790, %v7799
        %v7827 = vadd.f32 %v7791, %v7804
        %v7828 = vadd.f32 %v7792, %v7809
        %v7829 = vadd.f32 %v7793, %v7814
        %v7830 = vadd.f32 %v7794, %v7819
        %v7831 = vadd.f32 %v7795, %v7824
        %v7832 = vmul.f32 %v7826, %v7038
        %v7833 = vmul.f32 %v7827, %v7038
        %v7834 = vmul.f32 %v7828, %v7038
        %v7835 = vmul.f32 %v7829, %v7038
        %v7836 = vmul.f32 %v7830, %v7038
        %v7837 = vmul.f32 %v7831, %v7038
        %v7838 = vld [vmem:[%s22] sm:$0xff]
        %v7839 = vld [vmem:[%s22 + $0x8] sm:$0x3]
        %v7841 = vsel %vm3168, %v7838, 0
        %v7844 = vsel %vm3168, %v7839, 0
        %7846 = vmatpush.msra.mxu0 0.0
        %7847 = vmatpush.msra.mxu0 0.0
        %7848 = vmatpush.msra.mxu0 0.0
        %7849 = vmatpush.msra.mxu0 0.0
        %7850 = vmatpush.msra.mxu0 0.0
        %7851 = vmatpush.msra.mxu0 0.0
        %7852 = vmatpush.msra.mxu0 0.0
        %7853 = vmatpush.msra.mxu0 0.0
        %7854 = vmatpush.msra.mxu0 0.0
        %7855 = vmatpush.msra.mxu0 0.0
        %7856 = vmatpush.msra.mxu0 %v7837
        %7857 = vmatpush.msra.mxu0 %v7836
        %7858 = vmatpush.msra.mxu0 %v7835
        %7859 = vmatpush.msra.mxu0 %v7834
        %7860 = vmatpush.msra.mxu0 %v7833
        %7861 = vmatpush.msra.mxu0 %v7832
        %7862 = vmatmul.f32.gmra.mxu0 %v7841
        %v7863 = vpop.f32.mrf.mxu0
        %v7864 = vadd.f32 0.0, %v7863
        %7865 = vmatmul.f32.gmra.mxu0 %v7844
        %v7866 = vpop.f32.mrf.mxu0
        %v7867 = vadd.f32 0.0, %v7866
        %7868 = vdwg.mxu0
        %7869 = vadd.xlane.f32.xlu0 %v7864
        %v7870 = vpop.xlane.xlu0 %7869
        %vm7871 = vcmask 1041408
        %v7872 = vsel %vm7871, %v7867, 0.0
        %7873 = vadd.xlane.f32.xlu0 %v7872
        %v7874 = vpop.xlane.xlu0 %7873
        %v7875 = vmul.f32 %v7870, 0.015625
        %v7876 = vmul.f32 %v7874, 0.015625
        %v7877 = vsel %vm7871, %v7876, -inf
        %v7878 = vmax.f32 %v7875, %v7877
        %v7879 = vrot.slane %v7878, 4
        %v7880 = vmax.f32 %v7878, %v7879
        %v7881 = vrot.slane %v7880, 2
        %v7882 = vmax.f32 %v7880, %v7881
        %v7883 = vrot.slane %v7882, 1
        %v7884 = vmax.f32 %v7882, %v7883
        %v7885 = vsub.f32 %v7875, %v7884
        %v7886 = vsub.f32 %v7876, %v7884
        %v7887 = vmul.f32 %v7885, 1.442695
        %v7888 = vpow.pop %v7887
        %v7889 = vmul.f32 %v7886, 1.442695
        %v7890 = vpow.pop %v7889
        %v7891 = vsel %vm7871, %v7890, 0.0
        %v7892 = vadd.f32 %v7888, %v7891
        %v7893 = vrot.slane %v7892, 4
        %v7894 = vadd.f32 %v7892, %v7893
        %v7895 = vrot.slane %v7894, 2
        %v7896 = vadd.f32 %v7894, %v7895
        %v7897 = vrot.slane %v7896, 1
        %v7898 = vadd.f32 %v7896, %v7897
        %v7899 = vlog2.pop %v7898
        %v7900 = vmul.f32 %v7899, 0.6931472
        %v7901 = vsub.f32 %v7885, %v7900
        %v7902 = vsub.f32 %v7886, %v7900
        %vm7903 = vcmask 7168
        %7904 = vst.msk [vmem:[%s727] sm:$0xff] %vm7903, %v7901
        %vm7905 = vcmask 1024
        %7906 = vst.msk [vmem:[%s727 + $0x8] sm:$0x3] %vm7905, %v7902
        %p7907 = scmp.lt.s32.totalorder %s35, 1
        %s7908 = scalar_select %p7907, %s35, 1
        %s7909 = smul.addr %s7908, 2
        %s7910 = smul.addr %s7909, 8
        %s7911 = scalar_lea.vmem %s23, %s7910
        // Predicated region
        $region117: #{group_norm_net_forward.1} parent=111 // pred_check
          %p7912 = pneg %p541
        $region118: #{group_norm_net_forward.1} parent=111 // pred_check_branch
          %7914 = sbr.rel (%p7912) target = $region120
        $region119: #{group_norm_net_forward.1} parent=111 // pred_region
          _
        $region120: #{group_norm_net_forward.1} parent=111 // pred_fallthru
          _
      $region112: #{group_norm_net_forward.1} parent=5 // pred_fallthru
        _
      %p7915 = scmp.le.s32.totalorder 2, %s30
      // Predicated region
      $region121: #{group_norm_net_forward.1} parent=5 // pred_check
        %p7916 = pneg %p7915
      $region122: #{group_norm_net_forward.1} parent=5 // pred_check_branch
        %7918 = sbr.rel (%p7916) target = $region124
      $region123: #{group_norm_net_forward.1} parent=5 // pred_region
        %s7919 = ssub.s32 %s30, 2
        // Predicated region
        $region125: #{group_norm_net_forward.1} parent=123 // pred_check
          %p7920 = pneg %p547
        $region126: #{group_norm_net_forward.1} parent=123 // pred_check_branch
          %7922 = sbr.rel (%p7920) target = $region128
        $region127: #{group_norm_net_forward.1} parent=123 // pred_region
          %p7923 = scmp.lt.s32.totalorder %s36, 1
          %s7924 = scalar_select %p7923, %s36, 1
          %s7925 = smul.addr %s7924, 2
          %s7926 = smul.addr %s7925, 8
          %s7927 = scalar_lea.vmem %s23, %s7926
        $region128: #{group_norm_net_forward.1} parent=123 // pred_fallthru
          _
      $region124: #{group_norm_net_forward.1} parent=5 // pred_fallthru
        _
    $region6: #{group_norm_net_forward.1} parent=1 // loop_footer
      %s34 = sadd.s32 1, %s30
    $region7: #{group_norm_net_forward.1} parent=1 // loop_footer_branch
      %29 = sbr.rel target = $region3
    $region8: #{group_norm_net_forward.1} parent=1 // loop_exit
      _
    %7928 = vsyncpa [#allocation3], 1
    %s7929 = scalar_lea.sflag [#allocation3], 1
    %7930 = vsyncpa %s7929, 1

</llo_original>
